<compile_context>
chip_gen: v6e
topology: v6e:2x2x1
jax: 0.10.0
libtpu: 0.0.40
codegen_flags: <defaults>
</compile_context>

<pallas_src>
import jax
import jax.numpy as jnp
from jax.experimental import pallas as pl
from jax.experimental.pallas import tpu as pltpu

FLAT_IN = 48 * 100            # the module fixes the flattened input width at 4800
_LN_EPS = 1e-5                # torch.nn.LayerNorm default eps
_INV_SQRT2 = 0.7071067811865476


def _erf_f32(z):
    # erf() for the exact (erf-based) torch.nn.GELU(); Abramowitz & Stegun 7.1.26
    # rational approximation (max abs err ~1.5e-7, f32 round-off level).
    a1, a2, a3, a4, a5 = (0.254829592, -0.284496736, 1.421413741,
                          -1.453152027, 1.061405429)
    p = 0.3275911
    za = jnp.abs(z)
    t = 1.0 / (1.0 + p * za)
    poly = ((((a5 * t + a4) * t + a3) * t + a2) * t + a1) * t
    y = 1.0 - poly * jnp.exp(-za * za)
    return jnp.where(z >= 0.0, y, -y)


def _make_kernel(quantized):
    """quantized: static tuple[bool] per layer (True -> int8 weight + scale ref)."""

    def kernel(x_ref, *refs):
        o_ref = refs[-1]
        layer_refs = refs[:-1]

        h = x_ref[...]                                    # (M, K0) f32
        idx = 0
        for q in quantized:
            if q:
                g_ref, b_ref, w_ref, s_ref, bias_ref = layer_refs[idx:idx + 5]
                idx += 5
            else:
                g_ref, b_ref, w_ref, bias_ref = layer_refs[idx:idx + 4]
                s_ref = None
                idx += 4

            # Block = GELU -> Dropout(identity at inference) -> LayerNorm -> Linear.
            a = 0.5 * h * (1.0 + _erf_f32(h * _INV_SQRT2))

            # Per-row LayerNorm, one-pass stats (sum + sum of squares).
            inv_n = 1.0 / a.shape[-1]
            s_sum = jnp.sum(a, axis=-1, keepdims=True)
            s_sq = jnp.sum(a * a, axis=-1, keepdims=True)
            mean = s_sum * inv_n
            var = jnp.maximum(s_sq * inv_n - mean * mean, 0.0)
            hn = (a - mean) * jax.lax.rsqrt(var + _LN_EPS) * g_ref[...] + b_ref[...]

            # Linear on the MXU: bf16 inputs, f32 accumulation.
            if s_ref is not None:
                # int8 weight, per-output-column f32 scale -> dequant to bf16.
                w = (w_ref[...].astype(jnp.float32) * s_ref[...]).astype(jnp.bfloat16)
            else:
                w = w_ref[...]
            h = jnp.dot(hn.astype(jnp.bfloat16), w,
                        preferred_element_type=jnp.float32) + bias_ref[...]

        # torch.softmax(x, 1)
        m = jnp.max(h, axis=-1, keepdims=True)
        e = jnp.exp(h - m)
        o_ref[...] = e / jnp.sum(e, axis=-1, keepdims=True)

    return kernel


def init_params(key, n_fc, out_features, quantize_first_layer=True):
    """Shapes mirror the module's __init__.

    LayerNorm: gamma=1, beta=0 (torch default), stored (1, K).
    Linear:    U(-1/sqrt(fan_in), 1/sqrt(fan_in)) (torch default), stored
               transposed w.r.t. PyTorch, i.e. (K_in, N_out) so out = x @ W + b.
    First layer weight optionally int8 per-output-column symmetric quantized
    (kernel dequantizes in-VMEM); other weights bf16.
    """
    dims = [FLAT_IN] + list(n_fc) + [out_features]
    params = []
    for i in range(len(dims) - 1):
        fan_in, fan_out = dims[i], dims[i + 1]
        key, kw, kb = jax.random.split(key, 3)
        bound = 1.0 / float(fan_in) ** 0.5
        w = jax.random.uniform(kw, (fan_in, fan_out), jnp.float32, -bound, bound)
        b = jax.random.uniform(kb, (1, fan_out), jnp.float32, -bound, bound)
        gamma = jnp.ones((1, fan_in), jnp.float32)
        beta = jnp.zeros((1, fan_in), jnp.float32)
        if i == 0 and quantize_first_layer:
            amax = jnp.max(jnp.abs(w), axis=0, keepdims=True)          # (1, N)
            scale = jnp.where(amax > 0, amax / 127.0, 1.0).astype(jnp.float32)
            w_q = jnp.clip(jnp.round(w / scale), -127, 127).astype(jnp.int8)
            params.append((gamma, beta, w_q, scale, b))
        else:
            params.append((gamma, beta, w.astype(jnp.bfloat16), b))
    return params


def _dequant(layer):
    if len(layer) == 5:
        g, bt, wq, sc, b = layer
        w = (wq.astype(jnp.float32) * sc).astype(jnp.bfloat16)
        return g, bt, w, b
    return layer


def reference_forward(x, params):
    """Pure-JAX reference with the same numerics (bf16 matmul inputs, f32 acc)."""
    h = x.reshape(x.shape[0], -1).astype(jnp.float32)
    for layer in params:
        g, bt, w, b = _dequant(layer)
        a = 0.5 * h * (1.0 + jax.scipy.special.erf(h * _INV_SQRT2))
        mean = jnp.mean(a, axis=-1, keepdims=True)
        var = jnp.mean((a - mean) ** 2, axis=-1, keepdims=True)
        hn = (a - mean) * jax.lax.rsqrt(var + _LN_EPS) * g + bt
        h = jnp.dot(hn.astype(jnp.bfloat16), w,
                    preferred_element_type=jnp.float32) + b
    m = jnp.max(h, axis=-1, keepdims=True)
    e = jnp.exp(h - m)
    return e / jnp.sum(e, axis=-1, keepdims=True)


def space_group_nn_forward(x, params, *, batch_tile=128):
    """Fused forward pass.  x: (B, 48, 100) (or (48, 100) / (B, 4800))."""
    if x.ndim == 3:
        x = x.reshape(x.shape[0], -1)
    elif x.ndim == 2 and x.shape[-1] != FLAT_IN:
        x = x.reshape(1, -1)                    # original module: x.view(1, -1)
    x = x.astype(jnp.float32)
    assert x.shape[-1] == FLAT_IN
    B = x.shape[0]

    out_features = params[-1][-1].shape[-1]
    quantized = tuple(len(layer) == 5 for layer in params)
    kernel = _make_kernel(quantized)

    flat_inputs = []
    for layer in params:
        flat_inputs.extend(layer)
    param_bytes = sum(int(t.size) * t.dtype.itemsize for t in flat_inputs)

    # Cost estimate (advisory).
    dims = [FLAT_IN] + [layer[-1].shape[-1] for layer in params]
    mm_flops = 2 * sum(dims[i] * dims[i + 1] for i in range(len(dims) - 1))
    ew_flops = 25 * sum(dims[:-1])
    cost = pl.CostEstimate(
        flops=int(B * (mm_flops + ew_flops)),
        transcendentals=int(B * (2 * sum(dims[:-1]) + dims[-1])),
        bytes_accessed=int(x.size * 4 + param_bytes + B * out_features * 4))

    # Keep batch_tile a multiple of 8 (sublane granularity).
    batch_tile = max(8, (int(batch_tile) // 8) * 8)

    if B <= batch_tile:
        # Small batch: no grid at all -> whole arrays in VMEM, no double-buffering,
        # no per-step bookkeeping.
        act_bytes = B * FLAT_IN * 4
        vmem_limit = int(min(2 * param_bytes + 8 * act_bytes + (16 << 20), 48 << 20))
        return pl.pallas_call(
            kernel,
            out_shape=jax.ShapeDtypeStruct((B, out_features), jnp.float32),
            compiler_params=pltpu.CompilerParams(vmem_limit_bytes=vmem_limit),
            cost_estimate=cost,
        )(x, *flat_inputs)

    # Large batch: 1-D grid over batch tiles, marked "parallel" so v7x's two
    # TensorCores split the work.  Weight blocks are grid-invariant.
    nb = pl.cdiv(B, batch_tile)
    bp = nb * batch_tile
    if bp != B:
        x = jnp.concatenate(
            [x, jnp.zeros((bp - B, FLAT_IN), jnp.float32)], axis=0)

    in_specs = [pl.BlockSpec((batch_tile, FLAT_IN), lambda i: (i, 0))]
    in_specs += [pl.BlockSpec(t.shape, lambda i: (0, 0)) for t in flat_inputs]
    out_specs = pl.BlockSpec((batch_tile, out_features), lambda i: (i, 0))

    act_bytes = batch_tile * FLAT_IN * 4
    vmem_limit = int(min(2 * param_bytes + 10 * act_bytes + (16 << 20), 48 << 20))

    out = pl.pallas_call(
        kernel,
        out_shape=jax.ShapeDtypeStruct((bp, out_features), jnp.float32),
        grid=(nb,),
        in_specs=in_specs,
        out_specs=out_specs,
        compiler_params=pltpu.CompilerParams(
            dimension_semantics=("parallel",),
            vmem_limit_bytes=vmem_limit),
        cost_estimate=cost,
    )(x, *flat_inputs)
    return out[:B]


if __name__ == "__main__":
    key = jax.random.PRNGKey(0)
    kx, kp = jax.random.split(key)

    # Small deterministic example: batch of 16 samples, each (48, 100) as the
    # module's first layer requires.  Hidden widths / outputs kept small.
    B = 16
    x = jax.random.normal(kx, (B, 48, 100), jnp.float32)
    n_fc = (128, 64)
    out_features = 32
    params = init_params(kp, n_fc, out_features)

    # Path 1: no-grid (whole batch fits one VMEM block).
    fwd = jax.jit(space_group_nn_forward)
    probs = fwd(x, params)
    jax.block_until_ready(probs)
    assert probs.shape == (B, out_features)

    # Path 2: batch-tiled ("parallel") grid path — exercised here with tile=8.
    fwd_tiled = jax.jit(lambda xx, pp: space_group_nn_forward(xx, pp, batch_tile=8))
    probs_tiled = fwd_tiled(x, params)
    jax.block_until_ready(probs_tiled)

    ref = reference_forward(x, params)
    assert jnp.allclose(probs, probs_tiled, atol=1e-4), "tiled path mismatch"
    assert jnp.allclose(probs, ref, atol=5e-3), "reference mismatch"
    assert jnp.allclose(jnp.sum(probs, axis=-1), 1.0, atol=1e-4), "softmax rows"
    print("KERNEL_OK")
</pallas_src>

<mosaic_0001>
module attributes {stable_mosaic.version = 11 : i64} {
  func.func @kernel(%arg0: memref<16x4800xf32, #tpu.memory_space<vmem>>, %arg1: memref<1x4800xf32, #tpu.memory_space<vmem>>, %arg2: memref<1x4800xf32, #tpu.memory_space<vmem>>, %arg3: memref<4800x128xi8, #tpu.memory_space<vmem>>, %arg4: memref<1x128xf32, #tpu.memory_space<vmem>>, %arg5: memref<1x128xf32, #tpu.memory_space<vmem>>, %arg6: memref<1x128xf32, #tpu.memory_space<vmem>>, %arg7: memref<1x128xf32, #tpu.memory_space<vmem>>, %arg8: memref<128x64xbf16, #tpu.memory_space<vmem>>, %arg9: memref<1x64xf32, #tpu.memory_space<vmem>>, %arg10: memref<1x64xf32, #tpu.memory_space<vmem>>, %arg11: memref<1x64xf32, #tpu.memory_space<vmem>>, %arg12: memref<64x32xbf16, #tpu.memory_space<vmem>>, %arg13: memref<1x32xf32, #tpu.memory_space<vmem>>, %arg14: memref<16x32xf32, #tpu.memory_space<vmem>>) attributes {dimension_semantics = [], scalar_prefetch = 0 : i64, scratch_operands = 0 : i64, tpu.core_type = #tpu.core_type<tc>} {
    %c0 = arith.constant 0 : index
    %c0_0 = arith.constant 0 : index
    %0 = vector.load %arg0[%c0, %c0_0] : memref<16x4800xf32, #tpu.memory_space<vmem>>, vector<16x4800xf32>
    %cst = arith.constant 5.000000e-01 : f32
    %1 = vector.broadcast %cst : f32 to vector<16x4800xf32>
    %2 = arith.mulf %1, %0 : vector<16x4800xf32>
    %cst_1 = arith.constant 0.707106769 : f32
    %3 = vector.broadcast %cst_1 : f32 to vector<16x4800xf32>
    %4 = arith.mulf %0, %3 : vector<16x4800xf32>
    %5 = math.absf %4 : vector<16x4800xf32>
    %cst_2 = arith.constant 0.327591091 : f32
    %6 = vector.broadcast %cst_2 : f32 to vector<16x4800xf32>
    %7 = arith.mulf %6, %5 : vector<16x4800xf32>
    %cst_3 = arith.constant 1.000000e+00 : f32
    %8 = vector.broadcast %cst_3 : f32 to vector<16x4800xf32>
    %9 = arith.addf %8, %7 : vector<16x4800xf32>
    %cst_4 = arith.constant 1.000000e+00 : f32
    %10 = vector.broadcast %cst_4 : f32 to vector<16x4800xf32>
    %11 = arith.divf %10, %9 : vector<16x4800xf32>
    %cst_5 = arith.constant 1.06140542 : f32
    %12 = vector.broadcast %cst_5 : f32 to vector<16x4800xf32>
    %13 = arith.mulf %12, %11 : vector<16x4800xf32>
    %cst_6 = arith.constant -1.45315206 : f32
    %14 = vector.broadcast %cst_6 : f32 to vector<16x4800xf32>
    %15 = arith.addf %13, %14 : vector<16x4800xf32>
    %16 = arith.mulf %15, %11 : vector<16x4800xf32>
    %cst_7 = arith.constant 1.42141378 : f32
    %17 = vector.broadcast %cst_7 : f32 to vector<16x4800xf32>
    %18 = arith.addf %16, %17 : vector<16x4800xf32>
    %19 = arith.mulf %18, %11 : vector<16x4800xf32>
    %cst_8 = arith.constant -0.284496725 : f32
    %20 = vector.broadcast %cst_8 : f32 to vector<16x4800xf32>
    %21 = arith.addf %19, %20 : vector<16x4800xf32>
    %22 = arith.mulf %21, %11 : vector<16x4800xf32>
    %cst_9 = arith.constant 0.254829586 : f32
    %23 = vector.broadcast %cst_9 : f32 to vector<16x4800xf32>
    %24 = arith.addf %22, %23 : vector<16x4800xf32>
    %25 = arith.mulf %24, %11 : vector<16x4800xf32>
    %cst_10 = arith.constant 0.000000e+00 : f32
    %26 = vector.broadcast %cst_10 : f32 to vector<16x4800xf32>
    %27 = arith.subf %26, %5 : vector<16x4800xf32>
    %28 = arith.mulf %27, %5 : vector<16x4800xf32>
    %29 = math.exp %28 : vector<16x4800xf32>
    %30 = arith.mulf %25, %29 : vector<16x4800xf32>
    %cst_11 = arith.constant 1.000000e+00 : f32
    %31 = vector.broadcast %cst_11 : f32 to vector<16x4800xf32>
    %32 = arith.subf %31, %30 : vector<16x4800xf32>
    %cst_12 = arith.constant 0.000000e+00 : f32
    %33 = vector.broadcast %cst_12 : f32 to vector<16x4800xf32>
    %34 = arith.cmpf oge, %4, %33 : vector<16x4800xf32>
    %cst_13 = arith.constant 0.000000e+00 : f32
    %35 = vector.broadcast %cst_13 : f32 to vector<16x4800xf32>
    %36 = arith.subf %35, %32 : vector<16x4800xf32>
    %37 = arith.select %34, %32, %36 : vector<16x4800xi1>, vector<16x4800xf32>
    %cst_14 = arith.constant 1.000000e+00 : f32
    %38 = vector.broadcast %cst_14 : f32 to vector<16x4800xf32>
    %39 = arith.addf %38, %37 : vector<16x4800xf32>
    %40 = arith.mulf %2, %39 : vector<16x4800xf32>
    %cst_15 = arith.constant dense<0.000000e+00> : vector<16xf32>
    %41 = vector.multi_reduction <add>, %40, %cst_15 [1] : vector<16x4800xf32> to vector<16xf32>
    %42 = vector.shape_cast %41 : vector<16xf32> to vector<16x1xf32>
    %43 = arith.mulf %40, %40 : vector<16x4800xf32>
    %cst_16 = arith.constant dense<0.000000e+00> : vector<16xf32>
    %44 = vector.multi_reduction <add>, %43, %cst_16 [1] : vector<16x4800xf32> to vector<16xf32>
    %45 = vector.shape_cast %44 : vector<16xf32> to vector<16x1xf32>
    %cst_17 = arith.constant 2.08333338E-4 : f32
    %46 = vector.broadcast %cst_17 : f32 to vector<16x1xf32>
    %47 = arith.mulf %42, %46 : vector<16x1xf32>
    %cst_18 = arith.constant 2.08333338E-4 : f32
    %48 = vector.broadcast %cst_18 : f32 to vector<16x1xf32>
    %49 = arith.mulf %45, %48 : vector<16x1xf32>
    %50 = arith.mulf %47, %47 : vector<16x1xf32>
    %51 = arith.subf %49, %50 : vector<16x1xf32>
    %cst_19 = arith.constant 0.000000e+00 : f32
    %52 = vector.broadcast %cst_19 : f32 to vector<16x1xf32>
    %53 = arith.maximumf %51, %52 : vector<16x1xf32>
    %54 = vector.broadcast %47 : vector<16x1xf32> to vector<16x4800xf32>
    %55 = arith.subf %40, %54 : vector<16x4800xf32>
    %cst_20 = arith.constant 9.99999974E-6 : f32
    %56 = vector.broadcast %cst_20 : f32 to vector<16x1xf32>
    %57 = arith.addf %53, %56 : vector<16x1xf32>
    %58 = math.rsqrt %57 : vector<16x1xf32>
    %59 = vector.broadcast %58 : vector<16x1xf32> to vector<16x4800xf32>
    %60 = arith.mulf %55, %59 : vector<16x4800xf32>
    %c0_21 = arith.constant 0 : index
    %c0_22 = arith.constant 0 : index
    %61 = vector.load %arg1[%c0_21, %c0_22] : memref<1x4800xf32, #tpu.memory_space<vmem>>, vector<1x4800xf32>
    %62 = vector.broadcast %61 : vector<1x4800xf32> to vector<16x4800xf32>
    %63 = arith.mulf %60, %62 : vector<16x4800xf32>
    %c0_23 = arith.constant 0 : index
    %c0_24 = arith.constant 0 : index
    %64 = vector.load %arg2[%c0_23, %c0_24] : memref<1x4800xf32, #tpu.memory_space<vmem>>, vector<1x4800xf32>
    %65 = vector.broadcast %64 : vector<1x4800xf32> to vector<16x4800xf32>
    %66 = arith.addf %63, %65 : vector<16x4800xf32>
    %c0_25 = arith.constant 0 : index
    %c0_26 = arith.constant 0 : index
    %67 = vector.load %arg3[%c0_25, %c0_26] : memref<4800x128xi8, #tpu.memory_space<vmem>>, vector<4800x128xi8>
    %68 = arith.sitofp %67 : vector<4800x128xi8> to vector<4800x128xf32>
    %c0_27 = arith.constant 0 : index
    %c0_28 = arith.constant 0 : index
    %69 = vector.load %arg4[%c0_27, %c0_28] : memref<1x128xf32, #tpu.memory_space<vmem>>, vector<1x128xf32>
    %70 = vector.broadcast %69 : vector<1x128xf32> to vector<4800x128xf32>
    %71 = arith.mulf %68, %70 : vector<4800x128xf32>
    %72 = arith.truncf %71 : vector<4800x128xf32> to vector<4800x128xbf16>
    %73 = arith.truncf %66 : vector<16x4800xf32> to vector<16x4800xbf16>
    %cst_29 = arith.constant dense<0.000000e+00> : vector<16x128xf32>
    %74 = tpu.matmul %73, %72, %cst_29 {dimension_numbers = #tpu.dot_dimension_numbers<[1], [0], [0], [1], [0, 0, 1, 1], [], []>} : vector<16x4800xbf16>, vector<4800x128xbf16>, vector<16x128xf32> -> vector<16x128xf32>
    %c0_30 = arith.constant 0 : index
    %c0_31 = arith.constant 0 : index
    %75 = vector.load %arg5[%c0_30, %c0_31] : memref<1x128xf32, #tpu.memory_space<vmem>>, vector<1x128xf32>
    %76 = vector.broadcast %75 : vector<1x128xf32> to vector<16x128xf32>
    %77 = arith.addf %74, %76 : vector<16x128xf32>
    %cst_32 = arith.constant 5.000000e-01 : f32
    %78 = vector.broadcast %cst_32 : f32 to vector<16x128xf32>
    %79 = arith.mulf %78, %77 : vector<16x128xf32>
    %cst_33 = arith.constant 0.707106769 : f32
    %80 = vector.broadcast %cst_33 : f32 to vector<16x128xf32>
    %81 = arith.mulf %77, %80 : vector<16x128xf32>
    %82 = math.absf %81 : vector<16x128xf32>
    %cst_34 = arith.constant 0.327591091 : f32
    %83 = vector.broadcast %cst_34 : f32 to vector<16x128xf32>
    %84 = arith.mulf %83, %82 : vector<16x128xf32>
    %cst_35 = arith.constant 1.000000e+00 : f32
    %85 = vector.broadcast %cst_35 : f32 to vector<16x128xf32>
    %86 = arith.addf %85, %84 : vector<16x128xf32>
    %cst_36 = arith.constant 1.000000e+00 : f32
    %87 = vector.broadcast %cst_36 : f32 to vector<16x128xf32>
    %88 = arith.divf %87, %86 : vector<16x128xf32>
    %cst_37 = arith.constant 1.06140542 : f32
    %89 = vector.broadcast %cst_37 : f32 to vector<16x128xf32>
    %90 = arith.mulf %89, %88 : vector<16x128xf32>
    %cst_38 = arith.constant -1.45315206 : f32
    %91 = vector.broadcast %cst_38 : f32 to vector<16x128xf32>
    %92 = arith.addf %90, %91 : vector<16x128xf32>
    %93 = arith.mulf %92, %88 : vector<16x128xf32>
    %cst_39 = arith.constant 1.42141378 : f32
    %94 = vector.broadcast %cst_39 : f32 to vector<16x128xf32>
    %95 = arith.addf %93, %94 : vector<16x128xf32>
    %96 = arith.mulf %95, %88 : vector<16x128xf32>
    %cst_40 = arith.constant -0.284496725 : f32
    %97 = vector.broadcast %cst_40 : f32 to vector<16x128xf32>
    %98 = arith.addf %96, %97 : vector<16x128xf32>
    %99 = arith.mulf %98, %88 : vector<16x128xf32>
    %cst_41 = arith.constant 0.254829586 : f32
    %100 = vector.broadcast %cst_41 : f32 to vector<16x128xf32>
    %101 = arith.addf %99, %100 : vector<16x128xf32>
    %102 = arith.mulf %101, %88 : vector<16x128xf32>
    %cst_42 = arith.constant 0.000000e+00 : f32
    %103 = vector.broadcast %cst_42 : f32 to vector<16x128xf32>
    %104 = arith.subf %103, %82 : vector<16x128xf32>
    %105 = arith.mulf %104, %82 : vector<16x128xf32>
    %106 = math.exp %105 : vector<16x128xf32>
    %107 = arith.mulf %102, %106 : vector<16x128xf32>
    %cst_43 = arith.constant 1.000000e+00 : f32
    %108 = vector.broadcast %cst_43 : f32 to vector<16x128xf32>
    %109 = arith.subf %108, %107 : vector<16x128xf32>
    %cst_44 = arith.constant 0.000000e+00 : f32
    %110 = vector.broadcast %cst_44 : f32 to vector<16x128xf32>
    %111 = arith.cmpf oge, %81, %110 : vector<16x128xf32>
    %cst_45 = arith.constant 0.000000e+00 : f32
    %112 = vector.broadcast %cst_45 : f32 to vector<16x128xf32>
    %113 = arith.subf %112, %109 : vector<16x128xf32>
    %114 = arith.select %111, %109, %113 : vector<16x128xi1>, vector<16x128xf32>
    %cst_46 = arith.constant 1.000000e+00 : f32
    %115 = vector.broadcast %cst_46 : f32 to vector<16x128xf32>
    %116 = arith.addf %115, %114 : vector<16x128xf32>
    %117 = arith.mulf %79, %116 : vector<16x128xf32>
    %cst_47 = arith.constant dense<0.000000e+00> : vector<16xf32>
    %118 = vector.multi_reduction <add>, %117, %cst_47 [1] : vector<16x128xf32> to vector<16xf32>
    %119 = vector.shape_cast %118 : vector<16xf32> to vector<16x1xf32>
    %120 = arith.mulf %117, %117 : vector<16x128xf32>
    %cst_48 = arith.constant dense<0.000000e+00> : vector<16xf32>
    %121 = vector.multi_reduction <add>, %120, %cst_48 [1] : vector<16x128xf32> to vector<16xf32>
    %122 = vector.shape_cast %121 : vector<16xf32> to vector<16x1xf32>
    %cst_49 = arith.constant 7.812500e-03 : f32
    %123 = vector.broadcast %cst_49 : f32 to vector<16x1xf32>
    %124 = arith.mulf %119, %123 : vector<16x1xf32>
    %cst_50 = arith.constant 7.812500e-03 : f32
    %125 = vector.broadcast %cst_50 : f32 to vector<16x1xf32>
    %126 = arith.mulf %122, %125 : vector<16x1xf32>
    %127 = arith.mulf %124, %124 : vector<16x1xf32>
    %128 = arith.subf %126, %127 : vector<16x1xf32>
    %cst_51 = arith.constant 0.000000e+00 : f32
    %129 = vector.broadcast %cst_51 : f32 to vector<16x1xf32>
    %130 = arith.maximumf %128, %129 : vector<16x1xf32>
    %131 = vector.broadcast %124 : vector<16x1xf32> to vector<16x128xf32>
    %132 = arith.subf %117, %131 : vector<16x128xf32>
    %cst_52 = arith.constant 9.99999974E-6 : f32
    %133 = vector.broadcast %cst_52 : f32 to vector<16x1xf32>
    %134 = arith.addf %130, %133 : vector<16x1xf32>
    %135 = math.rsqrt %134 : vector<16x1xf32>
    %136 = vector.broadcast %135 : vector<16x1xf32> to vector<16x128xf32>
    %137 = arith.mulf %132, %136 : vector<16x128xf32>
    %c0_53 = arith.constant 0 : index
    %c0_54 = arith.constant 0 : index
    %138 = vector.load %arg6[%c0_53, %c0_54] : memref<1x128xf32, #tpu.memory_space<vmem>>, vector<1x128xf32>
    %139 = vector.broadcast %138 : vector<1x128xf32> to vector<16x128xf32>
    %140 = arith.mulf %137, %139 : vector<16x128xf32>
    %c0_55 = arith.constant 0 : index
    %c0_56 = arith.constant 0 : index
    %141 = vector.load %arg7[%c0_55, %c0_56] : memref<1x128xf32, #tpu.memory_space<vmem>>, vector<1x128xf32>
    %142 = vector.broadcast %141 : vector<1x128xf32> to vector<16x128xf32>
    %143 = arith.addf %140, %142 : vector<16x128xf32>
    %c0_57 = arith.constant 0 : index
    %c0_58 = arith.constant 0 : index
    %144 = vector.load %arg8[%c0_57, %c0_58] : memref<128x64xbf16, #tpu.memory_space<vmem>>, vector<128x64xbf16>
    %145 = arith.truncf %143 : vector<16x128xf32> to vector<16x128xbf16>
    %cst_59 = arith.constant dense<0.000000e+00> : vector<16x64xf32>
    %146 = tpu.matmul %145, %144, %cst_59 {dimension_numbers = #tpu.dot_dimension_numbers<[1], [0], [0], [1], [0, 0, 1, 1], [], []>} : vector<16x128xbf16>, vector<128x64xbf16>, vector<16x64xf32> -> vector<16x64xf32>
    %c0_60 = arith.constant 0 : index
    %c0_61 = arith.constant 0 : index
    %147 = vector.load %arg9[%c0_60, %c0_61] : memref<1x64xf32, #tpu.memory_space<vmem>>, vector<1x64xf32>
    %148 = vector.broadcast %147 : vector<1x64xf32> to vector<16x64xf32>
    %149 = arith.addf %146, %148 : vector<16x64xf32>
    %cst_62 = arith.constant 5.000000e-01 : f32
    %150 = vector.broadcast %cst_62 : f32 to vector<16x64xf32>
    %151 = arith.mulf %150, %149 : vector<16x64xf32>
    %cst_63 = arith.constant 0.707106769 : f32
    %152 = vector.broadcast %cst_63 : f32 to vector<16x64xf32>
    %153 = arith.mulf %149, %152 : vector<16x64xf32>
    %154 = math.absf %153 : vector<16x64xf32>
    %cst_64 = arith.constant 0.327591091 : f32
    %155 = vector.broadcast %cst_64 : f32 to vector<16x64xf32>
    %156 = arith.mulf %155, %154 : vector<16x64xf32>
    %cst_65 = arith.constant 1.000000e+00 : f32
    %157 = vector.broadcast %cst_65 : f32 to vector<16x64xf32>
    %158 = arith.addf %157, %156 : vector<16x64xf32>
    %cst_66 = arith.constant 1.000000e+00 : f32
    %159 = vector.broadcast %cst_66 : f32 to vector<16x64xf32>
    %160 = arith.divf %159, %158 : vector<16x64xf32>
    %cst_67 = arith.constant 1.06140542 : f32
    %161 = vector.broadcast %cst_67 : f32 to vector<16x64xf32>
    %162 = arith.mulf %161, %160 : vector<16x64xf32>
    %cst_68 = arith.constant -1.45315206 : f32
    %163 = vector.broadcast %cst_68 : f32 to vector<16x64xf32>
    %164 = arith.addf %162, %163 : vector<16x64xf32>
    %165 = arith.mulf %164, %160 : vector<16x64xf32>
    %cst_69 = arith.constant 1.42141378 : f32
    %166 = vector.broadcast %cst_69 : f32 to vector<16x64xf32>
    %167 = arith.addf %165, %166 : vector<16x64xf32>
    %168 = arith.mulf %167, %160 : vector<16x64xf32>
    %cst_70 = arith.constant -0.284496725 : f32
    %169 = vector.broadcast %cst_70 : f32 to vector<16x64xf32>
    %170 = arith.addf %168, %169 : vector<16x64xf32>
    %171 = arith.mulf %170, %160 : vector<16x64xf32>
    %cst_71 = arith.constant 0.254829586 : f32
    %172 = vector.broadcast %cst_71 : f32 to vector<16x64xf32>
    %173 = arith.addf %171, %172 : vector<16x64xf32>
    %174 = arith.mulf %173, %160 : vector<16x64xf32>
    %cst_72 = arith.constant 0.000000e+00 : f32
    %175 = vector.broadcast %cst_72 : f32 to vector<16x64xf32>
    %176 = arith.subf %175, %154 : vector<16x64xf32>
    %177 = arith.mulf %176, %154 : vector<16x64xf32>
    %178 = math.exp %177 : vector<16x64xf32>
    %179 = arith.mulf %174, %178 : vector<16x64xf32>
    %cst_73 = arith.constant 1.000000e+00 : f32
    %180 = vector.broadcast %cst_73 : f32 to vector<16x64xf32>
    %181 = arith.subf %180, %179 : vector<16x64xf32>
    %cst_74 = arith.constant 0.000000e+00 : f32
    %182 = vector.broadcast %cst_74 : f32 to vector<16x64xf32>
    %183 = arith.cmpf oge, %153, %182 : vector<16x64xf32>
    %cst_75 = arith.constant 0.000000e+00 : f32
    %184 = vector.broadcast %cst_75 : f32 to vector<16x64xf32>
    %185 = arith.subf %184, %181 : vector<16x64xf32>
    %186 = arith.select %183, %181, %185 : vector<16x64xi1>, vector<16x64xf32>
    %cst_76 = arith.constant 1.000000e+00 : f32
    %187 = vector.broadcast %cst_76 : f32 to vector<16x64xf32>
    %188 = arith.addf %187, %186 : vector<16x64xf32>
    %189 = arith.mulf %151, %188 : vector<16x64xf32>
    %cst_77 = arith.constant dense<0.000000e+00> : vector<16xf32>
    %190 = vector.multi_reduction <add>, %189, %cst_77 [1] : vector<16x64xf32> to vector<16xf32>
    %191 = vector.shape_cast %190 : vector<16xf32> to vector<16x1xf32>
    %192 = arith.mulf %189, %189 : vector<16x64xf32>
    %cst_78 = arith.constant dense<0.000000e+00> : vector<16xf32>
    %193 = vector.multi_reduction <add>, %192, %cst_78 [1] : vector<16x64xf32> to vector<16xf32>
    %194 = vector.shape_cast %193 : vector<16xf32> to vector<16x1xf32>
    %cst_79 = arith.constant 1.562500e-02 : f32
    %195 = vector.broadcast %cst_79 : f32 to vector<16x1xf32>
    %196 = arith.mulf %191, %195 : vector<16x1xf32>
    %cst_80 = arith.constant 1.562500e-02 : f32
    %197 = vector.broadcast %cst_80 : f32 to vector<16x1xf32>
    %198 = arith.mulf %194, %197 : vector<16x1xf32>
    %199 = arith.mulf %196, %196 : vector<16x1xf32>
    %200 = arith.subf %198, %199 : vector<16x1xf32>
    %cst_81 = arith.constant 0.000000e+00 : f32
    %201 = vector.broadcast %cst_81 : f32 to vector<16x1xf32>
    %202 = arith.maximumf %200, %201 : vector<16x1xf32>
    %203 = vector.broadcast %196 : vector<16x1xf32> to vector<16x64xf32>
    %204 = arith.subf %189, %203 : vector<16x64xf32>
    %cst_82 = arith.constant 9.99999974E-6 : f32
    %205 = vector.broadcast %cst_82 : f32 to vector<16x1xf32>
    %206 = arith.addf %202, %205 : vector<16x1xf32>
    %207 = math.rsqrt %206 : vector<16x1xf32>
    %208 = vector.broadcast %207 : vector<16x1xf32> to vector<16x64xf32>
    %209 = arith.mulf %204, %208 : vector<16x64xf32>
    %c0_83 = arith.constant 0 : index
    %c0_84 = arith.constant 0 : index
    %210 = vector.load %arg10[%c0_83, %c0_84] : memref<1x64xf32, #tpu.memory_space<vmem>>, vector<1x64xf32>
    %211 = vector.broadcast %210 : vector<1x64xf32> to vector<16x64xf32>
    %212 = arith.mulf %209, %211 : vector<16x64xf32>
    %c0_85 = arith.constant 0 : index
    %c0_86 = arith.constant 0 : index
    %213 = vector.load %arg11[%c0_85, %c0_86] : memref<1x64xf32, #tpu.memory_space<vmem>>, vector<1x64xf32>
    %214 = vector.broadcast %213 : vector<1x64xf32> to vector<16x64xf32>
    %215 = arith.addf %212, %214 : vector<16x64xf32>
    %c0_87 = arith.constant 0 : index
    %c0_88 = arith.constant 0 : index
    %216 = vector.load %arg12[%c0_87, %c0_88] : memref<64x32xbf16, #tpu.memory_space<vmem>>, vector<64x32xbf16>
    %217 = arith.truncf %215 : vector<16x64xf32> to vector<16x64xbf16>
    %cst_89 = arith.constant dense<0.000000e+00> : vector<16x32xf32>
    %218 = tpu.matmul %217, %216, %cst_89 {dimension_numbers = #tpu.dot_dimension_numbers<[1], [0], [0], [1], [0, 0, 1, 1], [], []>} : vector<16x64xbf16>, vector<64x32xbf16>, vector<16x32xf32> -> vector<16x32xf32>
    %c0_90 = arith.constant 0 : index
    %c0_91 = arith.constant 0 : index
    %219 = vector.load %arg13[%c0_90, %c0_91] : memref<1x32xf32, #tpu.memory_space<vmem>>, vector<1x32xf32>
    %220 = vector.broadcast %219 : vector<1x32xf32> to vector<16x32xf32>
    %221 = arith.addf %218, %220 : vector<16x32xf32>
    %cst_92 = arith.constant dense<0xFF800000> : vector<16xf32>
    %222 = vector.multi_reduction <maximumf>, %221, %cst_92 [1] : vector<16x32xf32> to vector<16xf32>
    %223 = vector.shape_cast %222 : vector<16xf32> to vector<16x1xf32>
    %224 = vector.broadcast %223 : vector<16x1xf32> to vector<16x32xf32>
    %225 = arith.subf %221, %224 : vector<16x32xf32>
    %226 = math.exp %225 : vector<16x32xf32>
    %cst_93 = arith.constant dense<0.000000e+00> : vector<16xf32>
    %227 = vector.multi_reduction <add>, %226, %cst_93 [1] : vector<16x32xf32> to vector<16xf32>
    %228 = vector.shape_cast %227 : vector<16xf32> to vector<16x1xf32>
    %229 = vector.broadcast %228 : vector<16x1xf32> to vector<16x32xf32>
    %230 = arith.divf %226, %229 : vector<16x32xf32>
    %c0_94 = arith.constant 0 : index
    %c0_95 = arith.constant 0 : index
    %231 = vector.load %arg14[%c0_94, %c0_95] : memref<16x32xf32, #tpu.memory_space<vmem>>, vector<16x32xf32>
    tpu.vector_store %arg14[%c0_94, %c0_95], %230 {strides = array<i32>} : memref<16x32xf32, #tpu.memory_space<vmem>>, vector<16x32xf32>,
    return
  }
}

</mosaic_0001>

<llo_original>
// kernel: space_group_nn_forward.1
$region0: #{space_group_nn_forward.1}
  #allocation0 [shape = 'u32[]', space=smem, size = 0x4, offset = 0x4, fixed_abs, tag = 'smem constant byte address 0x4 - core index']
  #allocation1 [shape = 'u32[144,128]{1,0:T(1,128)}', space=vmem, size = 0x12000, scoped, tag = 'internal scratch']
  %s0 = inlined_call_operand.vmem [shape: f32[16,4800], index: 0, kind: input, shape index: {}]
  %s1 = inlined_call_operand.vmem [shape: f32[1,4800], index: 1, kind: input, shape index: {}]
  %s2 = inlined_call_operand.vmem [shape: f32[1,4800], index: 2, kind: input, shape index: {}]
  %s3 = inlined_call_operand.vmem [shape: s8[4800,128], index: 3, kind: input, shape index: {}]
  %s4 = inlined_call_operand.vmem [shape: f32[1,128], index: 4, kind: input, shape index: {}]
  %s5 = inlined_call_operand.vmem [shape: f32[1,128], index: 5, kind: input, shape index: {}]
  %s6 = inlined_call_operand.vmem [shape: f32[1,128], index: 6, kind: input, shape index: {}]
  %s7 = inlined_call_operand.vmem [shape: f32[1,128], index: 7, kind: input, shape index: {}]
  %s8 = inlined_call_operand.vmem [shape: bf16[128,64], index: 8, kind: input, shape index: {}]
  %s9 = inlined_call_operand.vmem [shape: f32[1,64], index: 9, kind: input, shape index: {}]
  %s10 = inlined_call_operand.vmem [shape: f32[1,64], index: 10, kind: input, shape index: {}]
  %s11 = inlined_call_operand.vmem [shape: f32[1,64], index: 11, kind: input, shape index: {}]
  %s12 = inlined_call_operand.vmem [shape: bf16[64,32], index: 12, kind: input, shape index: {}]
  %s13 = inlined_call_operand.vmem [shape: f32[1,32], index: 13, kind: input, shape index: {}]
  %s14 = inlined_call_operand.hbm [shape: f32[16,32], index: 14, kind: output, shape index: {}]
  %s15 = sld [smem:[#allocation0]]
  $region66: #{space_group_nn_forward.1} parent=0
    _
  %s17 = ssub.s32 1, %s15
  %s18 = scalar_select 0, %s17, %s15
  $region1: #{space_group_nn_forward.1} parent=0
    #allocation2 [shape = 'u8[8192]{0}', space=vmem, size = 0x2000, scoped, tag = 'output window, operand 0, single buffered']
    #allocation3 [shape = 's32[1]{0}', space=sflag, size = 0x4, scoped, tag = 'scoped memory for space_group_nn_forward.1']
    %19 = vsyncpa [#allocation3], 0
    // Predicated region
    $region2: #{space_group_nn_forward.1} parent=1 // pred_check
      _
    $region3: #{space_group_nn_forward.1} parent=1 // pred_check_branch
      %21 = sbr.rel (0) target = $region5
    $region4: #{space_group_nn_forward.1} parent=1 // pred_region
      _
    $region5: #{space_group_nn_forward.1} parent=1 // pred_fallthru
      _
    // Predicated region
    $region6: #{space_group_nn_forward.1} parent=1 // pred_check
      _
    $region7: #{space_group_nn_forward.1} parent=1 // pred_check_branch
      %23 = sbr.rel (0) target = $region9
    $region8: #{space_group_nn_forward.1} parent=1 // pred_region
      _
    $region9: #{space_group_nn_forward.1} parent=1 // pred_fallthru
      _
    // Predicated region
    $region10: #{space_group_nn_forward.1} parent=1 // pred_check
      _
    $region11: #{space_group_nn_forward.1} parent=1 // pred_check_branch
      %25 = sbr.rel (0) target = $region13
    $region12: #{space_group_nn_forward.1} parent=1 // pred_region
      _
    $region13: #{space_group_nn_forward.1} parent=1 // pred_fallthru
      _
    // Predicated region
    $region14: #{space_group_nn_forward.1} parent=1 // pred_check
      _
    $region15: #{space_group_nn_forward.1} parent=1 // pred_check_branch
      %27 = sbr.rel (0) target = $region17
    $region16: #{space_group_nn_forward.1} parent=1 // pred_region
      _
    $region17: #{space_group_nn_forward.1} parent=1 // pred_fallthru
      _
    // Predicated region
    $region18: #{space_group_nn_forward.1} parent=1 // pred_check
      _
    $region19: #{space_group_nn_forward.1} parent=1 // pred_check_branch
      %29 = sbr.rel (0) target = $region21
    $region20: #{space_group_nn_forward.1} parent=1 // pred_region
      _
    $region21: #{space_group_nn_forward.1} parent=1 // pred_fallthru
      _
    // Predicated region
    $region22: #{space_group_nn_forward.1} parent=1 // pred_check
      _
    $region23: #{space_group_nn_forward.1} parent=1 // pred_check_branch
      %31 = sbr.rel (0) target = $region25
    $region24: #{space_group_nn_forward.1} parent=1 // pred_region
      _
    $region25: #{space_group_nn_forward.1} parent=1 // pred_fallthru
      _
    // Predicated region
    $region26: #{space_group_nn_forward.1} parent=1 // pred_check
      _
    $region27: #{space_group_nn_forward.1} parent=1 // pred_check_branch
      %33 = sbr.rel (0) target = $region29
    $region28: #{space_group_nn_forward.1} parent=1 // pred_region
      _
    $region29: #{space_group_nn_forward.1} parent=1 // pred_fallthru
      _
    // Predicated region
    $region30: #{space_group_nn_forward.1} parent=1 // pred_check
      _
    $region31: #{space_group_nn_forward.1} parent=1 // pred_check_branch
      %35 = sbr.rel (0) target = $region33
    $region32: #{space_group_nn_forward.1} parent=1 // pred_region
      _
    $region33: #{space_group_nn_forward.1} parent=1 // pred_fallthru
      _
    // Predicated region
    $region34: #{space_group_nn_forward.1} parent=1 // pred_check
      _
    $region35: #{space_group_nn_forward.1} parent=1 // pred_check_branch
      %37 = sbr.rel (0) target = $region37
    $region36: #{space_group_nn_forward.1} parent=1 // pred_region
      _
    $region37: #{space_group_nn_forward.1} parent=1 // pred_fallthru
      _
    // Predicated region
    $region38: #{space_group_nn_forward.1} parent=1 // pred_check
      _
    $region39: #{space_group_nn_forward.1} parent=1 // pred_check_branch
      %39 = sbr.rel (0) target = $region41
    $region40: #{space_group_nn_forward.1} parent=1 // pred_region
      _
    $region41: #{space_group_nn_forward.1} parent=1 // pred_fallthru
      _
    // Predicated region
    $region42: #{space_group_nn_forward.1} parent=1 // pred_check
      _
    $region43: #{space_group_nn_forward.1} parent=1 // pred_check_branch
      %41 = sbr.rel (0) target = $region45
    $region44: #{space_group_nn_forward.1} parent=1 // pred_region
      _
    $region45: #{space_group_nn_forward.1} parent=1 // pred_fallthru
      _
    // Predicated region
    $region46: #{space_group_nn_forward.1} parent=1 // pred_check
      _
    $region47: #{space_group_nn_forward.1} parent=1 // pred_check_branch
      %43 = sbr.rel (0) target = $region49
    $region48: #{space_group_nn_forward.1} parent=1 // pred_region
      _
    $region49: #{space_group_nn_forward.1} parent=1 // pred_fallthru
      _
    // Predicated region
    $region50: #{space_group_nn_forward.1} parent=1 // pred_check
      _
    $region51: #{space_group_nn_forward.1} parent=1 // pred_check_branch
      %45 = sbr.rel (0) target = $region53
    $region52: #{space_group_nn_forward.1} parent=1 // pred_region
      _
    $region53: #{space_group_nn_forward.1} parent=1 // pred_fallthru
      _
    // Predicated region
    $region54: #{space_group_nn_forward.1} parent=1 // pred_check
      _
    $region55: #{space_group_nn_forward.1} parent=1 // pred_check_branch
      %47 = sbr.rel (0) target = $region57
    $region56: #{space_group_nn_forward.1} parent=1 // pred_region
      _
    $region57: #{space_group_nn_forward.1} parent=1 // pred_fallthru
      _
    %v49 = vld [vmem:[%s0] sm:$0xff]
    %v50 = vld [vmem:[%s0 + $0x8] sm:$0xff]
    %v51 = vld [vmem:[%s0 + $0x10] sm:$0xff]
    %v52 = vld [vmem:[%s0 + $0x18] sm:$0xff]
    %v53 = vld [vmem:[%s0 + $0x20] sm:$0xff]
    %v54 = vld [vmem:[%s0 + $0x28] sm:$0xff]
    %v55 = vld [vmem:[%s0 + $0x30] sm:$0xff]
    %v56 = vld [vmem:[%s0 + $0x38] sm:$0xff]
    %v57 = vld [vmem:[%s0 + $0x40] sm:$0xff]
    %v58 = vld [vmem:[%s0 + $0x48] sm:$0xff]
    %v59 = vld [vmem:[%s0 + $0x50] sm:$0xff]
    %v60 = vld [vmem:[%s0 + $0x58] sm:$0xff]
    %v61 = vld [vmem:[%s0 + $0x60] sm:$0xff]
    %v62 = vld [vmem:[%s0 + $0x68] sm:$0xff]
    %v63 = vld [vmem:[%s0 + $0x70] sm:$0xff]
    %v64 = vld [vmem:[%s0 + $0x78] sm:$0xff]
    %v65 = vld [vmem:[%s0 + $0x80] sm:$0xff]
    %v66 = vld [vmem:[%s0 + $0x88] sm:$0xff]
    %v67 = vld [vmem:[%s0 + $0x90] sm:$0xff]
    %v68 = vld [vmem:[%s0 + $0x98] sm:$0xff]
    %v69 = vld [vmem:[%s0 + $0xa0] sm:$0xff]
    %v70 = vld [vmem:[%s0 + $0xa8] sm:$0xff]
    %v71 = vld [vmem:[%s0 + $0xb0] sm:$0xff]
    %v72 = vld [vmem:[%s0 + $0xb8] sm:$0xff]
    %v73 = vld [vmem:[%s0 + $0xc0] sm:$0xff]
    %v74 = vld [vmem:[%s0 + $0xc8] sm:$0xff]
    %v75 = vld [vmem:[%s0 + $0xd0] sm:$0xff]
    %v76 = vld [vmem:[%s0 + $0xd8] sm:$0xff]
    %v77 = vld [vmem:[%s0 + $0xe0] sm:$0xff]
    %v78 = vld [vmem:[%s0 + $0xe8] sm:$0xff]
    %v79 = vld [vmem:[%s0 + $0xf0] sm:$0xff]
    %v80 = vld [vmem:[%s0 + $0xf8] sm:$0xff]
    %v81 = vld [vmem:[%s0 + $0x100] sm:$0xff]
    %v82 = vld [vmem:[%s0 + $0x108] sm:$0xff]
    %v83 = vld [vmem:[%s0 + $0x110] sm:$0xff]
    %v84 = vld [vmem:[%s0 + $0x118] sm:$0xff]
    %v85 = vld [vmem:[%s0 + $0x120] sm:$0xff]
    %v86 = vld [vmem:[%s0 + $0x128] sm:$0xff]
    %v87 = vld [vmem:[%s0 + $0x130] sm:$0xff]
    %v88 = vld [vmem:[%s0 + $0x138] sm:$0xff]
    %v89 = vld [vmem:[%s0 + $0x140] sm:$0xff]
    %v90 = vld [vmem:[%s0 + $0x148] sm:$0xff]
    %v91 = vld [vmem:[%s0 + $0x150] sm:$0xff]
    %v92 = vld [vmem:[%s0 + $0x158] sm:$0xff]
    %v93 = vld [vmem:[%s0 + $0x160] sm:$0xff]
    %v94 = vld [vmem:[%s0 + $0x168] sm:$0xff]
    %v95 = vld [vmem:[%s0 + $0x170] sm:$0xff]
    %v96 = vld [vmem:[%s0 + $0x178] sm:$0xff]
    %v97 = vld [vmem:[%s0 + $0x180] sm:$0xff]
    %v98 = vld [vmem:[%s0 + $0x188] sm:$0xff]
    %v99 = vld [vmem:[%s0 + $0x190] sm:$0xff]
    %v100 = vld [vmem:[%s0 + $0x198] sm:$0xff]
    %v101 = vld [vmem:[%s0 + $0x1a0] sm:$0xff]
    %v102 = vld [vmem:[%s0 + $0x1a8] sm:$0xff]
    %v103 = vld [vmem:[%s0 + $0x1b0] sm:$0xff]
    %v104 = vld [vmem:[%s0 + $0x1b8] sm:$0xff]
    %v105 = vld [vmem:[%s0 + $0x1c0] sm:$0xff]
    %v106 = vld [vmem:[%s0 + $0x1c8] sm:$0xff]
    %v107 = vld [vmem:[%s0 + $0x1d0] sm:$0xff]
    %v108 = vld [vmem:[%s0 + $0x1d8] sm:$0xff]
    %v109 = vld [vmem:[%s0 + $0x1e0] sm:$0xff]
    %v110 = vld [vmem:[%s0 + $0x1e8] sm:$0xff]
    %v111 = vld [vmem:[%s0 + $0x1f0] sm:$0xff]
    %v112 = vld [vmem:[%s0 + $0x1f8] sm:$0xff]
    %v113 = vld [vmem:[%s0 + $0x200] sm:$0xff]
    %v114 = vld [vmem:[%s0 + $0x208] sm:$0xff]
    %v115 = vld [vmem:[%s0 + $0x210] sm:$0xff]
    %v116 = vld [vmem:[%s0 + $0x218] sm:$0xff]
    %v117 = vld [vmem:[%s0 + $0x220] sm:$0xff]
    %v118 = vld [vmem:[%s0 + $0x228] sm:$0xff]
    %v119 = vld [vmem:[%s0 + $0x230] sm:$0xff]
    %v120 = vld [vmem:[%s0 + $0x238] sm:$0xff]
    %v121 = vld [vmem:[%s0 + $0x240] sm:$0xff]
    %v122 = vld [vmem:[%s0 + $0x248] sm:$0xff]
    %v123 = vld [vmem:[%s0 + $0x250] sm:$0xff]
    %v124 = vld [vmem:[%s0 + $0x258] sm:$0xff]
    %v125 = vmul.f32 %v49, 0.5
    %v126 = vmul.f32 %v50, 0.5
    %v127 = vmul.f32 %v51, 0.5
    %v128 = vmul.f32 %v52, 0.5
    %v129 = vmul.f32 %v53, 0.5
    %v130 = vmul.f32 %v54, 0.5
    %v131 = vmul.f32 %v55, 0.5
    %v132 = vmul.f32 %v56, 0.5
    %v133 = vmul.f32 %v57, 0.5
    %v134 = vmul.f32 %v58, 0.5
    %v135 = vmul.f32 %v59, 0.5
    %v136 = vmul.f32 %v60, 0.5
    %v137 = vmul.f32 %v61, 0.5
    %v138 = vmul.f32 %v62, 0.5
    %v139 = vmul.f32 %v63, 0.5
    %v140 = vmul.f32 %v64, 0.5
    %v141 = vmul.f32 %v65, 0.5
    %v142 = vmul.f32 %v66, 0.5
    %v143 = vmul.f32 %v67, 0.5
    %v144 = vmul.f32 %v68, 0.5
    %v145 = vmul.f32 %v69, 0.5
    %v146 = vmul.f32 %v70, 0.5
    %v147 = vmul.f32 %v71, 0.5
    %v148 = vmul.f32 %v72, 0.5
    %v149 = vmul.f32 %v73, 0.5
    %v150 = vmul.f32 %v74, 0.5
    %v151 = vmul.f32 %v75, 0.5
    %v152 = vmul.f32 %v76, 0.5
    %v153 = vmul.f32 %v77, 0.5
    %v154 = vmul.f32 %v78, 0.5
    %v155 = vmul.f32 %v79, 0.5
    %v156 = vmul.f32 %v80, 0.5
    %v157 = vmul.f32 %v81, 0.5
    %v158 = vmul.f32 %v82, 0.5
    %v159 = vmul.f32 %v83, 0.5
    %v160 = vmul.f32 %v84, 0.5
    %v161 = vmul.f32 %v85, 0.5
    %v162 = vmul.f32 %v86, 0.5
    %v163 = vmul.f32 %v87, 0.5
    %v164 = vmul.f32 %v88, 0.5
    %v165 = vmul.f32 %v89, 0.5
    %v166 = vmul.f32 %v90, 0.5
    %v167 = vmul.f32 %v91, 0.5
    %v168 = vmul.f32 %v92, 0.5
    %v169 = vmul.f32 %v93, 0.5
    %v170 = vmul.f32 %v94, 0.5
    %v171 = vmul.f32 %v95, 0.5
    %v172 = vmul.f32 %v96, 0.5
    %v173 = vmul.f32 %v97, 0.5
    %v174 = vmul.f32 %v98, 0.5
    %v175 = vmul.f32 %v99, 0.5
    %v176 = vmul.f32 %v100, 0.5
    %v177 = vmul.f32 %v101, 0.5
    %v178 = vmul.f32 %v102, 0.5
    %v179 = vmul.f32 %v103, 0.5
    %v180 = vmul.f32 %v104, 0.5
    %v181 = vmul.f32 %v105, 0.5
    %v182 = vmul.f32 %v106, 0.5
    %v183 = vmul.f32 %v107, 0.5
    %v184 = vmul.f32 %v108, 0.5
    %v185 = vmul.f32 %v109, 0.5
    %v186 = vmul.f32 %v110, 0.5
    %v187 = vmul.f32 %v111, 0.5
    %v188 = vmul.f32 %v112, 0.5
    %v189 = vmul.f32 %v113, 0.5
    %v190 = vmul.f32 %v114, 0.5
    %v191 = vmul.f32 %v115, 0.5
    %v192 = vmul.f32 %v116, 0.5
    %v193 = vmul.f32 %v117, 0.5
    %v194 = vmul.f32 %v118, 0.5
    %v195 = vmul.f32 %v119, 0.5
    %v196 = vmul.f32 %v120, 0.5
    %v197 = vmul.f32 %v121, 0.5
    %v198 = vmul.f32 %v122, 0.5
    %v199 = vmul.f32 %v123, 0.5
    %v200 = vmul.f32 %v124, 0.5
    %v201 = vmul.f32 %v49, 0.70710677
    %v202 = vmul.f32 %v50, 0.70710677
    %v203 = vmul.f32 %v51, 0.70710677
    %v204 = vmul.f32 %v52, 0.70710677
    %v205 = vmul.f32 %v53, 0.70710677
    %v206 = vmul.f32 %v54, 0.70710677
    %v207 = vmul.f32 %v55, 0.70710677
    %v208 = vmul.f32 %v56, 0.70710677
    %v209 = vmul.f32 %v57, 0.70710677
    %v210 = vmul.f32 %v58, 0.70710677
    %v211 = vmul.f32 %v59, 0.70710677
    %v212 = vmul.f32 %v60, 0.70710677
    %v213 = vmul.f32 %v61, 0.70710677
    %v214 = vmul.f32 %v62, 0.70710677
    %v215 = vmul.f32 %v63, 0.70710677
    %v216 = vmul.f32 %v64, 0.70710677
    %v217 = vmul.f32 %v65, 0.70710677
    %v218 = vmul.f32 %v66, 0.70710677
    %v219 = vmul.f32 %v67, 0.70710677
    %v220 = vmul.f32 %v68, 0.70710677
    %v221 = vmul.f32 %v69, 0.70710677
    %v222 = vmul.f32 %v70, 0.70710677
    %v223 = vmul.f32 %v71, 0.70710677
    %v224 = vmul.f32 %v72, 0.70710677
    %v225 = vmul.f32 %v73, 0.70710677
    %v226 = vmul.f32 %v74, 0.70710677
    %v227 = vmul.f32 %v75, 0.70710677
    %v228 = vmul.f32 %v76, 0.70710677
    %v229 = vmul.f32 %v77, 0.70710677
    %v230 = vmul.f32 %v78, 0.70710677
    %v231 = vmul.f32 %v79, 0.70710677
    %v232 = vmul.f32 %v80, 0.70710677
    %v233 = vmul.f32 %v81, 0.70710677
    %v234 = vmul.f32 %v82, 0.70710677
    %v235 = vmul.f32 %v83, 0.70710677
    %v236 = vmul.f32 %v84, 0.70710677
    %v237 = vmul.f32 %v85, 0.70710677
    %v238 = vmul.f32 %v86, 0.70710677
    %v239 = vmul.f32 %v87, 0.70710677
    %v240 = vmul.f32 %v88, 0.70710677
    %v241 = vmul.f32 %v89, 0.70710677
    %v242 = vmul.f32 %v90, 0.70710677
    %v243 = vmul.f32 %v91, 0.70710677
    %v244 = vmul.f32 %v92, 0.70710677
    %v245 = vmul.f32 %v93, 0.70710677
    %v246 = vmul.f32 %v94, 0.70710677
    %v247 = vmul.f32 %v95, 0.70710677
    %v248 = vmul.f32 %v96, 0.70710677
    %v249 = vmul.f32 %v97, 0.70710677
    %v250 = vmul.f32 %v98, 0.70710677
    %v251 = vmul.f32 %v99, 0.70710677
    %v252 = vmul.f32 %v100, 0.70710677
    %v253 = vmul.f32 %v101, 0.70710677
    %v254 = vmul.f32 %v102, 0.70710677
    %v255 = vmul.f32 %v103, 0.70710677
    %v256 = vmul.f32 %v104, 0.70710677
    %v257 = vmul.f32 %v105, 0.70710677
    %v258 = vmul.f32 %v106, 0.70710677
    %v259 = vmul.f32 %v107, 0.70710677
    %v260 = vmul.f32 %v108, 0.70710677
    %v261 = vmul.f32 %v109, 0.70710677
    %v262 = vmul.f32 %v110, 0.70710677
    %v263 = vmul.f32 %v111, 0.70710677
    %v264 = vmul.f32 %v112, 0.70710677
    %v265 = vmul.f32 %v113, 0.70710677
    %v266 = vmul.f32 %v114, 0.70710677
    %v267 = vmul.f32 %v115, 0.70710677
    %v268 = vmul.f32 %v116, 0.70710677
    %v269 = vmul.f32 %v117, 0.70710677
    %v270 = vmul.f32 %v118, 0.70710677
    %v271 = vmul.f32 %v119, 0.70710677
    %v272 = vmul.f32 %v120, 0.70710677
    %v273 = vmul.f32 %v121, 0.70710677
    %v274 = vmul.f32 %v122, 0.70710677
    %v275 = vmul.f32 %v123, 0.70710677
    %v276 = vmul.f32 %v124, 0.70710677
    %v277 = vand.u32 2147483647, %v201
    %v278 = vand.u32 2147483647, %v202
    %v279 = vand.u32 2147483647, %v203
    %v280 = vand.u32 2147483647, %v204
    %v281 = vand.u32 2147483647, %v205
    %v282 = vand.u32 2147483647, %v206
    %v283 = vand.u32 2147483647, %v207
    %v284 = vand.u32 2147483647, %v208
    %v285 = vand.u32 2147483647, %v209
    %v286 = vand.u32 2147483647, %v210
    %v287 = vand.u32 2147483647, %v211
    %v288 = vand.u32 2147483647, %v212
    %v289 = vand.u32 2147483647, %v213
    %v290 = vand.u32 2147483647, %v214
    %v291 = vand.u32 2147483647, %v215
    %v292 = vand.u32 2147483647, %v216
    %v293 = vand.u32 2147483647, %v217
    %v294 = vand.u32 2147483647, %v218
    %v295 = vand.u32 2147483647, %v219
    %v296 = vand.u32 2147483647, %v220
    %v297 = vand.u32 2147483647, %v221
    %v298 = vand.u32 2147483647, %v222
    %v299 = vand.u32 2147483647, %v223
    %v300 = vand.u32 2147483647, %v224
    %v301 = vand.u32 2147483647, %v225
    %v302 = vand.u32 2147483647, %v226
    %v303 = vand.u32 2147483647, %v227
    %v304 = vand.u32 2147483647, %v228
    %v305 = vand.u32 2147483647, %v229
    %v306 = vand.u32 2147483647, %v230
    %v307 = vand.u32 2147483647, %v231
    %v308 = vand.u32 2147483647, %v232
    %v309 = vand.u32 2147483647, %v233
    %v310 = vand.u32 2147483647, %v234
    %v311 = vand.u32 2147483647, %v235
    %v312 = vand.u32 2147483647, %v236
    %v313 = vand.u32 2147483647, %v237
    %v314 = vand.u32 2147483647, %v238
    %v315 = vand.u32 2147483647, %v239
    %v316 = vand.u32 2147483647, %v240
    %v317 = vand.u32 2147483647, %v241
    %v318 = vand.u32 2147483647, %v242
    %v319 = vand.u32 2147483647, %v243
    %v320 = vand.u32 2147483647, %v244
    %v321 = vand.u32 2147483647, %v245
    %v322 = vand.u32 2147483647, %v246
    %v323 = vand.u32 2147483647, %v247
    %v324 = vand.u32 2147483647, %v248
    %v325 = vand.u32 2147483647, %v249
    %v326 = vand.u32 2147483647, %v250
    %v327 = vand.u32 2147483647, %v251
    %v328 = vand.u32 2147483647, %v252
    %v329 = vand.u32 2147483647, %v253
    %v330 = vand.u32 2147483647, %v254
    %v331 = vand.u32 2147483647, %v255
    %v332 = vand.u32 2147483647, %v256
    %v333 = vand.u32 2147483647, %v257
    %v334 = vand.u32 2147483647, %v258
    %v335 = vand.u32 2147483647, %v259
    %v336 = vand.u32 2147483647, %v260
    %v337 = vand.u32 2147483647, %v261
    %v338 = vand.u32 2147483647, %v262
    %v339 = vand.u32 2147483647, %v263
    %v340 = vand.u32 2147483647, %v264
    %v341 = vand.u32 2147483647, %v265
    %v342 = vand.u32 2147483647, %v266
    %v343 = vand.u32 2147483647, %v267
    %v344 = vand.u32 2147483647, %v268
    %v345 = vand.u32 2147483647, %v269
    %v346 = vand.u32 2147483647, %v270
    %v347 = vand.u32 2147483647, %v271
    %v348 = vand.u32 2147483647, %v272
    %v349 = vand.u32 2147483647, %v273
    %v350 = vand.u32 2147483647, %v274
    %v351 = vand.u32 2147483647, %v275
    %v352 = vand.u32 2147483647, %v276
    %v353 = vmul.f32 %v277, 0.3275911
    %v354 = vmul.f32 %v278, 0.3275911
    %v355 = vmul.f32 %v279, 0.3275911
    %v356 = vmul.f32 %v280, 0.3275911
    %v357 = vmul.f32 %v281, 0.3275911
    %v358 = vmul.f32 %v282, 0.3275911
    %v359 = vmul.f32 %v283, 0.3275911
    %v360 = vmul.f32 %v284, 0.3275911
    %v361 = vmul.f32 %v285, 0.3275911
    %v362 = vmul.f32 %v286, 0.3275911
    %v363 = vmul.f32 %v287, 0.3275911
    %v364 = vmul.f32 %v288, 0.3275911
    %v365 = vmul.f32 %v289, 0.3275911
    %v366 = vmul.f32 %v290, 0.3275911
    %v367 = vmul.f32 %v291, 0.3275911
    %v368 = vmul.f32 %v292, 0.3275911
    %v369 = vmul.f32 %v293, 0.3275911
    %v370 = vmul.f32 %v294, 0.3275911
    %v371 = vmul.f32 %v295, 0.3275911
    %v372 = vmul.f32 %v296, 0.3275911
    %v373 = vmul.f32 %v297, 0.3275911
    %v374 = vmul.f32 %v298, 0.3275911
    %v375 = vmul.f32 %v299, 0.3275911
    %v376 = vmul.f32 %v300, 0.3275911
    %v377 = vmul.f32 %v301, 0.3275911
    %v378 = vmul.f32 %v302, 0.3275911
    %v379 = vmul.f32 %v303, 0.3275911
    %v380 = vmul.f32 %v304, 0.3275911
    %v381 = vmul.f32 %v305, 0.3275911
    %v382 = vmul.f32 %v306, 0.3275911
    %v383 = vmul.f32 %v307, 0.3275911
    %v384 = vmul.f32 %v308, 0.3275911
    %v385 = vmul.f32 %v309, 0.3275911
    %v386 = vmul.f32 %v310, 0.3275911
    %v387 = vmul.f32 %v311, 0.3275911
    %v388 = vmul.f32 %v312, 0.3275911
    %v389 = vmul.f32 %v313, 0.3275911
    %v390 = vmul.f32 %v314, 0.3275911
    %v391 = vmul.f32 %v315, 0.3275911
    %v392 = vmul.f32 %v316, 0.3275911
    %v393 = vmul.f32 %v317, 0.3275911
    %v394 = vmul.f32 %v318, 0.3275911
    %v395 = vmul.f32 %v319, 0.3275911
    %v396 = vmul.f32 %v320, 0.3275911
    %v397 = vmul.f32 %v321, 0.3275911
    %v398 = vmul.f32 %v322, 0.3275911
    %v399 = vmul.f32 %v323, 0.3275911
    %v400 = vmul.f32 %v324, 0.3275911
    %v401 = vmul.f32 %v325, 0.3275911
    %v402 = vmul.f32 %v326, 0.3275911
    %v403 = vmul.f32 %v327, 0.3275911
    %v404 = vmul.f32 %v328, 0.3275911
    %v405 = vmul.f32 %v329, 0.3275911
    %v406 = vmul.f32 %v330, 0.3275911
    %v407 = vmul.f32 %v331, 0.3275911
    %v408 = vmul.f32 %v332, 0.3275911
    %v409 = vmul.f32 %v333, 0.3275911
    %v410 = vmul.f32 %v334, 0.3275911
    %v411 = vmul.f32 %v335, 0.3275911
    %v412 = vmul.f32 %v336, 0.3275911
    %v413 = vmul.f32 %v337, 0.3275911
    %v414 = vmul.f32 %v338, 0.3275911
    %v415 = vmul.f32 %v339, 0.3275911
    %v416 = vmul.f32 %v340, 0.3275911
    %v417 = vmul.f32 %v341, 0.3275911
    %v418 = vmul.f32 %v342, 0.3275911
    %v419 = vmul.f32 %v343, 0.3275911
    %v420 = vmul.f32 %v344, 0.3275911
    %v421 = vmul.f32 %v345, 0.3275911
    %v422 = vmul.f32 %v346, 0.3275911
    %v423 = vmul.f32 %v347, 0.3275911
    %v424 = vmul.f32 %v348, 0.3275911
    %v425 = vmul.f32 %v349, 0.3275911
    %v426 = vmul.f32 %v350, 0.3275911
    %v427 = vmul.f32 %v351, 0.3275911
    %v428 = vmul.f32 %v352, 0.3275911
    %v429 = vadd.f32 %v353, 1.0
    %v430 = vadd.f32 %v354, 1.0
    %v431 = vadd.f32 %v355, 1.0
    %v432 = vadd.f32 %v356, 1.0
    %v433 = vadd.f32 %v357, 1.0
    %v434 = vadd.f32 %v358, 1.0
    %v435 = vadd.f32 %v359, 1.0
    %v436 = vadd.f32 %v360, 1.0
    %v437 = vadd.f32 %v361, 1.0
    %v438 = vadd.f32 %v362, 1.0
    %v439 = vadd.f32 %v363, 1.0
    %v440 = vadd.f32 %v364, 1.0
    %v441 = vadd.f32 %v365, 1.0
    %v442 = vadd.f32 %v366, 1.0
    %v443 = vadd.f32 %v367, 1.0
    %v444 = vadd.f32 %v368, 1.0
    %v445 = vadd.f32 %v369, 1.0
    %v446 = vadd.f32 %v370, 1.0
    %v447 = vadd.f32 %v371, 1.0
    %v448 = vadd.f32 %v372, 1.0
    %v449 = vadd.f32 %v373, 1.0
    %v450 = vadd.f32 %v374, 1.0
    %v451 = vadd.f32 %v375, 1.0
    %v452 = vadd.f32 %v376, 1.0
    %v453 = vadd.f32 %v377, 1.0
    %v454 = vadd.f32 %v378, 1.0
    %v455 = vadd.f32 %v379, 1.0
    %v456 = vadd.f32 %v380, 1.0
    %v457 = vadd.f32 %v381, 1.0
    %v458 = vadd.f32 %v382, 1.0
    %v459 = vadd.f32 %v383, 1.0
    %v460 = vadd.f32 %v384, 1.0
    %v461 = vadd.f32 %v385, 1.0
    %v462 = vadd.f32 %v386, 1.0
    %v463 = vadd.f32 %v387, 1.0
    %v464 = vadd.f32 %v388, 1.0
    %v465 = vadd.f32 %v389, 1.0
    %v466 = vadd.f32 %v390, 1.0
    %v467 = vadd.f32 %v391, 1.0
    %v468 = vadd.f32 %v392, 1.0
    %v469 = vadd.f32 %v393, 1.0
    %v470 = vadd.f32 %v394, 1.0
    %v471 = vadd.f32 %v395, 1.0
    %v472 = vadd.f32 %v396, 1.0
    %v473 = vadd.f32 %v397, 1.0
    %v474 = vadd.f32 %v398, 1.0
    %v475 = vadd.f32 %v399, 1.0
    %v476 = vadd.f32 %v400, 1.0
    %v477 = vadd.f32 %v401, 1.0
    %v478 = vadd.f32 %v402, 1.0
    %v479 = vadd.f32 %v403, 1.0
    %v480 = vadd.f32 %v404, 1.0
    %v481 = vadd.f32 %v405, 1.0
    %v482 = vadd.f32 %v406, 1.0
    %v483 = vadd.f32 %v407, 1.0
    %v484 = vadd.f32 %v408, 1.0
    %v485 = vadd.f32 %v409, 1.0
    %v486 = vadd.f32 %v410, 1.0
    %v487 = vadd.f32 %v411, 1.0
    %v488 = vadd.f32 %v412, 1.0
    %v489 = vadd.f32 %v413, 1.0
    %v490 = vadd.f32 %v414, 1.0
    %v491 = vadd.f32 %v415, 1.0
    %v492 = vadd.f32 %v416, 1.0
    %v493 = vadd.f32 %v417, 1.0
    %v494 = vadd.f32 %v418, 1.0
    %v495 = vadd.f32 %v419, 1.0
    %v496 = vadd.f32 %v420, 1.0
    %v497 = vadd.f32 %v421, 1.0
    %v498 = vadd.f32 %v422, 1.0
    %v499 = vadd.f32 %v423, 1.0
    %v500 = vadd.f32 %v424, 1.0
    %v501 = vadd.f32 %v425, 1.0
    %v502 = vadd.f32 %v426, 1.0
    %v503 = vadd.f32 %v427, 1.0
    %v504 = vadd.f32 %v428, 1.0
    %v505 = vrcp.pop %v429
    %v506 = vmul.f32 1.0, %v505
    %v507 = vrcp.pop %v430
    %v508 = vmul.f32 1.0, %v507
    %v509 = vrcp.pop %v431
    %v510 = vmul.f32 1.0, %v509
    %v511 = vrcp.pop %v432
    %v512 = vmul.f32 1.0, %v511
    %v513 = vrcp.pop %v433
    %v514 = vmul.f32 1.0, %v513
    %v515 = vrcp.pop %v434
    %v516 = vmul.f32 1.0, %v515
    %v517 = vrcp.pop %v435
    %v518 = vmul.f32 1.0, %v517
    %v519 = vrcp.pop %v436
    %v520 = vmul.f32 1.0, %v519
    %v521 = vrcp.pop %v437
    %v522 = vmul.f32 1.0, %v521
    %v523 = vrcp.pop %v438
    %v524 = vmul.f32 1.0, %v523
    %v525 = vrcp.pop %v439
    %v526 = vmul.f32 1.0, %v525
    %v527 = vrcp.pop %v440
    %v528 = vmul.f32 1.0, %v527
    %v529 = vrcp.pop %v441
    %v530 = vmul.f32 1.0, %v529
    %v531 = vrcp.pop %v442
    %v532 = vmul.f32 1.0, %v531
    %v533 = vrcp.pop %v443
    %v534 = vmul.f32 1.0, %v533
    %v535 = vrcp.pop %v444
    %v536 = vmul.f32 1.0, %v535
    %v537 = vrcp.pop %v445
    %v538 = vmul.f32 1.0, %v537
    %v539 = vrcp.pop %v446
    %v540 = vmul.f32 1.0, %v539
    %v541 = vrcp.pop %v447
    %v542 = vmul.f32 1.0, %v541
    %v543 = vrcp.pop %v448
    %v544 = vmul.f32 1.0, %v543
    %v545 = vrcp.pop %v449
    %v546 = vmul.f32 1.0, %v545
    %v547 = vrcp.pop %v450
    %v548 = vmul.f32 1.0, %v547
    %v549 = vrcp.pop %v451
    %v550 = vmul.f32 1.0, %v549
    %v551 = vrcp.pop %v452
    %v552 = vmul.f32 1.0, %v551
    %v553 = vrcp.pop %v453
    %v554 = vmul.f32 1.0, %v553
    %v555 = vrcp.pop %v454
    %v556 = vmul.f32 1.0, %v555
    %v557 = vrcp.pop %v455
    %v558 = vmul.f32 1.0, %v557
    %v559 = vrcp.pop %v456
    %v560 = vmul.f32 1.0, %v559
    %v561 = vrcp.pop %v457
    %v562 = vmul.f32 1.0, %v561
    %v563 = vrcp.pop %v458
    %v564 = vmul.f32 1.0, %v563
    %v565 = vrcp.pop %v459
    %v566 = vmul.f32 1.0, %v565
    %v567 = vrcp.pop %v460
    %v568 = vmul.f32 1.0, %v567
    %v569 = vrcp.pop %v461
    %v570 = vmul.f32 1.0, %v569
    %v571 = vrcp.pop %v462
    %v572 = vmul.f32 1.0, %v571
    %v573 = vrcp.pop %v463
    %v574 = vmul.f32 1.0, %v573
    %v575 = vrcp.pop %v464
    %v576 = vmul.f32 1.0, %v575
    %v577 = vrcp.pop %v465
    %v578 = vmul.f32 1.0, %v577
    %v579 = vrcp.pop %v466
    %v580 = vmul.f32 1.0, %v579
    %v581 = vrcp.pop %v467
    %v582 = vmul.f32 1.0, %v581
    %v583 = vrcp.pop %v468
    %v584 = vmul.f32 1.0, %v583
    %v585 = vrcp.pop %v469
    %v586 = vmul.f32 1.0, %v585
    %v587 = vrcp.pop %v470
    %v588 = vmul.f32 1.0, %v587
    %v589 = vrcp.pop %v471
    %v590 = vmul.f32 1.0, %v589
    %v591 = vrcp.pop %v472
    %v592 = vmul.f32 1.0, %v591
    %v593 = vrcp.pop %v473
    %v594 = vmul.f32 1.0, %v593
    %v595 = vrcp.pop %v474
    %v596 = vmul.f32 1.0, %v595
    %v597 = vrcp.pop %v475
    %v598 = vmul.f32 1.0, %v597
    %v599 = vrcp.pop %v476
    %v600 = vmul.f32 1.0, %v599
    %v601 = vrcp.pop %v477
    %v602 = vmul.f32 1.0, %v601
    %v603 = vrcp.pop %v478
    %v604 = vmul.f32 1.0, %v603
    %v605 = vrcp.pop %v479
    %v606 = vmul.f32 1.0, %v605
    %v607 = vrcp.pop %v480
    %v608 = vmul.f32 1.0, %v607
    %v609 = vrcp.pop %v481
    %v610 = vmul.f32 1.0, %v609
    %v611 = vrcp.pop %v482
    %v612 = vmul.f32 1.0, %v611
    %v613 = vrcp.pop %v483
    %v614 = vmul.f32 1.0, %v613
    %v615 = vrcp.pop %v484
    %v616 = vmul.f32 1.0, %v615
    %v617 = vrcp.pop %v485
    %v618 = vmul.f32 1.0, %v617
    %v619 = vrcp.pop %v486
    %v620 = vmul.f32 1.0, %v619
    %v621 = vrcp.pop %v487
    %v622 = vmul.f32 1.0, %v621
    %v623 = vrcp.pop %v488
    %v624 = vmul.f32 1.0, %v623
    %v625 = vrcp.pop %v489
    %v626 = vmul.f32 1.0, %v625
    %v627 = vrcp.pop %v490
    %v628 = vmul.f32 1.0, %v627
    %v629 = vrcp.pop %v491
    %v630 = vmul.f32 1.0, %v629
    %v631 = vrcp.pop %v492
    %v632 = vmul.f32 1.0, %v631
    %v633 = vrcp.pop %v493
    %v634 = vmul.f32 1.0, %v633
    %v635 = vrcp.pop %v494
    %v636 = vmul.f32 1.0, %v635
    %v637 = vrcp.pop %v495
    %v638 = vmul.f32 1.0, %v637
    %v639 = vrcp.pop %v496
    %v640 = vmul.f32 1.0, %v639
    %v641 = vrcp.pop %v497
    %v642 = vmul.f32 1.0, %v641
    %v643 = vrcp.pop %v498
    %v644 = vmul.f32 1.0, %v643
    %v645 = vrcp.pop %v499
    %v646 = vmul.f32 1.0, %v645
    %v647 = vrcp.pop %v500
    %v648 = vmul.f32 1.0, %v647
    %v649 = vrcp.pop %v501
    %v650 = vmul.f32 1.0, %v649
    %v651 = vrcp.pop %v502
    %v652 = vmul.f32 1.0, %v651
    %v653 = vrcp.pop %v503
    %v654 = vmul.f32 1.0, %v653
    %v655 = vrcp.pop %v504
    %v656 = vmul.f32 1.0, %v655
    %v657 = vmul.f32 %v506, 1.0614054
    %v658 = vmul.f32 %v508, 1.0614054
    %v659 = vmul.f32 %v510, 1.0614054
    %v660 = vmul.f32 %v512, 1.0614054
    %v661 = vmul.f32 %v514, 1.0614054
    %v662 = vmul.f32 %v516, 1.0614054
    %v663 = vmul.f32 %v518, 1.0614054
    %v664 = vmul.f32 %v520, 1.0614054
    %v665 = vmul.f32 %v522, 1.0614054
    %v666 = vmul.f32 %v524, 1.0614054
    %v667 = vmul.f32 %v526, 1.0614054
    %v668 = vmul.f32 %v528, 1.0614054
    %v669 = vmul.f32 %v530, 1.0614054
    %v670 = vmul.f32 %v532, 1.0614054
    %v671 = vmul.f32 %v534, 1.0614054
    %v672 = vmul.f32 %v536, 1.0614054
    %v673 = vmul.f32 %v538, 1.0614054
    %v674 = vmul.f32 %v540, 1.0614054
    %v675 = vmul.f32 %v542, 1.0614054
    %v676 = vmul.f32 %v544, 1.0614054
    %v677 = vmul.f32 %v546, 1.0614054
    %v678 = vmul.f32 %v548, 1.0614054
    %v679 = vmul.f32 %v550, 1.0614054
    %v680 = vmul.f32 %v552, 1.0614054
    %v681 = vmul.f32 %v554, 1.0614054
    %v682 = vmul.f32 %v556, 1.0614054
    %v683 = vmul.f32 %v558, 1.0614054
    %v684 = vmul.f32 %v560, 1.0614054
    %v685 = vmul.f32 %v562, 1.0614054
    %v686 = vmul.f32 %v564, 1.0614054
    %v687 = vmul.f32 %v566, 1.0614054
    %v688 = vmul.f32 %v568, 1.0614054
    %v689 = vmul.f32 %v570, 1.0614054
    %v690 = vmul.f32 %v572, 1.0614054
    %v691 = vmul.f32 %v574, 1.0614054
    %v692 = vmul.f32 %v576, 1.0614054
    %v693 = vmul.f32 %v578, 1.0614054
    %v694 = vmul.f32 %v580, 1.0614054
    %v695 = vmul.f32 %v582, 1.0614054
    %v696 = vmul.f32 %v584, 1.0614054
    %v697 = vmul.f32 %v586, 1.0614054
    %v698 = vmul.f32 %v588, 1.0614054
    %v699 = vmul.f32 %v590, 1.0614054
    %v700 = vmul.f32 %v592, 1.0614054
    %v701 = vmul.f32 %v594, 1.0614054
    %v702 = vmul.f32 %v596, 1.0614054
    %v703 = vmul.f32 %v598, 1.0614054
    %v704 = vmul.f32 %v600, 1.0614054
    %v705 = vmul.f32 %v602, 1.0614054
    %v706 = vmul.f32 %v604, 1.0614054
    %v707 = vmul.f32 %v606, 1.0614054
    %v708 = vmul.f32 %v608, 1.0614054
    %v709 = vmul.f32 %v610, 1.0614054
    %v710 = vmul.f32 %v612, 1.0614054
    %v711 = vmul.f32 %v614, 1.0614054
    %v712 = vmul.f32 %v616, 1.0614054
    %v713 = vmul.f32 %v618, 1.0614054
    %v714 = vmul.f32 %v620, 1.0614054
    %v715 = vmul.f32 %v622, 1.0614054
    %v716 = vmul.f32 %v624, 1.0614054
    %v717 = vmul.f32 %v626, 1.0614054
    %v718 = vmul.f32 %v628, 1.0614054
    %v719 = vmul.f32 %v630, 1.0614054
    %v720 = vmul.f32 %v632, 1.0614054
    %v721 = vmul.f32 %v634, 1.0614054
    %v722 = vmul.f32 %v636, 1.0614054
    %v723 = vmul.f32 %v638, 1.0614054
    %v724 = vmul.f32 %v640, 1.0614054
    %v725 = vmul.f32 %v642, 1.0614054
    %v726 = vmul.f32 %v644, 1.0614054
    %v727 = vmul.f32 %v646, 1.0614054
    %v728 = vmul.f32 %v648, 1.0614054
    %v729 = vmul.f32 %v650, 1.0614054
    %v730 = vmul.f32 %v652, 1.0614054
    %v731 = vmul.f32 %v654, 1.0614054
    %v732 = vmul.f32 %v656, 1.0614054
    %v733 = vadd.f32 %v657, -1.4531521
    %v734 = vadd.f32 %v658, -1.4531521
    %v735 = vadd.f32 %v659, -1.4531521
    %v736 = vadd.f32 %v660, -1.4531521
    %v737 = vadd.f32 %v661, -1.4531521
    %v738 = vadd.f32 %v662, -1.4531521
    %v739 = vadd.f32 %v663, -1.4531521
    %v740 = vadd.f32 %v664, -1.4531521
    %v741 = vadd.f32 %v665, -1.4531521
    %v742 = vadd.f32 %v666, -1.4531521
    %v743 = vadd.f32 %v667, -1.4531521
    %v744 = vadd.f32 %v668, -1.4531521
    %v745 = vadd.f32 %v669, -1.4531521
    %v746 = vadd.f32 %v670, -1.4531521
    %v747 = vadd.f32 %v671, -1.4531521
    %v748 = vadd.f32 %v672, -1.4531521
    %v749 = vadd.f32 %v673, -1.4531521
    %v750 = vadd.f32 %v674, -1.4531521
    %v751 = vadd.f32 %v675, -1.4531521
    %v752 = vadd.f32 %v676, -1.4531521
    %v753 = vadd.f32 %v677, -1.4531521
    %v754 = vadd.f32 %v678, -1.4531521
    %v755 = vadd.f32 %v679, -1.4531521
    %v756 = vadd.f32 %v680, -1.4531521
    %v757 = vadd.f32 %v681, -1.4531521
    %v758 = vadd.f32 %v682, -1.4531521
    %v759 = vadd.f32 %v683, -1.4531521
    %v760 = vadd.f32 %v684, -1.4531521
    %v761 = vadd.f32 %v685, -1.4531521
    %v762 = vadd.f32 %v686, -1.4531521
    %v763 = vadd.f32 %v687, -1.4531521
    %v764 = vadd.f32 %v688, -1.4531521
    %v765 = vadd.f32 %v689, -1.4531521
    %v766 = vadd.f32 %v690, -1.4531521
    %v767 = vadd.f32 %v691, -1.4531521
    %v768 = vadd.f32 %v692, -1.4531521
    %v769 = vadd.f32 %v693, -1.4531521
    %v770 = vadd.f32 %v694, -1.4531521
    %v771 = vadd.f32 %v695, -1.4531521
    %v772 = vadd.f32 %v696, -1.4531521
    %v773 = vadd.f32 %v697, -1.4531521
    %v774 = vadd.f32 %v698, -1.4531521
    %v775 = vadd.f32 %v699, -1.4531521
    %v776 = vadd.f32 %v700, -1.4531521
    %v777 = vadd.f32 %v701, -1.4531521
    %v778 = vadd.f32 %v702, -1.4531521
    %v779 = vadd.f32 %v703, -1.4531521
    %v780 = vadd.f32 %v704, -1.4531521
    %v781 = vadd.f32 %v705, -1.4531521
    %v782 = vadd.f32 %v706, -1.4531521
    %v783 = vadd.f32 %v707, -1.4531521
    %v784 = vadd.f32 %v708, -1.4531521
    %v785 = vadd.f32 %v709, -1.4531521
    %v786 = vadd.f32 %v710, -1.4531521
    %v787 = vadd.f32 %v711, -1.4531521
    %v788 = vadd.f32 %v712, -1.4531521
    %v789 = vadd.f32 %v713, -1.4531521
    %v790 = vadd.f32 %v714, -1.4531521
    %v791 = vadd.f32 %v715, -1.4531521
    %v792 = vadd.f32 %v716, -1.4531521
    %v793 = vadd.f32 %v717, -1.4531521
    %v794 = vadd.f32 %v718, -1.4531521
    %v795 = vadd.f32 %v719, -1.4531521
    %v796 = vadd.f32 %v720, -1.4531521
    %v797 = vadd.f32 %v721, -1.4531521
    %v798 = vadd.f32 %v722, -1.4531521
    %v799 = vadd.f32 %v723, -1.4531521
    %v800 = vadd.f32 %v724, -1.4531521
    %v801 = vadd.f32 %v725, -1.4531521
    %v802 = vadd.f32 %v726, -1.4531521
    %v803 = vadd.f32 %v727, -1.4531521
    %v804 = vadd.f32 %v728, -1.4531521
    %v805 = vadd.f32 %v729, -1.4531521
    %v806 = vadd.f32 %v730, -1.4531521
    %v807 = vadd.f32 %v731, -1.4531521
    %v808 = vadd.f32 %v732, -1.4531521
    %v809 = vmul.f32 %v733, %v506
    %v810 = vmul.f32 %v734, %v508
    %v811 = vmul.f32 %v735, %v510
    %v812 = vmul.f32 %v736, %v512
    %v813 = vmul.f32 %v737, %v514
    %v814 = vmul.f32 %v738, %v516
    %v815 = vmul.f32 %v739, %v518
    %v816 = vmul.f32 %v740, %v520
    %v817 = vmul.f32 %v741, %v522
    %v818 = vmul.f32 %v742, %v524
    %v819 = vmul.f32 %v743, %v526
    %v820 = vmul.f32 %v744, %v528
    %v821 = vmul.f32 %v745, %v530
    %v822 = vmul.f32 %v746, %v532
    %v823 = vmul.f32 %v747, %v534
    %v824 = vmul.f32 %v748, %v536
    %v825 = vmul.f32 %v749, %v538
    %v826 = vmul.f32 %v750, %v540
    %v827 = vmul.f32 %v751, %v542
    %v828 = vmul.f32 %v752, %v544
    %v829 = vmul.f32 %v753, %v546
    %v830 = vmul.f32 %v754, %v548
    %v831 = vmul.f32 %v755, %v550
    %v832 = vmul.f32 %v756, %v552
    %v833 = vmul.f32 %v757, %v554
    %v834 = vmul.f32 %v758, %v556
    %v835 = vmul.f32 %v759, %v558
    %v836 = vmul.f32 %v760, %v560
    %v837 = vmul.f32 %v761, %v562
    %v838 = vmul.f32 %v762, %v564
    %v839 = vmul.f32 %v763, %v566
    %v840 = vmul.f32 %v764, %v568
    %v841 = vmul.f32 %v765, %v570
    %v842 = vmul.f32 %v766, %v572
    %v843 = vmul.f32 %v767, %v574
    %v844 = vmul.f32 %v768, %v576
    %v845 = vmul.f32 %v769, %v578
    %v846 = vmul.f32 %v770, %v580
    %v847 = vmul.f32 %v771, %v582
    %v848 = vmul.f32 %v772, %v584
    %v849 = vmul.f32 %v773, %v586
    %v850 = vmul.f32 %v774, %v588
    %v851 = vmul.f32 %v775, %v590
    %v852 = vmul.f32 %v776, %v592
    %v853 = vmul.f32 %v777, %v594
    %v854 = vmul.f32 %v778, %v596
    %v855 = vmul.f32 %v779, %v598
    %v856 = vmul.f32 %v780, %v600
    %v857 = vmul.f32 %v781, %v602
    %v858 = vmul.f32 %v782, %v604
    %v859 = vmul.f32 %v783, %v606
    %v860 = vmul.f32 %v784, %v608
    %v861 = vmul.f32 %v785, %v610
    %v862 = vmul.f32 %v786, %v612
    %v863 = vmul.f32 %v787, %v614
    %v864 = vmul.f32 %v788, %v616
    %v865 = vmul.f32 %v789, %v618
    %v866 = vmul.f32 %v790, %v620
    %v867 = vmul.f32 %v791, %v622
    %v868 = vmul.f32 %v792, %v624
    %v869 = vmul.f32 %v793, %v626
    %v870 = vmul.f32 %v794, %v628
    %v871 = vmul.f32 %v795, %v630
    %v872 = vmul.f32 %v796, %v632
    %v873 = vmul.f32 %v797, %v634
    %v874 = vmul.f32 %v798, %v636
    %v875 = vmul.f32 %v799, %v638
    %v876 = vmul.f32 %v800, %v640
    %v877 = vmul.f32 %v801, %v642
    %v878 = vmul.f32 %v802, %v644
    %v879 = vmul.f32 %v803, %v646
    %v880 = vmul.f32 %v804, %v648
    %v881 = vmul.f32 %v805, %v650
    %v882 = vmul.f32 %v806, %v652
    %v883 = vmul.f32 %v807, %v654
    %v884 = vmul.f32 %v808, %v656
    %v885 = vadd.f32 %v809, 1.4214138
    %v886 = vadd.f32 %v810, 1.4214138
    %v887 = vadd.f32 %v811, 1.4214138
    %v888 = vadd.f32 %v812, 1.4214138
    %v889 = vadd.f32 %v813, 1.4214138
    %v890 = vadd.f32 %v814, 1.4214138
    %v891 = vadd.f32 %v815, 1.4214138
    %v892 = vadd.f32 %v816, 1.4214138
    %v893 = vadd.f32 %v817, 1.4214138
    %v894 = vadd.f32 %v818, 1.4214138
    %v895 = vadd.f32 %v819, 1.4214138
    %v896 = vadd.f32 %v820, 1.4214138
    %v897 = vadd.f32 %v821, 1.4214138
    %v898 = vadd.f32 %v822, 1.4214138
    %v899 = vadd.f32 %v823, 1.4214138
    %v900 = vadd.f32 %v824, 1.4214138
    %v901 = vadd.f32 %v825, 1.4214138
    %v902 = vadd.f32 %v826, 1.4214138
    %v903 = vadd.f32 %v827, 1.4214138
    %v904 = vadd.f32 %v828, 1.4214138
    %v905 = vadd.f32 %v829, 1.4214138
    %v906 = vadd.f32 %v830, 1.4214138
    %v907 = vadd.f32 %v831, 1.4214138
    %v908 = vadd.f32 %v832, 1.4214138
    %v909 = vadd.f32 %v833, 1.4214138
    %v910 = vadd.f32 %v834, 1.4214138
    %v911 = vadd.f32 %v835, 1.4214138
    %v912 = vadd.f32 %v836, 1.4214138
    %v913 = vadd.f32 %v837, 1.4214138
    %v914 = vadd.f32 %v838, 1.4214138
    %v915 = vadd.f32 %v839, 1.4214138
    %v916 = vadd.f32 %v840, 1.4214138
    %v917 = vadd.f32 %v841, 1.4214138
    %v918 = vadd.f32 %v842, 1.4214138
    %v919 = vadd.f32 %v843, 1.4214138
    %v920 = vadd.f32 %v844, 1.4214138
    %v921 = vadd.f32 %v845, 1.4214138
    %v922 = vadd.f32 %v846, 1.4214138
    %v923 = vadd.f32 %v847, 1.4214138
    %v924 = vadd.f32 %v848, 1.4214138
    %v925 = vadd.f32 %v849, 1.4214138
    %v926 = vadd.f32 %v850, 1.4214138
    %v927 = vadd.f32 %v851, 1.4214138
    %v928 = vadd.f32 %v852, 1.4214138
    %v929 = vadd.f32 %v853, 1.4214138
    %v930 = vadd.f32 %v854, 1.4214138
    %v931 = vadd.f32 %v855, 1.4214138
    %v932 = vadd.f32 %v856, 1.4214138
    %v933 = vadd.f32 %v857, 1.4214138
    %v934 = vadd.f32 %v858, 1.4214138
    %v935 = vadd.f32 %v859, 1.4214138
    %v936 = vadd.f32 %v860, 1.4214138
    %v937 = vadd.f32 %v861, 1.4214138
    %v938 = vadd.f32 %v862, 1.4214138
    %v939 = vadd.f32 %v863, 1.4214138
    %v940 = vadd.f32 %v864, 1.4214138
    %v941 = vadd.f32 %v865, 1.4214138
    %v942 = vadd.f32 %v866, 1.4214138
    %v943 = vadd.f32 %v867, 1.4214138
    %v944 = vadd.f32 %v868, 1.4214138
    %v945 = vadd.f32 %v869, 1.4214138
    %v946 = vadd.f32 %v870, 1.4214138
    %v947 = vadd.f32 %v871, 1.4214138
    %v948 = vadd.f32 %v872, 1.4214138
    %v949 = vadd.f32 %v873, 1.4214138
    %v950 = vadd.f32 %v874, 1.4214138
    %v951 = vadd.f32 %v875, 1.4214138
    %v952 = vadd.f32 %v876, 1.4214138
    %v953 = vadd.f32 %v877, 1.4214138
    %v954 = vadd.f32 %v878, 1.4214138
    %v955 = vadd.f32 %v879, 1.4214138
    %v956 = vadd.f32 %v880, 1.4214138
    %v957 = vadd.f32 %v881, 1.4214138
    %v958 = vadd.f32 %v882, 1.4214138
    %v959 = vadd.f32 %v883, 1.4214138
    %v960 = vadd.f32 %v884, 1.4214138
    %v961 = vmul.f32 %v885, %v506
    %v962 = vmul.f32 %v886, %v508
    %v963 = vmul.f32 %v887, %v510
    %v964 = vmul.f32 %v888, %v512
    %v965 = vmul.f32 %v889, %v514
    %v966 = vmul.f32 %v890, %v516
    %v967 = vmul.f32 %v891, %v518
    %v968 = vmul.f32 %v892, %v520
    %v969 = vmul.f32 %v893, %v522
    %v970 = vmul.f32 %v894, %v524
    %v971 = vmul.f32 %v895, %v526
    %v972 = vmul.f32 %v896, %v528
    %v973 = vmul.f32 %v897, %v530
    %v974 = vmul.f32 %v898, %v532
    %v975 = vmul.f32 %v899, %v534
    %v976 = vmul.f32 %v900, %v536
    %v977 = vmul.f32 %v901, %v538
    %v978 = vmul.f32 %v902, %v540
    %v979 = vmul.f32 %v903, %v542
    %v980 = vmul.f32 %v904, %v544
    %v981 = vmul.f32 %v905, %v546
    %v982 = vmul.f32 %v906, %v548
    %v983 = vmul.f32 %v907, %v550
    %v984 = vmul.f32 %v908, %v552
    %v985 = vmul.f32 %v909, %v554
    %v986 = vmul.f32 %v910, %v556
    %v987 = vmul.f32 %v911, %v558
    %v988 = vmul.f32 %v912, %v560
    %v989 = vmul.f32 %v913, %v562
    %v990 = vmul.f32 %v914, %v564
    %v991 = vmul.f32 %v915, %v566
    %v992 = vmul.f32 %v916, %v568
    %v993 = vmul.f32 %v917, %v570
    %v994 = vmul.f32 %v918, %v572
    %v995 = vmul.f32 %v919, %v574
    %v996 = vmul.f32 %v920, %v576
    %v997 = vmul.f32 %v921, %v578
    %v998 = vmul.f32 %v922, %v580
    %v999 = vmul.f32 %v923, %v582
    %v1000 = vmul.f32 %v924, %v584
    %v1001 = vmul.f32 %v925, %v586
    %v1002 = vmul.f32 %v926, %v588
    %v1003 = vmul.f32 %v927, %v590
    %v1004 = vmul.f32 %v928, %v592
    %v1005 = vmul.f32 %v929, %v594
    %v1006 = vmul.f32 %v930, %v596
    %v1007 = vmul.f32 %v931, %v598
    %v1008 = vmul.f32 %v932, %v600
    %v1009 = vmul.f32 %v933, %v602
    %v1010 = vmul.f32 %v934, %v604
    %v1011 = vmul.f32 %v935, %v606
    %v1012 = vmul.f32 %v936, %v608
    %v1013 = vmul.f32 %v937, %v610
    %v1014 = vmul.f32 %v938, %v612
    %v1015 = vmul.f32 %v939, %v614
    %v1016 = vmul.f32 %v940, %v616
    %v1017 = vmul.f32 %v941, %v618
    %v1018 = vmul.f32 %v942, %v620
    %v1019 = vmul.f32 %v943, %v622
    %v1020 = vmul.f32 %v944, %v624
    %v1021 = vmul.f32 %v945, %v626
    %v1022 = vmul.f32 %v946, %v628
    %v1023 = vmul.f32 %v947, %v630
    %v1024 = vmul.f32 %v948, %v632
    %v1025 = vmul.f32 %v949, %v634
    %v1026 = vmul.f32 %v950, %v636
    %v1027 = vmul.f32 %v951, %v638
    %v1028 = vmul.f32 %v952, %v640
    %v1029 = vmul.f32 %v953, %v642
    %v1030 = vmul.f32 %v954, %v644
    %v1031 = vmul.f32 %v955, %v646
    %v1032 = vmul.f32 %v956, %v648
    %v1033 = vmul.f32 %v957, %v650
    %v1034 = vmul.f32 %v958, %v652
    %v1035 = vmul.f32 %v959, %v654
    %v1036 = vmul.f32 %v960, %v656
    %v1037 = vadd.f32 %v961, -0.28449672
    %v1038 = vadd.f32 %v962, -0.28449672
    %v1039 = vadd.f32 %v963, -0.28449672
    %v1040 = vadd.f32 %v964, -0.28449672
    %v1041 = vadd.f32 %v965, -0.28449672
    %v1042 = vadd.f32 %v966, -0.28449672
    %v1043 = vadd.f32 %v967, -0.28449672
    %v1044 = vadd.f32 %v968, -0.28449672
    %v1045 = vadd.f32 %v969, -0.28449672
    %v1046 = vadd.f32 %v970, -0.28449672
    %v1047 = vadd.f32 %v971, -0.28449672
    %v1048 = vadd.f32 %v972, -0.28449672
    %v1049 = vadd.f32 %v973, -0.28449672
    %v1050 = vadd.f32 %v974, -0.28449672
    %v1051 = vadd.f32 %v975, -0.28449672
    %v1052 = vadd.f32 %v976, -0.28449672
    %v1053 = vadd.f32 %v977, -0.28449672
    %v1054 = vadd.f32 %v978, -0.28449672
    %v1055 = vadd.f32 %v979, -0.28449672
    %v1056 = vadd.f32 %v980, -0.28449672
    %v1057 = vadd.f32 %v981, -0.28449672
    %v1058 = vadd.f32 %v982, -0.28449672
    %v1059 = vadd.f32 %v983, -0.28449672
    %v1060 = vadd.f32 %v984, -0.28449672
    %v1061 = vadd.f32 %v985, -0.28449672
    %v1062 = vadd.f32 %v986, -0.28449672
    %v1063 = vadd.f32 %v987, -0.28449672
    %v1064 = vadd.f32 %v988, -0.28449672
    %v1065 = vadd.f32 %v989, -0.28449672
    %v1066 = vadd.f32 %v990, -0.28449672
    %v1067 = vadd.f32 %v991, -0.28449672
    %v1068 = vadd.f32 %v992, -0.28449672
    %v1069 = vadd.f32 %v993, -0.28449672
    %v1070 = vadd.f32 %v994, -0.28449672
    %v1071 = vadd.f32 %v995, -0.28449672
    %v1072 = vadd.f32 %v996, -0.28449672
    %v1073 = vadd.f32 %v997, -0.28449672
    %v1074 = vadd.f32 %v998, -0.28449672
    %v1075 = vadd.f32 %v999, -0.28449672
    %v1076 = vadd.f32 %v1000, -0.28449672
    %v1077 = vadd.f32 %v1001, -0.28449672
    %v1078 = vadd.f32 %v1002, -0.28449672
    %v1079 = vadd.f32 %v1003, -0.28449672
    %v1080 = vadd.f32 %v1004, -0.28449672
    %v1081 = vadd.f32 %v1005, -0.28449672
    %v1082 = vadd.f32 %v1006, -0.28449672
    %v1083 = vadd.f32 %v1007, -0.28449672
    %v1084 = vadd.f32 %v1008, -0.28449672
    %v1085 = vadd.f32 %v1009, -0.28449672
    %v1086 = vadd.f32 %v1010, -0.28449672
    %v1087 = vadd.f32 %v1011, -0.28449672
    %v1088 = vadd.f32 %v1012, -0.28449672
    %v1089 = vadd.f32 %v1013, -0.28449672
    %v1090 = vadd.f32 %v1014, -0.28449672
    %v1091 = vadd.f32 %v1015, -0.28449672
    %v1092 = vadd.f32 %v1016, -0.28449672
    %v1093 = vadd.f32 %v1017, -0.28449672
    %v1094 = vadd.f32 %v1018, -0.28449672
    %v1095 = vadd.f32 %v1019, -0.28449672
    %v1096 = vadd.f32 %v1020, -0.28449672
    %v1097 = vadd.f32 %v1021, -0.28449672
    %v1098 = vadd.f32 %v1022, -0.28449672
    %v1099 = vadd.f32 %v1023, -0.28449672
    %v1100 = vadd.f32 %v1024, -0.28449672
    %v1101 = vadd.f32 %v1025, -0.28449672
    %v1102 = vadd.f32 %v1026, -0.28449672
    %v1103 = vadd.f32 %v1027, -0.28449672
    %v1104 = vadd.f32 %v1028, -0.28449672
    %v1105 = vadd.f32 %v1029, -0.28449672
    %v1106 = vadd.f32 %v1030, -0.28449672
    %v1107 = vadd.f32 %v1031, -0.28449672
    %v1108 = vadd.f32 %v1032, -0.28449672
    %v1109 = vadd.f32 %v1033, -0.28449672
    %v1110 = vadd.f32 %v1034, -0.28449672
    %v1111 = vadd.f32 %v1035, -0.28449672
    %v1112 = vadd.f32 %v1036, -0.28449672
    %v1113 = vmul.f32 %v1037, %v506
    %v1114 = vmul.f32 %v1038, %v508
    %v1115 = vmul.f32 %v1039, %v510
    %v1116 = vmul.f32 %v1040, %v512
    %v1117 = vmul.f32 %v1041, %v514
    %v1118 = vmul.f32 %v1042, %v516
    %v1119 = vmul.f32 %v1043, %v518
    %v1120 = vmul.f32 %v1044, %v520
    %v1121 = vmul.f32 %v1045, %v522
    %v1122 = vmul.f32 %v1046, %v524
    %v1123 = vmul.f32 %v1047, %v526
    %v1124 = vmul.f32 %v1048, %v528
    %v1125 = vmul.f32 %v1049, %v530
    %v1126 = vmul.f32 %v1050, %v532
    %v1127 = vmul.f32 %v1051, %v534
    %v1128 = vmul.f32 %v1052, %v536
    %v1129 = vmul.f32 %v1053, %v538
    %v1130 = vmul.f32 %v1054, %v540
    %v1131 = vmul.f32 %v1055, %v542
    %v1132 = vmul.f32 %v1056, %v544
    %v1133 = vmul.f32 %v1057, %v546
    %v1134 = vmul.f32 %v1058, %v548
    %v1135 = vmul.f32 %v1059, %v550
    %v1136 = vmul.f32 %v1060, %v552
    %v1137 = vmul.f32 %v1061, %v554
    %v1138 = vmul.f32 %v1062, %v556
    %v1139 = vmul.f32 %v1063, %v558
    %v1140 = vmul.f32 %v1064, %v560
    %v1141 = vmul.f32 %v1065, %v562
    %v1142 = vmul.f32 %v1066, %v564
    %v1143 = vmul.f32 %v1067, %v566
    %v1144 = vmul.f32 %v1068, %v568
    %v1145 = vmul.f32 %v1069, %v570
    %v1146 = vmul.f32 %v1070, %v572
    %v1147 = vmul.f32 %v1071, %v574
    %v1148 = vmul.f32 %v1072, %v576
    %v1149 = vmul.f32 %v1073, %v578
    %v1150 = vmul.f32 %v1074, %v580
    %v1151 = vmul.f32 %v1075, %v582
    %v1152 = vmul.f32 %v1076, %v584
    %v1153 = vmul.f32 %v1077, %v586
    %v1154 = vmul.f32 %v1078, %v588
    %v1155 = vmul.f32 %v1079, %v590
    %v1156 = vmul.f32 %v1080, %v592
    %v1157 = vmul.f32 %v1081, %v594
    %v1158 = vmul.f32 %v1082, %v596
    %v1159 = vmul.f32 %v1083, %v598
    %v1160 = vmul.f32 %v1084, %v600
    %v1161 = vmul.f32 %v1085, %v602
    %v1162 = vmul.f32 %v1086, %v604
    %v1163 = vmul.f32 %v1087, %v606
    %v1164 = vmul.f32 %v1088, %v608
    %v1165 = vmul.f32 %v1089, %v610
    %v1166 = vmul.f32 %v1090, %v612
    %v1167 = vmul.f32 %v1091, %v614
    %v1168 = vmul.f32 %v1092, %v616
    %v1169 = vmul.f32 %v1093, %v618
    %v1170 = vmul.f32 %v1094, %v620
    %v1171 = vmul.f32 %v1095, %v622
    %v1172 = vmul.f32 %v1096, %v624
    %v1173 = vmul.f32 %v1097, %v626
    %v1174 = vmul.f32 %v1098, %v628
    %v1175 = vmul.f32 %v1099, %v630
    %v1176 = vmul.f32 %v1100, %v632
    %v1177 = vmul.f32 %v1101, %v634
    %v1178 = vmul.f32 %v1102, %v636
    %v1179 = vmul.f32 %v1103, %v638
    %v1180 = vmul.f32 %v1104, %v640
    %v1181 = vmul.f32 %v1105, %v642
    %v1182 = vmul.f32 %v1106, %v644
    %v1183 = vmul.f32 %v1107, %v646
    %v1184 = vmul.f32 %v1108, %v648
    %v1185 = vmul.f32 %v1109, %v650
    %v1186 = vmul.f32 %v1110, %v652
    %v1187 = vmul.f32 %v1111, %v654
    %v1188 = vmul.f32 %v1112, %v656
    %v1189 = vadd.f32 %v1113, 0.2548296
    %v1190 = vadd.f32 %v1114, 0.2548296
    %v1191 = vadd.f32 %v1115, 0.2548296
    %v1192 = vadd.f32 %v1116, 0.2548296
    %v1193 = vadd.f32 %v1117, 0.2548296
    %v1194 = vadd.f32 %v1118, 0.2548296
    %v1195 = vadd.f32 %v1119, 0.2548296
    %v1196 = vadd.f32 %v1120, 0.2548296
    %v1197 = vadd.f32 %v1121, 0.2548296
    %v1198 = vadd.f32 %v1122, 0.2548296
    %v1199 = vadd.f32 %v1123, 0.2548296
    %v1200 = vadd.f32 %v1124, 0.2548296
    %v1201 = vadd.f32 %v1125, 0.2548296
    %v1202 = vadd.f32 %v1126, 0.2548296
    %v1203 = vadd.f32 %v1127, 0.2548296
    %v1204 = vadd.f32 %v1128, 0.2548296
    %v1205 = vadd.f32 %v1129, 0.2548296
    %v1206 = vadd.f32 %v1130, 0.2548296
    %v1207 = vadd.f32 %v1131, 0.2548296
    %v1208 = vadd.f32 %v1132, 0.2548296
    %v1209 = vadd.f32 %v1133, 0.2548296
    %v1210 = vadd.f32 %v1134, 0.2548296
    %v1211 = vadd.f32 %v1135, 0.2548296
    %v1212 = vadd.f32 %v1136, 0.2548296
    %v1213 = vadd.f32 %v1137, 0.2548296
    %v1214 = vadd.f32 %v1138, 0.2548296
    %v1215 = vadd.f32 %v1139, 0.2548296
    %v1216 = vadd.f32 %v1140, 0.2548296
    %v1217 = vadd.f32 %v1141, 0.2548296
    %v1218 = vadd.f32 %v1142, 0.2548296
    %v1219 = vadd.f32 %v1143, 0.2548296
    %v1220 = vadd.f32 %v1144, 0.2548296
    %v1221 = vadd.f32 %v1145, 0.2548296
    %v1222 = vadd.f32 %v1146, 0.2548296
    %v1223 = vadd.f32 %v1147, 0.2548296
    %v1224 = vadd.f32 %v1148, 0.2548296
    %v1225 = vadd.f32 %v1149, 0.2548296
    %v1226 = vadd.f32 %v1150, 0.2548296
    %v1227 = vadd.f32 %v1151, 0.2548296
    %v1228 = vadd.f32 %v1152, 0.2548296
    %v1229 = vadd.f32 %v1153, 0.2548296
    %v1230 = vadd.f32 %v1154, 0.2548296
    %v1231 = vadd.f32 %v1155, 0.2548296
    %v1232 = vadd.f32 %v1156, 0.2548296
    %v1233 = vadd.f32 %v1157, 0.2548296
    %v1234 = vadd.f32 %v1158, 0.2548296
    %v1235 = vadd.f32 %v1159, 0.2548296
    %v1236 = vadd.f32 %v1160, 0.2548296
    %v1237 = vadd.f32 %v1161, 0.2548296
    %v1238 = vadd.f32 %v1162, 0.2548296
    %v1239 = vadd.f32 %v1163, 0.2548296
    %v1240 = vadd.f32 %v1164, 0.2548296
    %v1241 = vadd.f32 %v1165, 0.2548296
    %v1242 = vadd.f32 %v1166, 0.2548296
    %v1243 = vadd.f32 %v1167, 0.2548296
    %v1244 = vadd.f32 %v1168, 0.2548296
    %v1245 = vadd.f32 %v1169, 0.2548296
    %v1246 = vadd.f32 %v1170, 0.2548296
    %v1247 = vadd.f32 %v1171, 0.2548296
    %v1248 = vadd.f32 %v1172, 0.2548296
    %v1249 = vadd.f32 %v1173, 0.2548296
    %v1250 = vadd.f32 %v1174, 0.2548296
    %v1251 = vadd.f32 %v1175, 0.2548296
    %v1252 = vadd.f32 %v1176, 0.2548296
    %v1253 = vadd.f32 %v1177, 0.2548296
    %v1254 = vadd.f32 %v1178, 0.2548296
    %v1255 = vadd.f32 %v1179, 0.2548296
    %v1256 = vadd.f32 %v1180, 0.2548296
    %v1257 = vadd.f32 %v1181, 0.2548296
    %v1258 = vadd.f32 %v1182, 0.2548296
    %v1259 = vadd.f32 %v1183, 0.2548296
    %v1260 = vadd.f32 %v1184, 0.2548296
    %v1261 = vadd.f32 %v1185, 0.2548296
    %v1262 = vadd.f32 %v1186, 0.2548296
    %v1263 = vadd.f32 %v1187, 0.2548296
    %v1264 = vadd.f32 %v1188, 0.2548296
    %v1265 = vmul.f32 %v1189, %v506
    %v1266 = vmul.f32 %v1190, %v508
    %v1267 = vmul.f32 %v1191, %v510
    %v1268 = vmul.f32 %v1192, %v512
    %v1269 = vmul.f32 %v1193, %v514
    %v1270 = vmul.f32 %v1194, %v516
    %v1271 = vmul.f32 %v1195, %v518
    %v1272 = vmul.f32 %v1196, %v520
    %v1273 = vmul.f32 %v1197, %v522
    %v1274 = vmul.f32 %v1198, %v524
    %v1275 = vmul.f32 %v1199, %v526
    %v1276 = vmul.f32 %v1200, %v528
    %v1277 = vmul.f32 %v1201, %v530
    %v1278 = vmul.f32 %v1202, %v532
    %v1279 = vmul.f32 %v1203, %v534
    %v1280 = vmul.f32 %v1204, %v536
    %v1281 = vmul.f32 %v1205, %v538
    %v1282 = vmul.f32 %v1206, %v540
    %v1283 = vmul.f32 %v1207, %v542
    %v1284 = vmul.f32 %v1208, %v544
    %v1285 = vmul.f32 %v1209, %v546
    %v1286 = vmul.f32 %v1210, %v548
    %v1287 = vmul.f32 %v1211, %v550
    %v1288 = vmul.f32 %v1212, %v552
    %v1289 = vmul.f32 %v1213, %v554
    %v1290 = vmul.f32 %v1214, %v556
    %v1291 = vmul.f32 %v1215, %v558
    %v1292 = vmul.f32 %v1216, %v560
    %v1293 = vmul.f32 %v1217, %v562
    %v1294 = vmul.f32 %v1218, %v564
    %v1295 = vmul.f32 %v1219, %v566
    %v1296 = vmul.f32 %v1220, %v568
    %v1297 = vmul.f32 %v1221, %v570
    %v1298 = vmul.f32 %v1222, %v572
    %v1299 = vmul.f32 %v1223, %v574
    %v1300 = vmul.f32 %v1224, %v576
    %v1301 = vmul.f32 %v1225, %v578
    %v1302 = vmul.f32 %v1226, %v580
    %v1303 = vmul.f32 %v1227, %v582
    %v1304 = vmul.f32 %v1228, %v584
    %v1305 = vmul.f32 %v1229, %v586
    %v1306 = vmul.f32 %v1230, %v588
    %v1307 = vmul.f32 %v1231, %v590
    %v1308 = vmul.f32 %v1232, %v592
    %v1309 = vmul.f32 %v1233, %v594
    %v1310 = vmul.f32 %v1234, %v596
    %v1311 = vmul.f32 %v1235, %v598
    %v1312 = vmul.f32 %v1236, %v600
    %v1313 = vmul.f32 %v1237, %v602
    %v1314 = vmul.f32 %v1238, %v604
    %v1315 = vmul.f32 %v1239, %v606
    %v1316 = vmul.f32 %v1240, %v608
    %v1317 = vmul.f32 %v1241, %v610
    %v1318 = vmul.f32 %v1242, %v612
    %v1319 = vmul.f32 %v1243, %v614
    %v1320 = vmul.f32 %v1244, %v616
    %v1321 = vmul.f32 %v1245, %v618
    %v1322 = vmul.f32 %v1246, %v620
    %v1323 = vmul.f32 %v1247, %v622
    %v1324 = vmul.f32 %v1248, %v624
    %v1325 = vmul.f32 %v1249, %v626
    %v1326 = vmul.f32 %v1250, %v628
    %v1327 = vmul.f32 %v1251, %v630
    %v1328 = vmul.f32 %v1252, %v632
    %v1329 = vmul.f32 %v1253, %v634
    %v1330 = vmul.f32 %v1254, %v636
    %v1331 = vmul.f32 %v1255, %v638
    %v1332 = vmul.f32 %v1256, %v640
    %v1333 = vmul.f32 %v1257, %v642
    %v1334 = vmul.f32 %v1258, %v644
    %v1335 = vmul.f32 %v1259, %v646
    %v1336 = vmul.f32 %v1260, %v648
    %v1337 = vmul.f32 %v1261, %v650
    %v1338 = vmul.f32 %v1262, %v652
    %v1339 = vmul.f32 %v1263, %v654
    %v1340 = vmul.f32 %v1264, %v656
    %v1341 = vsub.f32 0.0, %v277
    %v1342 = vsub.f32 0.0, %v278
    %v1343 = vsub.f32 0.0, %v279
    %v1344 = vsub.f32 0.0, %v280
    %v1345 = vsub.f32 0.0, %v281
    %v1346 = vsub.f32 0.0, %v282
    %v1347 = vsub.f32 0.0, %v283
    %v1348 = vsub.f32 0.0, %v284
    %v1349 = vsub.f32 0.0, %v285
    %v1350 = vsub.f32 0.0, %v286
    %v1351 = vsub.f32 0.0, %v287
    %v1352 = vsub.f32 0.0, %v288
    %v1353 = vsub.f32 0.0, %v289
    %v1354 = vsub.f32 0.0, %v290
    %v1355 = vsub.f32 0.0, %v291
    %v1356 = vsub.f32 0.0, %v292
    %v1357 = vsub.f32 0.0, %v293
    %v1358 = vsub.f32 0.0, %v294
    %v1359 = vsub.f32 0.0, %v295
    %v1360 = vsub.f32 0.0, %v296
    %v1361 = vsub.f32 0.0, %v297
    %v1362 = vsub.f32 0.0, %v298
    %v1363 = vsub.f32 0.0, %v299
    %v1364 = vsub.f32 0.0, %v300
    %v1365 = vsub.f32 0.0, %v301
    %v1366 = vsub.f32 0.0, %v302
    %v1367 = vsub.f32 0.0, %v303
    %v1368 = vsub.f32 0.0, %v304
    %v1369 = vsub.f32 0.0, %v305
    %v1370 = vsub.f32 0.0, %v306
    %v1371 = vsub.f32 0.0, %v307
    %v1372 = vsub.f32 0.0, %v308
    %v1373 = vsub.f32 0.0, %v309
    %v1374 = vsub.f32 0.0, %v310
    %v1375 = vsub.f32 0.0, %v311
    %v1376 = vsub.f32 0.0, %v312
    %v1377 = vsub.f32 0.0, %v313
    %v1378 = vsub.f32 0.0, %v314
    %v1379 = vsub.f32 0.0, %v315
    %v1380 = vsub.f32 0.0, %v316
    %v1381 = vsub.f32 0.0, %v317
    %v1382 = vsub.f32 0.0, %v318
    %v1383 = vsub.f32 0.0, %v319
    %v1384 = vsub.f32 0.0, %v320
    %v1385 = vsub.f32 0.0, %v321
    %v1386 = vsub.f32 0.0, %v322
    %v1387 = vsub.f32 0.0, %v323
    %v1388 = vsub.f32 0.0, %v324
    %v1389 = vsub.f32 0.0, %v325
    %v1390 = vsub.f32 0.0, %v326
    %v1391 = vsub.f32 0.0, %v327
    %v1392 = vsub.f32 0.0, %v328
    %v1393 = vsub.f32 0.0, %v329
    %v1394 = vsub.f32 0.0, %v330
    %v1395 = vsub.f32 0.0, %v331
    %v1396 = vsub.f32 0.0, %v332
    %v1397 = vsub.f32 0.0, %v333
    %v1398 = vsub.f32 0.0, %v334
    %v1399 = vsub.f32 0.0, %v335
    %v1400 = vsub.f32 0.0, %v336
    %v1401 = vsub.f32 0.0, %v337
    %v1402 = vsub.f32 0.0, %v338
    %v1403 = vsub.f32 0.0, %v339
    %v1404 = vsub.f32 0.0, %v340
    %v1405 = vsub.f32 0.0, %v341
    %v1406 = vsub.f32 0.0, %v342
    %v1407 = vsub.f32 0.0, %v343
    %v1408 = vsub.f32 0.0, %v344
    %v1409 = vsub.f32 0.0, %v345
    %v1410 = vsub.f32 0.0, %v346
    %v1411 = vsub.f32 0.0, %v347
    %v1412 = vsub.f32 0.0, %v348
    %v1413 = vsub.f32 0.0, %v349
    %v1414 = vsub.f32 0.0, %v350
    %v1415 = vsub.f32 0.0, %v351
    %v1416 = vsub.f32 0.0, %v352
    %v1417 = vmul.f32 %v1341, %v277
    %v1418 = vmul.f32 %v1342, %v278
    %v1419 = vmul.f32 %v1343, %v279
    %v1420 = vmul.f32 %v1344, %v280
    %v1421 = vmul.f32 %v1345, %v281
    %v1422 = vmul.f32 %v1346, %v282
    %v1423 = vmul.f32 %v1347, %v283
    %v1424 = vmul.f32 %v1348, %v284
    %v1425 = vmul.f32 %v1349, %v285
    %v1426 = vmul.f32 %v1350, %v286
    %v1427 = vmul.f32 %v1351, %v287
    %v1428 = vmul.f32 %v1352, %v288
    %v1429 = vmul.f32 %v1353, %v289
    %v1430 = vmul.f32 %v1354, %v290
    %v1431 = vmul.f32 %v1355, %v291
    %v1432 = vmul.f32 %v1356, %v292
    %v1433 = vmul.f32 %v1357, %v293
    %v1434 = vmul.f32 %v1358, %v294
    %v1435 = vmul.f32 %v1359, %v295
    %v1436 = vmul.f32 %v1360, %v296
    %v1437 = vmul.f32 %v1361, %v297
    %v1438 = vmul.f32 %v1362, %v298
    %v1439 = vmul.f32 %v1363, %v299
    %v1440 = vmul.f32 %v1364, %v300
    %v1441 = vmul.f32 %v1365, %v301
    %v1442 = vmul.f32 %v1366, %v302
    %v1443 = vmul.f32 %v1367, %v303
    %v1444 = vmul.f32 %v1368, %v304
    %v1445 = vmul.f32 %v1369, %v305
    %v1446 = vmul.f32 %v1370, %v306
    %v1447 = vmul.f32 %v1371, %v307
    %v1448 = vmul.f32 %v1372, %v308
    %v1449 = vmul.f32 %v1373, %v309
    %v1450 = vmul.f32 %v1374, %v310
    %v1451 = vmul.f32 %v1375, %v311
    %v1452 = vmul.f32 %v1376, %v312
    %v1453 = vmul.f32 %v1377, %v313
    %v1454 = vmul.f32 %v1378, %v314
    %v1455 = vmul.f32 %v1379, %v315
    %v1456 = vmul.f32 %v1380, %v316
    %v1457 = vmul.f32 %v1381, %v317
    %v1458 = vmul.f32 %v1382, %v318
    %v1459 = vmul.f32 %v1383, %v319
    %v1460 = vmul.f32 %v1384, %v320
    %v1461 = vmul.f32 %v1385, %v321
    %v1462 = vmul.f32 %v1386, %v322
    %v1463 = vmul.f32 %v1387, %v323
    %v1464 = vmul.f32 %v1388, %v324
    %v1465 = vmul.f32 %v1389, %v325
    %v1466 = vmul.f32 %v1390, %v326
    %v1467 = vmul.f32 %v1391, %v327
    %v1468 = vmul.f32 %v1392, %v328
    %v1469 = vmul.f32 %v1393, %v329
    %v1470 = vmul.f32 %v1394, %v330
    %v1471 = vmul.f32 %v1395, %v331
    %v1472 = vmul.f32 %v1396, %v332
    %v1473 = vmul.f32 %v1397, %v333
    %v1474 = vmul.f32 %v1398, %v334
    %v1475 = vmul.f32 %v1399, %v335
    %v1476 = vmul.f32 %v1400, %v336
    %v1477 = vmul.f32 %v1401, %v337
    %v1478 = vmul.f32 %v1402, %v338
    %v1479 = vmul.f32 %v1403, %v339
    %v1480 = vmul.f32 %v1404, %v340
    %v1481 = vmul.f32 %v1405, %v341
    %v1482 = vmul.f32 %v1406, %v342
    %v1483 = vmul.f32 %v1407, %v343
    %v1484 = vmul.f32 %v1408, %v344
    %v1485 = vmul.f32 %v1409, %v345
    %v1486 = vmul.f32 %v1410, %v346
    %v1487 = vmul.f32 %v1411, %v347
    %v1488 = vmul.f32 %v1412, %v348
    %v1489 = vmul.f32 %v1413, %v349
    %v1490 = vmul.f32 %v1414, %v350
    %v1491 = vmul.f32 %v1415, %v351
    %v1492 = vmul.f32 %v1416, %v352
    %v1493 = vmul.f32 %v1417, 1.442695
    %v1494 = vpow.pop %v1493
    %v1495 = vmul.f32 %v1418, 1.442695
    %v1496 = vpow.pop %v1495
    %v1497 = vmul.f32 %v1419, 1.442695
    %v1498 = vpow.pop %v1497
    %v1499 = vmul.f32 %v1420, 1.442695
    %v1500 = vpow.pop %v1499
    %v1501 = vmul.f32 %v1421, 1.442695
    %v1502 = vpow.pop %v1501
    %v1503 = vmul.f32 %v1422, 1.442695
    %v1504 = vpow.pop %v1503
    %v1505 = vmul.f32 %v1423, 1.442695
    %v1506 = vpow.pop %v1505
    %v1507 = vmul.f32 %v1424, 1.442695
    %v1508 = vpow.pop %v1507
    %v1509 = vmul.f32 %v1425, 1.442695
    %v1510 = vpow.pop %v1509
    %v1511 = vmul.f32 %v1426, 1.442695
    %v1512 = vpow.pop %v1511
    %v1513 = vmul.f32 %v1427, 1.442695
    %v1514 = vpow.pop %v1513
    %v1515 = vmul.f32 %v1428, 1.442695
    %v1516 = vpow.pop %v1515
    %v1517 = vmul.f32 %v1429, 1.442695
    %v1518 = vpow.pop %v1517
    %v1519 = vmul.f32 %v1430, 1.442695
    %v1520 = vpow.pop %v1519
    %v1521 = vmul.f32 %v1431, 1.442695
    %v1522 = vpow.pop %v1521
    %v1523 = vmul.f32 %v1432, 1.442695
    %v1524 = vpow.pop %v1523
    %v1525 = vmul.f32 %v1433, 1.442695
    %v1526 = vpow.pop %v1525
    %v1527 = vmul.f32 %v1434, 1.442695
    %v1528 = vpow.pop %v1527
    %v1529 = vmul.f32 %v1435, 1.442695
    %v1530 = vpow.pop %v1529
    %v1531 = vmul.f32 %v1436, 1.442695
    %v1532 = vpow.pop %v1531
    %v1533 = vmul.f32 %v1437, 1.442695
    %v1534 = vpow.pop %v1533
    %v1535 = vmul.f32 %v1438, 1.442695
    %v1536 = vpow.pop %v1535
    %v1537 = vmul.f32 %v1439, 1.442695
    %v1538 = vpow.pop %v1537
    %v1539 = vmul.f32 %v1440, 1.442695
    %v1540 = vpow.pop %v1539
    %v1541 = vmul.f32 %v1441, 1.442695
    %v1542 = vpow.pop %v1541
    %v1543 = vmul.f32 %v1442, 1.442695
    %v1544 = vpow.pop %v1543
    %v1545 = vmul.f32 %v1443, 1.442695
    %v1546 = vpow.pop %v1545
    %v1547 = vmul.f32 %v1444, 1.442695
    %v1548 = vpow.pop %v1547
    %v1549 = vmul.f32 %v1445, 1.442695
    %v1550 = vpow.pop %v1549
    %v1551 = vmul.f32 %v1446, 1.442695
    %v1552 = vpow.pop %v1551
    %v1553 = vmul.f32 %v1447, 1.442695
    %v1554 = vpow.pop %v1553
    %v1555 = vmul.f32 %v1448, 1.442695
    %v1556 = vpow.pop %v1555
    %v1557 = vmul.f32 %v1449, 1.442695
    %v1558 = vpow.pop %v1557
    %v1559 = vmul.f32 %v1450, 1.442695
    %v1560 = vpow.pop %v1559
    %v1561 = vmul.f32 %v1451, 1.442695
    %v1562 = vpow.pop %v1561
    %v1563 = vmul.f32 %v1452, 1.442695
    %v1564 = vpow.pop %v1563
    %v1565 = vmul.f32 %v1453, 1.442695
    %v1566 = vpow.pop %v1565
    %v1567 = vmul.f32 %v1454, 1.442695
    %v1568 = vpow.pop %v1567
    %v1569 = vmul.f32 %v1455, 1.442695
    %v1570 = vpow.pop %v1569
    %v1571 = vmul.f32 %v1456, 1.442695
    %v1572 = vpow.pop %v1571
    %v1573 = vmul.f32 %v1457, 1.442695
    %v1574 = vpow.pop %v1573
    %v1575 = vmul.f32 %v1458, 1.442695
    %v1576 = vpow.pop %v1575
    %v1577 = vmul.f32 %v1459, 1.442695
    %v1578 = vpow.pop %v1577
    %v1579 = vmul.f32 %v1460, 1.442695
    %v1580 = vpow.pop %v1579
    %v1581 = vmul.f32 %v1461, 1.442695
    %v1582 = vpow.pop %v1581
    %v1583 = vmul.f32 %v1462, 1.442695
    %v1584 = vpow.pop %v1583
    %v1585 = vmul.f32 %v1463, 1.442695
    %v1586 = vpow.pop %v1585
    %v1587 = vmul.f32 %v1464, 1.442695
    %v1588 = vpow.pop %v1587
    %v1589 = vmul.f32 %v1465, 1.442695
    %v1590 = vpow.pop %v1589
    %v1591 = vmul.f32 %v1466, 1.442695
    %v1592 = vpow.pop %v1591
    %v1593 = vmul.f32 %v1467, 1.442695
    %v1594 = vpow.pop %v1593
    %v1595 = vmul.f32 %v1468, 1.442695
    %v1596 = vpow.pop %v1595
    %v1597 = vmul.f32 %v1469, 1.442695
    %v1598 = vpow.pop %v1597
    %v1599 = vmul.f32 %v1470, 1.442695
    %v1600 = vpow.pop %v1599
    %v1601 = vmul.f32 %v1471, 1.442695
    %v1602 = vpow.pop %v1601
    %v1603 = vmul.f32 %v1472, 1.442695
    %v1604 = vpow.pop %v1603
    %v1605 = vmul.f32 %v1473, 1.442695
    %v1606 = vpow.pop %v1605
    %v1607 = vmul.f32 %v1474, 1.442695
    %v1608 = vpow.pop %v1607
    %v1609 = vmul.f32 %v1475, 1.442695
    %v1610 = vpow.pop %v1609
    %v1611 = vmul.f32 %v1476, 1.442695
    %v1612 = vpow.pop %v1611
    %v1613 = vmul.f32 %v1477, 1.442695
    %v1614 = vpow.pop %v1613
    %v1615 = vmul.f32 %v1478, 1.442695
    %v1616 = vpow.pop %v1615
    %v1617 = vmul.f32 %v1479, 1.442695
    %v1618 = vpow.pop %v1617
    %v1619 = vmul.f32 %v1480, 1.442695
    %v1620 = vpow.pop %v1619
    %v1621 = vmul.f32 %v1481, 1.442695
    %v1622 = vpow.pop %v1621
    %v1623 = vmul.f32 %v1482, 1.442695
    %v1624 = vpow.pop %v1623
    %v1625 = vmul.f32 %v1483, 1.442695
    %v1626 = vpow.pop %v1625
    %v1627 = vmul.f32 %v1484, 1.442695
    %v1628 = vpow.pop %v1627
    %v1629 = vmul.f32 %v1485, 1.442695
    %v1630 = vpow.pop %v1629
    %v1631 = vmul.f32 %v1486, 1.442695
    %v1632 = vpow.pop %v1631
    %v1633 = vmul.f32 %v1487, 1.442695
    %v1634 = vpow.pop %v1633
    %v1635 = vmul.f32 %v1488, 1.442695
    %v1636 = vpow.pop %v1635
    %v1637 = vmul.f32 %v1489, 1.442695
    %v1638 = vpow.pop %v1637
    %v1639 = vmul.f32 %v1490, 1.442695
    %v1640 = vpow.pop %v1639
    %v1641 = vmul.f32 %v1491, 1.442695
    %v1642 = vpow.pop %v1641
    %v1643 = vmul.f32 %v1492, 1.442695
    %v1644 = vpow.pop %v1643
    %v1645 = vmul.f32 %v1265, %v1494
    %v1646 = vmul.f32 %v1266, %v1496
    %v1647 = vmul.f32 %v1267, %v1498
    %v1648 = vmul.f32 %v1268, %v1500
    %v1649 = vmul.f32 %v1269, %v1502
    %v1650 = vmul.f32 %v1270, %v1504
    %v1651 = vmul.f32 %v1271, %v1506
    %v1652 = vmul.f32 %v1272, %v1508
    %v1653 = vmul.f32 %v1273, %v1510
    %v1654 = vmul.f32 %v1274, %v1512
    %v1655 = vmul.f32 %v1275, %v1514
    %v1656 = vmul.f32 %v1276, %v1516
    %v1657 = vmul.f32 %v1277, %v1518
    %v1658 = vmul.f32 %v1278, %v1520
    %v1659 = vmul.f32 %v1279, %v1522
    %v1660 = vmul.f32 %v1280, %v1524
    %v1661 = vmul.f32 %v1281, %v1526
    %v1662 = vmul.f32 %v1282, %v1528
    %v1663 = vmul.f32 %v1283, %v1530
    %v1664 = vmul.f32 %v1284, %v1532
    %v1665 = vmul.f32 %v1285, %v1534
    %v1666 = vmul.f32 %v1286, %v1536
    %v1667 = vmul.f32 %v1287, %v1538
    %v1668 = vmul.f32 %v1288, %v1540
    %v1669 = vmul.f32 %v1289, %v1542
    %v1670 = vmul.f32 %v1290, %v1544
    %v1671 = vmul.f32 %v1291, %v1546
    %v1672 = vmul.f32 %v1292, %v1548
    %v1673 = vmul.f32 %v1293, %v1550
    %v1674 = vmul.f32 %v1294, %v1552
    %v1675 = vmul.f32 %v1295, %v1554
    %v1676 = vmul.f32 %v1296, %v1556
    %v1677 = vmul.f32 %v1297, %v1558
    %v1678 = vmul.f32 %v1298, %v1560
    %v1679 = vmul.f32 %v1299, %v1562
    %v1680 = vmul.f32 %v1300, %v1564
    %v1681 = vmul.f32 %v1301, %v1566
    %v1682 = vmul.f32 %v1302, %v1568
    %v1683 = vmul.f32 %v1303, %v1570
    %v1684 = vmul.f32 %v1304, %v1572
    %v1685 = vmul.f32 %v1305, %v1574
    %v1686 = vmul.f32 %v1306, %v1576
    %v1687 = vmul.f32 %v1307, %v1578
    %v1688 = vmul.f32 %v1308, %v1580
    %v1689 = vmul.f32 %v1309, %v1582
    %v1690 = vmul.f32 %v1310, %v1584
    %v1691 = vmul.f32 %v1311, %v1586
    %v1692 = vmul.f32 %v1312, %v1588
    %v1693 = vmul.f32 %v1313, %v1590
    %v1694 = vmul.f32 %v1314, %v1592
    %v1695 = vmul.f32 %v1315, %v1594
    %v1696 = vmul.f32 %v1316, %v1596
    %v1697 = vmul.f32 %v1317, %v1598
    %v1698 = vmul.f32 %v1318, %v1600
    %v1699 = vmul.f32 %v1319, %v1602
    %v1700 = vmul.f32 %v1320, %v1604
    %v1701 = vmul.f32 %v1321, %v1606
    %v1702 = vmul.f32 %v1322, %v1608
    %v1703 = vmul.f32 %v1323, %v1610
    %v1704 = vmul.f32 %v1324, %v1612
    %v1705 = vmul.f32 %v1325, %v1614
    %v1706 = vmul.f32 %v1326, %v1616
    %v1707 = vmul.f32 %v1327, %v1618
    %v1708 = vmul.f32 %v1328, %v1620
    %v1709 = vmul.f32 %v1329, %v1622
    %v1710 = vmul.f32 %v1330, %v1624
    %v1711 = vmul.f32 %v1331, %v1626
    %v1712 = vmul.f32 %v1332, %v1628
    %v1713 = vmul.f32 %v1333, %v1630
    %v1714 = vmul.f32 %v1334, %v1632
    %v1715 = vmul.f32 %v1335, %v1634
    %v1716 = vmul.f32 %v1336, %v1636
    %v1717 = vmul.f32 %v1337, %v1638
    %v1718 = vmul.f32 %v1338, %v1640
    %v1719 = vmul.f32 %v1339, %v1642
    %v1720 = vmul.f32 %v1340, %v1644
    %v1721 = vsub.f32 1.0, %v1645
    %v1722 = vsub.f32 1.0, %v1646
    %v1723 = vsub.f32 1.0, %v1647
    %v1724 = vsub.f32 1.0, %v1648
    %v1725 = vsub.f32 1.0, %v1649
    %v1726 = vsub.f32 1.0, %v1650
    %v1727 = vsub.f32 1.0, %v1651
    %v1728 = vsub.f32 1.0, %v1652
    %v1729 = vsub.f32 1.0, %v1653
    %v1730 = vsub.f32 1.0, %v1654
    %v1731 = vsub.f32 1.0, %v1655
    %v1732 = vsub.f32 1.0, %v1656
    %v1733 = vsub.f32 1.0, %v1657
    %v1734 = vsub.f32 1.0, %v1658
    %v1735 = vsub.f32 1.0, %v1659
    %v1736 = vsub.f32 1.0, %v1660
    %v1737 = vsub.f32 1.0, %v1661
    %v1738 = vsub.f32 1.0, %v1662
    %v1739 = vsub.f32 1.0, %v1663
    %v1740 = vsub.f32 1.0, %v1664
    %v1741 = vsub.f32 1.0, %v1665
    %v1742 = vsub.f32 1.0, %v1666
    %v1743 = vsub.f32 1.0, %v1667
    %v1744 = vsub.f32 1.0, %v1668
    %v1745 = vsub.f32 1.0, %v1669
    %v1746 = vsub.f32 1.0, %v1670
    %v1747 = vsub.f32 1.0, %v1671
    %v1748 = vsub.f32 1.0, %v1672
    %v1749 = vsub.f32 1.0, %v1673
    %v1750 = vsub.f32 1.0, %v1674
    %v1751 = vsub.f32 1.0, %v1675
    %v1752 = vsub.f32 1.0, %v1676
    %v1753 = vsub.f32 1.0, %v1677
    %v1754 = vsub.f32 1.0, %v1678
    %v1755 = vsub.f32 1.0, %v1679
    %v1756 = vsub.f32 1.0, %v1680
    %v1757 = vsub.f32 1.0, %v1681
    %v1758 = vsub.f32 1.0, %v1682
    %v1759 = vsub.f32 1.0, %v1683
    %v1760 = vsub.f32 1.0, %v1684
    %v1761 = vsub.f32 1.0, %v1685
    %v1762 = vsub.f32 1.0, %v1686
    %v1763 = vsub.f32 1.0, %v1687
    %v1764 = vsub.f32 1.0, %v1688
    %v1765 = vsub.f32 1.0, %v1689
    %v1766 = vsub.f32 1.0, %v1690
    %v1767 = vsub.f32 1.0, %v1691
    %v1768 = vsub.f32 1.0, %v1692
    %v1769 = vsub.f32 1.0, %v1693
    %v1770 = vsub.f32 1.0, %v1694
    %v1771 = vsub.f32 1.0, %v1695
    %v1772 = vsub.f32 1.0, %v1696
    %v1773 = vsub.f32 1.0, %v1697
    %v1774 = vsub.f32 1.0, %v1698
    %v1775 = vsub.f32 1.0, %v1699
    %v1776 = vsub.f32 1.0, %v1700
    %v1777 = vsub.f32 1.0, %v1701
    %v1778 = vsub.f32 1.0, %v1702
    %v1779 = vsub.f32 1.0, %v1703
    %v1780 = vsub.f32 1.0, %v1704
    %v1781 = vsub.f32 1.0, %v1705
    %v1782 = vsub.f32 1.0, %v1706
    %v1783 = vsub.f32 1.0, %v1707
    %v1784 = vsub.f32 1.0, %v1708
    %v1785 = vsub.f32 1.0, %v1709
    %v1786 = vsub.f32 1.0, %v1710
    %v1787 = vsub.f32 1.0, %v1711
    %v1788 = vsub.f32 1.0, %v1712
    %v1789 = vsub.f32 1.0, %v1713
    %v1790 = vsub.f32 1.0, %v1714
    %v1791 = vsub.f32 1.0, %v1715
    %v1792 = vsub.f32 1.0, %v1716
    %v1793 = vsub.f32 1.0, %v1717
    %v1794 = vsub.f32 1.0, %v1718
    %v1795 = vsub.f32 1.0, %v1719
    %v1796 = vsub.f32 1.0, %v1720
    %vm1797 = vcmp.ge.f32.partialorder %v201, 0.0
    %vm1798 = vcmp.ge.f32.partialorder %v202, 0.0
    %vm1799 = vcmp.ge.f32.partialorder %v203, 0.0
    %vm1800 = vcmp.ge.f32.partialorder %v204, 0.0
    %vm1801 = vcmp.ge.f32.partialorder %v205, 0.0
    %vm1802 = vcmp.ge.f32.partialorder %v206, 0.0
    %vm1803 = vcmp.ge.f32.partialorder %v207, 0.0
    %vm1804 = vcmp.ge.f32.partialorder %v208, 0.0
    %vm1805 = vcmp.ge.f32.partialorder %v209, 0.0
    %vm1806 = vcmp.ge.f32.partialorder %v210, 0.0
    %vm1807 = vcmp.ge.f32.partialorder %v211, 0.0
    %vm1808 = vcmp.ge.f32.partialorder %v212, 0.0
    %vm1809 = vcmp.ge.f32.partialorder %v213, 0.0
    %vm1810 = vcmp.ge.f32.partialorder %v214, 0.0
    %vm1811 = vcmp.ge.f32.partialorder %v215, 0.0
    %vm1812 = vcmp.ge.f32.partialorder %v216, 0.0
    %vm1813 = vcmp.ge.f32.partialorder %v217, 0.0
    %vm1814 = vcmp.ge.f32.partialorder %v218, 0.0
    %vm1815 = vcmp.ge.f32.partialorder %v219, 0.0
    %vm1816 = vcmp.ge.f32.partialorder %v220, 0.0
    %vm1817 = vcmp.ge.f32.partialorder %v221, 0.0
    %vm1818 = vcmp.ge.f32.partialorder %v222, 0.0
    %vm1819 = vcmp.ge.f32.partialorder %v223, 0.0
    %vm1820 = vcmp.ge.f32.partialorder %v224, 0.0
    %vm1821 = vcmp.ge.f32.partialorder %v225, 0.0
    %vm1822 = vcmp.ge.f32.partialorder %v226, 0.0
    %vm1823 = vcmp.ge.f32.partialorder %v227, 0.0
    %vm1824 = vcmp.ge.f32.partialorder %v228, 0.0
    %vm1825 = vcmp.ge.f32.partialorder %v229, 0.0
    %vm1826 = vcmp.ge.f32.partialorder %v230, 0.0
    %vm1827 = vcmp.ge.f32.partialorder %v231, 0.0
    %vm1828 = vcmp.ge.f32.partialorder %v232, 0.0
    %vm1829 = vcmp.ge.f32.partialorder %v233, 0.0
    %vm1830 = vcmp.ge.f32.partialorder %v234, 0.0
    %vm1831 = vcmp.ge.f32.partialorder %v235, 0.0
    %vm1832 = vcmp.ge.f32.partialorder %v236, 0.0
    %vm1833 = vcmp.ge.f32.partialorder %v237, 0.0
    %vm1834 = vcmp.ge.f32.partialorder %v238, 0.0
    %vm1835 = vcmp.ge.f32.partialorder %v239, 0.0
    %vm1836 = vcmp.ge.f32.partialorder %v240, 0.0
    %vm1837 = vcmp.ge.f32.partialorder %v241, 0.0
    %vm1838 = vcmp.ge.f32.partialorder %v242, 0.0
    %vm1839 = vcmp.ge.f32.partialorder %v243, 0.0
    %vm1840 = vcmp.ge.f32.partialorder %v244, 0.0
    %vm1841 = vcmp.ge.f32.partialorder %v245, 0.0
    %vm1842 = vcmp.ge.f32.partialorder %v246, 0.0
    %vm1843 = vcmp.ge.f32.partialorder %v247, 0.0
    %vm1844 = vcmp.ge.f32.partialorder %v248, 0.0
    %vm1845 = vcmp.ge.f32.partialorder %v249, 0.0
    %vm1846 = vcmp.ge.f32.partialorder %v250, 0.0
    %vm1847 = vcmp.ge.f32.partialorder %v251, 0.0
    %vm1848 = vcmp.ge.f32.partialorder %v252, 0.0
    %vm1849 = vcmp.ge.f32.partialorder %v253, 0.0
    %vm1850 = vcmp.ge.f32.partialorder %v254, 0.0
    %vm1851 = vcmp.ge.f32.partialorder %v255, 0.0
    %vm1852 = vcmp.ge.f32.partialorder %v256, 0.0
    %vm1853 = vcmp.ge.f32.partialorder %v257, 0.0
    %vm1854 = vcmp.ge.f32.partialorder %v258, 0.0
    %vm1855 = vcmp.ge.f32.partialorder %v259, 0.0
    %vm1856 = vcmp.ge.f32.partialorder %v260, 0.0
    %vm1857 = vcmp.ge.f32.partialorder %v261, 0.0
    %vm1858 = vcmp.ge.f32.partialorder %v262, 0.0
    %vm1859 = vcmp.ge.f32.partialorder %v263, 0.0
    %vm1860 = vcmp.ge.f32.partialorder %v264, 0.0
    %vm1861 = vcmp.ge.f32.partialorder %v265, 0.0
    %vm1862 = vcmp.ge.f32.partialorder %v266, 0.0
    %vm1863 = vcmp.ge.f32.partialorder %v267, 0.0
    %vm1864 = vcmp.ge.f32.partialorder %v268, 0.0
    %vm1865 = vcmp.ge.f32.partialorder %v269, 0.0
    %vm1866 = vcmp.ge.f32.partialorder %v270, 0.0
    %vm1867 = vcmp.ge.f32.partialorder %v271, 0.0
    %vm1868 = vcmp.ge.f32.partialorder %v272, 0.0
    %vm1869 = vcmp.ge.f32.partialorder %v273, 0.0
    %vm1870 = vcmp.ge.f32.partialorder %v274, 0.0
    %vm1871 = vcmp.ge.f32.partialorder %v275, 0.0
    %vm1872 = vcmp.ge.f32.partialorder %v276, 0.0
    %v1873 = vsub.f32 0.0, %v1721
    %v1874 = vsub.f32 0.0, %v1722
    %v1875 = vsub.f32 0.0, %v1723
    %v1876 = vsub.f32 0.0, %v1724
    %v1877 = vsub.f32 0.0, %v1725
    %v1878 = vsub.f32 0.0, %v1726
    %v1879 = vsub.f32 0.0, %v1727
    %v1880 = vsub.f32 0.0, %v1728
    %v1881 = vsub.f32 0.0, %v1729
    %v1882 = vsub.f32 0.0, %v1730
    %v1883 = vsub.f32 0.0, %v1731
    %v1884 = vsub.f32 0.0, %v1732
    %v1885 = vsub.f32 0.0, %v1733
    %v1886 = vsub.f32 0.0, %v1734
    %v1887 = vsub.f32 0.0, %v1735
    %v1888 = vsub.f32 0.0, %v1736
    %v1889 = vsub.f32 0.0, %v1737
    %v1890 = vsub.f32 0.0, %v1738
    %v1891 = vsub.f32 0.0, %v1739
    %v1892 = vsub.f32 0.0, %v1740
    %v1893 = vsub.f32 0.0, %v1741
    %v1894 = vsub.f32 0.0, %v1742
    %v1895 = vsub.f32 0.0, %v1743
    %v1896 = vsub.f32 0.0, %v1744
    %v1897 = vsub.f32 0.0, %v1745
    %v1898 = vsub.f32 0.0, %v1746
    %v1899 = vsub.f32 0.0, %v1747
    %v1900 = vsub.f32 0.0, %v1748
    %v1901 = vsub.f32 0.0, %v1749
    %v1902 = vsub.f32 0.0, %v1750
    %v1903 = vsub.f32 0.0, %v1751
    %v1904 = vsub.f32 0.0, %v1752
    %v1905 = vsub.f32 0.0, %v1753
    %v1906 = vsub.f32 0.0, %v1754
    %v1907 = vsub.f32 0.0, %v1755
    %v1908 = vsub.f32 0.0, %v1756
    %v1909 = vsub.f32 0.0, %v1757
    %v1910 = vsub.f32 0.0, %v1758
    %v1911 = vsub.f32 0.0, %v1759
    %v1912 = vsub.f32 0.0, %v1760
    %v1913 = vsub.f32 0.0, %v1761
    %v1914 = vsub.f32 0.0, %v1762
    %v1915 = vsub.f32 0.0, %v1763
    %v1916 = vsub.f32 0.0, %v1764
    %v1917 = vsub.f32 0.0, %v1765
    %v1918 = vsub.f32 0.0, %v1766
    %v1919 = vsub.f32 0.0, %v1767
    %v1920 = vsub.f32 0.0, %v1768
    %v1921 = vsub.f32 0.0, %v1769
    %v1922 = vsub.f32 0.0, %v1770
    %v1923 = vsub.f32 0.0, %v1771
    %v1924 = vsub.f32 0.0, %v1772
    %v1925 = vsub.f32 0.0, %v1773
    %v1926 = vsub.f32 0.0, %v1774
    %v1927 = vsub.f32 0.0, %v1775
    %v1928 = vsub.f32 0.0, %v1776
    %v1929 = vsub.f32 0.0, %v1777
    %v1930 = vsub.f32 0.0, %v1778
    %v1931 = vsub.f32 0.0, %v1779
    %v1932 = vsub.f32 0.0, %v1780
    %v1933 = vsub.f32 0.0, %v1781
    %v1934 = vsub.f32 0.0, %v1782
    %v1935 = vsub.f32 0.0, %v1783
    %v1936 = vsub.f32 0.0, %v1784
    %v1937 = vsub.f32 0.0, %v1785
    %v1938 = vsub.f32 0.0, %v1786
    %v1939 = vsub.f32 0.0, %v1787
    %v1940 = vsub.f32 0.0, %v1788
    %v1941 = vsub.f32 0.0, %v1789
    %v1942 = vsub.f32 0.0, %v1790
    %v1943 = vsub.f32 0.0, %v1791
    %v1944 = vsub.f32 0.0, %v1792
    %v1945 = vsub.f32 0.0, %v1793
    %v1946 = vsub.f32 0.0, %v1794
    %v1947 = vsub.f32 0.0, %v1795
    %v1948 = vsub.f32 0.0, %v1796
    %v1949 = vsel %vm1797, %v1721, %v1873
    %v1950 = vsel %vm1798, %v1722, %v1874
    %v1951 = vsel %vm1799, %v1723, %v1875
    %v1952 = vsel %vm1800, %v1724, %v1876
    %v1953 = vsel %vm1801, %v1725, %v1877
    %v1954 = vsel %vm1802, %v1726, %v1878
    %v1955 = vsel %vm1803, %v1727, %v1879
    %v1956 = vsel %vm1804, %v1728, %v1880
    %v1957 = vsel %vm1805, %v1729, %v1881
    %v1958 = vsel %vm1806, %v1730, %v1882
    %v1959 = vsel %vm1807, %v1731, %v1883
    %v1960 = vsel %vm1808, %v1732, %v1884
    %v1961 = vsel %vm1809, %v1733, %v1885
    %v1962 = vsel %vm1810, %v1734, %v1886
    %v1963 = vsel %vm1811, %v1735, %v1887
    %v1964 = vsel %vm1812, %v1736, %v1888
    %v1965 = vsel %vm1813, %v1737, %v1889
    %v1966 = vsel %vm1814, %v1738, %v1890
    %v1967 = vsel %vm1815, %v1739, %v1891
    %v1968 = vsel %vm1816, %v1740, %v1892
    %v1969 = vsel %vm1817, %v1741, %v1893
    %v1970 = vsel %vm1818, %v1742, %v1894
    %v1971 = vsel %vm1819, %v1743, %v1895
    %v1972 = vsel %vm1820, %v1744, %v1896
    %v1973 = vsel %vm1821, %v1745, %v1897
    %v1974 = vsel %vm1822, %v1746, %v1898
    %v1975 = vsel %vm1823, %v1747, %v1899
    %v1976 = vsel %vm1824, %v1748, %v1900
    %v1977 = vsel %vm1825, %v1749, %v1901
    %v1978 = vsel %vm1826, %v1750, %v1902
    %v1979 = vsel %vm1827, %v1751, %v1903
    %v1980 = vsel %vm1828, %v1752, %v1904
    %v1981 = vsel %vm1829, %v1753, %v1905
    %v1982 = vsel %vm1830, %v1754, %v1906
    %v1983 = vsel %vm1831, %v1755, %v1907
    %v1984 = vsel %vm1832, %v1756, %v1908
    %v1985 = vsel %vm1833, %v1757, %v1909
    %v1986 = vsel %vm1834, %v1758, %v1910
    %v1987 = vsel %vm1835, %v1759, %v1911
    %v1988 = vsel %vm1836, %v1760, %v1912
    %v1989 = vsel %vm1837, %v1761, %v1913
    %v1990 = vsel %vm1838, %v1762, %v1914
    %v1991 = vsel %vm1839, %v1763, %v1915
    %v1992 = vsel %vm1840, %v1764, %v1916
    %v1993 = vsel %vm1841, %v1765, %v1917
    %v1994 = vsel %vm1842, %v1766, %v1918
    %v1995 = vsel %vm1843, %v1767, %v1919
    %v1996 = vsel %vm1844, %v1768, %v1920
    %v1997 = vsel %vm1845, %v1769, %v1921
    %v1998 = vsel %vm1846, %v1770, %v1922
    %v1999 = vsel %vm1847, %v1771, %v1923
    %v2000 = vsel %vm1848, %v1772, %v1924
    %v2001 = vsel %vm1849, %v1773, %v1925
    %v2002 = vsel %vm1850, %v1774, %v1926
    %v2003 = vsel %vm1851, %v1775, %v1927
    %v2004 = vsel %vm1852, %v1776, %v1928
    %v2005 = vsel %vm1853, %v1777, %v1929
    %v2006 = vsel %vm1854, %v1778, %v1930
    %v2007 = vsel %vm1855, %v1779, %v1931
    %v2008 = vsel %vm1856, %v1780, %v1932
    %v2009 = vsel %vm1857, %v1781, %v1933
    %v2010 = vsel %vm1858, %v1782, %v1934
    %v2011 = vsel %vm1859, %v1783, %v1935
    %v2012 = vsel %vm1860, %v1784, %v1936
    %v2013 = vsel %vm1861, %v1785, %v1937
    %v2014 = vsel %vm1862, %v1786, %v1938
    %v2015 = vsel %vm1863, %v1787, %v1939
    %v2016 = vsel %vm1864, %v1788, %v1940
    %v2017 = vsel %vm1865, %v1789, %v1941
    %v2018 = vsel %vm1866, %v1790, %v1942
    %v2019 = vsel %vm1867, %v1791, %v1943
    %v2020 = vsel %vm1868, %v1792, %v1944
    %v2021 = vsel %vm1869, %v1793, %v1945
    %v2022 = vsel %vm1870, %v1794, %v1946
    %v2023 = vsel %vm1871, %v1795, %v1947
    %v2024 = vsel %vm1872, %v1796, %v1948
    %v2025 = vadd.f32 %v1949, 1.0
    %v2026 = vadd.f32 %v1950, 1.0
    %v2027 = vadd.f32 %v1951, 1.0
    %v2028 = vadd.f32 %v1952, 1.0
    %v2029 = vadd.f32 %v1953, 1.0
    %v2030 = vadd.f32 %v1954, 1.0
    %v2031 = vadd.f32 %v1955, 1.0
    %v2032 = vadd.f32 %v1956, 1.0
    %v2033 = vadd.f32 %v1957, 1.0
    %v2034 = vadd.f32 %v1958, 1.0
    %v2035 = vadd.f32 %v1959, 1.0
    %v2036 = vadd.f32 %v1960, 1.0
    %v2037 = vadd.f32 %v1961, 1.0
    %v2038 = vadd.f32 %v1962, 1.0
    %v2039 = vadd.f32 %v1963, 1.0
    %v2040 = vadd.f32 %v1964, 1.0
    %v2041 = vadd.f32 %v1965, 1.0
    %v2042 = vadd.f32 %v1966, 1.0
    %v2043 = vadd.f32 %v1967, 1.0
    %v2044 = vadd.f32 %v1968, 1.0
    %v2045 = vadd.f32 %v1969, 1.0
    %v2046 = vadd.f32 %v1970, 1.0
    %v2047 = vadd.f32 %v1971, 1.0
    %v2048 = vadd.f32 %v1972, 1.0
    %v2049 = vadd.f32 %v1973, 1.0
    %v2050 = vadd.f32 %v1974, 1.0
    %v2051 = vadd.f32 %v1975, 1.0
    %v2052 = vadd.f32 %v1976, 1.0
    %v2053 = vadd.f32 %v1977, 1.0
    %v2054 = vadd.f32 %v1978, 1.0
    %v2055 = vadd.f32 %v1979, 1.0
    %v2056 = vadd.f32 %v1980, 1.0
    %v2057 = vadd.f32 %v1981, 1.0
    %v2058 = vadd.f32 %v1982, 1.0
    %v2059 = vadd.f32 %v1983, 1.0
    %v2060 = vadd.f32 %v1984, 1.0
    %v2061 = vadd.f32 %v1985, 1.0
    %v2062 = vadd.f32 %v1986, 1.0
    %v2063 = vadd.f32 %v1987, 1.0
    %v2064 = vadd.f32 %v1988, 1.0
    %v2065 = vadd.f32 %v1989, 1.0
    %v2066 = vadd.f32 %v1990, 1.0
    %v2067 = vadd.f32 %v1991, 1.0
    %v2068 = vadd.f32 %v1992, 1.0
    %v2069 = vadd.f32 %v1993, 1.0
    %v2070 = vadd.f32 %v1994, 1.0
    %v2071 = vadd.f32 %v1995, 1.0
    %v2072 = vadd.f32 %v1996, 1.0
    %v2073 = vadd.f32 %v1997, 1.0
    %v2074 = vadd.f32 %v1998, 1.0
    %v2075 = vadd.f32 %v1999, 1.0
    %v2076 = vadd.f32 %v2000, 1.0
    %v2077 = vadd.f32 %v2001, 1.0
    %v2078 = vadd.f32 %v2002, 1.0
    %v2079 = vadd.f32 %v2003, 1.0
    %v2080 = vadd.f32 %v2004, 1.0
    %v2081 = vadd.f32 %v2005, 1.0
    %v2082 = vadd.f32 %v2006, 1.0
    %v2083 = vadd.f32 %v2007, 1.0
    %v2084 = vadd.f32 %v2008, 1.0
    %v2085 = vadd.f32 %v2009, 1.0
    %v2086 = vadd.f32 %v2010, 1.0
    %v2087 = vadd.f32 %v2011, 1.0
    %v2088 = vadd.f32 %v2012, 1.0
    %v2089 = vadd.f32 %v2013, 1.0
    %v2090 = vadd.f32 %v2014, 1.0
    %v2091 = vadd.f32 %v2015, 1.0
    %v2092 = vadd.f32 %v2016, 1.0
    %v2093 = vadd.f32 %v2017, 1.0
    %v2094 = vadd.f32 %v2018, 1.0
    %v2095 = vadd.f32 %v2019, 1.0
    %v2096 = vadd.f32 %v2020, 1.0
    %v2097 = vadd.f32 %v2021, 1.0
    %v2098 = vadd.f32 %v2022, 1.0
    %v2099 = vadd.f32 %v2023, 1.0
    %v2100 = vadd.f32 %v2024, 1.0
    %v2101 = vmul.f32 %v125, %v2025
    %v2102 = vmul.f32 %v126, %v2026
    %v2103 = vmul.f32 %v127, %v2027
    %v2104 = vmul.f32 %v128, %v2028
    %v2105 = vmul.f32 %v129, %v2029
    %v2106 = vmul.f32 %v130, %v2030
    %v2107 = vmul.f32 %v131, %v2031
    %v2108 = vmul.f32 %v132, %v2032
    %v2109 = vmul.f32 %v133, %v2033
    %v2110 = vmul.f32 %v134, %v2034
    %v2111 = vmul.f32 %v135, %v2035
    %v2112 = vmul.f32 %v136, %v2036
    %v2113 = vmul.f32 %v137, %v2037
    %v2114 = vmul.f32 %v138, %v2038
    %v2115 = vmul.f32 %v139, %v2039
    %v2116 = vmul.f32 %v140, %v2040
    %v2117 = vmul.f32 %v141, %v2041
    %v2118 = vmul.f32 %v142, %v2042
    %v2119 = vmul.f32 %v143, %v2043
    %v2120 = vmul.f32 %v144, %v2044
    %v2121 = vmul.f32 %v145, %v2045
    %v2122 = vmul.f32 %v146, %v2046
    %v2123 = vmul.f32 %v147, %v2047
    %v2124 = vmul.f32 %v148, %v2048
    %v2125 = vmul.f32 %v149, %v2049
    %v2126 = vmul.f32 %v150, %v2050
    %v2127 = vmul.f32 %v151, %v2051
    %v2128 = vmul.f32 %v152, %v2052
    %v2129 = vmul.f32 %v153, %v2053
    %v2130 = vmul.f32 %v154, %v2054
    %v2131 = vmul.f32 %v155, %v2055
    %v2132 = vmul.f32 %v156, %v2056
    %v2133 = vmul.f32 %v157, %v2057
    %v2134 = vmul.f32 %v158, %v2058
    %v2135 = vmul.f32 %v159, %v2059
    %v2136 = vmul.f32 %v160, %v2060
    %v2137 = vmul.f32 %v161, %v2061
    %v2138 = vmul.f32 %v162, %v2062
    %v2139 = vmul.f32 %v163, %v2063
    %v2140 = vmul.f32 %v164, %v2064
    %v2141 = vmul.f32 %v165, %v2065
    %v2142 = vmul.f32 %v166, %v2066
    %v2143 = vmul.f32 %v167, %v2067
    %v2144 = vmul.f32 %v168, %v2068
    %v2145 = vmul.f32 %v169, %v2069
    %v2146 = vmul.f32 %v170, %v2070
    %v2147 = vmul.f32 %v171, %v2071
    %v2148 = vmul.f32 %v172, %v2072
    %v2149 = vmul.f32 %v173, %v2073
    %v2150 = vmul.f32 %v174, %v2074
    %v2151 = vmul.f32 %v175, %v2075
    %v2152 = vmul.f32 %v176, %v2076
    %v2153 = vmul.f32 %v177, %v2077
    %v2154 = vmul.f32 %v178, %v2078
    %v2155 = vmul.f32 %v179, %v2079
    %v2156 = vmul.f32 %v180, %v2080
    %v2157 = vmul.f32 %v181, %v2081
    %v2158 = vmul.f32 %v182, %v2082
    %v2159 = vmul.f32 %v183, %v2083
    %v2160 = vmul.f32 %v184, %v2084
    %v2161 = vmul.f32 %v185, %v2085
    %v2162 = vmul.f32 %v186, %v2086
    %v2163 = vmul.f32 %v187, %v2087
    %v2164 = vmul.f32 %v188, %v2088
    %v2165 = vmul.f32 %v189, %v2089
    %v2166 = vmul.f32 %v190, %v2090
    %v2167 = vmul.f32 %v191, %v2091
    %v2168 = vmul.f32 %v192, %v2092
    %v2169 = vmul.f32 %v193, %v2093
    %v2170 = vmul.f32 %v194, %v2094
    %v2171 = vmul.f32 %v195, %v2095
    %v2172 = vmul.f32 %v196, %v2096
    %v2173 = vmul.f32 %v197, %v2097
    %v2174 = vmul.f32 %v198, %v2098
    %v2175 = vmul.f32 %v199, %v2099
    %v2176 = vmul.f32 %v200, %v2100
    %v2177 = vadd.f32 %v2101, %v2102
    %v2178 = vadd.f32 %v2177, %v2103
    %v2179 = vadd.f32 %v2178, %v2104
    %v2180 = vadd.f32 %v2179, %v2105
    %v2181 = vadd.f32 %v2180, %v2106
    %v2182 = vadd.f32 %v2181, %v2107
    %v2183 = vadd.f32 %v2182, %v2108
    %v2184 = vadd.f32 %v2183, %v2109
    %v2185 = vadd.f32 %v2184, %v2110
    %v2186 = vadd.f32 %v2185, %v2111
    %v2187 = vadd.f32 %v2186, %v2112
    %v2188 = vadd.f32 %v2187, %v2113
    %v2189 = vadd.f32 %v2188, %v2114
    %v2190 = vadd.f32 %v2189, %v2115
    %v2191 = vadd.f32 %v2190, %v2116
    %v2192 = vadd.f32 %v2191, %v2117
    %v2193 = vadd.f32 %v2192, %v2118
    %v2194 = vadd.f32 %v2193, %v2119
    %v2195 = vadd.f32 %v2194, %v2120
    %v2196 = vadd.f32 %v2195, %v2121
    %v2197 = vadd.f32 %v2196, %v2122
    %v2198 = vadd.f32 %v2197, %v2123
    %v2199 = vadd.f32 %v2198, %v2124
    %v2200 = vadd.f32 %v2199, %v2125
    %v2201 = vadd.f32 %v2200, %v2126
    %v2202 = vadd.f32 %v2201, %v2127
    %v2203 = vadd.f32 %v2202, %v2128
    %v2204 = vadd.f32 %v2203, %v2129
    %v2205 = vadd.f32 %v2204, %v2130
    %v2206 = vadd.f32 %v2205, %v2131
    %v2207 = vadd.f32 %v2206, %v2132
    %v2208 = vadd.f32 %v2207, %v2133
    %v2209 = vadd.f32 %v2208, %v2134
    %v2210 = vadd.f32 %v2209, %v2135
    %v2211 = vadd.f32 %v2210, %v2136
    %v2212 = vadd.f32 %v2211, %v2137
    %vm2213 = vcmask 523264
    %v2214 = vsel %vm2213, %v2138, 0.0
    %v2215 = vadd.f32 %v2212, %v2214
    %2216 = vadd.xlane.f32.xlu0 %v2215
    %v2217 = vpop.xlane.xlu0 %2216
    %v2218 = vadd.f32 %v2139, %v2140
    %v2219 = vadd.f32 %v2218, %v2141
    %v2220 = vadd.f32 %v2219, %v2142
    %v2221 = vadd.f32 %v2220, %v2143
    %v2222 = vadd.f32 %v2221, %v2144
    %v2223 = vadd.f32 %v2222, %v2145
    %v2224 = vadd.f32 %v2223, %v2146
    %v2225 = vadd.f32 %v2224, %v2147
    %v2226 = vadd.f32 %v2225, %v2148
    %v2227 = vadd.f32 %v2226, %v2149
    %v2228 = vadd.f32 %v2227, %v2150
    %v2229 = vadd.f32 %v2228, %v2151
    %v2230 = vadd.f32 %v2229, %v2152
    %v2231 = vadd.f32 %v2230, %v2153
    %v2232 = vadd.f32 %v2231, %v2154
    %v2233 = vadd.f32 %v2232, %v2155
    %v2234 = vadd.f32 %v2233, %v2156
    %v2235 = vadd.f32 %v2234, %v2157
    %v2236 = vadd.f32 %v2235, %v2158
    %v2237 = vadd.f32 %v2236, %v2159
    %v2238 = vadd.f32 %v2237, %v2160
    %v2239 = vadd.f32 %v2238, %v2161
    %v2240 = vadd.f32 %v2239, %v2162
    %v2241 = vadd.f32 %v2240, %v2163
    %v2242 = vadd.f32 %v2241, %v2164
    %v2243 = vadd.f32 %v2242, %v2165
    %v2244 = vadd.f32 %v2243, %v2166
    %v2245 = vadd.f32 %v2244, %v2167
    %v2246 = vadd.f32 %v2245, %v2168
    %v2247 = vadd.f32 %v2246, %v2169
    %v2248 = vadd.f32 %v2247, %v2170
    %v2249 = vadd.f32 %v2248, %v2171
    %v2250 = vadd.f32 %v2249, %v2172
    %v2251 = vadd.f32 %v2250, %v2173
    %v2252 = vadd.f32 %v2251, %v2174
    %v2253 = vadd.f32 %v2252, %v2175
    %v2254 = vsel %vm2213, %v2176, 0.0
    %v2255 = vadd.f32 %v2253, %v2254
    %2256 = vadd.xlane.f32.xlu0 %v2255
    %v2257 = vpop.xlane.xlu0 %2256
    %v2258 = vmul.f32 %v2101, %v2101
    %v2259 = vmul.f32 %v2102, %v2102
    %v2260 = vmul.f32 %v2103, %v2103
    %v2261 = vmul.f32 %v2104, %v2104
    %v2262 = vmul.f32 %v2105, %v2105
    %v2263 = vmul.f32 %v2106, %v2106
    %v2264 = vmul.f32 %v2107, %v2107
    %v2265 = vmul.f32 %v2108, %v2108
    %v2266 = vmul.f32 %v2109, %v2109
    %v2267 = vmul.f32 %v2110, %v2110
    %v2268 = vmul.f32 %v2111, %v2111
    %v2269 = vmul.f32 %v2112, %v2112
    %v2270 = vmul.f32 %v2113, %v2113
    %v2271 = vmul.f32 %v2114, %v2114
    %v2272 = vmul.f32 %v2115, %v2115
    %v2273 = vmul.f32 %v2116, %v2116
    %v2274 = vmul.f32 %v2117, %v2117
    %v2275 = vmul.f32 %v2118, %v2118
    %v2276 = vmul.f32 %v2119, %v2119
    %v2277 = vmul.f32 %v2120, %v2120
    %v2278 = vmul.f32 %v2121, %v2121
    %v2279 = vmul.f32 %v2122, %v2122
    %v2280 = vmul.f32 %v2123, %v2123
    %v2281 = vmul.f32 %v2124, %v2124
    %v2282 = vmul.f32 %v2125, %v2125
    %v2283 = vmul.f32 %v2126, %v2126
    %v2284 = vmul.f32 %v2127, %v2127
    %v2285 = vmul.f32 %v2128, %v2128
    %v2286 = vmul.f32 %v2129, %v2129
    %v2287 = vmul.f32 %v2130, %v2130
    %v2288 = vmul.f32 %v2131, %v2131
    %v2289 = vmul.f32 %v2132, %v2132
    %v2290 = vmul.f32 %v2133, %v2133
    %v2291 = vmul.f32 %v2134, %v2134
    %v2292 = vmul.f32 %v2135, %v2135
    %v2293 = vmul.f32 %v2136, %v2136
    %v2294 = vmul.f32 %v2137, %v2137
    %v2295 = vmul.f32 %v2138, %v2138
    %v2296 = vmul.f32 %v2139, %v2139
    %v2297 = vmul.f32 %v2140, %v2140
    %v2298 = vmul.f32 %v2141, %v2141
    %v2299 = vmul.f32 %v2142, %v2142
    %v2300 = vmul.f32 %v2143, %v2143
    %v2301 = vmul.f32 %v2144, %v2144
    %v2302 = vmul.f32 %v2145, %v2145
    %v2303 = vmul.f32 %v2146, %v2146
    %v2304 = vmul.f32 %v2147, %v2147
    %v2305 = vmul.f32 %v2148, %v2148
    %v2306 = vmul.f32 %v2149, %v2149
    %v2307 = vmul.f32 %v2150, %v2150
    %v2308 = vmul.f32 %v2151, %v2151
    %v2309 = vmul.f32 %v2152, %v2152
    %v2310 = vmul.f32 %v2153, %v2153
    %v2311 = vmul.f32 %v2154, %v2154
    %v2312 = vmul.f32 %v2155, %v2155
    %v2313 = vmul.f32 %v2156, %v2156
    %v2314 = vmul.f32 %v2157, %v2157
    %v2315 = vmul.f32 %v2158, %v2158
    %v2316 = vmul.f32 %v2159, %v2159
    %v2317 = vmul.f32 %v2160, %v2160
    %v2318 = vmul.f32 %v2161, %v2161
    %v2319 = vmul.f32 %v2162, %v2162
    %v2320 = vmul.f32 %v2163, %v2163
    %v2321 = vmul.f32 %v2164, %v2164
    %v2322 = vmul.f32 %v2165, %v2165
    %v2323 = vmul.f32 %v2166, %v2166
    %v2324 = vmul.f32 %v2167, %v2167
    %v2325 = vmul.f32 %v2168, %v2168
    %v2326 = vmul.f32 %v2169, %v2169
    %v2327 = vmul.f32 %v2170, %v2170
    %v2328 = vmul.f32 %v2171, %v2171
    %v2329 = vmul.f32 %v2172, %v2172
    %v2330 = vmul.f32 %v2173, %v2173
    %v2331 = vmul.f32 %v2174, %v2174
    %v2332 = vmul.f32 %v2175, %v2175
    %v2333 = vmul.f32 %v2176, %v2176
    %v2334 = vadd.f32 %v2258, %v2259
    %v2335 = vadd.f32 %v2334, %v2260
    %v2336 = vadd.f32 %v2335, %v2261
    %v2337 = vadd.f32 %v2336, %v2262
    %v2338 = vadd.f32 %v2337, %v2263
    %v2339 = vadd.f32 %v2338, %v2264
    %v2340 = vadd.f32 %v2339, %v2265
    %v2341 = vadd.f32 %v2340, %v2266
    %v2342 = vadd.f32 %v2341, %v2267
    %v2343 = vadd.f32 %v2342, %v2268
    %v2344 = vadd.f32 %v2343, %v2269
    %v2345 = vadd.f32 %v2344, %v2270
    %v2346 = vadd.f32 %v2345, %v2271
    %v2347 = vadd.f32 %v2346, %v2272
    %v2348 = vadd.f32 %v2347, %v2273
    %v2349 = vadd.f32 %v2348, %v2274
    %v2350 = vadd.f32 %v2349, %v2275
    %v2351 = vadd.f32 %v2350, %v2276
    %v2352 = vadd.f32 %v2351, %v2277
    %v2353 = vadd.f32 %v2352, %v2278
    %v2354 = vadd.f32 %v2353, %v2279
    %v2355 = vadd.f32 %v2354, %v2280
    %v2356 = vadd.f32 %v2355, %v2281
    %v2357 = vadd.f32 %v2356, %v2282
    %v2358 = vadd.f32 %v2357, %v2283
    %v2359 = vadd.f32 %v2358, %v2284
    %v2360 = vadd.f32 %v2359, %v2285
    %v2361 = vadd.f32 %v2360, %v2286
    %v2362 = vadd.f32 %v2361, %v2287
    %v2363 = vadd.f32 %v2362, %v2288
    %v2364 = vadd.f32 %v2363, %v2289
    %v2365 = vadd.f32 %v2364, %v2290
    %v2366 = vadd.f32 %v2365, %v2291
    %v2367 = vadd.f32 %v2366, %v2292
    %v2368 = vadd.f32 %v2367, %v2293
    %v2369 = vadd.f32 %v2368, %v2294
    %v2370 = vsel %vm2213, %v2295, 0.0
    %v2371 = vadd.f32 %v2369, %v2370
    %2372 = vadd.xlane.f32.xlu0 %v2371
    %v2373 = vpop.xlane.xlu0 %2372
    %v2374 = vadd.f32 %v2296, %v2297
    %v2375 = vadd.f32 %v2374, %v2298
    %v2376 = vadd.f32 %v2375, %v2299
    %v2377 = vadd.f32 %v2376, %v2300
    %v2378 = vadd.f32 %v2377, %v2301
    %v2379 = vadd.f32 %v2378, %v2302
    %v2380 = vadd.f32 %v2379, %v2303
    %v2381 = vadd.f32 %v2380, %v2304
    %v2382 = vadd.f32 %v2381, %v2305
    %v2383 = vadd.f32 %v2382, %v2306
    %v2384 = vadd.f32 %v2383, %v2307
    %v2385 = vadd.f32 %v2384, %v2308
    %v2386 = vadd.f32 %v2385, %v2309
    %v2387 = vadd.f32 %v2386, %v2310
    %v2388 = vadd.f32 %v2387, %v2311
    %v2389 = vadd.f32 %v2388, %v2312
    %v2390 = vadd.f32 %v2389, %v2313
    %v2391 = vadd.f32 %v2390, %v2314
    %v2392 = vadd.f32 %v2391, %v2315
    %v2393 = vadd.f32 %v2392, %v2316
    %v2394 = vadd.f32 %v2393, %v2317
    %v2395 = vadd.f32 %v2394, %v2318
    %v2396 = vadd.f32 %v2395, %v2319
    %v2397 = vadd.f32 %v2396, %v2320
    %v2398 = vadd.f32 %v2397, %v2321
    %v2399 = vadd.f32 %v2398, %v2322
    %v2400 = vadd.f32 %v2399, %v2323
    %v2401 = vadd.f32 %v2400, %v2324
    %v2402 = vadd.f32 %v2401, %v2325
    %v2403 = vadd.f32 %v2402, %v2326
    %v2404 = vadd.f32 %v2403, %v2327
    %v2405 = vadd.f32 %v2404, %v2328
    %v2406 = vadd.f32 %v2405, %v2329
    %v2407 = vadd.f32 %v2406, %v2330
    %v2408 = vadd.f32 %v2407, %v2331
    %v2409 = vadd.f32 %v2408, %v2332
    %v2410 = vsel %vm2213, %v2333, 0.0
    %v2411 = vadd.f32 %v2409, %v2410
    %2412 = vadd.xlane.f32.xlu0 %v2411
    %v2413 = vpop.xlane.xlu0 %2412
    %v2414 = vmul.f32 %v2217, 0.00020833334
    %v2415 = vmul.f32 %v2257, 0.00020833334
    %v2416 = vmul.f32 %v2373, 0.00020833334
    %v2417 = vmul.f32 %v2413, 0.00020833334
    %v2418 = vmul.f32 %v2414, %v2414
    %v2419 = vmul.f32 %v2415, %v2415
    %v2420 = vsub.f32 %v2416, %v2418
    %v2421 = vsub.f32 %v2417, %v2419
    %v2422 = vmax.f32 %v2420, 0.0
    %v2423 = vmax.f32 %v2421, 0.0
    %v2424 = vsub.f32 %v2101, %v2414
    %v2425 = vsub.f32 %v2102, %v2414
    %v2426 = vsub.f32 %v2103, %v2414
    %v2427 = vsub.f32 %v2104, %v2414
    %v2428 = vsub.f32 %v2105, %v2414
    %v2429 = vsub.f32 %v2106, %v2414
    %v2430 = vsub.f32 %v2107, %v2414
    %v2431 = vsub.f32 %v2108, %v2414
    %v2432 = vsub.f32 %v2109, %v2414
    %v2433 = vsub.f32 %v2110, %v2414
    %v2434 = vsub.f32 %v2111, %v2414
    %v2435 = vsub.f32 %v2112, %v2414
    %v2436 = vsub.f32 %v2113, %v2414
    %v2437 = vsub.f32 %v2114, %v2414
    %v2438 = vsub.f32 %v2115, %v2414
    %v2439 = vsub.f32 %v2116, %v2414
    %v2440 = vsub.f32 %v2117, %v2414
    %v2441 = vsub.f32 %v2118, %v2414
    %v2442 = vsub.f32 %v2119, %v2414
    %v2443 = vsub.f32 %v2120, %v2414
    %v2444 = vsub.f32 %v2121, %v2414
    %v2445 = vsub.f32 %v2122, %v2414
    %v2446 = vsub.f32 %v2123, %v2414
    %v2447 = vsub.f32 %v2124, %v2414
    %v2448 = vsub.f32 %v2125, %v2414
    %v2449 = vsub.f32 %v2126, %v2414
    %v2450 = vsub.f32 %v2127, %v2414
    %v2451 = vsub.f32 %v2128, %v2414
    %v2452 = vsub.f32 %v2129, %v2414
    %v2453 = vsub.f32 %v2130, %v2414
    %v2454 = vsub.f32 %v2131, %v2414
    %v2455 = vsub.f32 %v2132, %v2414
    %v2456 = vsub.f32 %v2133, %v2414
    %v2457 = vsub.f32 %v2134, %v2414
    %v2458 = vsub.f32 %v2135, %v2414
    %v2459 = vsub.f32 %v2136, %v2414
    %v2460 = vsub.f32 %v2137, %v2414
    %v2461 = vsub.f32 %v2138, %v2414
    %v2462 = vsub.f32 %v2139, %v2415
    %v2463 = vsub.f32 %v2140, %v2415
    %v2464 = vsub.f32 %v2141, %v2415
    %v2465 = vsub.f32 %v2142, %v2415
    %v2466 = vsub.f32 %v2143, %v2415
    %v2467 = vsub.f32 %v2144, %v2415
    %v2468 = vsub.f32 %v2145, %v2415
    %v2469 = vsub.f32 %v2146, %v2415
    %v2470 = vsub.f32 %v2147, %v2415
    %v2471 = vsub.f32 %v2148, %v2415
    %v2472 = vsub.f32 %v2149, %v2415
    %v2473 = vsub.f32 %v2150, %v2415
    %v2474 = vsub.f32 %v2151, %v2415
    %v2475 = vsub.f32 %v2152, %v2415
    %v2476 = vsub.f32 %v2153, %v2415
    %v2477 = vsub.f32 %v2154, %v2415
    %v2478 = vsub.f32 %v2155, %v2415
    %v2479 = vsub.f32 %v2156, %v2415
    %v2480 = vsub.f32 %v2157, %v2415
    %v2481 = vsub.f32 %v2158, %v2415
    %v2482 = vsub.f32 %v2159, %v2415
    %v2483 = vsub.f32 %v2160, %v2415
    %v2484 = vsub.f32 %v2161, %v2415
    %v2485 = vsub.f32 %v2162, %v2415
    %v2486 = vsub.f32 %v2163, %v2415
    %v2487 = vsub.f32 %v2164, %v2415
    %v2488 = vsub.f32 %v2165, %v2415
    %v2489 = vsub.f32 %v2166, %v2415
    %v2490 = vsub.f32 %v2167, %v2415
    %v2491 = vsub.f32 %v2168, %v2415
    %v2492 = vsub.f32 %v2169, %v2415
    %v2493 = vsub.f32 %v2170, %v2415
    %v2494 = vsub.f32 %v2171, %v2415
    %v2495 = vsub.f32 %v2172, %v2415
    %v2496 = vsub.f32 %v2173, %v2415
    %v2497 = vsub.f32 %v2174, %v2415
    %v2498 = vsub.f32 %v2175, %v2415
    %v2499 = vsub.f32 %v2176, %v2415
    %v2500 = vadd.f32 %v2422, 1e-05
    %v2501 = vadd.f32 %v2423, 1e-05
    %v2502 = vrsqrt.pop %v2500
    %v2503 = vrsqrt.pop %v2501
    %v2504 = vmul.f32 %v2424, %v2502
    %v2505 = vmul.f32 %v2425, %v2502
    %v2506 = vmul.f32 %v2426, %v2502
    %v2507 = vmul.f32 %v2427, %v2502
    %v2508 = vmul.f32 %v2428, %v2502
    %v2509 = vmul.f32 %v2429, %v2502
    %v2510 = vmul.f32 %v2430, %v2502
    %v2511 = vmul.f32 %v2431, %v2502
    %v2512 = vmul.f32 %v2432, %v2502
    %v2513 = vmul.f32 %v2433, %v2502
    %v2514 = vmul.f32 %v2434, %v2502
    %v2515 = vmul.f32 %v2435, %v2502
    %v2516 = vmul.f32 %v2436, %v2502
    %v2517 = vmul.f32 %v2437, %v2502
    %v2518 = vmul.f32 %v2438, %v2502
    %v2519 = vmul.f32 %v2439, %v2502
    %v2520 = vmul.f32 %v2440, %v2502
    %v2521 = vmul.f32 %v2441, %v2502
    %v2522 = vmul.f32 %v2442, %v2502
    %v2523 = vmul.f32 %v2443, %v2502
    %v2524 = vmul.f32 %v2444, %v2502
    %v2525 = vmul.f32 %v2445, %v2502
    %v2526 = vmul.f32 %v2446, %v2502
    %v2527 = vmul.f32 %v2447, %v2502
    %v2528 = vmul.f32 %v2448, %v2502
    %v2529 = vmul.f32 %v2449, %v2502
    %v2530 = vmul.f32 %v2450, %v2502
    %v2531 = vmul.f32 %v2451, %v2502
    %v2532 = vmul.f32 %v2452, %v2502
    %v2533 = vmul.f32 %v2453, %v2502
    %v2534 = vmul.f32 %v2454, %v2502
    %v2535 = vmul.f32 %v2455, %v2502
    %v2536 = vmul.f32 %v2456, %v2502
    %v2537 = vmul.f32 %v2457, %v2502
    %v2538 = vmul.f32 %v2458, %v2502
    %v2539 = vmul.f32 %v2459, %v2502
    %v2540 = vmul.f32 %v2460, %v2502
    %v2541 = vmul.f32 %v2461, %v2502
    %v2542 = vmul.f32 %v2462, %v2503
    %v2543 = vmul.f32 %v2463, %v2503
    %v2544 = vmul.f32 %v2464, %v2503
    %v2545 = vmul.f32 %v2465, %v2503
    %v2546 = vmul.f32 %v2466, %v2503
    %v2547 = vmul.f32 %v2467, %v2503
    %v2548 = vmul.f32 %v2468, %v2503
    %v2549 = vmul.f32 %v2469, %v2503
    %v2550 = vmul.f32 %v2470, %v2503
    %v2551 = vmul.f32 %v2471, %v2503
    %v2552 = vmul.f32 %v2472, %v2503
    %v2553 = vmul.f32 %v2473, %v2503
    %v2554 = vmul.f32 %v2474, %v2503
    %v2555 = vmul.f32 %v2475, %v2503
    %v2556 = vmul.f32 %v2476, %v2503
    %v2557 = vmul.f32 %v2477, %v2503
    %v2558 = vmul.f32 %v2478, %v2503
    %v2559 = vmul.f32 %v2479, %v2503
    %v2560 = vmul.f32 %v2480, %v2503
    %v2561 = vmul.f32 %v2481, %v2503
    %v2562 = vmul.f32 %v2482, %v2503
    %v2563 = vmul.f32 %v2483, %v2503
    %v2564 = vmul.f32 %v2484, %v2503
    %v2565 = vmul.f32 %v2485, %v2503
    %v2566 = vmul.f32 %v2486, %v2503
    %v2567 = vmul.f32 %v2487, %v2503
    %v2568 = vmul.f32 %v2488, %v2503
    %v2569 = vmul.f32 %v2489, %v2503
    %v2570 = vmul.f32 %v2490, %v2503
    %v2571 = vmul.f32 %v2491, %v2503
    %v2572 = vmul.f32 %v2492, %v2503
    %v2573 = vmul.f32 %v2493, %v2503
    %v2574 = vmul.f32 %v2494, %v2503
    %v2575 = vmul.f32 %v2495, %v2503
    %v2576 = vmul.f32 %v2496, %v2503
    %v2577 = vmul.f32 %v2497, %v2503
    %v2578 = vmul.f32 %v2498, %v2503
    %v2579 = vmul.f32 %v2499, %v2503
    %v2580 = vld [vmem:[%s1] sm:$0xff]
    %v2581 = vld [vmem:[%s1 + $0x8] sm:$0xff]
    %v2582 = vld [vmem:[%s1 + $0x10] sm:$0xff]
    %v2583 = vld [vmem:[%s1 + $0x18] sm:$0xff]
    %v2584 = vld [vmem:[%s1 + $0x20] sm:$0x3f]
    %v2590 = vlaneseq
    %v2591 = vshrl.u32 %v2590, 7
    %v2592 = vsub.s32 0, %v2591
    %v2593 = vrot.slane %v2580, %v2592
    %v2594 = vlaneseq
    %v2595 = vshrl.u32 %v2594, 7
    %v2596 = vsub.s32 1, %v2595
    %v2597 = vrot.slane %v2580, %v2596
    %v2598 = vlaneseq
    %v2599 = vshrl.u32 %v2598, 7
    %v2600 = vsub.s32 2, %v2599
    %v2601 = vrot.slane %v2580, %v2600
    %v2602 = vlaneseq
    %v2603 = vshrl.u32 %v2602, 7
    %v2604 = vsub.s32 3, %v2603
    %v2605 = vrot.slane %v2580, %v2604
    %v2606 = vlaneseq
    %v2607 = vshrl.u32 %v2606, 7
    %v2608 = vsub.s32 4, %v2607
    %v2609 = vrot.slane %v2580, %v2608
    %v2610 = vlaneseq
    %v2611 = vshrl.u32 %v2610, 7
    %v2612 = vsub.s32 5, %v2611
    %v2613 = vrot.slane %v2580, %v2612
    %v2614 = vlaneseq
    %v2615 = vshrl.u32 %v2614, 7
    %v2616 = vsub.s32 6, %v2615
    %v2617 = vrot.slane %v2580, %v2616
    %v2618 = vlaneseq
    %v2619 = vshrl.u32 %v2618, 7
    %v2620 = vsub.s32 7, %v2619
    %v2621 = vrot.slane %v2580, %v2620
    %v2622 = vlaneseq
    %v2623 = vshrl.u32 %v2622, 7
    %v2624 = vsub.s32 0, %v2623
    %v2625 = vrot.slane %v2581, %v2624
    %v2626 = vlaneseq
    %v2627 = vshrl.u32 %v2626, 7
    %v2628 = vsub.s32 1, %v2627
    %v2629 = vrot.slane %v2581, %v2628
    %v2630 = vlaneseq
    %v2631 = vshrl.u32 %v2630, 7
    %v2632 = vsub.s32 2, %v2631
    %v2633 = vrot.slane %v2581, %v2632
    %v2634 = vlaneseq
    %v2635 = vshrl.u32 %v2634, 7
    %v2636 = vsub.s32 3, %v2635
    %v2637 = vrot.slane %v2581, %v2636
    %v2638 = vlaneseq
    %v2639 = vshrl.u32 %v2638, 7
    %v2640 = vsub.s32 4, %v2639
    %v2641 = vrot.slane %v2581, %v2640
    %v2642 = vlaneseq
    %v2643 = vshrl.u32 %v2642, 7
    %v2644 = vsub.s32 5, %v2643
    %v2645 = vrot.slane %v2581, %v2644
    %v2646 = vlaneseq
    %v2647 = vshrl.u32 %v2646, 7
    %v2648 = vsub.s32 6, %v2647
    %v2649 = vrot.slane %v2581, %v2648
    %v2650 = vlaneseq
    %v2651 = vshrl.u32 %v2650, 7
    %v2652 = vsub.s32 7, %v2651
    %v2653 = vrot.slane %v2581, %v2652
    %v2654 = vlaneseq
    %v2655 = vshrl.u32 %v2654, 7
    %v2656 = vsub.s32 0, %v2655
    %v2657 = vrot.slane %v2582, %v2656
    %v2658 = vlaneseq
    %v2659 = vshrl.u32 %v2658, 7
    %v2660 = vsub.s32 1, %v2659
    %v2661 = vrot.slane %v2582, %v2660
    %v2662 = vlaneseq
    %v2663 = vshrl.u32 %v2662, 7
    %v2664 = vsub.s32 2, %v2663
    %v2665 = vrot.slane %v2582, %v2664
    %v2666 = vlaneseq
    %v2667 = vshrl.u32 %v2666, 7
    %v2668 = vsub.s32 3, %v2667
    %v2669 = vrot.slane %v2582, %v2668
    %v2670 = vlaneseq
    %v2671 = vshrl.u32 %v2670, 7
    %v2672 = vsub.s32 4, %v2671
    %v2673 = vrot.slane %v2582, %v2672
    %v2674 = vlaneseq
    %v2675 = vshrl.u32 %v2674, 7
    %v2676 = vsub.s32 5, %v2675
    %v2677 = vrot.slane %v2582, %v2676
    %v2678 = vlaneseq
    %v2679 = vshrl.u32 %v2678, 7
    %v2680 = vsub.s32 6, %v2679
    %v2681 = vrot.slane %v2582, %v2680
    %v2682 = vlaneseq
    %v2683 = vshrl.u32 %v2682, 7
    %v2684 = vsub.s32 7, %v2683
    %v2685 = vrot.slane %v2582, %v2684
    %v2686 = vlaneseq
    %v2687 = vshrl.u32 %v2686, 7
    %v2688 = vsub.s32 0, %v2687
    %v2689 = vrot.slane %v2583, %v2688
    %v2690 = vlaneseq
    %v2691 = vshrl.u32 %v2690, 7
    %v2692 = vsub.s32 1, %v2691
    %v2693 = vrot.slane %v2583, %v2692
    %v2694 = vlaneseq
    %v2695 = vshrl.u32 %v2694, 7
    %v2696 = vsub.s32 2, %v2695
    %v2697 = vrot.slane %v2583, %v2696
    %v2698 = vlaneseq
    %v2699 = vshrl.u32 %v2698, 7
    %v2700 = vsub.s32 3, %v2699
    %v2701 = vrot.slane %v2583, %v2700
    %v2702 = vlaneseq
    %v2703 = vshrl.u32 %v2702, 7
    %v2704 = vsub.s32 4, %v2703
    %v2705 = vrot.slane %v2583, %v2704
    %v2706 = vlaneseq
    %v2707 = vshrl.u32 %v2706, 7
    %v2708 = vsub.s32 5, %v2707
    %v2709 = vrot.slane %v2583, %v2708
    %v2710 = vlaneseq
    %v2711 = vshrl.u32 %v2710, 7
    %v2712 = vsub.s32 6, %v2711
    %v2713 = vrot.slane %v2583, %v2712
    %v2714 = vlaneseq
    %v2715 = vshrl.u32 %v2714, 7
    %v2716 = vsub.s32 7, %v2715
    %v2717 = vrot.slane %v2583, %v2716
    %v2718 = vlaneseq
    %v2719 = vshrl.u32 %v2718, 7
    %v2720 = vsub.s32 0, %v2719
    %v2721 = vrot.slane %v2584, %v2720
    %v2722 = vlaneseq
    %v2723 = vshrl.u32 %v2722, 7
    %v2724 = vsub.s32 1, %v2723
    %v2725 = vrot.slane %v2584, %v2724
    %v2726 = vlaneseq
    %v2727 = vshrl.u32 %v2726, 7
    %v2728 = vsub.s32 2, %v2727
    %v2729 = vrot.slane %v2584, %v2728
    %v2730 = vlaneseq
    %v2731 = vshrl.u32 %v2730, 7
    %v2732 = vsub.s32 3, %v2731
    %v2733 = vrot.slane %v2584, %v2732
    %v2734 = vlaneseq
    %v2735 = vshrl.u32 %v2734, 7
    %v2736 = vsub.s32 4, %v2735
    %v2737 = vrot.slane %v2584, %v2736
    %v2738 = vlaneseq
    %v2739 = vshrl.u32 %v2738, 7
    %v2740 = vsub.s32 5, %v2739
    %v2741 = vrot.slane %v2584, %v2740
    %v2780 = vmul.f32 %v2504, %v2593
    %v2781 = vmul.f32 %v2505, %v2597
    %v2782 = vmul.f32 %v2506, %v2601
    %v2783 = vmul.f32 %v2507, %v2605
    %v2784 = vmul.f32 %v2508, %v2609
    %v2785 = vmul.f32 %v2509, %v2613
    %v2786 = vmul.f32 %v2510, %v2617
    %v2787 = vmul.f32 %v2511, %v2621
    %v2788 = vmul.f32 %v2512, %v2625
    %v2789 = vmul.f32 %v2513, %v2629
    %v2790 = vmul.f32 %v2514, %v2633
    %v2791 = vmul.f32 %v2515, %v2637
    %v2792 = vmul.f32 %v2516, %v2641
    %v2793 = vmul.f32 %v2517, %v2645
    %v2794 = vmul.f32 %v2518, %v2649
    %v2795 = vmul.f32 %v2519, %v2653
    %v2796 = vmul.f32 %v2520, %v2657
    %v2797 = vmul.f32 %v2521, %v2661
    %v2798 = vmul.f32 %v2522, %v2665
    %v2799 = vmul.f32 %v2523, %v2669
    %v2800 = vmul.f32 %v2524, %v2673
    %v2801 = vmul.f32 %v2525, %v2677
    %v2802 = vmul.f32 %v2526, %v2681
    %v2803 = vmul.f32 %v2527, %v2685
    %v2804 = vmul.f32 %v2528, %v2689
    %v2805 = vmul.f32 %v2529, %v2693
    %v2806 = vmul.f32 %v2530, %v2697
    %v2807 = vmul.f32 %v2531, %v2701
    %v2808 = vmul.f32 %v2532, %v2705
    %v2809 = vmul.f32 %v2533, %v2709
    %v2810 = vmul.f32 %v2534, %v2713
    %v2811 = vmul.f32 %v2535, %v2717
    %v2812 = vmul.f32 %v2536, %v2721
    %v2813 = vmul.f32 %v2537, %v2725
    %v2814 = vmul.f32 %v2538, %v2729
    %v2815 = vmul.f32 %v2539, %v2733
    %v2816 = vmul.f32 %v2540, %v2737
    %v2817 = vmul.f32 %v2541, %v2741
    %v2818 = vmul.f32 %v2542, %v2593
    %v2819 = vmul.f32 %v2543, %v2597
    %v2820 = vmul.f32 %v2544, %v2601
    %v2821 = vmul.f32 %v2545, %v2605
    %v2822 = vmul.f32 %v2546, %v2609
    %v2823 = vmul.f32 %v2547, %v2613
    %v2824 = vmul.f32 %v2548, %v2617
    %v2825 = vmul.f32 %v2549, %v2621
    %v2826 = vmul.f32 %v2550, %v2625
    %v2827 = vmul.f32 %v2551, %v2629
    %v2828 = vmul.f32 %v2552, %v2633
    %v2829 = vmul.f32 %v2553, %v2637
    %v2830 = vmul.f32 %v2554, %v2641
    %v2831 = vmul.f32 %v2555, %v2645
    %v2832 = vmul.f32 %v2556, %v2649
    %v2833 = vmul.f32 %v2557, %v2653
    %v2834 = vmul.f32 %v2558, %v2657
    %v2835 = vmul.f32 %v2559, %v2661
    %v2836 = vmul.f32 %v2560, %v2665
    %v2837 = vmul.f32 %v2561, %v2669
    %v2838 = vmul.f32 %v2562, %v2673
    %v2839 = vmul.f32 %v2563, %v2677
    %v2840 = vmul.f32 %v2564, %v2681
    %v2841 = vmul.f32 %v2565, %v2685
    %v2842 = vmul.f32 %v2566, %v2689
    %v2843 = vmul.f32 %v2567, %v2693
    %v2844 = vmul.f32 %v2568, %v2697
    %v2845 = vmul.f32 %v2569, %v2701
    %v2846 = vmul.f32 %v2570, %v2705
    %v2847 = vmul.f32 %v2571, %v2709
    %v2848 = vmul.f32 %v2572, %v2713
    %v2849 = vmul.f32 %v2573, %v2717
    %v2850 = vmul.f32 %v2574, %v2721
    %v2851 = vmul.f32 %v2575, %v2725
    %v2852 = vmul.f32 %v2576, %v2729
    %v2853 = vmul.f32 %v2577, %v2733
    %v2854 = vmul.f32 %v2578, %v2737
    %v2855 = vmul.f32 %v2579, %v2741
    %v2856 = vld [vmem:[%s2] sm:$0xff]
    %v2857 = vld [vmem:[%s2 + $0x8] sm:$0xff]
    %v2858 = vld [vmem:[%s2 + $0x10] sm:$0xff]
    %v2859 = vld [vmem:[%s2 + $0x18] sm:$0xff]
    %v2860 = vld [vmem:[%s2 + $0x20] sm:$0x3f]
    %v2866 = vlaneseq
    %v2867 = vshrl.u32 %v2866, 7
    %v2868 = vsub.s32 0, %v2867
    %v2869 = vrot.slane %v2856, %v2868
    %v2870 = vlaneseq
    %v2871 = vshrl.u32 %v2870, 7
    %v2872 = vsub.s32 1, %v2871
    %v2873 = vrot.slane %v2856, %v2872
    %v2874 = vlaneseq
    %v2875 = vshrl.u32 %v2874, 7
    %v2876 = vsub.s32 2, %v2875
    %v2877 = vrot.slane %v2856, %v2876
    %v2878 = vlaneseq
    %v2879 = vshrl.u32 %v2878, 7
    %v2880 = vsub.s32 3, %v2879
    %v2881 = vrot.slane %v2856, %v2880
    %v2882 = vlaneseq
    %v2883 = vshrl.u32 %v2882, 7
    %v2884 = vsub.s32 4, %v2883
    %v2885 = vrot.slane %v2856, %v2884
    %v2886 = vlaneseq
    %v2887 = vshrl.u32 %v2886, 7
    %v2888 = vsub.s32 5, %v2887
    %v2889 = vrot.slane %v2856, %v2888
    %v2890 = vlaneseq
    %v2891 = vshrl.u32 %v2890, 7
    %v2892 = vsub.s32 6, %v2891
    %v2893 = vrot.slane %v2856, %v2892
    %v2894 = vlaneseq
    %v2895 = vshrl.u32 %v2894, 7
    %v2896 = vsub.s32 7, %v2895
    %v2897 = vrot.slane %v2856, %v2896
    %v2898 = vlaneseq
    %v2899 = vshrl.u32 %v2898, 7
    %v2900 = vsub.s32 0, %v2899
    %v2901 = vrot.slane %v2857, %v2900
    %v2902 = vlaneseq
    %v2903 = vshrl.u32 %v2902, 7
    %v2904 = vsub.s32 1, %v2903
    %v2905 = vrot.slane %v2857, %v2904
    %v2906 = vlaneseq
    %v2907 = vshrl.u32 %v2906, 7
    %v2908 = vsub.s32 2, %v2907
    %v2909 = vrot.slane %v2857, %v2908
    %v2910 = vlaneseq
    %v2911 = vshrl.u32 %v2910, 7
    %v2912 = vsub.s32 3, %v2911
    %v2913 = vrot.slane %v2857, %v2912
    %v2914 = vlaneseq
    %v2915 = vshrl.u32 %v2914, 7
    %v2916 = vsub.s32 4, %v2915
    %v2917 = vrot.slane %v2857, %v2916
    %v2918 = vlaneseq
    %v2919 = vshrl.u32 %v2918, 7
    %v2920 = vsub.s32 5, %v2919
    %v2921 = vrot.slane %v2857, %v2920
    %v2922 = vlaneseq
    %v2923 = vshrl.u32 %v2922, 7
    %v2924 = vsub.s32 6, %v2923
    %v2925 = vrot.slane %v2857, %v2924
    %v2926 = vlaneseq
    %v2927 = vshrl.u32 %v2926, 7
    %v2928 = vsub.s32 7, %v2927
    %v2929 = vrot.slane %v2857, %v2928
    %v2930 = vlaneseq
    %v2931 = vshrl.u32 %v2930, 7
    %v2932 = vsub.s32 0, %v2931
    %v2933 = vrot.slane %v2858, %v2932
    %v2934 = vlaneseq
    %v2935 = vshrl.u32 %v2934, 7
    %v2936 = vsub.s32 1, %v2935
    %v2937 = vrot.slane %v2858, %v2936
    %v2938 = vlaneseq
    %v2939 = vshrl.u32 %v2938, 7
    %v2940 = vsub.s32 2, %v2939
    %v2941 = vrot.slane %v2858, %v2940
    %v2942 = vlaneseq
    %v2943 = vshrl.u32 %v2942, 7
    %v2944 = vsub.s32 3, %v2943
    %v2945 = vrot.slane %v2858, %v2944
    %v2946 = vlaneseq
    %v2947 = vshrl.u32 %v2946, 7
    %v2948 = vsub.s32 4, %v2947
    %v2949 = vrot.slane %v2858, %v2948
    %v2950 = vlaneseq
    %v2951 = vshrl.u32 %v2950, 7
    %v2952 = vsub.s32 5, %v2951
    %v2953 = vrot.slane %v2858, %v2952
    %v2954 = vlaneseq
    %v2955 = vshrl.u32 %v2954, 7
    %v2956 = vsub.s32 6, %v2955
    %v2957 = vrot.slane %v2858, %v2956
    %v2958 = vlaneseq
    %v2959 = vshrl.u32 %v2958, 7
    %v2960 = vsub.s32 7, %v2959
    %v2961 = vrot.slane %v2858, %v2960
    %v2962 = vlaneseq
    %v2963 = vshrl.u32 %v2962, 7
    %v2964 = vsub.s32 0, %v2963
    %v2965 = vrot.slane %v2859, %v2964
    %v2966 = vlaneseq
    %v2967 = vshrl.u32 %v2966, 7
    %v2968 = vsub.s32 1, %v2967
    %v2969 = vrot.slane %v2859, %v2968
    %v2970 = vlaneseq
    %v2971 = vshrl.u32 %v2970, 7
    %v2972 = vsub.s32 2, %v2971
    %v2973 = vrot.slane %v2859, %v2972
    %v2974 = vlaneseq
    %v2975 = vshrl.u32 %v2974, 7
    %v2976 = vsub.s32 3, %v2975
    %v2977 = vrot.slane %v2859, %v2976
    %v2978 = vlaneseq
    %v2979 = vshrl.u32 %v2978, 7
    %v2980 = vsub.s32 4, %v2979
    %v2981 = vrot.slane %v2859, %v2980
    %v2982 = vlaneseq
    %v2983 = vshrl.u32 %v2982, 7
    %v2984 = vsub.s32 5, %v2983
    %v2985 = vrot.slane %v2859, %v2984
    %v2986 = vlaneseq
    %v2987 = vshrl.u32 %v2986, 7
    %v2988 = vsub.s32 6, %v2987
    %v2989 = vrot.slane %v2859, %v2988
    %v2990 = vlaneseq
    %v2991 = vshrl.u32 %v2990, 7
    %v2992 = vsub.s32 7, %v2991
    %v2993 = vrot.slane %v2859, %v2992
    %v2994 = vlaneseq
    %v2995 = vshrl.u32 %v2994, 7
    %v2996 = vsub.s32 0, %v2995
    %v2997 = vrot.slane %v2860, %v2996
    %v2998 = vlaneseq
    %v2999 = vshrl.u32 %v2998, 7
    %v3000 = vsub.s32 1, %v2999
    %v3001 = vrot.slane %v2860, %v3000
    %v3002 = vlaneseq
    %v3003 = vshrl.u32 %v3002, 7
    %v3004 = vsub.s32 2, %v3003
    %v3005 = vrot.slane %v2860, %v3004
    %v3006 = vlaneseq
    %v3007 = vshrl.u32 %v3006, 7
    %v3008 = vsub.s32 3, %v3007
    %v3009 = vrot.slane %v2860, %v3008
    %v3010 = vlaneseq
    %v3011 = vshrl.u32 %v3010, 7
    %v3012 = vsub.s32 4, %v3011
    %v3013 = vrot.slane %v2860, %v3012
    %v3014 = vlaneseq
    %v3015 = vshrl.u32 %v3014, 7
    %v3016 = vsub.s32 5, %v3015
    %v3017 = vrot.slane %v2860, %v3016
    %v3056 = vadd.f32 %v2780, %v2869
    %v3057 = vadd.f32 %v2781, %v2873
    %v3058 = vadd.f32 %v2782, %v2877
    %v3059 = vadd.f32 %v2783, %v2881
    %v3060 = vadd.f32 %v2784, %v2885
    %v3061 = vadd.f32 %v2785, %v2889
    %v3062 = vadd.f32 %v2786, %v2893
    %v3063 = vadd.f32 %v2787, %v2897
    %v3064 = vadd.f32 %v2788, %v2901
    %v3065 = vadd.f32 %v2789, %v2905
    %v3066 = vadd.f32 %v2790, %v2909
    %v3067 = vadd.f32 %v2791, %v2913
    %v3068 = vadd.f32 %v2792, %v2917
    %v3069 = vadd.f32 %v2793, %v2921
    %v3070 = vadd.f32 %v2794, %v2925
    %v3071 = vadd.f32 %v2795, %v2929
    %v3072 = vadd.f32 %v2796, %v2933
    %v3073 = vadd.f32 %v2797, %v2937
    %v3074 = vadd.f32 %v2798, %v2941
    %v3075 = vadd.f32 %v2799, %v2945
    %v3076 = vadd.f32 %v2800, %v2949
    %v3077 = vadd.f32 %v2801, %v2953
    %v3078 = vadd.f32 %v2802, %v2957
    %v3079 = vadd.f32 %v2803, %v2961
    %v3080 = vadd.f32 %v2804, %v2965
    %v3081 = vadd.f32 %v2805, %v2969
    %v3082 = vadd.f32 %v2806, %v2973
    %v3083 = vadd.f32 %v2807, %v2977
    %v3084 = vadd.f32 %v2808, %v2981
    %v3085 = vadd.f32 %v2809, %v2985
    %v3086 = vadd.f32 %v2810, %v2989
    %v3087 = vadd.f32 %v2811, %v2993
    %v3088 = vadd.f32 %v2812, %v2997
    %v3089 = vadd.f32 %v2813, %v3001
    %v3090 = vadd.f32 %v2814, %v3005
    %v3091 = vadd.f32 %v2815, %v3009
    %v3092 = vadd.f32 %v2816, %v3013
    %v3093 = vadd.f32 %v2817, %v3017
    %v3094 = vadd.f32 %v2818, %v2869
    %v3095 = vadd.f32 %v2819, %v2873
    %v3096 = vadd.f32 %v2820, %v2877
    %v3097 = vadd.f32 %v2821, %v2881
    %v3098 = vadd.f32 %v2822, %v2885
    %v3099 = vadd.f32 %v2823, %v2889
    %v3100 = vadd.f32 %v2824, %v2893
    %v3101 = vadd.f32 %v2825, %v2897
    %v3102 = vadd.f32 %v2826, %v2901
    %v3103 = vadd.f32 %v2827, %v2905
    %v3104 = vadd.f32 %v2828, %v2909
    %v3105 = vadd.f32 %v2829, %v2913
    %v3106 = vadd.f32 %v2830, %v2917
    %v3107 = vadd.f32 %v2831, %v2921
    %v3108 = vadd.f32 %v2832, %v2925
    %v3109 = vadd.f32 %v2833, %v2929
    %v3110 = vadd.f32 %v2834, %v2933
    %v3111 = vadd.f32 %v2835, %v2937
    %v3112 = vadd.f32 %v2836, %v2941
    %v3113 = vadd.f32 %v2837, %v2945
    %v3114 = vadd.f32 %v2838, %v2949
    %v3115 = vadd.f32 %v2839, %v2953
    %v3116 = vadd.f32 %v2840, %v2957
    %v3117 = vadd.f32 %v2841, %v2961
    %v3118 = vadd.f32 %v2842, %v2965
    %v3119 = vadd.f32 %v2843, %v2969
    %v3120 = vadd.f32 %v2844, %v2973
    %v3121 = vadd.f32 %v2845, %v2977
    %v3122 = vadd.f32 %v2846, %v2981
    %v3123 = vadd.f32 %v2847, %v2985
    %v3124 = vadd.f32 %v2848, %v2989
    %v3125 = vadd.f32 %v2849, %v2993
    %v3126 = vadd.f32 %v2850, %v2997
    %v3127 = vadd.f32 %v2851, %v3001
    %v3128 = vadd.f32 %v2852, %v3005
    %v3129 = vadd.f32 %v2853, %v3009
    %v3130 = vadd.f32 %v2854, %v3013
    %v3131 = vadd.f32 %v2855, %v3017
    %v3132 = vld [vmem:[%s3] sm:$0xff]
    %v3133 = vld [vmem:[%s3 + $0x8] sm:$0xff]
    %v3134 = vld [vmem:[%s3 + $0x10] sm:$0xff]
    %v3135 = vld [vmem:[%s3 + $0x18] sm:$0xff]
    %v3136 = vld [vmem:[%s3 + $0x20] sm:$0xff]
    %v3137 = vld [vmem:[%s3 + $0x28] sm:$0xff]
    %v3138 = vld [vmem:[%s3 + $0x30] sm:$0xff]
    %v3139 = vld [vmem:[%s3 + $0x38] sm:$0xff]
    %v3140 = vld [vmem:[%s3 + $0x40] sm:$0xff]
    %v3141 = vld [vmem:[%s3 + $0x48] sm:$0xff]
    %v3142 = vld [vmem:[%s3 + $0x50] sm:$0xff]
    %v3143 = vld [vmem:[%s3 + $0x58] sm:$0xff]
    %v3144 = vld [vmem:[%s3 + $0x60] sm:$0xff]
    %v3145 = vld [vmem:[%s3 + $0x68] sm:$0xff]
    %v3146 = vld [vmem:[%s3 + $0x70] sm:$0xff]
    %v3147 = vld [vmem:[%s3 + $0x78] sm:$0xff]
    %v3148 = vld [vmem:[%s3 + $0x80] sm:$0xff]
    %v3149 = vld [vmem:[%s3 + $0x88] sm:$0xff]
    %v3150 = vld [vmem:[%s3 + $0x90] sm:$0xff]
    %v3151 = vld [vmem:[%s3 + $0x98] sm:$0xff]
    %v3152 = vld [vmem:[%s3 + $0xa0] sm:$0xff]
    %v3153 = vld [vmem:[%s3 + $0xa8] sm:$0xff]
    %v3154 = vld [vmem:[%s3 + $0xb0] sm:$0xff]
    %v3155 = vld [vmem:[%s3 + $0xb8] sm:$0xff]
    %v3156 = vld [vmem:[%s3 + $0xc0] sm:$0xff]
    %v3157 = vld [vmem:[%s3 + $0xc8] sm:$0xff]
    %v3158 = vld [vmem:[%s3 + $0xd0] sm:$0xff]
    %v3159 = vld [vmem:[%s3 + $0xd8] sm:$0xff]
    %v3160 = vld [vmem:[%s3 + $0xe0] sm:$0xff]
    %v3161 = vld [vmem:[%s3 + $0xe8] sm:$0xff]
    %v3162 = vld [vmem:[%s3 + $0xf0] sm:$0xff]
    %v3163 = vld [vmem:[%s3 + $0xf8] sm:$0xff]
    %v3164 = vld [vmem:[%s3 + $0x100] sm:$0xff]
    %v3165 = vld [vmem:[%s3 + $0x108] sm:$0xff]
    %v3166 = vld [vmem:[%s3 + $0x110] sm:$0xff]
    %v3167 = vld [vmem:[%s3 + $0x118] sm:$0xff]
    %v3168 = vld [vmem:[%s3 + $0x120] sm:$0xff]
    %v3169 = vld [vmem:[%s3 + $0x128] sm:$0xff]
    %v3170 = vld [vmem:[%s3 + $0x130] sm:$0xff]
    %v3171 = vld [vmem:[%s3 + $0x138] sm:$0xff]
    %v3172 = vld [vmem:[%s3 + $0x140] sm:$0xff]
    %v3173 = vld [vmem:[%s3 + $0x148] sm:$0xff]
    %v3174 = vld [vmem:[%s3 + $0x150] sm:$0xff]
    %v3175 = vld [vmem:[%s3 + $0x158] sm:$0xff]
    %v3176 = vld [vmem:[%s3 + $0x160] sm:$0xff]
    %v3177 = vld [vmem:[%s3 + $0x168] sm:$0xff]
    %v3178 = vld [vmem:[%s3 + $0x170] sm:$0xff]
    %v3179 = vld [vmem:[%s3 + $0x178] sm:$0xff]
    %v3180 = vld [vmem:[%s3 + $0x180] sm:$0xff]
    %v3181 = vld [vmem:[%s3 + $0x188] sm:$0xff]
    %v3182 = vld [vmem:[%s3 + $0x190] sm:$0xff]
    %v3183 = vld [vmem:[%s3 + $0x198] sm:$0xff]
    %v3184 = vld [vmem:[%s3 + $0x1a0] sm:$0xff]
    %v3185 = vld [vmem:[%s3 + $0x1a8] sm:$0xff]
    %v3186 = vld [vmem:[%s3 + $0x1b0] sm:$0xff]
    %v3187 = vld [vmem:[%s3 + $0x1b8] sm:$0xff]
    %v3188 = vld [vmem:[%s3 + $0x1c0] sm:$0xff]
    %v3189 = vld [vmem:[%s3 + $0x1c8] sm:$0xff]
    %v3190 = vld [vmem:[%s3 + $0x1d0] sm:$0xff]
    %v3191 = vld [vmem:[%s3 + $0x1d8] sm:$0xff]
    %v3192 = vld [vmem:[%s3 + $0x1e0] sm:$0xff]
    %v3193 = vld [vmem:[%s3 + $0x1e8] sm:$0xff]
    %v3194 = vld [vmem:[%s3 + $0x1f0] sm:$0xff]
    %v3195 = vld [vmem:[%s3 + $0x1f8] sm:$0xff]
    %v3196 = vld [vmem:[%s3 + $0x200] sm:$0xff]
    %v3197 = vld [vmem:[%s3 + $0x208] sm:$0xff]
    %v3198 = vld [vmem:[%s3 + $0x210] sm:$0xff]
    %v3199 = vld [vmem:[%s3 + $0x218] sm:$0xff]
    %v3200 = vld [vmem:[%s3 + $0x220] sm:$0xff]
    %v3201 = vld [vmem:[%s3 + $0x228] sm:$0xff]
    %v3202 = vld [vmem:[%s3 + $0x230] sm:$0xff]
    %v3203 = vld [vmem:[%s3 + $0x238] sm:$0xff]
    %v3204 = vld [vmem:[%s3 + $0x240] sm:$0xff]
    %v3205 = vld [vmem:[%s3 + $0x248] sm:$0xff]
    %v3206 = vld [vmem:[%s3 + $0x250] sm:$0xff]
    %v3207 = vld [vmem:[%s3 + $0x258] sm:$0xff]
    %v3208 = vld [vmem:[%s3 + $0x260] sm:$0xff]
    %v3209 = vld [vmem:[%s3 + $0x268] sm:$0xff]
    %v3210 = vld [vmem:[%s3 + $0x270] sm:$0xff]
    %v3211 = vld [vmem:[%s3 + $0x278] sm:$0xff]
    %v3212 = vld [vmem:[%s3 + $0x280] sm:$0xff]
    %v3213 = vld [vmem:[%s3 + $0x288] sm:$0xff]
    %v3214 = vld [vmem:[%s3 + $0x290] sm:$0xff]
    %v3215 = vld [vmem:[%s3 + $0x298] sm:$0xff]
    %v3216 = vld [vmem:[%s3 + $0x2a0] sm:$0xff]
    %v3217 = vld [vmem:[%s3 + $0x2a8] sm:$0xff]
    %v3218 = vld [vmem:[%s3 + $0x2b0] sm:$0xff]
    %v3219 = vld [vmem:[%s3 + $0x2b8] sm:$0xff]
    %v3220 = vld [vmem:[%s3 + $0x2c0] sm:$0xff]
    %v3221 = vld [vmem:[%s3 + $0x2c8] sm:$0xff]
    %v3222 = vld [vmem:[%s3 + $0x2d0] sm:$0xff]
    %v3223 = vld [vmem:[%s3 + $0x2d8] sm:$0xff]
    %v3224 = vld [vmem:[%s3 + $0x2e0] sm:$0xff]
    %v3225 = vld [vmem:[%s3 + $0x2e8] sm:$0xff]
    %v3226 = vld [vmem:[%s3 + $0x2f0] sm:$0xff]
    %v3227 = vld [vmem:[%s3 + $0x2f8] sm:$0xff]
    %v3228 = vld [vmem:[%s3 + $0x300] sm:$0xff]
    %v3229 = vld [vmem:[%s3 + $0x308] sm:$0xff]
    %v3230 = vld [vmem:[%s3 + $0x310] sm:$0xff]
    %v3231 = vld [vmem:[%s3 + $0x318] sm:$0xff]
    %v3232 = vld [vmem:[%s3 + $0x320] sm:$0xff]
    %v3233 = vld [vmem:[%s3 + $0x328] sm:$0xff]
    %v3234 = vld [vmem:[%s3 + $0x330] sm:$0xff]
    %v3235 = vld [vmem:[%s3 + $0x338] sm:$0xff]
    %v3236 = vld [vmem:[%s3 + $0x340] sm:$0xff]
    %v3237 = vld [vmem:[%s3 + $0x348] sm:$0xff]
    %v3238 = vld [vmem:[%s3 + $0x350] sm:$0xff]
    %v3239 = vld [vmem:[%s3 + $0x358] sm:$0xff]
    %v3240 = vld [vmem:[%s3 + $0x360] sm:$0xff]
    %v3241 = vld [vmem:[%s3 + $0x368] sm:$0xff]
    %v3242 = vld [vmem:[%s3 + $0x370] sm:$0xff]
    %v3243 = vld [vmem:[%s3 + $0x378] sm:$0xff]
    %v3244 = vld [vmem:[%s3 + $0x380] sm:$0xff]
    %v3245 = vld [vmem:[%s3 + $0x388] sm:$0xff]
    %v3246 = vld [vmem:[%s3 + $0x390] sm:$0xff]
    %v3247 = vld [vmem:[%s3 + $0x398] sm:$0xff]
    %v3248 = vld [vmem:[%s3 + $0x3a0] sm:$0xff]
    %v3249 = vld [vmem:[%s3 + $0x3a8] sm:$0xff]
    %v3250 = vld [vmem:[%s3 + $0x3b0] sm:$0xff]
    %v3251 = vld [vmem:[%s3 + $0x3b8] sm:$0xff]
    %v3252 = vld [vmem:[%s3 + $0x3c0] sm:$0xff]
    %v3253 = vld [vmem:[%s3 + $0x3c8] sm:$0xff]
    %v3254 = vld [vmem:[%s3 + $0x3d0] sm:$0xff]
    %v3255 = vld [vmem:[%s3 + $0x3d8] sm:$0xff]
    %v3256 = vld [vmem:[%s3 + $0x3e0] sm:$0xff]
    %v3257 = vld [vmem:[%s3 + $0x3e8] sm:$0xff]
    %v3258 = vld [vmem:[%s3 + $0x3f0] sm:$0xff]
    %v3259 = vld [vmem:[%s3 + $0x3f8] sm:$0xff]
    %v3260 = vld [vmem:[%s3 + $0x400] sm:$0xff]
    %v3261 = vld [vmem:[%s3 + $0x408] sm:$0xff]
    %v3262 = vld [vmem:[%s3 + $0x410] sm:$0xff]
    %v3263 = vld [vmem:[%s3 + $0x418] sm:$0xff]
    %v3264 = vld [vmem:[%s3 + $0x420] sm:$0xff]
    %v3265 = vld [vmem:[%s3 + $0x428] sm:$0xff]
    %v3266 = vld [vmem:[%s3 + $0x430] sm:$0xff]
    %v3267 = vld [vmem:[%s3 + $0x438] sm:$0xff]
    %v3268 = vld [vmem:[%s3 + $0x440] sm:$0xff]
    %v3269 = vld [vmem:[%s3 + $0x448] sm:$0xff]
    %v3270 = vld [vmem:[%s3 + $0x450] sm:$0xff]
    %v3271 = vld [vmem:[%s3 + $0x458] sm:$0xff]
    %v3272 = vld [vmem:[%s3 + $0x460] sm:$0xff]
    %v3273 = vld [vmem:[%s3 + $0x468] sm:$0xff]
    %v3274 = vld [vmem:[%s3 + $0x470] sm:$0xff]
    %v3275 = vld [vmem:[%s3 + $0x478] sm:$0xff]
    %v3276 = vld [vmem:[%s3 + $0x480] sm:$0xff]
    %v3277 = vld [vmem:[%s3 + $0x488] sm:$0xff]
    %v3278 = vld [vmem:[%s3 + $0x490] sm:$0xff]
    %v3279 = vld [vmem:[%s3 + $0x498] sm:$0xff]
    %v3280 = vld [vmem:[%s3 + $0x4a0] sm:$0xff]
    %v3281 = vld [vmem:[%s3 + $0x4a8] sm:$0xff]
    %v3282 = vunpack.c.0.s8 %v3132
    %v3283 = vunpack.c.1.s8 %v3132
    %v3284 = vunpack.c.2.s8 %v3132
    %v3285 = vunpack.c.3.s8 %v3132
    %v3286 = vunpack.c.0.s8 %v3133
    %v3287 = vunpack.c.1.s8 %v3133
    %v3288 = vunpack.c.2.s8 %v3133
    %v3289 = vunpack.c.3.s8 %v3133
    %v3290 = vunpack.c.0.s8 %v3134
    %v3291 = vunpack.c.1.s8 %v3134
    %v3292 = vunpack.c.2.s8 %v3134
    %v3293 = vunpack.c.3.s8 %v3134
    %v3294 = vunpack.c.0.s8 %v3135
    %v3295 = vunpack.c.1.s8 %v3135
    %v3296 = vunpack.c.2.s8 %v3135
    %v3297 = vunpack.c.3.s8 %v3135
    %v3298 = vunpack.c.0.s8 %v3136
    %v3299 = vunpack.c.1.s8 %v3136
    %v3300 = vunpack.c.2.s8 %v3136
    %v3301 = vunpack.c.3.s8 %v3136
    %v3302 = vunpack.c.0.s8 %v3137
    %v3303 = vunpack.c.1.s8 %v3137
    %v3304 = vunpack.c.2.s8 %v3137
    %v3305 = vunpack.c.3.s8 %v3137
    %v3306 = vunpack.c.0.s8 %v3138
    %v3307 = vunpack.c.1.s8 %v3138
    %v3308 = vunpack.c.2.s8 %v3138
    %v3309 = vunpack.c.3.s8 %v3138
    %v3310 = vunpack.c.0.s8 %v3139
    %v3311 = vunpack.c.1.s8 %v3139
    %v3312 = vunpack.c.2.s8 %v3139
    %v3313 = vunpack.c.3.s8 %v3139
    %v3314 = vunpack.c.0.s8 %v3140
    %v3315 = vunpack.c.1.s8 %v3140
    %v3316 = vunpack.c.2.s8 %v3140
    %v3317 = vunpack.c.3.s8 %v3140
    %v3318 = vunpack.c.0.s8 %v3141
    %v3319 = vunpack.c.1.s8 %v3141
    %v3320 = vunpack.c.2.s8 %v3141
    %v3321 = vunpack.c.3.s8 %v3141
    %v3322 = vunpack.c.0.s8 %v3142
    %v3323 = vunpack.c.1.s8 %v3142
    %v3324 = vunpack.c.2.s8 %v3142
    %v3325 = vunpack.c.3.s8 %v3142
    %v3326 = vunpack.c.0.s8 %v3143
    %v3327 = vunpack.c.1.s8 %v3143
    %v3328 = vunpack.c.2.s8 %v3143
    %v3329 = vunpack.c.3.s8 %v3143
    %v3330 = vunpack.c.0.s8 %v3144
    %v3331 = vunpack.c.1.s8 %v3144
    %v3332 = vunpack.c.2.s8 %v3144
    %v3333 = vunpack.c.3.s8 %v3144
    %v3334 = vunpack.c.0.s8 %v3145
    %v3335 = vunpack.c.1.s8 %v3145
    %v3336 = vunpack.c.2.s8 %v3145
    %v3337 = vunpack.c.3.s8 %v3145
    %v3338 = vunpack.c.0.s8 %v3146
    %v3339 = vunpack.c.1.s8 %v3146
    %v3340 = vunpack.c.2.s8 %v3146
    %v3341 = vunpack.c.3.s8 %v3146
    %v3342 = vunpack.c.0.s8 %v3147
    %v3343 = vunpack.c.1.s8 %v3147
    %v3344 = vunpack.c.2.s8 %v3147
    %v3345 = vunpack.c.3.s8 %v3147
    %v3346 = vunpack.c.0.s8 %v3148
    %v3347 = vunpack.c.1.s8 %v3148
    %v3348 = vunpack.c.2.s8 %v3148
    %v3349 = vunpack.c.3.s8 %v3148
    %v3350 = vunpack.c.0.s8 %v3149
    %v3351 = vunpack.c.1.s8 %v3149
    %v3352 = vunpack.c.2.s8 %v3149
    %v3353 = vunpack.c.3.s8 %v3149
    %v3354 = vunpack.c.0.s8 %v3150
    %v3355 = vunpack.c.1.s8 %v3150
    %v3356 = vunpack.c.2.s8 %v3150
    %v3357 = vunpack.c.3.s8 %v3150
    %v3358 = vunpack.c.0.s8 %v3151
    %v3359 = vunpack.c.1.s8 %v3151
    %v3360 = vunpack.c.2.s8 %v3151
    %v3361 = vunpack.c.3.s8 %v3151
    %v3362 = vunpack.c.0.s8 %v3152
    %v3363 = vunpack.c.1.s8 %v3152
    %v3364 = vunpack.c.2.s8 %v3152
    %v3365 = vunpack.c.3.s8 %v3152
    %v3366 = vunpack.c.0.s8 %v3153
    %v3367 = vunpack.c.1.s8 %v3153
    %v3368 = vunpack.c.2.s8 %v3153
    %v3369 = vunpack.c.3.s8 %v3153
    %v3370 = vunpack.c.0.s8 %v3154
    %v3371 = vunpack.c.1.s8 %v3154
    %v3372 = vunpack.c.2.s8 %v3154
    %v3373 = vunpack.c.3.s8 %v3154
    %v3374 = vunpack.c.0.s8 %v3155
    %v3375 = vunpack.c.1.s8 %v3155
    %v3376 = vunpack.c.2.s8 %v3155
    %v3377 = vunpack.c.3.s8 %v3155
    %v3378 = vunpack.c.0.s8 %v3156
    %v3379 = vunpack.c.1.s8 %v3156
    %v3380 = vunpack.c.2.s8 %v3156
    %v3381 = vunpack.c.3.s8 %v3156
    %v3382 = vunpack.c.0.s8 %v3157
    %v3383 = vunpack.c.1.s8 %v3157
    %v3384 = vunpack.c.2.s8 %v3157
    %v3385 = vunpack.c.3.s8 %v3157
    %v3386 = vunpack.c.0.s8 %v3158
    %v3387 = vunpack.c.1.s8 %v3158
    %v3388 = vunpack.c.2.s8 %v3158
    %v3389 = vunpack.c.3.s8 %v3158
    %v3390 = vunpack.c.0.s8 %v3159
    %v3391 = vunpack.c.1.s8 %v3159
    %v3392 = vunpack.c.2.s8 %v3159
    %v3393 = vunpack.c.3.s8 %v3159
    %v3394 = vunpack.c.0.s8 %v3160
    %v3395 = vunpack.c.1.s8 %v3160
    %v3396 = vunpack.c.2.s8 %v3160
    %v3397 = vunpack.c.3.s8 %v3160
    %v3398 = vunpack.c.0.s8 %v3161
    %v3399 = vunpack.c.1.s8 %v3161
    %v3400 = vunpack.c.2.s8 %v3161
    %v3401 = vunpack.c.3.s8 %v3161
    %v3402 = vunpack.c.0.s8 %v3162
    %v3403 = vunpack.c.1.s8 %v3162
    %v3404 = vunpack.c.2.s8 %v3162
    %v3405 = vunpack.c.3.s8 %v3162
    %v3406 = vunpack.c.0.s8 %v3163
    %v3407 = vunpack.c.1.s8 %v3163
    %v3408 = vunpack.c.2.s8 %v3163
    %v3409 = vunpack.c.3.s8 %v3163
    %v3410 = vunpack.c.0.s8 %v3164
    %v3411 = vunpack.c.1.s8 %v3164
    %v3412 = vunpack.c.2.s8 %v3164
    %v3413 = vunpack.c.3.s8 %v3164
    %v3414 = vunpack.c.0.s8 %v3165
    %v3415 = vunpack.c.1.s8 %v3165
    %v3416 = vunpack.c.2.s8 %v3165
    %v3417 = vunpack.c.3.s8 %v3165
    %v3418 = vunpack.c.0.s8 %v3166
    %v3419 = vunpack.c.1.s8 %v3166
    %v3420 = vunpack.c.2.s8 %v3166
    %v3421 = vunpack.c.3.s8 %v3166
    %v3422 = vunpack.c.0.s8 %v3167
    %v3423 = vunpack.c.1.s8 %v3167
    %v3424 = vunpack.c.2.s8 %v3167
    %v3425 = vunpack.c.3.s8 %v3167
    %v3426 = vunpack.c.0.s8 %v3168
    %v3427 = vunpack.c.1.s8 %v3168
    %v3428 = vunpack.c.2.s8 %v3168
    %v3429 = vunpack.c.3.s8 %v3168
    %v3430 = vunpack.c.0.s8 %v3169
    %v3431 = vunpack.c.1.s8 %v3169
    %v3432 = vunpack.c.2.s8 %v3169
    %v3433 = vunpack.c.3.s8 %v3169
    %v3434 = vunpack.c.0.s8 %v3170
    %v3435 = vunpack.c.1.s8 %v3170
    %v3436 = vunpack.c.2.s8 %v3170
    %v3437 = vunpack.c.3.s8 %v3170
    %v3438 = vunpack.c.0.s8 %v3171
    %v3439 = vunpack.c.1.s8 %v3171
    %v3440 = vunpack.c.2.s8 %v3171
    %v3441 = vunpack.c.3.s8 %v3171
    %v3442 = vunpack.c.0.s8 %v3172
    %v3443 = vunpack.c.1.s8 %v3172
    %v3444 = vunpack.c.2.s8 %v3172
    %v3445 = vunpack.c.3.s8 %v3172
    %v3446 = vunpack.c.0.s8 %v3173
    %v3447 = vunpack.c.1.s8 %v3173
    %v3448 = vunpack.c.2.s8 %v3173
    %v3449 = vunpack.c.3.s8 %v3173
    %v3450 = vunpack.c.0.s8 %v3174
    %v3451 = vunpack.c.1.s8 %v3174
    %v3452 = vunpack.c.2.s8 %v3174
    %v3453 = vunpack.c.3.s8 %v3174
    %v3454 = vunpack.c.0.s8 %v3175
    %v3455 = vunpack.c.1.s8 %v3175
    %v3456 = vunpack.c.2.s8 %v3175
    %v3457 = vunpack.c.3.s8 %v3175
    %v3458 = vunpack.c.0.s8 %v3176
    %v3459 = vunpack.c.1.s8 %v3176
    %v3460 = vunpack.c.2.s8 %v3176
    %v3461 = vunpack.c.3.s8 %v3176
    %v3462 = vunpack.c.0.s8 %v3177
    %v3463 = vunpack.c.1.s8 %v3177
    %v3464 = vunpack.c.2.s8 %v3177
    %v3465 = vunpack.c.3.s8 %v3177
    %v3466 = vunpack.c.0.s8 %v3178
    %v3467 = vunpack.c.1.s8 %v3178
    %v3468 = vunpack.c.2.s8 %v3178
    %v3469 = vunpack.c.3.s8 %v3178
    %v3470 = vunpack.c.0.s8 %v3179
    %v3471 = vunpack.c.1.s8 %v3179
    %v3472 = vunpack.c.2.s8 %v3179
    %v3473 = vunpack.c.3.s8 %v3179
    %v3474 = vunpack.c.0.s8 %v3180
    %v3475 = vunpack.c.1.s8 %v3180
    %v3476 = vunpack.c.2.s8 %v3180
    %v3477 = vunpack.c.3.s8 %v3180
    %v3478 = vunpack.c.0.s8 %v3181
    %v3479 = vunpack.c.1.s8 %v3181
    %v3480 = vunpack.c.2.s8 %v3181
    %v3481 = vunpack.c.3.s8 %v3181
    %v3482 = vunpack.c.0.s8 %v3182
    %v3483 = vunpack.c.1.s8 %v3182
    %v3484 = vunpack.c.2.s8 %v3182
    %v3485 = vunpack.c.3.s8 %v3182
    %v3486 = vunpack.c.0.s8 %v3183
    %v3487 = vunpack.c.1.s8 %v3183
    %v3488 = vunpack.c.2.s8 %v3183
    %v3489 = vunpack.c.3.s8 %v3183
    %v3490 = vunpack.c.0.s8 %v3184
    %v3491 = vunpack.c.1.s8 %v3184
    %v3492 = vunpack.c.2.s8 %v3184
    %v3493 = vunpack.c.3.s8 %v3184
    %v3494 = vunpack.c.0.s8 %v3185
    %v3495 = vunpack.c.1.s8 %v3185
    %v3496 = vunpack.c.2.s8 %v3185
    %v3497 = vunpack.c.3.s8 %v3185
    %v3498 = vunpack.c.0.s8 %v3186
    %v3499 = vunpack.c.1.s8 %v3186
    %v3500 = vunpack.c.2.s8 %v3186
    %v3501 = vunpack.c.3.s8 %v3186
    %v3502 = vunpack.c.0.s8 %v3187
    %v3503 = vunpack.c.1.s8 %v3187
    %v3504 = vunpack.c.2.s8 %v3187
    %v3505 = vunpack.c.3.s8 %v3187
    %v3506 = vunpack.c.0.s8 %v3188
    %v3507 = vunpack.c.1.s8 %v3188
    %v3508 = vunpack.c.2.s8 %v3188
    %v3509 = vunpack.c.3.s8 %v3188
    %v3510 = vunpack.c.0.s8 %v3189
    %v3511 = vunpack.c.1.s8 %v3189
    %v3512 = vunpack.c.2.s8 %v3189
    %v3513 = vunpack.c.3.s8 %v3189
    %v3514 = vunpack.c.0.s8 %v3190
    %v3515 = vunpack.c.1.s8 %v3190
    %v3516 = vunpack.c.2.s8 %v3190
    %v3517 = vunpack.c.3.s8 %v3190
    %v3518 = vunpack.c.0.s8 %v3191
    %v3519 = vunpack.c.1.s8 %v3191
    %v3520 = vunpack.c.2.s8 %v3191
    %v3521 = vunpack.c.3.s8 %v3191
    %v3522 = vunpack.c.0.s8 %v3192
    %v3523 = vunpack.c.1.s8 %v3192
    %v3524 = vunpack.c.2.s8 %v3192
    %v3525 = vunpack.c.3.s8 %v3192
    %v3526 = vunpack.c.0.s8 %v3193
    %v3527 = vunpack.c.1.s8 %v3193
    %v3528 = vunpack.c.2.s8 %v3193
    %v3529 = vunpack.c.3.s8 %v3193
    %v3530 = vunpack.c.0.s8 %v3194
    %v3531 = vunpack.c.1.s8 %v3194
    %v3532 = vunpack.c.2.s8 %v3194
    %v3533 = vunpack.c.3.s8 %v3194
    %v3534 = vunpack.c.0.s8 %v3195
    %v3535 = vunpack.c.1.s8 %v3195
    %v3536 = vunpack.c.2.s8 %v3195
    %v3537 = vunpack.c.3.s8 %v3195
    %v3538 = vunpack.c.0.s8 %v3196
    %v3539 = vunpack.c.1.s8 %v3196
    %v3540 = vunpack.c.2.s8 %v3196
    %v3541 = vunpack.c.3.s8 %v3196
    %v3542 = vunpack.c.0.s8 %v3197
    %v3543 = vunpack.c.1.s8 %v3197
    %v3544 = vunpack.c.2.s8 %v3197
    %v3545 = vunpack.c.3.s8 %v3197
    %v3546 = vunpack.c.0.s8 %v3198
    %v3547 = vunpack.c.1.s8 %v3198
    %v3548 = vunpack.c.2.s8 %v3198
    %v3549 = vunpack.c.3.s8 %v3198
    %v3550 = vunpack.c.0.s8 %v3199
    %v3551 = vunpack.c.1.s8 %v3199
    %v3552 = vunpack.c.2.s8 %v3199
    %v3553 = vunpack.c.3.s8 %v3199
    %v3554 = vunpack.c.0.s8 %v3200
    %v3555 = vunpack.c.1.s8 %v3200
    %v3556 = vunpack.c.2.s8 %v3200
    %v3557 = vunpack.c.3.s8 %v3200
    %v3558 = vunpack.c.0.s8 %v3201
    %v3559 = vunpack.c.1.s8 %v3201
    %v3560 = vunpack.c.2.s8 %v3201
    %v3561 = vunpack.c.3.s8 %v3201
    %v3562 = vunpack.c.0.s8 %v3202
    %v3563 = vunpack.c.1.s8 %v3202
    %v3564 = vunpack.c.2.s8 %v3202
    %v3565 = vunpack.c.3.s8 %v3202
    %v3566 = vunpack.c.0.s8 %v3203
    %v3567 = vunpack.c.1.s8 %v3203
    %v3568 = vunpack.c.2.s8 %v3203
    %v3569 = vunpack.c.3.s8 %v3203
    %v3570 = vunpack.c.0.s8 %v3204
    %v3571 = vunpack.c.1.s8 %v3204
    %v3572 = vunpack.c.2.s8 %v3204
    %v3573 = vunpack.c.3.s8 %v3204
    %v3574 = vunpack.c.0.s8 %v3205
    %v3575 = vunpack.c.1.s8 %v3205
    %v3576 = vunpack.c.2.s8 %v3205
    %v3577 = vunpack.c.3.s8 %v3205
    %v3578 = vunpack.c.0.s8 %v3206
    %v3579 = vunpack.c.1.s8 %v3206
    %v3580 = vunpack.c.2.s8 %v3206
    %v3581 = vunpack.c.3.s8 %v3206
    %v3582 = vunpack.c.0.s8 %v3207
    %v3583 = vunpack.c.1.s8 %v3207
    %v3584 = vunpack.c.2.s8 %v3207
    %v3585 = vunpack.c.3.s8 %v3207
    %v3586 = vunpack.c.0.s8 %v3208
    %v3587 = vunpack.c.1.s8 %v3208
    %v3588 = vunpack.c.2.s8 %v3208
    %v3589 = vunpack.c.3.s8 %v3208
    %v3590 = vunpack.c.0.s8 %v3209
    %v3591 = vunpack.c.1.s8 %v3209
    %v3592 = vunpack.c.2.s8 %v3209
    %v3593 = vunpack.c.3.s8 %v3209
    %v3594 = vunpack.c.0.s8 %v3210
    %v3595 = vunpack.c.1.s8 %v3210
    %v3596 = vunpack.c.2.s8 %v3210
    %v3597 = vunpack.c.3.s8 %v3210
    %v3598 = vunpack.c.0.s8 %v3211
    %v3599 = vunpack.c.1.s8 %v3211
    %v3600 = vunpack.c.2.s8 %v3211
    %v3601 = vunpack.c.3.s8 %v3211
    %v3602 = vunpack.c.0.s8 %v3212
    %v3603 = vunpack.c.1.s8 %v3212
    %v3604 = vunpack.c.2.s8 %v3212
    %v3605 = vunpack.c.3.s8 %v3212
    %v3606 = vunpack.c.0.s8 %v3213
    %v3607 = vunpack.c.1.s8 %v3213
    %v3608 = vunpack.c.2.s8 %v3213
    %v3609 = vunpack.c.3.s8 %v3213
    %v3610 = vunpack.c.0.s8 %v3214
    %v3611 = vunpack.c.1.s8 %v3214
    %v3612 = vunpack.c.2.s8 %v3214
    %v3613 = vunpack.c.3.s8 %v3214
    %v3614 = vunpack.c.0.s8 %v3215
    %v3615 = vunpack.c.1.s8 %v3215
    %v3616 = vunpack.c.2.s8 %v3215
    %v3617 = vunpack.c.3.s8 %v3215
    %v3618 = vunpack.c.0.s8 %v3216
    %v3619 = vunpack.c.1.s8 %v3216
    %v3620 = vunpack.c.2.s8 %v3216
    %v3621 = vunpack.c.3.s8 %v3216
    %v3622 = vunpack.c.0.s8 %v3217
    %v3623 = vunpack.c.1.s8 %v3217
    %v3624 = vunpack.c.2.s8 %v3217
    %v3625 = vunpack.c.3.s8 %v3217
    %v3626 = vunpack.c.0.s8 %v3218
    %v3627 = vunpack.c.1.s8 %v3218
    %v3628 = vunpack.c.2.s8 %v3218
    %v3629 = vunpack.c.3.s8 %v3218
    %v3630 = vunpack.c.0.s8 %v3219
    %v3631 = vunpack.c.1.s8 %v3219
    %v3632 = vunpack.c.2.s8 %v3219
    %v3633 = vunpack.c.3.s8 %v3219
    %v3634 = vunpack.c.0.s8 %v3220
    %v3635 = vunpack.c.1.s8 %v3220
    %v3636 = vunpack.c.2.s8 %v3220
    %v3637 = vunpack.c.3.s8 %v3220
    %v3638 = vunpack.c.0.s8 %v3221
    %v3639 = vunpack.c.1.s8 %v3221
    %v3640 = vunpack.c.2.s8 %v3221
    %v3641 = vunpack.c.3.s8 %v3221
    %v3642 = vunpack.c.0.s8 %v3222
    %v3643 = vunpack.c.1.s8 %v3222
    %v3644 = vunpack.c.2.s8 %v3222
    %v3645 = vunpack.c.3.s8 %v3222
    %v3646 = vunpack.c.0.s8 %v3223
    %v3647 = vunpack.c.1.s8 %v3223
    %v3648 = vunpack.c.2.s8 %v3223
    %v3649 = vunpack.c.3.s8 %v3223
    %v3650 = vunpack.c.0.s8 %v3224
    %v3651 = vunpack.c.1.s8 %v3224
    %v3652 = vunpack.c.2.s8 %v3224
    %v3653 = vunpack.c.3.s8 %v3224
    %v3654 = vunpack.c.0.s8 %v3225
    %v3655 = vunpack.c.1.s8 %v3225
    %v3656 = vunpack.c.2.s8 %v3225
    %v3657 = vunpack.c.3.s8 %v3225
    %v3658 = vunpack.c.0.s8 %v3226
    %v3659 = vunpack.c.1.s8 %v3226
    %v3660 = vunpack.c.2.s8 %v3226
    %v3661 = vunpack.c.3.s8 %v3226
    %v3662 = vunpack.c.0.s8 %v3227
    %v3663 = vunpack.c.1.s8 %v3227
    %v3664 = vunpack.c.2.s8 %v3227
    %v3665 = vunpack.c.3.s8 %v3227
    %v3666 = vunpack.c.0.s8 %v3228
    %v3667 = vunpack.c.1.s8 %v3228
    %v3668 = vunpack.c.2.s8 %v3228
    %v3669 = vunpack.c.3.s8 %v3228
    %v3670 = vunpack.c.0.s8 %v3229
    %v3671 = vunpack.c.1.s8 %v3229
    %v3672 = vunpack.c.2.s8 %v3229
    %v3673 = vunpack.c.3.s8 %v3229
    %v3674 = vunpack.c.0.s8 %v3230
    %v3675 = vunpack.c.1.s8 %v3230
    %v3676 = vunpack.c.2.s8 %v3230
    %v3677 = vunpack.c.3.s8 %v3230
    %v3678 = vunpack.c.0.s8 %v3231
    %v3679 = vunpack.c.1.s8 %v3231
    %v3680 = vunpack.c.2.s8 %v3231
    %v3681 = vunpack.c.3.s8 %v3231
    %v3682 = vunpack.c.0.s8 %v3232
    %v3683 = vunpack.c.1.s8 %v3232
    %v3684 = vunpack.c.2.s8 %v3232
    %v3685 = vunpack.c.3.s8 %v3232
    %v3686 = vunpack.c.0.s8 %v3233
    %v3687 = vunpack.c.1.s8 %v3233
    %v3688 = vunpack.c.2.s8 %v3233
    %v3689 = vunpack.c.3.s8 %v3233
    %v3690 = vunpack.c.0.s8 %v3234
    %v3691 = vunpack.c.1.s8 %v3234
    %v3692 = vunpack.c.2.s8 %v3234
    %v3693 = vunpack.c.3.s8 %v3234
    %v3694 = vunpack.c.0.s8 %v3235
    %v3695 = vunpack.c.1.s8 %v3235
    %v3696 = vunpack.c.2.s8 %v3235
    %v3697 = vunpack.c.3.s8 %v3235
    %v3698 = vunpack.c.0.s8 %v3236
    %v3699 = vunpack.c.1.s8 %v3236
    %v3700 = vunpack.c.2.s8 %v3236
    %v3701 = vunpack.c.3.s8 %v3236
    %v3702 = vunpack.c.0.s8 %v3237
    %v3703 = vunpack.c.1.s8 %v3237
    %v3704 = vunpack.c.2.s8 %v3237
    %v3705 = vunpack.c.3.s8 %v3237
    %v3706 = vunpack.c.0.s8 %v3238
    %v3707 = vunpack.c.1.s8 %v3238
    %v3708 = vunpack.c.2.s8 %v3238
    %v3709 = vunpack.c.3.s8 %v3238
    %v3710 = vunpack.c.0.s8 %v3239
    %v3711 = vunpack.c.1.s8 %v3239
    %v3712 = vunpack.c.2.s8 %v3239
    %v3713 = vunpack.c.3.s8 %v3239
    %v3714 = vunpack.c.0.s8 %v3240
    %v3715 = vunpack.c.1.s8 %v3240
    %v3716 = vunpack.c.2.s8 %v3240
    %v3717 = vunpack.c.3.s8 %v3240
    %v3718 = vunpack.c.0.s8 %v3241
    %v3719 = vunpack.c.1.s8 %v3241
    %v3720 = vunpack.c.2.s8 %v3241
    %v3721 = vunpack.c.3.s8 %v3241
    %v3722 = vunpack.c.0.s8 %v3242
    %v3723 = vunpack.c.1.s8 %v3242
    %v3724 = vunpack.c.2.s8 %v3242
    %v3725 = vunpack.c.3.s8 %v3242
    %v3726 = vunpack.c.0.s8 %v3243
    %v3727 = vunpack.c.1.s8 %v3243
    %v3728 = vunpack.c.2.s8 %v3243
    %v3729 = vunpack.c.3.s8 %v3243
    %v3730 = vunpack.c.0.s8 %v3244
    %v3731 = vunpack.c.1.s8 %v3244
    %v3732 = vunpack.c.2.s8 %v3244
    %v3733 = vunpack.c.3.s8 %v3244
    %v3734 = vunpack.c.0.s8 %v3245
    %v3735 = vunpack.c.1.s8 %v3245
    %v3736 = vunpack.c.2.s8 %v3245
    %v3737 = vunpack.c.3.s8 %v3245
    %v3738 = vunpack.c.0.s8 %v3246
    %v3739 = vunpack.c.1.s8 %v3246
    %v3740 = vunpack.c.2.s8 %v3246
    %v3741 = vunpack.c.3.s8 %v3246
    %v3742 = vunpack.c.0.s8 %v3247
    %v3743 = vunpack.c.1.s8 %v3247
    %v3744 = vunpack.c.2.s8 %v3247
    %v3745 = vunpack.c.3.s8 %v3247
    %v3746 = vunpack.c.0.s8 %v3248
    %v3747 = vunpack.c.1.s8 %v3248
    %v3748 = vunpack.c.2.s8 %v3248
    %v3749 = vunpack.c.3.s8 %v3248
    %v3750 = vunpack.c.0.s8 %v3249
    %v3751 = vunpack.c.1.s8 %v3249
    %v3752 = vunpack.c.2.s8 %v3249
    %v3753 = vunpack.c.3.s8 %v3249
    %v3754 = vunpack.c.0.s8 %v3250
    %v3755 = vunpack.c.1.s8 %v3250
    %v3756 = vunpack.c.2.s8 %v3250
    %v3757 = vunpack.c.3.s8 %v3250
    %v3758 = vunpack.c.0.s8 %v3251
    %v3759 = vunpack.c.1.s8 %v3251
    %v3760 = vunpack.c.2.s8 %v3251
    %v3761 = vunpack.c.3.s8 %v3251
    %v3762 = vunpack.c.0.s8 %v3252
    %v3763 = vunpack.c.1.s8 %v3252
    %v3764 = vunpack.c.2.s8 %v3252
    %v3765 = vunpack.c.3.s8 %v3252
    %v3766 = vunpack.c.0.s8 %v3253
    %v3767 = vunpack.c.1.s8 %v3253
    %v3768 = vunpack.c.2.s8 %v3253
    %v3769 = vunpack.c.3.s8 %v3253
    %v3770 = vunpack.c.0.s8 %v3254
    %v3771 = vunpack.c.1.s8 %v3254
    %v3772 = vunpack.c.2.s8 %v3254
    %v3773 = vunpack.c.3.s8 %v3254
    %v3774 = vunpack.c.0.s8 %v3255
    %v3775 = vunpack.c.1.s8 %v3255
    %v3776 = vunpack.c.2.s8 %v3255
    %v3777 = vunpack.c.3.s8 %v3255
    %v3778 = vunpack.c.0.s8 %v3256
    %v3779 = vunpack.c.1.s8 %v3256
    %v3780 = vunpack.c.2.s8 %v3256
    %v3781 = vunpack.c.3.s8 %v3256
    %v3782 = vunpack.c.0.s8 %v3257
    %v3783 = vunpack.c.1.s8 %v3257
    %v3784 = vunpack.c.2.s8 %v3257
    %v3785 = vunpack.c.3.s8 %v3257
    %v3786 = vunpack.c.0.s8 %v3258
    %v3787 = vunpack.c.1.s8 %v3258
    %v3788 = vunpack.c.2.s8 %v3258
    %v3789 = vunpack.c.3.s8 %v3258
    %v3790 = vunpack.c.0.s8 %v3259
    %v3791 = vunpack.c.1.s8 %v3259
    %v3792 = vunpack.c.2.s8 %v3259
    %v3793 = vunpack.c.3.s8 %v3259
    %v3794 = vunpack.c.0.s8 %v3260
    %v3795 = vunpack.c.1.s8 %v3260
    %v3796 = vunpack.c.2.s8 %v3260
    %v3797 = vunpack.c.3.s8 %v3260
    %v3798 = vunpack.c.0.s8 %v3261
    %v3799 = vunpack.c.1.s8 %v3261
    %v3800 = vunpack.c.2.s8 %v3261
    %v3801 = vunpack.c.3.s8 %v3261
    %v3802 = vunpack.c.0.s8 %v3262
    %v3803 = vunpack.c.1.s8 %v3262
    %v3804 = vunpack.c.2.s8 %v3262
    %v3805 = vunpack.c.3.s8 %v3262
    %v3806 = vunpack.c.0.s8 %v3263
    %v3807 = vunpack.c.1.s8 %v3263
    %v3808 = vunpack.c.2.s8 %v3263
    %v3809 = vunpack.c.3.s8 %v3263
    %v3810 = vunpack.c.0.s8 %v3264
    %v3811 = vunpack.c.1.s8 %v3264
    %v3812 = vunpack.c.2.s8 %v3264
    %v3813 = vunpack.c.3.s8 %v3264
    %v3814 = vunpack.c.0.s8 %v3265
    %v3815 = vunpack.c.1.s8 %v3265
    %v3816 = vunpack.c.2.s8 %v3265
    %v3817 = vunpack.c.3.s8 %v3265
    %v3818 = vunpack.c.0.s8 %v3266
    %v3819 = vunpack.c.1.s8 %v3266
    %v3820 = vunpack.c.2.s8 %v3266
    %v3821 = vunpack.c.3.s8 %v3266
    %v3822 = vunpack.c.0.s8 %v3267
    %v3823 = vunpack.c.1.s8 %v3267
    %v3824 = vunpack.c.2.s8 %v3267
    %v3825 = vunpack.c.3.s8 %v3267
    %v3826 = vunpack.c.0.s8 %v3268
    %v3827 = vunpack.c.1.s8 %v3268
    %v3828 = vunpack.c.2.s8 %v3268
    %v3829 = vunpack.c.3.s8 %v3268
    %v3830 = vunpack.c.0.s8 %v3269
    %v3831 = vunpack.c.1.s8 %v3269
    %v3832 = vunpack.c.2.s8 %v3269
    %v3833 = vunpack.c.3.s8 %v3269
    %v3834 = vunpack.c.0.s8 %v3270
    %v3835 = vunpack.c.1.s8 %v3270
    %v3836 = vunpack.c.2.s8 %v3270
    %v3837 = vunpack.c.3.s8 %v3270
    %v3838 = vunpack.c.0.s8 %v3271
    %v3839 = vunpack.c.1.s8 %v3271
    %v3840 = vunpack.c.2.s8 %v3271
    %v3841 = vunpack.c.3.s8 %v3271
    %v3842 = vunpack.c.0.s8 %v3272
    %v3843 = vunpack.c.1.s8 %v3272
    %v3844 = vunpack.c.2.s8 %v3272
    %v3845 = vunpack.c.3.s8 %v3272
    %v3846 = vunpack.c.0.s8 %v3273
    %v3847 = vunpack.c.1.s8 %v3273
    %v3848 = vunpack.c.2.s8 %v3273
    %v3849 = vunpack.c.3.s8 %v3273
    %v3850 = vunpack.c.0.s8 %v3274
    %v3851 = vunpack.c.1.s8 %v3274
    %v3852 = vunpack.c.2.s8 %v3274
    %v3853 = vunpack.c.3.s8 %v3274
    %v3854 = vunpack.c.0.s8 %v3275
    %v3855 = vunpack.c.1.s8 %v3275
    %v3856 = vunpack.c.2.s8 %v3275
    %v3857 = vunpack.c.3.s8 %v3275
    %v3858 = vunpack.c.0.s8 %v3276
    %v3859 = vunpack.c.1.s8 %v3276
    %v3860 = vunpack.c.2.s8 %v3276
    %v3861 = vunpack.c.3.s8 %v3276
    %v3862 = vunpack.c.0.s8 %v3277
    %v3863 = vunpack.c.1.s8 %v3277
    %v3864 = vunpack.c.2.s8 %v3277
    %v3865 = vunpack.c.3.s8 %v3277
    %v3866 = vunpack.c.0.s8 %v3278
    %v3867 = vunpack.c.1.s8 %v3278
    %v3868 = vunpack.c.2.s8 %v3278
    %v3869 = vunpack.c.3.s8 %v3278
    %v3870 = vunpack.c.0.s8 %v3279
    %v3871 = vunpack.c.1.s8 %v3279
    %v3872 = vunpack.c.2.s8 %v3279
    %v3873 = vunpack.c.3.s8 %v3279
    %v3874 = vunpack.c.0.s8 %v3280
    %v3875 = vunpack.c.1.s8 %v3280
    %v3876 = vunpack.c.2.s8 %v3280
    %v3877 = vunpack.c.3.s8 %v3280
    %v3878 = vunpack.c.0.s8 %v3281
    %v3879 = vunpack.c.1.s8 %v3281
    %v3880 = vunpack.c.2.s8 %v3281
    %v3881 = vunpack.c.3.s8 %v3281
    %v3882 = vcvt.s32.f32 %v3282
    %v3883 = vcvt.s32.f32 %v3283
    %v3884 = vcvt.s32.f32 %v3284
    %v3885 = vcvt.s32.f32 %v3285
    %v3886 = vcvt.s32.f32 %v3286
    %v3887 = vcvt.s32.f32 %v3287
    %v3888 = vcvt.s32.f32 %v3288
    %v3889 = vcvt.s32.f32 %v3289
    %v3890 = vcvt.s32.f32 %v3290
    %v3891 = vcvt.s32.f32 %v3291
    %v3892 = vcvt.s32.f32 %v3292
    %v3893 = vcvt.s32.f32 %v3293
    %v3894 = vcvt.s32.f32 %v3294
    %v3895 = vcvt.s32.f32 %v3295
    %v3896 = vcvt.s32.f32 %v3296
    %v3897 = vcvt.s32.f32 %v3297
    %v3898 = vcvt.s32.f32 %v3298
    %v3899 = vcvt.s32.f32 %v3299
    %v3900 = vcvt.s32.f32 %v3300
    %v3901 = vcvt.s32.f32 %v3301
    %v3902 = vcvt.s32.f32 %v3302
    %v3903 = vcvt.s32.f32 %v3303
    %v3904 = vcvt.s32.f32 %v3304
    %v3905 = vcvt.s32.f32 %v3305
    %v3906 = vcvt.s32.f32 %v3306
    %v3907 = vcvt.s32.f32 %v3307
    %v3908 = vcvt.s32.f32 %v3308
    %v3909 = vcvt.s32.f32 %v3309
    %v3910 = vcvt.s32.f32 %v3310
    %v3911 = vcvt.s32.f32 %v3311
    %v3912 = vcvt.s32.f32 %v3312
    %v3913 = vcvt.s32.f32 %v3313
    %v3914 = vcvt.s32.f32 %v3314
    %v3915 = vcvt.s32.f32 %v3315
    %v3916 = vcvt.s32.f32 %v3316
    %v3917 = vcvt.s32.f32 %v3317
    %v3918 = vcvt.s32.f32 %v3318
    %v3919 = vcvt.s32.f32 %v3319
    %v3920 = vcvt.s32.f32 %v3320
    %v3921 = vcvt.s32.f32 %v3321
    %v3922 = vcvt.s32.f32 %v3322
    %v3923 = vcvt.s32.f32 %v3323
    %v3924 = vcvt.s32.f32 %v3324
    %v3925 = vcvt.s32.f32 %v3325
    %v3926 = vcvt.s32.f32 %v3326
    %v3927 = vcvt.s32.f32 %v3327
    %v3928 = vcvt.s32.f32 %v3328
    %v3929 = vcvt.s32.f32 %v3329
    %v3930 = vcvt.s32.f32 %v3330
    %v3931 = vcvt.s32.f32 %v3331
    %v3932 = vcvt.s32.f32 %v3332
    %v3933 = vcvt.s32.f32 %v3333
    %v3934 = vcvt.s32.f32 %v3334
    %v3935 = vcvt.s32.f32 %v3335
    %v3936 = vcvt.s32.f32 %v3336
    %v3937 = vcvt.s32.f32 %v3337
    %v3938 = vcvt.s32.f32 %v3338
    %v3939 = vcvt.s32.f32 %v3339
    %v3940 = vcvt.s32.f32 %v3340
    %v3941 = vcvt.s32.f32 %v3341
    %v3942 = vcvt.s32.f32 %v3342
    %v3943 = vcvt.s32.f32 %v3343
    %v3944 = vcvt.s32.f32 %v3344
    %v3945 = vcvt.s32.f32 %v3345
    %v3946 = vcvt.s32.f32 %v3346
    %v3947 = vcvt.s32.f32 %v3347
    %v3948 = vcvt.s32.f32 %v3348
    %v3949 = vcvt.s32.f32 %v3349
    %v3950 = vcvt.s32.f32 %v3350
    %v3951 = vcvt.s32.f32 %v3351
    %v3952 = vcvt.s32.f32 %v3352
    %v3953 = vcvt.s32.f32 %v3353
    %v3954 = vcvt.s32.f32 %v3354
    %v3955 = vcvt.s32.f32 %v3355
    %v3956 = vcvt.s32.f32 %v3356
    %v3957 = vcvt.s32.f32 %v3357
    %v3958 = vcvt.s32.f32 %v3358
    %v3959 = vcvt.s32.f32 %v3359
    %v3960 = vcvt.s32.f32 %v3360
    %v3961 = vcvt.s32.f32 %v3361
    %v3962 = vcvt.s32.f32 %v3362
    %v3963 = vcvt.s32.f32 %v3363
    %v3964 = vcvt.s32.f32 %v3364
    %v3965 = vcvt.s32.f32 %v3365
    %v3966 = vcvt.s32.f32 %v3366
    %v3967 = vcvt.s32.f32 %v3367
    %v3968 = vcvt.s32.f32 %v3368
    %v3969 = vcvt.s32.f32 %v3369
    %v3970 = vcvt.s32.f32 %v3370
    %v3971 = vcvt.s32.f32 %v3371
    %v3972 = vcvt.s32.f32 %v3372
    %v3973 = vcvt.s32.f32 %v3373
    %v3974 = vcvt.s32.f32 %v3374
    %v3975 = vcvt.s32.f32 %v3375
    %v3976 = vcvt.s32.f32 %v3376
    %v3977 = vcvt.s32.f32 %v3377
    %v3978 = vcvt.s32.f32 %v3378
    %v3979 = vcvt.s32.f32 %v3379
    %v3980 = vcvt.s32.f32 %v3380
    %v3981 = vcvt.s32.f32 %v3381
    %v3982 = vcvt.s32.f32 %v3382
    %v3983 = vcvt.s32.f32 %v3383
    %v3984 = vcvt.s32.f32 %v3384
    %v3985 = vcvt.s32.f32 %v3385
    %v3986 = vcvt.s32.f32 %v3386
    %v3987 = vcvt.s32.f32 %v3387
    %v3988 = vcvt.s32.f32 %v3388
    %v3989 = vcvt.s32.f32 %v3389
    %v3990 = vcvt.s32.f32 %v3390
    %v3991 = vcvt.s32.f32 %v3391
    %v3992 = vcvt.s32.f32 %v3392
    %v3993 = vcvt.s32.f32 %v3393
    %v3994 = vcvt.s32.f32 %v3394
    %v3995 = vcvt.s32.f32 %v3395
    %v3996 = vcvt.s32.f32 %v3396
    %v3997 = vcvt.s32.f32 %v3397
    %v3998 = vcvt.s32.f32 %v3398
    %v3999 = vcvt.s32.f32 %v3399
    %v4000 = vcvt.s32.f32 %v3400
    %v4001 = vcvt.s32.f32 %v3401
    %v4002 = vcvt.s32.f32 %v3402
    %v4003 = vcvt.s32.f32 %v3403
    %v4004 = vcvt.s32.f32 %v3404
    %v4005 = vcvt.s32.f32 %v3405
    %v4006 = vcvt.s32.f32 %v3406
    %v4007 = vcvt.s32.f32 %v3407
    %v4008 = vcvt.s32.f32 %v3408
    %v4009 = vcvt.s32.f32 %v3409
    %v4010 = vcvt.s32.f32 %v3410
    %v4011 = vcvt.s32.f32 %v3411
    %v4012 = vcvt.s32.f32 %v3412
    %v4013 = vcvt.s32.f32 %v3413
    %v4014 = vcvt.s32.f32 %v3414
    %v4015 = vcvt.s32.f32 %v3415
    %v4016 = vcvt.s32.f32 %v3416
    %v4017 = vcvt.s32.f32 %v3417
    %v4018 = vcvt.s32.f32 %v3418
    %v4019 = vcvt.s32.f32 %v3419
    %v4020 = vcvt.s32.f32 %v3420
    %v4021 = vcvt.s32.f32 %v3421
    %v4022 = vcvt.s32.f32 %v3422
    %v4023 = vcvt.s32.f32 %v3423
    %v4024 = vcvt.s32.f32 %v3424
    %v4025 = vcvt.s32.f32 %v3425
    %v4026 = vcvt.s32.f32 %v3426
    %v4027 = vcvt.s32.f32 %v3427
    %v4028 = vcvt.s32.f32 %v3428
    %v4029 = vcvt.s32.f32 %v3429
    %v4030 = vcvt.s32.f32 %v3430
    %v4031 = vcvt.s32.f32 %v3431
    %v4032 = vcvt.s32.f32 %v3432
    %v4033 = vcvt.s32.f32 %v3433
    %v4034 = vcvt.s32.f32 %v3434
    %v4035 = vcvt.s32.f32 %v3435
    %v4036 = vcvt.s32.f32 %v3436
    %v4037 = vcvt.s32.f32 %v3437
    %v4038 = vcvt.s32.f32 %v3438
    %v4039 = vcvt.s32.f32 %v3439
    %v4040 = vcvt.s32.f32 %v3440
    %v4041 = vcvt.s32.f32 %v3441
    %v4042 = vcvt.s32.f32 %v3442
    %v4043 = vcvt.s32.f32 %v3443
    %v4044 = vcvt.s32.f32 %v3444
    %v4045 = vcvt.s32.f32 %v3445
    %v4046 = vcvt.s32.f32 %v3446
    %v4047 = vcvt.s32.f32 %v3447
    %v4048 = vcvt.s32.f32 %v3448
    %v4049 = vcvt.s32.f32 %v3449
    %v4050 = vcvt.s32.f32 %v3450
    %v4051 = vcvt.s32.f32 %v3451
    %v4052 = vcvt.s32.f32 %v3452
    %v4053 = vcvt.s32.f32 %v3453
    %v4054 = vcvt.s32.f32 %v3454
    %v4055 = vcvt.s32.f32 %v3455
    %v4056 = vcvt.s32.f32 %v3456
    %v4057 = vcvt.s32.f32 %v3457
    %v4058 = vcvt.s32.f32 %v3458
    %v4059 = vcvt.s32.f32 %v3459
    %v4060 = vcvt.s32.f32 %v3460
    %v4061 = vcvt.s32.f32 %v3461
    %v4062 = vcvt.s32.f32 %v3462
    %v4063 = vcvt.s32.f32 %v3463
    %v4064 = vcvt.s32.f32 %v3464
    %v4065 = vcvt.s32.f32 %v3465
    %v4066 = vcvt.s32.f32 %v3466
    %v4067 = vcvt.s32.f32 %v3467
    %v4068 = vcvt.s32.f32 %v3468
    %v4069 = vcvt.s32.f32 %v3469
    %v4070 = vcvt.s32.f32 %v3470
    %v4071 = vcvt.s32.f32 %v3471
    %v4072 = vcvt.s32.f32 %v3472
    %v4073 = vcvt.s32.f32 %v3473
    %v4074 = vcvt.s32.f32 %v3474
    %v4075 = vcvt.s32.f32 %v3475
    %v4076 = vcvt.s32.f32 %v3476
    %v4077 = vcvt.s32.f32 %v3477
    %v4078 = vcvt.s32.f32 %v3478
    %v4079 = vcvt.s32.f32 %v3479
    %v4080 = vcvt.s32.f32 %v3480
    %v4081 = vcvt.s32.f32 %v3481
    %v4082 = vcvt.s32.f32 %v3482
    %v4083 = vcvt.s32.f32 %v3483
    %v4084 = vcvt.s32.f32 %v3484
    %v4085 = vcvt.s32.f32 %v3485
    %v4086 = vcvt.s32.f32 %v3486
    %v4087 = vcvt.s32.f32 %v3487
    %v4088 = vcvt.s32.f32 %v3488
    %v4089 = vcvt.s32.f32 %v3489
    %v4090 = vcvt.s32.f32 %v3490
    %v4091 = vcvt.s32.f32 %v3491
    %v4092 = vcvt.s32.f32 %v3492
    %v4093 = vcvt.s32.f32 %v3493
    %v4094 = vcvt.s32.f32 %v3494
    %v4095 = vcvt.s32.f32 %v3495
    %v4096 = vcvt.s32.f32 %v3496
    %v4097 = vcvt.s32.f32 %v3497
    %v4098 = vcvt.s32.f32 %v3498
    %v4099 = vcvt.s32.f32 %v3499
    %v4100 = vcvt.s32.f32 %v3500
    %v4101 = vcvt.s32.f32 %v3501
    %v4102 = vcvt.s32.f32 %v3502
    %v4103 = vcvt.s32.f32 %v3503
    %v4104 = vcvt.s32.f32 %v3504
    %v4105 = vcvt.s32.f32 %v3505
    %v4106 = vcvt.s32.f32 %v3506
    %v4107 = vcvt.s32.f32 %v3507
    %v4108 = vcvt.s32.f32 %v3508
    %v4109 = vcvt.s32.f32 %v3509
    %v4110 = vcvt.s32.f32 %v3510
    %v4111 = vcvt.s32.f32 %v3511
    %v4112 = vcvt.s32.f32 %v3512
    %v4113 = vcvt.s32.f32 %v3513
    %v4114 = vcvt.s32.f32 %v3514
    %v4115 = vcvt.s32.f32 %v3515
    %v4116 = vcvt.s32.f32 %v3516
    %v4117 = vcvt.s32.f32 %v3517
    %v4118 = vcvt.s32.f32 %v3518
    %v4119 = vcvt.s32.f32 %v3519
    %v4120 = vcvt.s32.f32 %v3520
    %v4121 = vcvt.s32.f32 %v3521
    %v4122 = vcvt.s32.f32 %v3522
    %v4123 = vcvt.s32.f32 %v3523
    %v4124 = vcvt.s32.f32 %v3524
    %v4125 = vcvt.s32.f32 %v3525
    %v4126 = vcvt.s32.f32 %v3526
    %v4127 = vcvt.s32.f32 %v3527
    %v4128 = vcvt.s32.f32 %v3528
    %v4129 = vcvt.s32.f32 %v3529
    %v4130 = vcvt.s32.f32 %v3530
    %v4131 = vcvt.s32.f32 %v3531
    %v4132 = vcvt.s32.f32 %v3532
    %v4133 = vcvt.s32.f32 %v3533
    %v4134 = vcvt.s32.f32 %v3534
    %v4135 = vcvt.s32.f32 %v3535
    %v4136 = vcvt.s32.f32 %v3536
    %v4137 = vcvt.s32.f32 %v3537
    %v4138 = vcvt.s32.f32 %v3538
    %v4139 = vcvt.s32.f32 %v3539
    %v4140 = vcvt.s32.f32 %v3540
    %v4141 = vcvt.s32.f32 %v3541
    %v4142 = vcvt.s32.f32 %v3542
    %v4143 = vcvt.s32.f32 %v3543
    %v4144 = vcvt.s32.f32 %v3544
    %v4145 = vcvt.s32.f32 %v3545
    %v4146 = vcvt.s32.f32 %v3546
    %v4147 = vcvt.s32.f32 %v3547
    %v4148 = vcvt.s32.f32 %v3548
    %v4149 = vcvt.s32.f32 %v3549
    %v4150 = vcvt.s32.f32 %v3550
    %v4151 = vcvt.s32.f32 %v3551
    %v4152 = vcvt.s32.f32 %v3552
    %v4153 = vcvt.s32.f32 %v3553
    %v4154 = vcvt.s32.f32 %v3554
    %v4155 = vcvt.s32.f32 %v3555
    %v4156 = vcvt.s32.f32 %v3556
    %v4157 = vcvt.s32.f32 %v3557
    %v4158 = vcvt.s32.f32 %v3558
    %v4159 = vcvt.s32.f32 %v3559
    %v4160 = vcvt.s32.f32 %v3560
    %v4161 = vcvt.s32.f32 %v3561
    %v4162 = vcvt.s32.f32 %v3562
    %v4163 = vcvt.s32.f32 %v3563
    %v4164 = vcvt.s32.f32 %v3564
    %v4165 = vcvt.s32.f32 %v3565
    %v4166 = vcvt.s32.f32 %v3566
    %v4167 = vcvt.s32.f32 %v3567
    %v4168 = vcvt.s32.f32 %v3568
    %v4169 = vcvt.s32.f32 %v3569
    %v4170 = vcvt.s32.f32 %v3570
    %v4171 = vcvt.s32.f32 %v3571
    %v4172 = vcvt.s32.f32 %v3572
    %v4173 = vcvt.s32.f32 %v3573
    %v4174 = vcvt.s32.f32 %v3574
    %v4175 = vcvt.s32.f32 %v3575
    %v4176 = vcvt.s32.f32 %v3576
    %v4177 = vcvt.s32.f32 %v3577
    %v4178 = vcvt.s32.f32 %v3578
    %v4179 = vcvt.s32.f32 %v3579
    %v4180 = vcvt.s32.f32 %v3580
    %v4181 = vcvt.s32.f32 %v3581
    %v4182 = vcvt.s32.f32 %v3582
    %v4183 = vcvt.s32.f32 %v3583
    %v4184 = vcvt.s32.f32 %v3584
    %v4185 = vcvt.s32.f32 %v3585
    %v4186 = vcvt.s32.f32 %v3586
    %v4187 = vcvt.s32.f32 %v3587
    %v4188 = vcvt.s32.f32 %v3588
    %v4189 = vcvt.s32.f32 %v3589
    %v4190 = vcvt.s32.f32 %v3590
    %v4191 = vcvt.s32.f32 %v3591
    %v4192 = vcvt.s32.f32 %v3592
    %v4193 = vcvt.s32.f32 %v3593
    %v4194 = vcvt.s32.f32 %v3594
    %v4195 = vcvt.s32.f32 %v3595
    %v4196 = vcvt.s32.f32 %v3596
    %v4197 = vcvt.s32.f32 %v3597
    %v4198 = vcvt.s32.f32 %v3598
    %v4199 = vcvt.s32.f32 %v3599
    %v4200 = vcvt.s32.f32 %v3600
    %v4201 = vcvt.s32.f32 %v3601
    %v4202 = vcvt.s32.f32 %v3602
    %v4203 = vcvt.s32.f32 %v3603
    %v4204 = vcvt.s32.f32 %v3604
    %v4205 = vcvt.s32.f32 %v3605
    %v4206 = vcvt.s32.f32 %v3606
    %v4207 = vcvt.s32.f32 %v3607
    %v4208 = vcvt.s32.f32 %v3608
    %v4209 = vcvt.s32.f32 %v3609
    %v4210 = vcvt.s32.f32 %v3610
    %v4211 = vcvt.s32.f32 %v3611
    %v4212 = vcvt.s32.f32 %v3612
    %v4213 = vcvt.s32.f32 %v3613
    %v4214 = vcvt.s32.f32 %v3614
    %v4215 = vcvt.s32.f32 %v3615
    %v4216 = vcvt.s32.f32 %v3616
    %v4217 = vcvt.s32.f32 %v3617
    %v4218 = vcvt.s32.f32 %v3618
    %v4219 = vcvt.s32.f32 %v3619
    %v4220 = vcvt.s32.f32 %v3620
    %v4221 = vcvt.s32.f32 %v3621
    %v4222 = vcvt.s32.f32 %v3622
    %v4223 = vcvt.s32.f32 %v3623
    %v4224 = vcvt.s32.f32 %v3624
    %v4225 = vcvt.s32.f32 %v3625
    %v4226 = vcvt.s32.f32 %v3626
    %v4227 = vcvt.s32.f32 %v3627
    %v4228 = vcvt.s32.f32 %v3628
    %v4229 = vcvt.s32.f32 %v3629
    %v4230 = vcvt.s32.f32 %v3630
    %v4231 = vcvt.s32.f32 %v3631
    %v4232 = vcvt.s32.f32 %v3632
    %v4233 = vcvt.s32.f32 %v3633
    %v4234 = vcvt.s32.f32 %v3634
    %v4235 = vcvt.s32.f32 %v3635
    %v4236 = vcvt.s32.f32 %v3636
    %v4237 = vcvt.s32.f32 %v3637
    %v4238 = vcvt.s32.f32 %v3638
    %v4239 = vcvt.s32.f32 %v3639
    %v4240 = vcvt.s32.f32 %v3640
    %v4241 = vcvt.s32.f32 %v3641
    %v4242 = vcvt.s32.f32 %v3642
    %v4243 = vcvt.s32.f32 %v3643
    %v4244 = vcvt.s32.f32 %v3644
    %v4245 = vcvt.s32.f32 %v3645
    %v4246 = vcvt.s32.f32 %v3646
    %v4247 = vcvt.s32.f32 %v3647
    %v4248 = vcvt.s32.f32 %v3648
    %v4249 = vcvt.s32.f32 %v3649
    %v4250 = vcvt.s32.f32 %v3650
    %v4251 = vcvt.s32.f32 %v3651
    %v4252 = vcvt.s32.f32 %v3652
    %v4253 = vcvt.s32.f32 %v3653
    %v4254 = vcvt.s32.f32 %v3654
    %v4255 = vcvt.s32.f32 %v3655
    %v4256 = vcvt.s32.f32 %v3656
    %v4257 = vcvt.s32.f32 %v3657
    %v4258 = vcvt.s32.f32 %v3658
    %v4259 = vcvt.s32.f32 %v3659
    %v4260 = vcvt.s32.f32 %v3660
    %v4261 = vcvt.s32.f32 %v3661
    %v4262 = vcvt.s32.f32 %v3662
    %v4263 = vcvt.s32.f32 %v3663
    %v4264 = vcvt.s32.f32 %v3664
    %v4265 = vcvt.s32.f32 %v3665
    %v4266 = vcvt.s32.f32 %v3666
    %v4267 = vcvt.s32.f32 %v3667
    %v4268 = vcvt.s32.f32 %v3668
    %v4269 = vcvt.s32.f32 %v3669
    %v4270 = vcvt.s32.f32 %v3670
    %v4271 = vcvt.s32.f32 %v3671
    %v4272 = vcvt.s32.f32 %v3672
    %v4273 = vcvt.s32.f32 %v3673
    %v4274 = vcvt.s32.f32 %v3674
    %v4275 = vcvt.s32.f32 %v3675
    %v4276 = vcvt.s32.f32 %v3676
    %v4277 = vcvt.s32.f32 %v3677
    %v4278 = vcvt.s32.f32 %v3678
    %v4279 = vcvt.s32.f32 %v3679
    %v4280 = vcvt.s32.f32 %v3680
    %v4281 = vcvt.s32.f32 %v3681
    %v4282 = vcvt.s32.f32 %v3682
    %v4283 = vcvt.s32.f32 %v3683
    %v4284 = vcvt.s32.f32 %v3684
    %v4285 = vcvt.s32.f32 %v3685
    %v4286 = vcvt.s32.f32 %v3686
    %v4287 = vcvt.s32.f32 %v3687
    %v4288 = vcvt.s32.f32 %v3688
    %v4289 = vcvt.s32.f32 %v3689
    %v4290 = vcvt.s32.f32 %v3690
    %v4291 = vcvt.s32.f32 %v3691
    %v4292 = vcvt.s32.f32 %v3692
    %v4293 = vcvt.s32.f32 %v3693
    %v4294 = vcvt.s32.f32 %v3694
    %v4295 = vcvt.s32.f32 %v3695
    %v4296 = vcvt.s32.f32 %v3696
    %v4297 = vcvt.s32.f32 %v3697
    %v4298 = vcvt.s32.f32 %v3698
    %v4299 = vcvt.s32.f32 %v3699
    %v4300 = vcvt.s32.f32 %v3700
    %v4301 = vcvt.s32.f32 %v3701
    %v4302 = vcvt.s32.f32 %v3702
    %v4303 = vcvt.s32.f32 %v3703
    %v4304 = vcvt.s32.f32 %v3704
    %v4305 = vcvt.s32.f32 %v3705
    %v4306 = vcvt.s32.f32 %v3706
    %v4307 = vcvt.s32.f32 %v3707
    %v4308 = vcvt.s32.f32 %v3708
    %v4309 = vcvt.s32.f32 %v3709
    %v4310 = vcvt.s32.f32 %v3710
    %v4311 = vcvt.s32.f32 %v3711
    %v4312 = vcvt.s32.f32 %v3712
    %v4313 = vcvt.s32.f32 %v3713
    %v4314 = vcvt.s32.f32 %v3714
    %v4315 = vcvt.s32.f32 %v3715
    %v4316 = vcvt.s32.f32 %v3716
    %v4317 = vcvt.s32.f32 %v3717
    %v4318 = vcvt.s32.f32 %v3718
    %v4319 = vcvt.s32.f32 %v3719
    %v4320 = vcvt.s32.f32 %v3720
    %v4321 = vcvt.s32.f32 %v3721
    %v4322 = vcvt.s32.f32 %v3722
    %v4323 = vcvt.s32.f32 %v3723
    %v4324 = vcvt.s32.f32 %v3724
    %v4325 = vcvt.s32.f32 %v3725
    %v4326 = vcvt.s32.f32 %v3726
    %v4327 = vcvt.s32.f32 %v3727
    %v4328 = vcvt.s32.f32 %v3728
    %v4329 = vcvt.s32.f32 %v3729
    %v4330 = vcvt.s32.f32 %v3730
    %v4331 = vcvt.s32.f32 %v3731
    %v4332 = vcvt.s32.f32 %v3732
    %v4333 = vcvt.s32.f32 %v3733
    %v4334 = vcvt.s32.f32 %v3734
    %v4335 = vcvt.s32.f32 %v3735
    %v4336 = vcvt.s32.f32 %v3736
    %v4337 = vcvt.s32.f32 %v3737
    %v4338 = vcvt.s32.f32 %v3738
    %v4339 = vcvt.s32.f32 %v3739
    %v4340 = vcvt.s32.f32 %v3740
    %v4341 = vcvt.s32.f32 %v3741
    %v4342 = vcvt.s32.f32 %v3742
    %v4343 = vcvt.s32.f32 %v3743
    %v4344 = vcvt.s32.f32 %v3744
    %v4345 = vcvt.s32.f32 %v3745
    %v4346 = vcvt.s32.f32 %v3746
    %v4347 = vcvt.s32.f32 %v3747
    %v4348 = vcvt.s32.f32 %v3748
    %v4349 = vcvt.s32.f32 %v3749
    %v4350 = vcvt.s32.f32 %v3750
    %v4351 = vcvt.s32.f32 %v3751
    %v4352 = vcvt.s32.f32 %v3752
    %v4353 = vcvt.s32.f32 %v3753
    %v4354 = vcvt.s32.f32 %v3754
    %v4355 = vcvt.s32.f32 %v3755
    %v4356 = vcvt.s32.f32 %v3756
    %v4357 = vcvt.s32.f32 %v3757
    %v4358 = vcvt.s32.f32 %v3758
    %v4359 = vcvt.s32.f32 %v3759
    %v4360 = vcvt.s32.f32 %v3760
    %v4361 = vcvt.s32.f32 %v3761
    %v4362 = vcvt.s32.f32 %v3762
    %v4363 = vcvt.s32.f32 %v3763
    %v4364 = vcvt.s32.f32 %v3764
    %v4365 = vcvt.s32.f32 %v3765
    %v4366 = vcvt.s32.f32 %v3766
    %v4367 = vcvt.s32.f32 %v3767
    %v4368 = vcvt.s32.f32 %v3768
    %v4369 = vcvt.s32.f32 %v3769
    %v4370 = vcvt.s32.f32 %v3770
    %v4371 = vcvt.s32.f32 %v3771
    %v4372 = vcvt.s32.f32 %v3772
    %v4373 = vcvt.s32.f32 %v3773
    %v4374 = vcvt.s32.f32 %v3774
    %v4375 = vcvt.s32.f32 %v3775
    %v4376 = vcvt.s32.f32 %v3776
    %v4377 = vcvt.s32.f32 %v3777
    %v4378 = vcvt.s32.f32 %v3778
    %v4379 = vcvt.s32.f32 %v3779
    %v4380 = vcvt.s32.f32 %v3780
    %v4381 = vcvt.s32.f32 %v3781
    %v4382 = vcvt.s32.f32 %v3782
    %v4383 = vcvt.s32.f32 %v3783
    %v4384 = vcvt.s32.f32 %v3784
    %v4385 = vcvt.s32.f32 %v3785
    %v4386 = vcvt.s32.f32 %v3786
    %v4387 = vcvt.s32.f32 %v3787
    %v4388 = vcvt.s32.f32 %v3788
    %v4389 = vcvt.s32.f32 %v3789
    %v4390 = vcvt.s32.f32 %v3790
    %v4391 = vcvt.s32.f32 %v3791
    %v4392 = vcvt.s32.f32 %v3792
    %v4393 = vcvt.s32.f32 %v3793
    %v4394 = vcvt.s32.f32 %v3794
    %v4395 = vcvt.s32.f32 %v3795
    %v4396 = vcvt.s32.f32 %v3796
    %v4397 = vcvt.s32.f32 %v3797
    %v4398 = vcvt.s32.f32 %v3798
    %v4399 = vcvt.s32.f32 %v3799
    %v4400 = vcvt.s32.f32 %v3800
    %v4401 = vcvt.s32.f32 %v3801
    %v4402 = vcvt.s32.f32 %v3802
    %v4403 = vcvt.s32.f32 %v3803
    %v4404 = vcvt.s32.f32 %v3804
    %v4405 = vcvt.s32.f32 %v3805
    %v4406 = vcvt.s32.f32 %v3806
    %v4407 = vcvt.s32.f32 %v3807
    %v4408 = vcvt.s32.f32 %v3808
    %v4409 = vcvt.s32.f32 %v3809
    %v4410 = vcvt.s32.f32 %v3810
    %v4411 = vcvt.s32.f32 %v3811
    %v4412 = vcvt.s32.f32 %v3812
    %v4413 = vcvt.s32.f32 %v3813
    %v4414 = vcvt.s32.f32 %v3814
    %v4415 = vcvt.s32.f32 %v3815
    %v4416 = vcvt.s32.f32 %v3816
    %v4417 = vcvt.s32.f32 %v3817
    %v4418 = vcvt.s32.f32 %v3818
    %v4419 = vcvt.s32.f32 %v3819
    %v4420 = vcvt.s32.f32 %v3820
    %v4421 = vcvt.s32.f32 %v3821
    %v4422 = vcvt.s32.f32 %v3822
    %v4423 = vcvt.s32.f32 %v3823
    %v4424 = vcvt.s32.f32 %v3824
    %v4425 = vcvt.s32.f32 %v3825
    %v4426 = vcvt.s32.f32 %v3826
    %v4427 = vcvt.s32.f32 %v3827
    %v4428 = vcvt.s32.f32 %v3828
    %v4429 = vcvt.s32.f32 %v3829
    %v4430 = vcvt.s32.f32 %v3830
    %v4431 = vcvt.s32.f32 %v3831
    %v4432 = vcvt.s32.f32 %v3832
    %v4433 = vcvt.s32.f32 %v3833
    %v4434 = vcvt.s32.f32 %v3834
    %v4435 = vcvt.s32.f32 %v3835
    %v4436 = vcvt.s32.f32 %v3836
    %v4437 = vcvt.s32.f32 %v3837
    %v4438 = vcvt.s32.f32 %v3838
    %v4439 = vcvt.s32.f32 %v3839
    %v4440 = vcvt.s32.f32 %v3840
    %v4441 = vcvt.s32.f32 %v3841
    %v4442 = vcvt.s32.f32 %v3842
    %v4443 = vcvt.s32.f32 %v3843
    %v4444 = vcvt.s32.f32 %v3844
    %v4445 = vcvt.s32.f32 %v3845
    %v4446 = vcvt.s32.f32 %v3846
    %v4447 = vcvt.s32.f32 %v3847
    %v4448 = vcvt.s32.f32 %v3848
    %v4449 = vcvt.s32.f32 %v3849
    %v4450 = vcvt.s32.f32 %v3850
    %v4451 = vcvt.s32.f32 %v3851
    %v4452 = vcvt.s32.f32 %v3852
    %v4453 = vcvt.s32.f32 %v3853
    %v4454 = vcvt.s32.f32 %v3854
    %v4455 = vcvt.s32.f32 %v3855
    %v4456 = vcvt.s32.f32 %v3856
    %v4457 = vcvt.s32.f32 %v3857
    %v4458 = vcvt.s32.f32 %v3858
    %v4459 = vcvt.s32.f32 %v3859
    %v4460 = vcvt.s32.f32 %v3860
    %v4461 = vcvt.s32.f32 %v3861
    %v4462 = vcvt.s32.f32 %v3862
    %v4463 = vcvt.s32.f32 %v3863
    %v4464 = vcvt.s32.f32 %v3864
    %v4465 = vcvt.s32.f32 %v3865
    %v4466 = vcvt.s32.f32 %v3866
    %v4467 = vcvt.s32.f32 %v3867
    %v4468 = vcvt.s32.f32 %v3868
    %v4469 = vcvt.s32.f32 %v3869
    %v4470 = vcvt.s32.f32 %v3870
    %v4471 = vcvt.s32.f32 %v3871
    %v4472 = vcvt.s32.f32 %v3872
    %v4473 = vcvt.s32.f32 %v3873
    %v4474 = vcvt.s32.f32 %v3874
    %v4475 = vcvt.s32.f32 %v3875
    %v4476 = vcvt.s32.f32 %v3876
    %v4477 = vcvt.s32.f32 %v3877
    %v4478 = vcvt.s32.f32 %v3878
    %v4479 = vcvt.s32.f32 %v3879
    %v4480 = vcvt.s32.f32 %v3880
    %v4481 = vcvt.s32.f32 %v3881
    %v4482 = vld [vmem:[%s4] sm:$0x1]
    %v4484 = vlaneseq
    %v4485 = vshrl.u32 %v4484, 7
    %v4486 = vsub.s32 0, %v4485
    %v4487 = vrot.slane %v4482, %v4486
    %v4489 = vmul.f32 %v3882, %v4487
    %v4490 = vmul.f32 %v3883, %v4487
    %v4491 = vmul.f32 %v3884, %v4487
    %v4492 = vmul.f32 %v3885, %v4487
    %v4493 = vmul.f32 %v3886, %v4487
    %v4494 = vmul.f32 %v3887, %v4487
    %v4495 = vmul.f32 %v3888, %v4487
    %v4496 = vmul.f32 %v3889, %v4487
    %v4497 = vmul.f32 %v3890, %v4487
    %v4498 = vmul.f32 %v3891, %v4487
    %v4499 = vmul.f32 %v3892, %v4487
    %v4500 = vmul.f32 %v3893, %v4487
    %v4501 = vmul.f32 %v3894, %v4487
    %v4502 = vmul.f32 %v3895, %v4487
    %v4503 = vmul.f32 %v3896, %v4487
    %v4504 = vmul.f32 %v3897, %v4487
    %v4505 = vmul.f32 %v3898, %v4487
    %v4506 = vmul.f32 %v3899, %v4487
    %v4507 = vmul.f32 %v3900, %v4487
    %v4508 = vmul.f32 %v3901, %v4487
    %v4509 = vmul.f32 %v3902, %v4487
    %v4510 = vmul.f32 %v3903, %v4487
    %v4511 = vmul.f32 %v3904, %v4487
    %v4512 = vmul.f32 %v3905, %v4487
    %v4513 = vmul.f32 %v3906, %v4487
    %v4514 = vmul.f32 %v3907, %v4487
    %v4515 = vmul.f32 %v3908, %v4487
    %v4516 = vmul.f32 %v3909, %v4487
    %v4517 = vmul.f32 %v3910, %v4487
    %v4518 = vmul.f32 %v3911, %v4487
    %v4519 = vmul.f32 %v3912, %v4487
    %v4520 = vmul.f32 %v3913, %v4487
    %v4521 = vmul.f32 %v3914, %v4487
    %v4522 = vmul.f32 %v3915, %v4487
    %v4523 = vmul.f32 %v3916, %v4487
    %v4524 = vmul.f32 %v3917, %v4487
    %v4525 = vmul.f32 %v3918, %v4487
    %v4526 = vmul.f32 %v3919, %v4487
    %v4527 = vmul.f32 %v3920, %v4487
    %v4528 = vmul.f32 %v3921, %v4487
    %v4529 = vmul.f32 %v3922, %v4487
    %v4530 = vmul.f32 %v3923, %v4487
    %v4531 = vmul.f32 %v3924, %v4487
    %v4532 = vmul.f32 %v3925, %v4487
    %v4533 = vmul.f32 %v3926, %v4487
    %v4534 = vmul.f32 %v3927, %v4487
    %v4535 = vmul.f32 %v3928, %v4487
    %v4536 = vmul.f32 %v3929, %v4487
    %v4537 = vmul.f32 %v3930, %v4487
    %v4538 = vmul.f32 %v3931, %v4487
    %v4539 = vmul.f32 %v3932, %v4487
    %v4540 = vmul.f32 %v3933, %v4487
    %v4541 = vmul.f32 %v3934, %v4487
    %v4542 = vmul.f32 %v3935, %v4487
    %v4543 = vmul.f32 %v3936, %v4487
    %v4544 = vmul.f32 %v3937, %v4487
    %v4545 = vmul.f32 %v3938, %v4487
    %v4546 = vmul.f32 %v3939, %v4487
    %v4547 = vmul.f32 %v3940, %v4487
    %v4548 = vmul.f32 %v3941, %v4487
    %v4549 = vmul.f32 %v3942, %v4487
    %v4550 = vmul.f32 %v3943, %v4487
    %v4551 = vmul.f32 %v3944, %v4487
    %v4552 = vmul.f32 %v3945, %v4487
    %v4553 = vmul.f32 %v3946, %v4487
    %v4554 = vmul.f32 %v3947, %v4487
    %v4555 = vmul.f32 %v3948, %v4487
    %v4556 = vmul.f32 %v3949, %v4487
    %v4557 = vmul.f32 %v3950, %v4487
    %v4558 = vmul.f32 %v3951, %v4487
    %v4559 = vmul.f32 %v3952, %v4487
    %v4560 = vmul.f32 %v3953, %v4487
    %v4561 = vmul.f32 %v3954, %v4487
    %v4562 = vmul.f32 %v3955, %v4487
    %v4563 = vmul.f32 %v3956, %v4487
    %v4564 = vmul.f32 %v3957, %v4487
    %v4565 = vmul.f32 %v3958, %v4487
    %v4566 = vmul.f32 %v3959, %v4487
    %v4567 = vmul.f32 %v3960, %v4487
    %v4568 = vmul.f32 %v3961, %v4487
    %v4569 = vmul.f32 %v3962, %v4487
    %v4570 = vmul.f32 %v3963, %v4487
    %v4571 = vmul.f32 %v3964, %v4487
    %v4572 = vmul.f32 %v3965, %v4487
    %v4573 = vmul.f32 %v3966, %v4487
    %v4574 = vmul.f32 %v3967, %v4487
    %v4575 = vmul.f32 %v3968, %v4487
    %v4576 = vmul.f32 %v3969, %v4487
    %v4577 = vmul.f32 %v3970, %v4487
    %v4578 = vmul.f32 %v3971, %v4487
    %v4579 = vmul.f32 %v3972, %v4487
    %v4580 = vmul.f32 %v3973, %v4487
    %v4581 = vmul.f32 %v3974, %v4487
    %v4582 = vmul.f32 %v3975, %v4487
    %v4583 = vmul.f32 %v3976, %v4487
    %v4584 = vmul.f32 %v3977, %v4487
    %v4585 = vmul.f32 %v3978, %v4487
    %v4586 = vmul.f32 %v3979, %v4487
    %v4587 = vmul.f32 %v3980, %v4487
    %v4588 = vmul.f32 %v3981, %v4487
    %v4589 = vmul.f32 %v3982, %v4487
    %v4590 = vmul.f32 %v3983, %v4487
    %v4591 = vmul.f32 %v3984, %v4487
    %v4592 = vmul.f32 %v3985, %v4487
    %v4593 = vmul.f32 %v3986, %v4487
    %v4594 = vmul.f32 %v3987, %v4487
    %v4595 = vmul.f32 %v3988, %v4487
    %v4596 = vmul.f32 %v3989, %v4487
    %v4597 = vmul.f32 %v3990, %v4487
    %v4598 = vmul.f32 %v3991, %v4487
    %v4599 = vmul.f32 %v3992, %v4487
    %v4600 = vmul.f32 %v3993, %v4487
    %v4601 = vmul.f32 %v3994, %v4487
    %v4602 = vmul.f32 %v3995, %v4487
    %v4603 = vmul.f32 %v3996, %v4487
    %v4604 = vmul.f32 %v3997, %v4487
    %v4605 = vmul.f32 %v3998, %v4487
    %v4606 = vmul.f32 %v3999, %v4487
    %v4607 = vmul.f32 %v4000, %v4487
    %v4608 = vmul.f32 %v4001, %v4487
    %v4609 = vmul.f32 %v4002, %v4487
    %v4610 = vmul.f32 %v4003, %v4487
    %v4611 = vmul.f32 %v4004, %v4487
    %v4612 = vmul.f32 %v4005, %v4487
    %v4613 = vmul.f32 %v4006, %v4487
    %v4614 = vmul.f32 %v4007, %v4487
    %v4615 = vmul.f32 %v4008, %v4487
    %v4616 = vmul.f32 %v4009, %v4487
    %v4617 = vmul.f32 %v4010, %v4487
    %v4618 = vmul.f32 %v4011, %v4487
    %v4619 = vmul.f32 %v4012, %v4487
    %v4620 = vmul.f32 %v4013, %v4487
    %v4621 = vmul.f32 %v4014, %v4487
    %v4622 = vmul.f32 %v4015, %v4487
    %v4623 = vmul.f32 %v4016, %v4487
    %v4624 = vmul.f32 %v4017, %v4487
    %v4625 = vmul.f32 %v4018, %v4487
    %v4626 = vmul.f32 %v4019, %v4487
    %v4627 = vmul.f32 %v4020, %v4487
    %v4628 = vmul.f32 %v4021, %v4487
    %v4629 = vmul.f32 %v4022, %v4487
    %v4630 = vmul.f32 %v4023, %v4487
    %v4631 = vmul.f32 %v4024, %v4487
    %v4632 = vmul.f32 %v4025, %v4487
    %v4633 = vmul.f32 %v4026, %v4487
    %v4634 = vmul.f32 %v4027, %v4487
    %v4635 = vmul.f32 %v4028, %v4487
    %v4636 = vmul.f32 %v4029, %v4487
    %v4637 = vmul.f32 %v4030, %v4487
    %v4638 = vmul.f32 %v4031, %v4487
    %v4639 = vmul.f32 %v4032, %v4487
    %v4640 = vmul.f32 %v4033, %v4487
    %v4641 = vmul.f32 %v4034, %v4487
    %v4642 = vmul.f32 %v4035, %v4487
    %v4643 = vmul.f32 %v4036, %v4487
    %v4644 = vmul.f32 %v4037, %v4487
    %v4645 = vmul.f32 %v4038, %v4487
    %v4646 = vmul.f32 %v4039, %v4487
    %v4647 = vmul.f32 %v4040, %v4487
    %v4648 = vmul.f32 %v4041, %v4487
    %v4649 = vmul.f32 %v4042, %v4487
    %v4650 = vmul.f32 %v4043, %v4487
    %v4651 = vmul.f32 %v4044, %v4487
    %v4652 = vmul.f32 %v4045, %v4487
    %v4653 = vmul.f32 %v4046, %v4487
    %v4654 = vmul.f32 %v4047, %v4487
    %v4655 = vmul.f32 %v4048, %v4487
    %v4656 = vmul.f32 %v4049, %v4487
    %v4657 = vmul.f32 %v4050, %v4487
    %v4658 = vmul.f32 %v4051, %v4487
    %v4659 = vmul.f32 %v4052, %v4487
    %v4660 = vmul.f32 %v4053, %v4487
    %v4661 = vmul.f32 %v4054, %v4487
    %v4662 = vmul.f32 %v4055, %v4487
    %v4663 = vmul.f32 %v4056, %v4487
    %v4664 = vmul.f32 %v4057, %v4487
    %v4665 = vmul.f32 %v4058, %v4487
    %v4666 = vmul.f32 %v4059, %v4487
    %v4667 = vmul.f32 %v4060, %v4487
    %v4668 = vmul.f32 %v4061, %v4487
    %v4669 = vmul.f32 %v4062, %v4487
    %v4670 = vmul.f32 %v4063, %v4487
    %v4671 = vmul.f32 %v4064, %v4487
    %v4672 = vmul.f32 %v4065, %v4487
    %v4673 = vmul.f32 %v4066, %v4487
    %v4674 = vmul.f32 %v4067, %v4487
    %v4675 = vmul.f32 %v4068, %v4487
    %v4676 = vmul.f32 %v4069, %v4487
    %v4677 = vmul.f32 %v4070, %v4487
    %v4678 = vmul.f32 %v4071, %v4487
    %v4679 = vmul.f32 %v4072, %v4487
    %v4680 = vmul.f32 %v4073, %v4487
    %v4681 = vmul.f32 %v4074, %v4487
    %v4682 = vmul.f32 %v4075, %v4487
    %v4683 = vmul.f32 %v4076, %v4487
    %v4684 = vmul.f32 %v4077, %v4487
    %v4685 = vmul.f32 %v4078, %v4487
    %v4686 = vmul.f32 %v4079, %v4487
    %v4687 = vmul.f32 %v4080, %v4487
    %v4688 = vmul.f32 %v4081, %v4487
    %v4689 = vmul.f32 %v4082, %v4487
    %v4690 = vmul.f32 %v4083, %v4487
    %v4691 = vmul.f32 %v4084, %v4487
    %v4692 = vmul.f32 %v4085, %v4487
    %v4693 = vmul.f32 %v4086, %v4487
    %v4694 = vmul.f32 %v4087, %v4487
    %v4695 = vmul.f32 %v4088, %v4487
    %v4696 = vmul.f32 %v4089, %v4487
    %v4697 = vmul.f32 %v4090, %v4487
    %v4698 = vmul.f32 %v4091, %v4487
    %v4699 = vmul.f32 %v4092, %v4487
    %v4700 = vmul.f32 %v4093, %v4487
    %v4701 = vmul.f32 %v4094, %v4487
    %v4702 = vmul.f32 %v4095, %v4487
    %v4703 = vmul.f32 %v4096, %v4487
    %v4704 = vmul.f32 %v4097, %v4487
    %v4705 = vmul.f32 %v4098, %v4487
    %v4706 = vmul.f32 %v4099, %v4487
    %v4707 = vmul.f32 %v4100, %v4487
    %v4708 = vmul.f32 %v4101, %v4487
    %v4709 = vmul.f32 %v4102, %v4487
    %v4710 = vmul.f32 %v4103, %v4487
    %v4711 = vmul.f32 %v4104, %v4487
    %v4712 = vmul.f32 %v4105, %v4487
    %v4713 = vmul.f32 %v4106, %v4487
    %v4714 = vmul.f32 %v4107, %v4487
    %v4715 = vmul.f32 %v4108, %v4487
    %v4716 = vmul.f32 %v4109, %v4487
    %v4717 = vmul.f32 %v4110, %v4487
    %v4718 = vmul.f32 %v4111, %v4487
    %v4719 = vmul.f32 %v4112, %v4487
    %v4720 = vmul.f32 %v4113, %v4487
    %v4721 = vmul.f32 %v4114, %v4487
    %v4722 = vmul.f32 %v4115, %v4487
    %v4723 = vmul.f32 %v4116, %v4487
    %v4724 = vmul.f32 %v4117, %v4487
    %v4725 = vmul.f32 %v4118, %v4487
    %v4726 = vmul.f32 %v4119, %v4487
    %v4727 = vmul.f32 %v4120, %v4487
    %v4728 = vmul.f32 %v4121, %v4487
    %v4729 = vmul.f32 %v4122, %v4487
    %v4730 = vmul.f32 %v4123, %v4487
    %v4731 = vmul.f32 %v4124, %v4487
    %v4732 = vmul.f32 %v4125, %v4487
    %v4733 = vmul.f32 %v4126, %v4487
    %v4734 = vmul.f32 %v4127, %v4487
    %v4735 = vmul.f32 %v4128, %v4487
    %v4736 = vmul.f32 %v4129, %v4487
    %v4737 = vmul.f32 %v4130, %v4487
    %v4738 = vmul.f32 %v4131, %v4487
    %v4739 = vmul.f32 %v4132, %v4487
    %v4740 = vmul.f32 %v4133, %v4487
    %v4741 = vmul.f32 %v4134, %v4487
    %v4742 = vmul.f32 %v4135, %v4487
    %v4743 = vmul.f32 %v4136, %v4487
    %v4744 = vmul.f32 %v4137, %v4487
    %v4745 = vmul.f32 %v4138, %v4487
    %v4746 = vmul.f32 %v4139, %v4487
    %v4747 = vmul.f32 %v4140, %v4487
    %v4748 = vmul.f32 %v4141, %v4487
    %v4749 = vmul.f32 %v4142, %v4487
    %v4750 = vmul.f32 %v4143, %v4487
    %v4751 = vmul.f32 %v4144, %v4487
    %v4752 = vmul.f32 %v4145, %v4487
    %v4753 = vmul.f32 %v4146, %v4487
    %v4754 = vmul.f32 %v4147, %v4487
    %v4755 = vmul.f32 %v4148, %v4487
    %v4756 = vmul.f32 %v4149, %v4487
    %v4757 = vmul.f32 %v4150, %v4487
    %v4758 = vmul.f32 %v4151, %v4487
    %v4759 = vmul.f32 %v4152, %v4487
    %v4760 = vmul.f32 %v4153, %v4487
    %v4761 = vmul.f32 %v4154, %v4487
    %v4762 = vmul.f32 %v4155, %v4487
    %v4763 = vmul.f32 %v4156, %v4487
    %v4764 = vmul.f32 %v4157, %v4487
    %v4765 = vmul.f32 %v4158, %v4487
    %v4766 = vmul.f32 %v4159, %v4487
    %v4767 = vmul.f32 %v4160, %v4487
    %v4768 = vmul.f32 %v4161, %v4487
    %v4769 = vmul.f32 %v4162, %v4487
    %v4770 = vmul.f32 %v4163, %v4487
    %v4771 = vmul.f32 %v4164, %v4487
    %v4772 = vmul.f32 %v4165, %v4487
    %v4773 = vmul.f32 %v4166, %v4487
    %v4774 = vmul.f32 %v4167, %v4487
    %v4775 = vmul.f32 %v4168, %v4487
    %v4776 = vmul.f32 %v4169, %v4487
    %v4777 = vmul.f32 %v4170, %v4487
    %v4778 = vmul.f32 %v4171, %v4487
    %v4779 = vmul.f32 %v4172, %v4487
    %v4780 = vmul.f32 %v4173, %v4487
    %v4781 = vmul.f32 %v4174, %v4487
    %v4782 = vmul.f32 %v4175, %v4487
    %v4783 = vmul.f32 %v4176, %v4487
    %v4784 = vmul.f32 %v4177, %v4487
    %v4785 = vmul.f32 %v4178, %v4487
    %v4786 = vmul.f32 %v4179, %v4487
    %v4787 = vmul.f32 %v4180, %v4487
    %v4788 = vmul.f32 %v4181, %v4487
    %v4789 = vmul.f32 %v4182, %v4487
    %v4790 = vmul.f32 %v4183, %v4487
    %v4791 = vmul.f32 %v4184, %v4487
    %v4792 = vmul.f32 %v4185, %v4487
    %v4793 = vmul.f32 %v4186, %v4487
    %v4794 = vmul.f32 %v4187, %v4487
    %v4795 = vmul.f32 %v4188, %v4487
    %v4796 = vmul.f32 %v4189, %v4487
    %v4797 = vmul.f32 %v4190, %v4487
    %v4798 = vmul.f32 %v4191, %v4487
    %v4799 = vmul.f32 %v4192, %v4487
    %v4800 = vmul.f32 %v4193, %v4487
    %v4801 = vmul.f32 %v4194, %v4487
    %v4802 = vmul.f32 %v4195, %v4487
    %v4803 = vmul.f32 %v4196, %v4487
    %v4804 = vmul.f32 %v4197, %v4487
    %v4805 = vmul.f32 %v4198, %v4487
    %v4806 = vmul.f32 %v4199, %v4487
    %v4807 = vmul.f32 %v4200, %v4487
    %v4808 = vmul.f32 %v4201, %v4487
    %v4809 = vmul.f32 %v4202, %v4487
    %v4810 = vmul.f32 %v4203, %v4487
    %v4811 = vmul.f32 %v4204, %v4487
    %v4812 = vmul.f32 %v4205, %v4487
    %v4813 = vmul.f32 %v4206, %v4487
    %v4814 = vmul.f32 %v4207, %v4487
    %v4815 = vmul.f32 %v4208, %v4487
    %v4816 = vmul.f32 %v4209, %v4487
    %v4817 = vmul.f32 %v4210, %v4487
    %v4818 = vmul.f32 %v4211, %v4487
    %v4819 = vmul.f32 %v4212, %v4487
    %v4820 = vmul.f32 %v4213, %v4487
    %v4821 = vmul.f32 %v4214, %v4487
    %v4822 = vmul.f32 %v4215, %v4487
    %v4823 = vmul.f32 %v4216, %v4487
    %v4824 = vmul.f32 %v4217, %v4487
    %v4825 = vmul.f32 %v4218, %v4487
    %v4826 = vmul.f32 %v4219, %v4487
    %v4827 = vmul.f32 %v4220, %v4487
    %v4828 = vmul.f32 %v4221, %v4487
    %v4829 = vmul.f32 %v4222, %v4487
    %v4830 = vmul.f32 %v4223, %v4487
    %v4831 = vmul.f32 %v4224, %v4487
    %v4832 = vmul.f32 %v4225, %v4487
    %v4833 = vmul.f32 %v4226, %v4487
    %v4834 = vmul.f32 %v4227, %v4487
    %v4835 = vmul.f32 %v4228, %v4487
    %v4836 = vmul.f32 %v4229, %v4487
    %v4837 = vmul.f32 %v4230, %v4487
    %v4838 = vmul.f32 %v4231, %v4487
    %v4839 = vmul.f32 %v4232, %v4487
    %v4840 = vmul.f32 %v4233, %v4487
    %v4841 = vmul.f32 %v4234, %v4487
    %v4842 = vmul.f32 %v4235, %v4487
    %v4843 = vmul.f32 %v4236, %v4487
    %v4844 = vmul.f32 %v4237, %v4487
    %v4845 = vmul.f32 %v4238, %v4487
    %v4846 = vmul.f32 %v4239, %v4487
    %v4847 = vmul.f32 %v4240, %v4487
    %v4848 = vmul.f32 %v4241, %v4487
    %v4849 = vmul.f32 %v4242, %v4487
    %v4850 = vmul.f32 %v4243, %v4487
    %v4851 = vmul.f32 %v4244, %v4487
    %v4852 = vmul.f32 %v4245, %v4487
    %v4853 = vmul.f32 %v4246, %v4487
    %v4854 = vmul.f32 %v4247, %v4487
    %v4855 = vmul.f32 %v4248, %v4487
    %v4856 = vmul.f32 %v4249, %v4487
    %v4857 = vmul.f32 %v4250, %v4487
    %v4858 = vmul.f32 %v4251, %v4487
    %v4859 = vmul.f32 %v4252, %v4487
    %v4860 = vmul.f32 %v4253, %v4487
    %v4861 = vmul.f32 %v4254, %v4487
    %v4862 = vmul.f32 %v4255, %v4487
    %v4863 = vmul.f32 %v4256, %v4487
    %v4864 = vmul.f32 %v4257, %v4487
    %v4865 = vmul.f32 %v4258, %v4487
    %v4866 = vmul.f32 %v4259, %v4487
    %v4867 = vmul.f32 %v4260, %v4487
    %v4868 = vmul.f32 %v4261, %v4487
    %v4869 = vmul.f32 %v4262, %v4487
    %v4870 = vmul.f32 %v4263, %v4487
    %v4871 = vmul.f32 %v4264, %v4487
    %v4872 = vmul.f32 %v4265, %v4487
    %v4873 = vmul.f32 %v4266, %v4487
    %v4874 = vmul.f32 %v4267, %v4487
    %v4875 = vmul.f32 %v4268, %v4487
    %v4876 = vmul.f32 %v4269, %v4487
    %v4877 = vmul.f32 %v4270, %v4487
    %v4878 = vmul.f32 %v4271, %v4487
    %v4879 = vmul.f32 %v4272, %v4487
    %v4880 = vmul.f32 %v4273, %v4487
    %v4881 = vmul.f32 %v4274, %v4487
    %v4882 = vmul.f32 %v4275, %v4487
    %v4883 = vmul.f32 %v4276, %v4487
    %v4884 = vmul.f32 %v4277, %v4487
    %v4885 = vmul.f32 %v4278, %v4487
    %v4886 = vmul.f32 %v4279, %v4487
    %v4887 = vmul.f32 %v4280, %v4487
    %v4888 = vmul.f32 %v4281, %v4487
    %v4889 = vmul.f32 %v4282, %v4487
    %v4890 = vmul.f32 %v4283, %v4487
    %v4891 = vmul.f32 %v4284, %v4487
    %v4892 = vmul.f32 %v4285, %v4487
    %v4893 = vmul.f32 %v4286, %v4487
    %v4894 = vmul.f32 %v4287, %v4487
    %v4895 = vmul.f32 %v4288, %v4487
    %v4896 = vmul.f32 %v4289, %v4487
    %v4897 = vmul.f32 %v4290, %v4487
    %v4898 = vmul.f32 %v4291, %v4487
    %v4899 = vmul.f32 %v4292, %v4487
    %v4900 = vmul.f32 %v4293, %v4487
    %v4901 = vmul.f32 %v4294, %v4487
    %v4902 = vmul.f32 %v4295, %v4487
    %v4903 = vmul.f32 %v4296, %v4487
    %v4904 = vmul.f32 %v4297, %v4487
    %v4905 = vmul.f32 %v4298, %v4487
    %v4906 = vmul.f32 %v4299, %v4487
    %v4907 = vmul.f32 %v4300, %v4487
    %v4908 = vmul.f32 %v4301, %v4487
    %v4909 = vmul.f32 %v4302, %v4487
    %v4910 = vmul.f32 %v4303, %v4487
    %v4911 = vmul.f32 %v4304, %v4487
    %v4912 = vmul.f32 %v4305, %v4487
    %v4913 = vmul.f32 %v4306, %v4487
    %v4914 = vmul.f32 %v4307, %v4487
    %v4915 = vmul.f32 %v4308, %v4487
    %v4916 = vmul.f32 %v4309, %v4487
    %v4917 = vmul.f32 %v4310, %v4487
    %v4918 = vmul.f32 %v4311, %v4487
    %v4919 = vmul.f32 %v4312, %v4487
    %v4920 = vmul.f32 %v4313, %v4487
    %v4921 = vmul.f32 %v4314, %v4487
    %v4922 = vmul.f32 %v4315, %v4487
    %v4923 = vmul.f32 %v4316, %v4487
    %v4924 = vmul.f32 %v4317, %v4487
    %v4925 = vmul.f32 %v4318, %v4487
    %v4926 = vmul.f32 %v4319, %v4487
    %v4927 = vmul.f32 %v4320, %v4487
    %v4928 = vmul.f32 %v4321, %v4487
    %v4929 = vmul.f32 %v4322, %v4487
    %v4930 = vmul.f32 %v4323, %v4487
    %v4931 = vmul.f32 %v4324, %v4487
    %v4932 = vmul.f32 %v4325, %v4487
    %v4933 = vmul.f32 %v4326, %v4487
    %v4934 = vmul.f32 %v4327, %v4487
    %v4935 = vmul.f32 %v4328, %v4487
    %v4936 = vmul.f32 %v4329, %v4487
    %v4937 = vmul.f32 %v4330, %v4487
    %v4938 = vmul.f32 %v4331, %v4487
    %v4939 = vmul.f32 %v4332, %v4487
    %v4940 = vmul.f32 %v4333, %v4487
    %v4941 = vmul.f32 %v4334, %v4487
    %v4942 = vmul.f32 %v4335, %v4487
    %v4943 = vmul.f32 %v4336, %v4487
    %v4944 = vmul.f32 %v4337, %v4487
    %v4945 = vmul.f32 %v4338, %v4487
    %v4946 = vmul.f32 %v4339, %v4487
    %v4947 = vmul.f32 %v4340, %v4487
    %v4948 = vmul.f32 %v4341, %v4487
    %v4949 = vmul.f32 %v4342, %v4487
    %v4950 = vmul.f32 %v4343, %v4487
    %v4951 = vmul.f32 %v4344, %v4487
    %v4952 = vmul.f32 %v4345, %v4487
    %v4953 = vmul.f32 %v4346, %v4487
    %v4954 = vmul.f32 %v4347, %v4487
    %v4955 = vmul.f32 %v4348, %v4487
    %v4956 = vmul.f32 %v4349, %v4487
    %v4957 = vmul.f32 %v4350, %v4487
    %v4958 = vmul.f32 %v4351, %v4487
    %v4959 = vmul.f32 %v4352, %v4487
    %v4960 = vmul.f32 %v4353, %v4487
    %v4961 = vmul.f32 %v4354, %v4487
    %v4962 = vmul.f32 %v4355, %v4487
    %v4963 = vmul.f32 %v4356, %v4487
    %v4964 = vmul.f32 %v4357, %v4487
    %v4965 = vmul.f32 %v4358, %v4487
    %v4966 = vmul.f32 %v4359, %v4487
    %v4967 = vmul.f32 %v4360, %v4487
    %v4968 = vmul.f32 %v4361, %v4487
    %v4969 = vmul.f32 %v4362, %v4487
    %v4970 = vmul.f32 %v4363, %v4487
    %v4971 = vmul.f32 %v4364, %v4487
    %v4972 = vmul.f32 %v4365, %v4487
    %v4973 = vmul.f32 %v4366, %v4487
    %v4974 = vmul.f32 %v4367, %v4487
    %v4975 = vmul.f32 %v4368, %v4487
    %v4976 = vmul.f32 %v4369, %v4487
    %v4977 = vmul.f32 %v4370, %v4487
    %v4978 = vmul.f32 %v4371, %v4487
    %v4979 = vmul.f32 %v4372, %v4487
    %v4980 = vmul.f32 %v4373, %v4487
    %v4981 = vmul.f32 %v4374, %v4487
    %v4982 = vmul.f32 %v4375, %v4487
    %v4983 = vmul.f32 %v4376, %v4487
    %v4984 = vmul.f32 %v4377, %v4487
    %v4985 = vmul.f32 %v4378, %v4487
    %v4986 = vmul.f32 %v4379, %v4487
    %v4987 = vmul.f32 %v4380, %v4487
    %v4988 = vmul.f32 %v4381, %v4487
    %v4989 = vmul.f32 %v4382, %v4487
    %v4990 = vmul.f32 %v4383, %v4487
    %v4991 = vmul.f32 %v4384, %v4487
    %v4992 = vmul.f32 %v4385, %v4487
    %v4993 = vmul.f32 %v4386, %v4487
    %v4994 = vmul.f32 %v4387, %v4487
    %v4995 = vmul.f32 %v4388, %v4487
    %v4996 = vmul.f32 %v4389, %v4487
    %v4997 = vmul.f32 %v4390, %v4487
    %v4998 = vmul.f32 %v4391, %v4487
    %v4999 = vmul.f32 %v4392, %v4487
    %v5000 = vmul.f32 %v4393, %v4487
    %v5001 = vmul.f32 %v4394, %v4487
    %v5002 = vmul.f32 %v4395, %v4487
    %v5003 = vmul.f32 %v4396, %v4487
    %v5004 = vmul.f32 %v4397, %v4487
    %v5005 = vmul.f32 %v4398, %v4487
    %v5006 = vmul.f32 %v4399, %v4487
    %v5007 = vmul.f32 %v4400, %v4487
    %v5008 = vmul.f32 %v4401, %v4487
    %v5009 = vmul.f32 %v4402, %v4487
    %v5010 = vmul.f32 %v4403, %v4487
    %v5011 = vmul.f32 %v4404, %v4487
    %v5012 = vmul.f32 %v4405, %v4487
    %v5013 = vmul.f32 %v4406, %v4487
    %v5014 = vmul.f32 %v4407, %v4487
    %v5015 = vmul.f32 %v4408, %v4487
    %v5016 = vmul.f32 %v4409, %v4487
    %v5017 = vmul.f32 %v4410, %v4487
    %v5018 = vmul.f32 %v4411, %v4487
    %v5019 = vmul.f32 %v4412, %v4487
    %v5020 = vmul.f32 %v4413, %v4487
    %v5021 = vmul.f32 %v4414, %v4487
    %v5022 = vmul.f32 %v4415, %v4487
    %v5023 = vmul.f32 %v4416, %v4487
    %v5024 = vmul.f32 %v4417, %v4487
    %v5025 = vmul.f32 %v4418, %v4487
    %v5026 = vmul.f32 %v4419, %v4487
    %v5027 = vmul.f32 %v4420, %v4487
    %v5028 = vmul.f32 %v4421, %v4487
    %v5029 = vmul.f32 %v4422, %v4487
    %v5030 = vmul.f32 %v4423, %v4487
    %v5031 = vmul.f32 %v4424, %v4487
    %v5032 = vmul.f32 %v4425, %v4487
    %v5033 = vmul.f32 %v4426, %v4487
    %v5034 = vmul.f32 %v4427, %v4487
    %v5035 = vmul.f32 %v4428, %v4487
    %v5036 = vmul.f32 %v4429, %v4487
    %v5037 = vmul.f32 %v4430, %v4487
    %v5038 = vmul.f32 %v4431, %v4487
    %v5039 = vmul.f32 %v4432, %v4487
    %v5040 = vmul.f32 %v4433, %v4487
    %v5041 = vmul.f32 %v4434, %v4487
    %v5042 = vmul.f32 %v4435, %v4487
    %v5043 = vmul.f32 %v4436, %v4487
    %v5044 = vmul.f32 %v4437, %v4487
    %v5045 = vmul.f32 %v4438, %v4487
    %v5046 = vmul.f32 %v4439, %v4487
    %v5047 = vmul.f32 %v4440, %v4487
    %v5048 = vmul.f32 %v4441, %v4487
    %v5049 = vmul.f32 %v4442, %v4487
    %v5050 = vmul.f32 %v4443, %v4487
    %v5051 = vmul.f32 %v4444, %v4487
    %v5052 = vmul.f32 %v4445, %v4487
    %v5053 = vmul.f32 %v4446, %v4487
    %v5054 = vmul.f32 %v4447, %v4487
    %v5055 = vmul.f32 %v4448, %v4487
    %v5056 = vmul.f32 %v4449, %v4487
    %v5057 = vmul.f32 %v4450, %v4487
    %v5058 = vmul.f32 %v4451, %v4487
    %v5059 = vmul.f32 %v4452, %v4487
    %v5060 = vmul.f32 %v4453, %v4487
    %v5061 = vmul.f32 %v4454, %v4487
    %v5062 = vmul.f32 %v4455, %v4487
    %v5063 = vmul.f32 %v4456, %v4487
    %v5064 = vmul.f32 %v4457, %v4487
    %v5065 = vmul.f32 %v4458, %v4487
    %v5066 = vmul.f32 %v4459, %v4487
    %v5067 = vmul.f32 %v4460, %v4487
    %v5068 = vmul.f32 %v4461, %v4487
    %v5069 = vmul.f32 %v4462, %v4487
    %v5070 = vmul.f32 %v4463, %v4487
    %v5071 = vmul.f32 %v4464, %v4487
    %v5072 = vmul.f32 %v4465, %v4487
    %v5073 = vmul.f32 %v4466, %v4487
    %v5074 = vmul.f32 %v4467, %v4487
    %v5075 = vmul.f32 %v4468, %v4487
    %v5076 = vmul.f32 %v4469, %v4487
    %v5077 = vmul.f32 %v4470, %v4487
    %v5078 = vmul.f32 %v4471, %v4487
    %v5079 = vmul.f32 %v4472, %v4487
    %v5080 = vmul.f32 %v4473, %v4487
    %v5081 = vmul.f32 %v4474, %v4487
    %v5082 = vmul.f32 %v4475, %v4487
    %v5083 = vmul.f32 %v4476, %v4487
    %v5084 = vmul.f32 %v4477, %v4487
    %v5085 = vmul.f32 %v4478, %v4487
    %v5086 = vmul.f32 %v4479, %v4487
    %v5087 = vmul.f32 %v4480, %v4487
    %v5088 = vmul.f32 %v4481, %v4487
    %v5089 = vpack.c.bf16 %v4490, %v4489
    %v5090 = vpack.c.bf16 %v4492, %v4491
    %v5091 = vpack.c.bf16 %v4494, %v4493
    %v5092 = vpack.c.bf16 %v4496, %v4495
    %v5093 = vpack.c.bf16 %v4498, %v4497
    %v5094 = vpack.c.bf16 %v4500, %v4499
    %v5095 = vpack.c.bf16 %v4502, %v4501
    %v5096 = vpack.c.bf16 %v4504, %v4503
    %v5097 = vpack.c.bf16 %v4506, %v4505
    %v5098 = vpack.c.bf16 %v4508, %v4507
    %v5099 = vpack.c.bf16 %v4510, %v4509
    %v5100 = vpack.c.bf16 %v4512, %v4511
    %v5101 = vpack.c.bf16 %v4514, %v4513
    %v5102 = vpack.c.bf16 %v4516, %v4515
    %v5103 = vpack.c.bf16 %v4518, %v4517
    %v5104 = vpack.c.bf16 %v4520, %v4519
    %v5105 = vpack.c.bf16 %v4522, %v4521
    %v5106 = vpack.c.bf16 %v4524, %v4523
    %v5107 = vpack.c.bf16 %v4526, %v4525
    %v5108 = vpack.c.bf16 %v4528, %v4527
    %v5109 = vpack.c.bf16 %v4530, %v4529
    %v5110 = vpack.c.bf16 %v4532, %v4531
    %v5111 = vpack.c.bf16 %v4534, %v4533
    %v5112 = vpack.c.bf16 %v4536, %v4535
    %v5113 = vpack.c.bf16 %v4538, %v4537
    %v5114 = vpack.c.bf16 %v4540, %v4539
    %v5115 = vpack.c.bf16 %v4542, %v4541
    %v5116 = vpack.c.bf16 %v4544, %v4543
    %v5117 = vpack.c.bf16 %v4546, %v4545
    %v5118 = vpack.c.bf16 %v4548, %v4547
    %v5119 = vpack.c.bf16 %v4550, %v4549
    %v5120 = vpack.c.bf16 %v4552, %v4551
    %v5121 = vpack.c.bf16 %v4554, %v4553
    %v5122 = vpack.c.bf16 %v4556, %v4555
    %v5123 = vpack.c.bf16 %v4558, %v4557
    %v5124 = vpack.c.bf16 %v4560, %v4559
    %v5125 = vpack.c.bf16 %v4562, %v4561
    %v5126 = vpack.c.bf16 %v4564, %v4563
    %v5127 = vpack.c.bf16 %v4566, %v4565
    %v5128 = vpack.c.bf16 %v4568, %v4567
    %v5129 = vpack.c.bf16 %v4570, %v4569
    %v5130 = vpack.c.bf16 %v4572, %v4571
    %v5131 = vpack.c.bf16 %v4574, %v4573
    %v5132 = vpack.c.bf16 %v4576, %v4575
    %v5133 = vpack.c.bf16 %v4578, %v4577
    %v5134 = vpack.c.bf16 %v4580, %v4579
    %v5135 = vpack.c.bf16 %v4582, %v4581
    %v5136 = vpack.c.bf16 %v4584, %v4583
    %v5137 = vpack.c.bf16 %v4586, %v4585
    %v5138 = vpack.c.bf16 %v4588, %v4587
    %v5139 = vpack.c.bf16 %v4590, %v4589
    %v5140 = vpack.c.bf16 %v4592, %v4591
    %v5141 = vpack.c.bf16 %v4594, %v4593
    %v5142 = vpack.c.bf16 %v4596, %v4595
    %v5143 = vpack.c.bf16 %v4598, %v4597
    %v5144 = vpack.c.bf16 %v4600, %v4599
    %v5145 = vpack.c.bf16 %v4602, %v4601
    %v5146 = vpack.c.bf16 %v4604, %v4603
    %v5147 = vpack.c.bf16 %v4606, %v4605
    %v5148 = vpack.c.bf16 %v4608, %v4607
    %v5149 = vpack.c.bf16 %v4610, %v4609
    %v5150 = vpack.c.bf16 %v4612, %v4611
    %v5151 = vpack.c.bf16 %v4614, %v4613
    %v5152 = vpack.c.bf16 %v4616, %v4615
    %v5153 = vpack.c.bf16 %v4618, %v4617
    %v5154 = vpack.c.bf16 %v4620, %v4619
    %v5155 = vpack.c.bf16 %v4622, %v4621
    %v5156 = vpack.c.bf16 %v4624, %v4623
    %v5157 = vpack.c.bf16 %v4626, %v4625
    %v5158 = vpack.c.bf16 %v4628, %v4627
    %v5159 = vpack.c.bf16 %v4630, %v4629
    %v5160 = vpack.c.bf16 %v4632, %v4631
    %v5161 = vpack.c.bf16 %v4634, %v4633
    %v5162 = vpack.c.bf16 %v4636, %v4635
    %v5163 = vpack.c.bf16 %v4638, %v4637
    %v5164 = vpack.c.bf16 %v4640, %v4639
    %v5165 = vpack.c.bf16 %v4642, %v4641
    %v5166 = vpack.c.bf16 %v4644, %v4643
    %v5167 = vpack.c.bf16 %v4646, %v4645
    %v5168 = vpack.c.bf16 %v4648, %v4647
    %v5169 = vpack.c.bf16 %v4650, %v4649
    %v5170 = vpack.c.bf16 %v4652, %v4651
    %v5171 = vpack.c.bf16 %v4654, %v4653
    %v5172 = vpack.c.bf16 %v4656, %v4655
    %v5173 = vpack.c.bf16 %v4658, %v4657
    %v5174 = vpack.c.bf16 %v4660, %v4659
    %v5175 = vpack.c.bf16 %v4662, %v4661
    %v5176 = vpack.c.bf16 %v4664, %v4663
    %v5177 = vpack.c.bf16 %v4666, %v4665
    %v5178 = vpack.c.bf16 %v4668, %v4667
    %v5179 = vpack.c.bf16 %v4670, %v4669
    %v5180 = vpack.c.bf16 %v4672, %v4671
    %v5181 = vpack.c.bf16 %v4674, %v4673
    %v5182 = vpack.c.bf16 %v4676, %v4675
    %v5183 = vpack.c.bf16 %v4678, %v4677
    %v5184 = vpack.c.bf16 %v4680, %v4679
    %v5185 = vpack.c.bf16 %v4682, %v4681
    %v5186 = vpack.c.bf16 %v4684, %v4683
    %v5187 = vpack.c.bf16 %v4686, %v4685
    %v5188 = vpack.c.bf16 %v4688, %v4687
    %v5189 = vpack.c.bf16 %v4690, %v4689
    %v5190 = vpack.c.bf16 %v4692, %v4691
    %v5191 = vpack.c.bf16 %v4694, %v4693
    %v5192 = vpack.c.bf16 %v4696, %v4695
    %v5193 = vpack.c.bf16 %v4698, %v4697
    %v5194 = vpack.c.bf16 %v4700, %v4699
    %v5195 = vpack.c.bf16 %v4702, %v4701
    %v5196 = vpack.c.bf16 %v4704, %v4703
    %v5197 = vpack.c.bf16 %v4706, %v4705
    %v5198 = vpack.c.bf16 %v4708, %v4707
    %v5199 = vpack.c.bf16 %v4710, %v4709
    %v5200 = vpack.c.bf16 %v4712, %v4711
    %v5201 = vpack.c.bf16 %v4714, %v4713
    %v5202 = vpack.c.bf16 %v4716, %v4715
    %v5203 = vpack.c.bf16 %v4718, %v4717
    %v5204 = vpack.c.bf16 %v4720, %v4719
    %v5205 = vpack.c.bf16 %v4722, %v4721
    %v5206 = vpack.c.bf16 %v4724, %v4723
    %v5207 = vpack.c.bf16 %v4726, %v4725
    %v5208 = vpack.c.bf16 %v4728, %v4727
    %v5209 = vpack.c.bf16 %v4730, %v4729
    %v5210 = vpack.c.bf16 %v4732, %v4731
    %v5211 = vpack.c.bf16 %v4734, %v4733
    %v5212 = vpack.c.bf16 %v4736, %v4735
    %v5213 = vpack.c.bf16 %v4738, %v4737
    %v5214 = vpack.c.bf16 %v4740, %v4739
    %v5215 = vpack.c.bf16 %v4742, %v4741
    %v5216 = vpack.c.bf16 %v4744, %v4743
    %v5217 = vpack.c.bf16 %v4746, %v4745
    %v5218 = vpack.c.bf16 %v4748, %v4747
    %v5219 = vpack.c.bf16 %v4750, %v4749
    %v5220 = vpack.c.bf16 %v4752, %v4751
    %v5221 = vpack.c.bf16 %v4754, %v4753
    %v5222 = vpack.c.bf16 %v4756, %v4755
    %v5223 = vpack.c.bf16 %v4758, %v4757
    %v5224 = vpack.c.bf16 %v4760, %v4759
    %v5225 = vpack.c.bf16 %v4762, %v4761
    %v5226 = vpack.c.bf16 %v4764, %v4763
    %v5227 = vpack.c.bf16 %v4766, %v4765
    %v5228 = vpack.c.bf16 %v4768, %v4767
    %v5229 = vpack.c.bf16 %v4770, %v4769
    %v5230 = vpack.c.bf16 %v4772, %v4771
    %v5231 = vpack.c.bf16 %v4774, %v4773
    %v5232 = vpack.c.bf16 %v4776, %v4775
    %v5233 = vpack.c.bf16 %v4778, %v4777
    %v5234 = vpack.c.bf16 %v4780, %v4779
    %v5235 = vpack.c.bf16 %v4782, %v4781
    %v5236 = vpack.c.bf16 %v4784, %v4783
    %v5237 = vpack.c.bf16 %v4786, %v4785
    %v5238 = vpack.c.bf16 %v4788, %v4787
    %v5239 = vpack.c.bf16 %v4790, %v4789
    %v5240 = vpack.c.bf16 %v4792, %v4791
    %v5241 = vpack.c.bf16 %v4794, %v4793
    %v5242 = vpack.c.bf16 %v4796, %v4795
    %v5243 = vpack.c.bf16 %v4798, %v4797
    %v5244 = vpack.c.bf16 %v4800, %v4799
    %v5245 = vpack.c.bf16 %v4802, %v4801
    %v5246 = vpack.c.bf16 %v4804, %v4803
    %v5247 = vpack.c.bf16 %v4806, %v4805
    %v5248 = vpack.c.bf16 %v4808, %v4807
    %v5249 = vpack.c.bf16 %v4810, %v4809
    %v5250 = vpack.c.bf16 %v4812, %v4811
    %v5251 = vpack.c.bf16 %v4814, %v4813
    %v5252 = vpack.c.bf16 %v4816, %v4815
    %v5253 = vpack.c.bf16 %v4818, %v4817
    %v5254 = vpack.c.bf16 %v4820, %v4819
    %v5255 = vpack.c.bf16 %v4822, %v4821
    %v5256 = vpack.c.bf16 %v4824, %v4823
    %v5257 = vpack.c.bf16 %v4826, %v4825
    %v5258 = vpack.c.bf16 %v4828, %v4827
    %v5259 = vpack.c.bf16 %v4830, %v4829
    %v5260 = vpack.c.bf16 %v4832, %v4831
    %v5261 = vpack.c.bf16 %v4834, %v4833
    %v5262 = vpack.c.bf16 %v4836, %v4835
    %v5263 = vpack.c.bf16 %v4838, %v4837
    %v5264 = vpack.c.bf16 %v4840, %v4839
    %v5265 = vpack.c.bf16 %v4842, %v4841
    %v5266 = vpack.c.bf16 %v4844, %v4843
    %v5267 = vpack.c.bf16 %v4846, %v4845
    %v5268 = vpack.c.bf16 %v4848, %v4847
    %v5269 = vpack.c.bf16 %v4850, %v4849
    %v5270 = vpack.c.bf16 %v4852, %v4851
    %v5271 = vpack.c.bf16 %v4854, %v4853
    %v5272 = vpack.c.bf16 %v4856, %v4855
    %v5273 = vpack.c.bf16 %v4858, %v4857
    %v5274 = vpack.c.bf16 %v4860, %v4859
    %v5275 = vpack.c.bf16 %v4862, %v4861
    %v5276 = vpack.c.bf16 %v4864, %v4863
    %v5277 = vpack.c.bf16 %v4866, %v4865
    %v5278 = vpack.c.bf16 %v4868, %v4867
    %v5279 = vpack.c.bf16 %v4870, %v4869
    %v5280 = vpack.c.bf16 %v4872, %v4871
    %v5281 = vpack.c.bf16 %v4874, %v4873
    %v5282 = vpack.c.bf16 %v4876, %v4875
    %v5283 = vpack.c.bf16 %v4878, %v4877
    %v5284 = vpack.c.bf16 %v4880, %v4879
    %v5285 = vpack.c.bf16 %v4882, %v4881
    %v5286 = vpack.c.bf16 %v4884, %v4883
    %v5287 = vpack.c.bf16 %v4886, %v4885
    %v5288 = vpack.c.bf16 %v4888, %v4887
    %v5289 = vpack.c.bf16 %v4890, %v4889
    %v5290 = vpack.c.bf16 %v4892, %v4891
    %v5291 = vpack.c.bf16 %v4894, %v4893
    %v5292 = vpack.c.bf16 %v4896, %v4895
    %v5293 = vpack.c.bf16 %v4898, %v4897
    %v5294 = vpack.c.bf16 %v4900, %v4899
    %v5295 = vpack.c.bf16 %v4902, %v4901
    %v5296 = vpack.c.bf16 %v4904, %v4903
    %v5297 = vpack.c.bf16 %v4906, %v4905
    %v5298 = vpack.c.bf16 %v4908, %v4907
    %v5299 = vpack.c.bf16 %v4910, %v4909
    %v5300 = vpack.c.bf16 %v4912, %v4911
    %v5301 = vpack.c.bf16 %v4914, %v4913
    %v5302 = vpack.c.bf16 %v4916, %v4915
    %v5303 = vpack.c.bf16 %v4918, %v4917
    %v5304 = vpack.c.bf16 %v4920, %v4919
    %v5305 = vpack.c.bf16 %v4922, %v4921
    %v5306 = vpack.c.bf16 %v4924, %v4923
    %v5307 = vpack.c.bf16 %v4926, %v4925
    %v5308 = vpack.c.bf16 %v4928, %v4927
    %v5309 = vpack.c.bf16 %v4930, %v4929
    %v5310 = vpack.c.bf16 %v4932, %v4931
    %v5311 = vpack.c.bf16 %v4934, %v4933
    %v5312 = vpack.c.bf16 %v4936, %v4935
    %v5313 = vpack.c.bf16 %v4938, %v4937
    %v5314 = vpack.c.bf16 %v4940, %v4939
    %v5315 = vpack.c.bf16 %v4942, %v4941
    %v5316 = vpack.c.bf16 %v4944, %v4943
    %v5317 = vpack.c.bf16 %v4946, %v4945
    %v5318 = vpack.c.bf16 %v4948, %v4947
    %v5319 = vpack.c.bf16 %v4950, %v4949
    %v5320 = vpack.c.bf16 %v4952, %v4951
    %v5321 = vpack.c.bf16 %v4954, %v4953
    %v5322 = vpack.c.bf16 %v4956, %v4955
    %v5323 = vpack.c.bf16 %v4958, %v4957
    %v5324 = vpack.c.bf16 %v4960, %v4959
    %v5325 = vpack.c.bf16 %v4962, %v4961
    %v5326 = vpack.c.bf16 %v4964, %v4963
    %v5327 = vpack.c.bf16 %v4966, %v4965
    %v5328 = vpack.c.bf16 %v4968, %v4967
    %v5329 = vpack.c.bf16 %v4970, %v4969
    %v5330 = vpack.c.bf16 %v4972, %v4971
    %v5331 = vpack.c.bf16 %v4974, %v4973
    %v5332 = vpack.c.bf16 %v4976, %v4975
    %v5333 = vpack.c.bf16 %v4978, %v4977
    %v5334 = vpack.c.bf16 %v4980, %v4979
    %v5335 = vpack.c.bf16 %v4982, %v4981
    %v5336 = vpack.c.bf16 %v4984, %v4983
    %v5337 = vpack.c.bf16 %v4986, %v4985
    %v5338 = vpack.c.bf16 %v4988, %v4987
    %v5339 = vpack.c.bf16 %v4990, %v4989
    %v5340 = vpack.c.bf16 %v4992, %v4991
    %v5341 = vpack.c.bf16 %v4994, %v4993
    %v5342 = vpack.c.bf16 %v4996, %v4995
    %v5343 = vpack.c.bf16 %v4998, %v4997
    %v5344 = vpack.c.bf16 %v5000, %v4999
    %v5345 = vpack.c.bf16 %v5002, %v5001
    %v5346 = vpack.c.bf16 %v5004, %v5003
    %v5347 = vpack.c.bf16 %v5006, %v5005
    %v5348 = vpack.c.bf16 %v5008, %v5007
    %v5349 = vpack.c.bf16 %v5010, %v5009
    %v5350 = vpack.c.bf16 %v5012, %v5011
    %v5351 = vpack.c.bf16 %v5014, %v5013
    %v5352 = vpack.c.bf16 %v5016, %v5015
    %v5353 = vpack.c.bf16 %v5018, %v5017
    %v5354 = vpack.c.bf16 %v5020, %v5019
    %v5355 = vpack.c.bf16 %v5022, %v5021
    %v5356 = vpack.c.bf16 %v5024, %v5023
    %v5357 = vpack.c.bf16 %v5026, %v5025
    %v5358 = vpack.c.bf16 %v5028, %v5027
    %v5359 = vpack.c.bf16 %v5030, %v5029
    %v5360 = vpack.c.bf16 %v5032, %v5031
    %v5361 = vpack.c.bf16 %v5034, %v5033
    %v5362 = vpack.c.bf16 %v5036, %v5035
    %v5363 = vpack.c.bf16 %v5038, %v5037
    %v5364 = vpack.c.bf16 %v5040, %v5039
    %v5365 = vpack.c.bf16 %v5042, %v5041
    %v5366 = vpack.c.bf16 %v5044, %v5043
    %v5367 = vpack.c.bf16 %v5046, %v5045
    %v5368 = vpack.c.bf16 %v5048, %v5047
    %v5369 = vpack.c.bf16 %v5050, %v5049
    %v5370 = vpack.c.bf16 %v5052, %v5051
    %v5371 = vpack.c.bf16 %v5054, %v5053
    %v5372 = vpack.c.bf16 %v5056, %v5055
    %v5373 = vpack.c.bf16 %v5058, %v5057
    %v5374 = vpack.c.bf16 %v5060, %v5059
    %v5375 = vpack.c.bf16 %v5062, %v5061
    %v5376 = vpack.c.bf16 %v5064, %v5063
    %v5377 = vpack.c.bf16 %v5066, %v5065
    %v5378 = vpack.c.bf16 %v5068, %v5067
    %v5379 = vpack.c.bf16 %v5070, %v5069
    %v5380 = vpack.c.bf16 %v5072, %v5071
    %v5381 = vpack.c.bf16 %v5074, %v5073
    %v5382 = vpack.c.bf16 %v5076, %v5075
    %v5383 = vpack.c.bf16 %v5078, %v5077
    %v5384 = vpack.c.bf16 %v5080, %v5079
    %v5385 = vpack.c.bf16 %v5082, %v5081
    %v5386 = vpack.c.bf16 %v5084, %v5083
    %v5387 = vpack.c.bf16 %v5086, %v5085
    %v5388 = vpack.c.bf16 %v5088, %v5087
    %v5389 = vpack.c.bf16 %v3094, %v3056
    %v5390 = vpack.c.bf16 %v3095, %v3057
    %v5391 = vpack.c.bf16 %v3096, %v3058
    %v5392 = vpack.c.bf16 %v3097, %v3059
    %v5393 = vpack.c.bf16 %v3098, %v3060
    %v5394 = vpack.c.bf16 %v3099, %v3061
    %v5395 = vpack.c.bf16 %v3100, %v3062
    %v5396 = vpack.c.bf16 %v3101, %v3063
    %v5397 = vpack.c.bf16 %v3102, %v3064
    %v5398 = vpack.c.bf16 %v3103, %v3065
    %v5399 = vpack.c.bf16 %v3104, %v3066
    %v5400 = vpack.c.bf16 %v3105, %v3067
    %v5401 = vpack.c.bf16 %v3106, %v3068
    %v5402 = vpack.c.bf16 %v3107, %v3069
    %v5403 = vpack.c.bf16 %v3108, %v3070
    %v5404 = vpack.c.bf16 %v3109, %v3071
    %v5405 = vpack.c.bf16 %v3110, %v3072
    %v5406 = vpack.c.bf16 %v3111, %v3073
    %v5407 = vpack.c.bf16 %v3112, %v3074
    %v5408 = vpack.c.bf16 %v3113, %v3075
    %v5409 = vpack.c.bf16 %v3114, %v3076
    %v5410 = vpack.c.bf16 %v3115, %v3077
    %v5411 = vpack.c.bf16 %v3116, %v3078
    %v5412 = vpack.c.bf16 %v3117, %v3079
    %v5413 = vpack.c.bf16 %v3118, %v3080
    %v5414 = vpack.c.bf16 %v3119, %v3081
    %v5415 = vpack.c.bf16 %v3120, %v3082
    %v5416 = vpack.c.bf16 %v3121, %v3083
    %v5417 = vpack.c.bf16 %v3122, %v3084
    %v5418 = vpack.c.bf16 %v3123, %v3085
    %v5419 = vpack.c.bf16 %v3124, %v3086
    %v5420 = vpack.c.bf16 %v3125, %v3087
    %v5421 = vpack.c.bf16 %v3126, %v3088
    %v5422 = vpack.c.bf16 %v3127, %v3089
    %v5423 = vpack.c.bf16 %v3128, %v3090
    %v5424 = vpack.c.bf16 %v3129, %v3091
    %v5425 = vpack.c.bf16 %v3130, %v3092
    %v5426 = vpack.c.bf16 %v3131, %v3093
    %v5427 = vld [vmem:[%s5] sm:$0x1]
    %v5429 = vlaneseq
    %v5430 = vshrl.u32 %v5429, 7
    %v5431 = vsub.s32 0, %v5430
    %v5432 = vrot.slane %v5427, %v5431
    %v5435 = vsel %vm2213, %v5426, 0
    %5437 = vmatprep.subr.bf16.mxu0 0
    %5438 = vmatpush1.bf16.msra.mxu0 %v5096
    %5439 = vmatprep.subr.bf16.mxu0 0
    %5440 = vmatpush1.bf16.msra.mxu0 %v5095
    %5441 = vmatprep.subr.bf16.mxu0 0
    %5442 = vmatpush1.bf16.msra.mxu0 %v5094
    %5443 = vmatprep.subr.bf16.mxu0 0
    %5444 = vmatpush1.bf16.msra.mxu0 %v5093
    %5445 = vmatprep.subr.bf16.mxu0 0
    %5446 = vmatpush1.bf16.msra.mxu0 %v5092
    %5447 = vmatprep.subr.bf16.mxu0 0
    %5448 = vmatpush1.bf16.msra.mxu0 %v5091
    %5449 = vmatprep.subr.bf16.mxu0 0
    %5450 = vmatpush1.bf16.msra.mxu0 %v5090
    %5451 = vmatprep.subr.bf16.mxu0 0
    %5452 = vmatpush1.bf16.msra.mxu0 %v5089
    %5453 = vmatprep.subr.bf16.mxu0 0
    %5454 = vmatpush2.bf16.msra.mxu0 %v5104
    %5455 = vmatprep.subr.bf16.mxu0 0
    %5456 = vmatpush2.bf16.msra.mxu0 %v5103
    %5457 = vmatprep.subr.bf16.mxu0 0
    %5458 = vmatpush2.bf16.msra.mxu0 %v5102
    %5459 = vmatprep.subr.bf16.mxu0 0
    %5460 = vmatpush2.bf16.msra.mxu0 %v5101
    %5461 = vmatprep.subr.bf16.mxu0 0
    %5462 = vmatpush2.bf16.msra.mxu0 %v5100
    %5463 = vmatprep.subr.bf16.mxu0 0
    %5464 = vmatpush2.bf16.msra.mxu0 %v5099
    %5465 = vmatprep.subr.bf16.mxu0 0
    %5466 = vmatpush2.bf16.msra.mxu0 %v5098
    %5467 = vmatprep.subr.bf16.mxu0 0
    %5468 = vmatpush2.bf16.msra.mxu0 %v5097
    %5469 = vmatprep.mubr.bf16.mxu0 %v5390
    %5470 = vmatmul.mubr.bf16.gmra.mxu0 %v5389
    %v5471 = vpop.f32.mrf.mxu0
    %v5472 = vadd.f32 %v5432, %v5471
    %v5473 = vpop.f32.mrf.mxu0
    %v5474 = vpop.f32.mrf.mxu0
    %v5475 = vadd.f32 %v5432, %v5474
    %v5476 = vpop.f32.mrf.mxu0
    %5477 = vdwg.mxu0
    %5478 = vmatprep.subr.bf16.mxu0 0
    %5479 = vmatpush1.bf16.msra.mxu0 %v5112
    %5480 = vmatprep.subr.bf16.mxu0 0
    %5481 = vmatpush1.bf16.msra.mxu0 %v5111
    %5482 = vmatprep.subr.bf16.mxu0 0
    %5483 = vmatpush1.bf16.msra.mxu0 %v5110
    %5484 = vmatprep.subr.bf16.mxu0 0
    %5485 = vmatpush1.bf16.msra.mxu0 %v5109
    %5486 = vmatprep.subr.bf16.mxu0 0
    %5487 = vmatpush1.bf16.msra.mxu0 %v5108
    %5488 = vmatprep.subr.bf16.mxu0 0
    %5489 = vmatpush1.bf16.msra.mxu0 %v5107
    %5490 = vmatprep.subr.bf16.mxu0 0
    %5491 = vmatpush1.bf16.msra.mxu0 %v5106
    %5492 = vmatprep.subr.bf16.mxu0 0
    %5493 = vmatpush1.bf16.msra.mxu0 %v5105
    %5494 = vmatprep.subr.bf16.mxu0 0
    %5495 = vmatpush2.bf16.msra.mxu0 %v5120
    %5496 = vmatprep.subr.bf16.mxu0 0
    %5497 = vmatpush2.bf16.msra.mxu0 %v5119
    %5498 = vmatprep.subr.bf16.mxu0 0
    %5499 = vmatpush2.bf16.msra.mxu0 %v5118
    %5500 = vmatprep.subr.bf16.mxu0 0
    %5501 = vmatpush2.bf16.msra.mxu0 %v5117
    %5502 = vmatprep.subr.bf16.mxu0 0
    %5503 = vmatpush2.bf16.msra.mxu0 %v5116
    %5504 = vmatprep.subr.bf16.mxu0 0
    %5505 = vmatpush2.bf16.msra.mxu0 %v5115
    %5506 = vmatprep.subr.bf16.mxu0 0
    %5507 = vmatpush2.bf16.msra.mxu0 %v5114
    %5508 = vmatprep.subr.bf16.mxu0 0
    %5509 = vmatpush2.bf16.msra.mxu0 %v5113
    %5510 = vmatprep.mubr.bf16.mxu0 %v5392
    %5511 = vmatmul.mubr.bf16.gmra.mxu0 %v5391
    %v5512 = vpop.f32.mrf.mxu0
    %v5513 = vadd.f32 %v5472, %v5512
    %v5514 = vpop.f32.mrf.mxu0
    %v5515 = vpop.f32.mrf.mxu0
    %v5516 = vadd.f32 %v5475, %v5515
    %v5517 = vpop.f32.mrf.mxu0
    %5518 = vdwg.mxu0
    %5519 = vmatprep.subr.bf16.mxu0 0
    %5520 = vmatpush1.bf16.msra.mxu0 %v5128
    %5521 = vmatprep.subr.bf16.mxu0 0
    %5522 = vmatpush1.bf16.msra.mxu0 %v5127
    %5523 = vmatprep.subr.bf16.mxu0 0
    %5524 = vmatpush1.bf16.msra.mxu0 %v5126
    %5525 = vmatprep.subr.bf16.mxu0 0
    %5526 = vmatpush1.bf16.msra.mxu0 %v5125
    %5527 = vmatprep.subr.bf16.mxu0 0
    %5528 = vmatpush1.bf16.msra.mxu0 %v5124
    %5529 = vmatprep.subr.bf16.mxu0 0
    %5530 = vmatpush1.bf16.msra.mxu0 %v5123
    %5531 = vmatprep.subr.bf16.mxu0 0
    %5532 = vmatpush1.bf16.msra.mxu0 %v5122
    %5533 = vmatprep.subr.bf16.mxu0 0
    %5534 = vmatpush1.bf16.msra.mxu0 %v5121
    %5535 = vmatprep.subr.bf16.mxu0 0
    %5536 = vmatpush2.bf16.msra.mxu0 %v5136
    %5537 = vmatprep.subr.bf16.mxu0 0
    %5538 = vmatpush2.bf16.msra.mxu0 %v5135
    %5539 = vmatprep.subr.bf16.mxu0 0
    %5540 = vmatpush2.bf16.msra.mxu0 %v5134
    %5541 = vmatprep.subr.bf16.mxu0 0
    %5542 = vmatpush2.bf16.msra.mxu0 %v5133
    %5543 = vmatprep.subr.bf16.mxu0 0
    %5544 = vmatpush2.bf16.msra.mxu0 %v5132
    %5545 = vmatprep.subr.bf16.mxu0 0
    %5546 = vmatpush2.bf16.msra.mxu0 %v5131
    %5547 = vmatprep.subr.bf16.mxu0 0
    %5548 = vmatpush2.bf16.msra.mxu0 %v5130
    %5549 = vmatprep.subr.bf16.mxu0 0
    %5550 = vmatpush2.bf16.msra.mxu0 %v5129
    %5551 = vmatprep.mubr.bf16.mxu0 %v5394
    %5552 = vmatmul.mubr.bf16.gmra.mxu0 %v5393
    %v5553 = vpop.f32.mrf.mxu0
    %v5554 = vadd.f32 %v5513, %v5553
    %v5555 = vpop.f32.mrf.mxu0
    %v5556 = vpop.f32.mrf.mxu0
    %v5557 = vadd.f32 %v5516, %v5556
    %v5558 = vpop.f32.mrf.mxu0
    %5559 = vdwg.mxu0
    %5560 = vmatprep.subr.bf16.mxu0 0
    %5561 = vmatpush1.bf16.msra.mxu0 %v5144
    %5562 = vmatprep.subr.bf16.mxu0 0
    %5563 = vmatpush1.bf16.msra.mxu0 %v5143
    %5564 = vmatprep.subr.bf16.mxu0 0
    %5565 = vmatpush1.bf16.msra.mxu0 %v5142
    %5566 = vmatprep.subr.bf16.mxu0 0
    %5567 = vmatpush1.bf16.msra.mxu0 %v5141
    %5568 = vmatprep.subr.bf16.mxu0 0
    %5569 = vmatpush1.bf16.msra.mxu0 %v5140
    %5570 = vmatprep.subr.bf16.mxu0 0
    %5571 = vmatpush1.bf16.msra.mxu0 %v5139
    %5572 = vmatprep.subr.bf16.mxu0 0
    %5573 = vmatpush1.bf16.msra.mxu0 %v5138
    %5574 = vmatprep.subr.bf16.mxu0 0
    %5575 = vmatpush1.bf16.msra.mxu0 %v5137
    %5576 = vmatprep.subr.bf16.mxu0 0
    %5577 = vmatpush2.bf16.msra.mxu0 %v5152
    %5578 = vmatprep.subr.bf16.mxu0 0
    %5579 = vmatpush2.bf16.msra.mxu0 %v5151
    %5580 = vmatprep.subr.bf16.mxu0 0
    %5581 = vmatpush2.bf16.msra.mxu0 %v5150
    %5582 = vmatprep.subr.bf16.mxu0 0
    %5583 = vmatpush2.bf16.msra.mxu0 %v5149
    %5584 = vmatprep.subr.bf16.mxu0 0
    %5585 = vmatpush2.bf16.msra.mxu0 %v5148
    %5586 = vmatprep.subr.bf16.mxu0 0
    %5587 = vmatpush2.bf16.msra.mxu0 %v5147
    %5588 = vmatprep.subr.bf16.mxu0 0
    %5589 = vmatpush2.bf16.msra.mxu0 %v5146
    %5590 = vmatprep.subr.bf16.mxu0 0
    %5591 = vmatpush2.bf16.msra.mxu0 %v5145
    %5592 = vmatprep.mubr.bf16.mxu0 %v5396
    %5593 = vmatmul.mubr.bf16.gmra.mxu0 %v5395
    %v5594 = vpop.f32.mrf.mxu0
    %v5595 = vadd.f32 %v5554, %v5594
    %v5596 = vpop.f32.mrf.mxu0
    %v5597 = vpop.f32.mrf.mxu0
    %v5598 = vadd.f32 %v5557, %v5597
    %v5599 = vpop.f32.mrf.mxu0
    %5600 = vdwg.mxu0
    %5601 = vmatprep.subr.bf16.mxu0 0
    %5602 = vmatpush1.bf16.msra.mxu0 %v5160
    %5603 = vmatprep.subr.bf16.mxu0 0
    %5604 = vmatpush1.bf16.msra.mxu0 %v5159
    %5605 = vmatprep.subr.bf16.mxu0 0
    %5606 = vmatpush1.bf16.msra.mxu0 %v5158
    %5607 = vmatprep.subr.bf16.mxu0 0
    %5608 = vmatpush1.bf16.msra.mxu0 %v5157
    %5609 = vmatprep.subr.bf16.mxu0 0
    %5610 = vmatpush1.bf16.msra.mxu0 %v5156
    %5611 = vmatprep.subr.bf16.mxu0 0
    %5612 = vmatpush1.bf16.msra.mxu0 %v5155
    %5613 = vmatprep.subr.bf16.mxu0 0
    %5614 = vmatpush1.bf16.msra.mxu0 %v5154
    %5615 = vmatprep.subr.bf16.mxu0 0
    %5616 = vmatpush1.bf16.msra.mxu0 %v5153
    %5617 = vmatprep.subr.bf16.mxu0 0
    %5618 = vmatpush2.bf16.msra.mxu0 %v5168
    %5619 = vmatprep.subr.bf16.mxu0 0
    %5620 = vmatpush2.bf16.msra.mxu0 %v5167
    %5621 = vmatprep.subr.bf16.mxu0 0
    %5622 = vmatpush2.bf16.msra.mxu0 %v5166
    %5623 = vmatprep.subr.bf16.mxu0 0
    %5624 = vmatpush2.bf16.msra.mxu0 %v5165
    %5625 = vmatprep.subr.bf16.mxu0 0
    %5626 = vmatpush2.bf16.msra.mxu0 %v5164
    %5627 = vmatprep.subr.bf16.mxu0 0
    %5628 = vmatpush2.bf16.msra.mxu0 %v5163
    %5629 = vmatprep.subr.bf16.mxu0 0
    %5630 = vmatpush2.bf16.msra.mxu0 %v5162
    %5631 = vmatprep.subr.bf16.mxu0 0
    %5632 = vmatpush2.bf16.msra.mxu0 %v5161
    %5633 = vmatprep.mubr.bf16.mxu0 %v5398
    %5634 = vmatmul.mubr.bf16.gmra.mxu0 %v5397
    %v5635 = vpop.f32.mrf.mxu0
    %v5636 = vadd.f32 %v5595, %v5635
    %v5637 = vpop.f32.mrf.mxu0
    %v5638 = vpop.f32.mrf.mxu0
    %v5639 = vadd.f32 %v5598, %v5638
    %v5640 = vpop.f32.mrf.mxu0
    %5641 = vdwg.mxu0
    %5642 = vmatprep.subr.bf16.mxu0 0
    %5643 = vmatpush1.bf16.msra.mxu0 %v5176
    %5644 = vmatprep.subr.bf16.mxu0 0
    %5645 = vmatpush1.bf16.msra.mxu0 %v5175
    %5646 = vmatprep.subr.bf16.mxu0 0
    %5647 = vmatpush1.bf16.msra.mxu0 %v5174
    %5648 = vmatprep.subr.bf16.mxu0 0
    %5649 = vmatpush1.bf16.msra.mxu0 %v5173
    %5650 = vmatprep.subr.bf16.mxu0 0
    %5651 = vmatpush1.bf16.msra.mxu0 %v5172
    %5652 = vmatprep.subr.bf16.mxu0 0
    %5653 = vmatpush1.bf16.msra.mxu0 %v5171
    %5654 = vmatprep.subr.bf16.mxu0 0
    %5655 = vmatpush1.bf16.msra.mxu0 %v5170
    %5656 = vmatprep.subr.bf16.mxu0 0
    %5657 = vmatpush1.bf16.msra.mxu0 %v5169
    %5658 = vmatprep.subr.bf16.mxu0 0
    %5659 = vmatpush2.bf16.msra.mxu0 %v5184
    %5660 = vmatprep.subr.bf16.mxu0 0
    %5661 = vmatpush2.bf16.msra.mxu0 %v5183
    %5662 = vmatprep.subr.bf16.mxu0 0
    %5663 = vmatpush2.bf16.msra.mxu0 %v5182
    %5664 = vmatprep.subr.bf16.mxu0 0
    %5665 = vmatpush2.bf16.msra.mxu0 %v5181
    %5666 = vmatprep.subr.bf16.mxu0 0
    %5667 = vmatpush2.bf16.msra.mxu0 %v5180
    %5668 = vmatprep.subr.bf16.mxu0 0
    %5669 = vmatpush2.bf16.msra.mxu0 %v5179
    %5670 = vmatprep.subr.bf16.mxu0 0
    %5671 = vmatpush2.bf16.msra.mxu0 %v5178
    %5672 = vmatprep.subr.bf16.mxu0 0
    %5673 = vmatpush2.bf16.msra.mxu0 %v5177
    %5674 = vmatprep.mubr.bf16.mxu0 %v5400
    %5675 = vmatmul.mubr.bf16.gmra.mxu0 %v5399
    %v5676 = vpop.f32.mrf.mxu0
    %v5677 = vadd.f32 %v5636, %v5676
    %v5678 = vpop.f32.mrf.mxu0
    %v5679 = vpop.f32.mrf.mxu0
    %v5680 = vadd.f32 %v5639, %v5679
    %v5681 = vpop.f32.mrf.mxu0
    %5682 = vdwg.mxu0
    %5683 = vmatprep.subr.bf16.mxu0 0
    %5684 = vmatpush1.bf16.msra.mxu0 %v5192
    %5685 = vmatprep.subr.bf16.mxu0 0
    %5686 = vmatpush1.bf16.msra.mxu0 %v5191
    %5687 = vmatprep.subr.bf16.mxu0 0
    %5688 = vmatpush1.bf16.msra.mxu0 %v5190
    %5689 = vmatprep.subr.bf16.mxu0 0
    %5690 = vmatpush1.bf16.msra.mxu0 %v5189
    %5691 = vmatprep.subr.bf16.mxu0 0
    %5692 = vmatpush1.bf16.msra.mxu0 %v5188
    %5693 = vmatprep.subr.bf16.mxu0 0
    %5694 = vmatpush1.bf16.msra.mxu0 %v5187
    %5695 = vmatprep.subr.bf16.mxu0 0
    %5696 = vmatpush1.bf16.msra.mxu0 %v5186
    %5697 = vmatprep.subr.bf16.mxu0 0
    %5698 = vmatpush1.bf16.msra.mxu0 %v5185
    %5699 = vmatprep.subr.bf16.mxu0 0
    %5700 = vmatpush2.bf16.msra.mxu0 %v5200
    %5701 = vmatprep.subr.bf16.mxu0 0
    %5702 = vmatpush2.bf16.msra.mxu0 %v5199
    %5703 = vmatprep.subr.bf16.mxu0 0
    %5704 = vmatpush2.bf16.msra.mxu0 %v5198
    %5705 = vmatprep.subr.bf16.mxu0 0
    %5706 = vmatpush2.bf16.msra.mxu0 %v5197
    %5707 = vmatprep.subr.bf16.mxu0 0
    %5708 = vmatpush2.bf16.msra.mxu0 %v5196
    %5709 = vmatprep.subr.bf16.mxu0 0
    %5710 = vmatpush2.bf16.msra.mxu0 %v5195
    %5711 = vmatprep.subr.bf16.mxu0 0
    %5712 = vmatpush2.bf16.msra.mxu0 %v5194
    %5713 = vmatprep.subr.bf16.mxu0 0
    %5714 = vmatpush2.bf16.msra.mxu0 %v5193
    %5715 = vmatprep.mubr.bf16.mxu0 %v5402
    %5716 = vmatmul.mubr.bf16.gmra.mxu0 %v5401
    %v5717 = vpop.f32.mrf.mxu0
    %v5718 = vadd.f32 %v5677, %v5717
    %v5719 = vpop.f32.mrf.mxu0
    %v5720 = vpop.f32.mrf.mxu0
    %v5721 = vadd.f32 %v5680, %v5720
    %v5722 = vpop.f32.mrf.mxu0
    %5723 = vdwg.mxu0
    %5724 = vmatprep.subr.bf16.mxu0 0
    %5725 = vmatpush1.bf16.msra.mxu0 %v5208
    %5726 = vmatprep.subr.bf16.mxu0 0
    %5727 = vmatpush1.bf16.msra.mxu0 %v5207
    %5728 = vmatprep.subr.bf16.mxu0 0
    %5729 = vmatpush1.bf16.msra.mxu0 %v5206
    %5730 = vmatprep.subr.bf16.mxu0 0
    %5731 = vmatpush1.bf16.msra.mxu0 %v5205
    %5732 = vmatprep.subr.bf16.mxu0 0
    %5733 = vmatpush1.bf16.msra.mxu0 %v5204
    %5734 = vmatprep.subr.bf16.mxu0 0
    %5735 = vmatpush1.bf16.msra.mxu0 %v5203
    %5736 = vmatprep.subr.bf16.mxu0 0
    %5737 = vmatpush1.bf16.msra.mxu0 %v5202
    %5738 = vmatprep.subr.bf16.mxu0 0
    %5739 = vmatpush1.bf16.msra.mxu0 %v5201
    %5740 = vmatprep.subr.bf16.mxu0 0
    %5741 = vmatpush2.bf16.msra.mxu0 %v5216
    %5742 = vmatprep.subr.bf16.mxu0 0
    %5743 = vmatpush2.bf16.msra.mxu0 %v5215
    %5744 = vmatprep.subr.bf16.mxu0 0
    %5745 = vmatpush2.bf16.msra.mxu0 %v5214
    %5746 = vmatprep.subr.bf16.mxu0 0
    %5747 = vmatpush2.bf16.msra.mxu0 %v5213
    %5748 = vmatprep.subr.bf16.mxu0 0
    %5749 = vmatpush2.bf16.msra.mxu0 %v5212
    %5750 = vmatprep.subr.bf16.mxu0 0
    %5751 = vmatpush2.bf16.msra.mxu0 %v5211
    %5752 = vmatprep.subr.bf16.mxu0 0
    %5753 = vmatpush2.bf16.msra.mxu0 %v5210
    %5754 = vmatprep.subr.bf16.mxu0 0
    %5755 = vmatpush2.bf16.msra.mxu0 %v5209
    %5756 = vmatprep.mubr.bf16.mxu0 %v5404
    %5757 = vmatmul.mubr.bf16.gmra.mxu0 %v5403
    %v5758 = vpop.f32.mrf.mxu0
    %v5759 = vadd.f32 %v5718, %v5758
    %v5760 = vpop.f32.mrf.mxu0
    %v5761 = vpop.f32.mrf.mxu0
    %v5762 = vadd.f32 %v5721, %v5761
    %v5763 = vpop.f32.mrf.mxu0
    %5764 = vdwg.mxu0
    %5765 = vmatprep.subr.bf16.mxu0 0
    %5766 = vmatpush1.bf16.msra.mxu0 %v5224
    %5767 = vmatprep.subr.bf16.mxu0 0
    %5768 = vmatpush1.bf16.msra.mxu0 %v5223
    %5769 = vmatprep.subr.bf16.mxu0 0
    %5770 = vmatpush1.bf16.msra.mxu0 %v5222
    %5771 = vmatprep.subr.bf16.mxu0 0
    %5772 = vmatpush1.bf16.msra.mxu0 %v5221
    %5773 = vmatprep.subr.bf16.mxu0 0
    %5774 = vmatpush1.bf16.msra.mxu0 %v5220
    %5775 = vmatprep.subr.bf16.mxu0 0
    %5776 = vmatpush1.bf16.msra.mxu0 %v5219
    %5777 = vmatprep.subr.bf16.mxu0 0
    %5778 = vmatpush1.bf16.msra.mxu0 %v5218
    %5779 = vmatprep.subr.bf16.mxu0 0
    %5780 = vmatpush1.bf16.msra.mxu0 %v5217
    %5781 = vmatprep.subr.bf16.mxu0 0
    %5782 = vmatpush2.bf16.msra.mxu0 %v5232
    %5783 = vmatprep.subr.bf16.mxu0 0
    %5784 = vmatpush2.bf16.msra.mxu0 %v5231
    %5785 = vmatprep.subr.bf16.mxu0 0
    %5786 = vmatpush2.bf16.msra.mxu0 %v5230
    %5787 = vmatprep.subr.bf16.mxu0 0
    %5788 = vmatpush2.bf16.msra.mxu0 %v5229
    %5789 = vmatprep.subr.bf16.mxu0 0
    %5790 = vmatpush2.bf16.msra.mxu0 %v5228
    %5791 = vmatprep.subr.bf16.mxu0 0
    %5792 = vmatpush2.bf16.msra.mxu0 %v5227
    %5793 = vmatprep.subr.bf16.mxu0 0
    %5794 = vmatpush2.bf16.msra.mxu0 %v5226
    %5795 = vmatprep.subr.bf16.mxu0 0
    %5796 = vmatpush2.bf16.msra.mxu0 %v5225
    %5797 = vmatprep.mubr.bf16.mxu0 %v5406
    %5798 = vmatmul.mubr.bf16.gmra.mxu0 %v5405
    %v5799 = vpop.f32.mrf.mxu0
    %v5800 = vadd.f32 %v5759, %v5799
    %v5801 = vpop.f32.mrf.mxu0
    %v5802 = vpop.f32.mrf.mxu0
    %v5803 = vadd.f32 %v5762, %v5802
    %v5804 = vpop.f32.mrf.mxu0
    %5805 = vdwg.mxu0
    %5806 = vmatprep.subr.bf16.mxu0 0
    %5807 = vmatpush1.bf16.msra.mxu0 %v5240
    %5808 = vmatprep.subr.bf16.mxu0 0
    %5809 = vmatpush1.bf16.msra.mxu0 %v5239
    %5810 = vmatprep.subr.bf16.mxu0 0
    %5811 = vmatpush1.bf16.msra.mxu0 %v5238
    %5812 = vmatprep.subr.bf16.mxu0 0
    %5813 = vmatpush1.bf16.msra.mxu0 %v5237
    %5814 = vmatprep.subr.bf16.mxu0 0
    %5815 = vmatpush1.bf16.msra.mxu0 %v5236
    %5816 = vmatprep.subr.bf16.mxu0 0
    %5817 = vmatpush1.bf16.msra.mxu0 %v5235
    %5818 = vmatprep.subr.bf16.mxu0 0
    %5819 = vmatpush1.bf16.msra.mxu0 %v5234
    %5820 = vmatprep.subr.bf16.mxu0 0
    %5821 = vmatpush1.bf16.msra.mxu0 %v5233
    %5822 = vmatprep.subr.bf16.mxu0 0
    %5823 = vmatpush2.bf16.msra.mxu0 %v5248
    %5824 = vmatprep.subr.bf16.mxu0 0
    %5825 = vmatpush2.bf16.msra.mxu0 %v5247
    %5826 = vmatprep.subr.bf16.mxu0 0
    %5827 = vmatpush2.bf16.msra.mxu0 %v5246
    %5828 = vmatprep.subr.bf16.mxu0 0
    %5829 = vmatpush2.bf16.msra.mxu0 %v5245
    %5830 = vmatprep.subr.bf16.mxu0 0
    %5831 = vmatpush2.bf16.msra.mxu0 %v5244
    %5832 = vmatprep.subr.bf16.mxu0 0
    %5833 = vmatpush2.bf16.msra.mxu0 %v5243
    %5834 = vmatprep.subr.bf16.mxu0 0
    %5835 = vmatpush2.bf16.msra.mxu0 %v5242
    %5836 = vmatprep.subr.bf16.mxu0 0
    %5837 = vmatpush2.bf16.msra.mxu0 %v5241
    %5838 = vmatprep.mubr.bf16.mxu0 %v5408
    %5839 = vmatmul.mubr.bf16.gmra.mxu0 %v5407
    %v5840 = vpop.f32.mrf.mxu0
    %v5841 = vadd.f32 %v5800, %v5840
    %v5842 = vpop.f32.mrf.mxu0
    %v5843 = vpop.f32.mrf.mxu0
    %v5844 = vadd.f32 %v5803, %v5843
    %v5845 = vpop.f32.mrf.mxu0
    %5846 = vdwg.mxu0
    %5847 = vmatprep.subr.bf16.mxu0 0
    %5848 = vmatpush1.bf16.msra.mxu0 %v5256
    %5849 = vmatprep.subr.bf16.mxu0 0
    %5850 = vmatpush1.bf16.msra.mxu0 %v5255
    %5851 = vmatprep.subr.bf16.mxu0 0
    %5852 = vmatpush1.bf16.msra.mxu0 %v5254
    %5853 = vmatprep.subr.bf16.mxu0 0
    %5854 = vmatpush1.bf16.msra.mxu0 %v5253
    %5855 = vmatprep.subr.bf16.mxu0 0
    %5856 = vmatpush1.bf16.msra.mxu0 %v5252
    %5857 = vmatprep.subr.bf16.mxu0 0
    %5858 = vmatpush1.bf16.msra.mxu0 %v5251
    %5859 = vmatprep.subr.bf16.mxu0 0
    %5860 = vmatpush1.bf16.msra.mxu0 %v5250
    %5861 = vmatprep.subr.bf16.mxu0 0
    %5862 = vmatpush1.bf16.msra.mxu0 %v5249
    %5863 = vmatprep.subr.bf16.mxu0 0
    %5864 = vmatpush2.bf16.msra.mxu0 %v5264
    %5865 = vmatprep.subr.bf16.mxu0 0
    %5866 = vmatpush2.bf16.msra.mxu0 %v5263
    %5867 = vmatprep.subr.bf16.mxu0 0
    %5868 = vmatpush2.bf16.msra.mxu0 %v5262
    %5869 = vmatprep.subr.bf16.mxu0 0
    %5870 = vmatpush2.bf16.msra.mxu0 %v5261
    %5871 = vmatprep.subr.bf16.mxu0 0
    %5872 = vmatpush2.bf16.msra.mxu0 %v5260
    %5873 = vmatprep.subr.bf16.mxu0 0
    %5874 = vmatpush2.bf16.msra.mxu0 %v5259
    %5875 = vmatprep.subr.bf16.mxu0 0
    %5876 = vmatpush2.bf16.msra.mxu0 %v5258
    %5877 = vmatprep.subr.bf16.mxu0 0
    %5878 = vmatpush2.bf16.msra.mxu0 %v5257
    %5879 = vmatprep.mubr.bf16.mxu0 %v5410
    %5880 = vmatmul.mubr.bf16.gmra.mxu0 %v5409
    %v5881 = vpop.f32.mrf.mxu0
    %v5882 = vadd.f32 %v5841, %v5881
    %v5883 = vpop.f32.mrf.mxu0
    %v5884 = vpop.f32.mrf.mxu0
    %v5885 = vadd.f32 %v5844, %v5884
    %v5886 = vpop.f32.mrf.mxu0
    %5887 = vdwg.mxu0
    %5888 = vmatprep.subr.bf16.mxu0 0
    %5889 = vmatpush1.bf16.msra.mxu0 %v5272
    %5890 = vmatprep.subr.bf16.mxu0 0
    %5891 = vmatpush1.bf16.msra.mxu0 %v5271
    %5892 = vmatprep.subr.bf16.mxu0 0
    %5893 = vmatpush1.bf16.msra.mxu0 %v5270
    %5894 = vmatprep.subr.bf16.mxu0 0
    %5895 = vmatpush1.bf16.msra.mxu0 %v5269
    %5896 = vmatprep.subr.bf16.mxu0 0
    %5897 = vmatpush1.bf16.msra.mxu0 %v5268
    %5898 = vmatprep.subr.bf16.mxu0 0
    %5899 = vmatpush1.bf16.msra.mxu0 %v5267
    %5900 = vmatprep.subr.bf16.mxu0 0
    %5901 = vmatpush1.bf16.msra.mxu0 %v5266
    %5902 = vmatprep.subr.bf16.mxu0 0
    %5903 = vmatpush1.bf16.msra.mxu0 %v5265
    %5904 = vmatprep.subr.bf16.mxu0 0
    %5905 = vmatpush2.bf16.msra.mxu0 %v5280
    %5906 = vmatprep.subr.bf16.mxu0 0
    %5907 = vmatpush2.bf16.msra.mxu0 %v5279
    %5908 = vmatprep.subr.bf16.mxu0 0
    %5909 = vmatpush2.bf16.msra.mxu0 %v5278
    %5910 = vmatprep.subr.bf16.mxu0 0
    %5911 = vmatpush2.bf16.msra.mxu0 %v5277
    %5912 = vmatprep.subr.bf16.mxu0 0
    %5913 = vmatpush2.bf16.msra.mxu0 %v5276
    %5914 = vmatprep.subr.bf16.mxu0 0
    %5915 = vmatpush2.bf16.msra.mxu0 %v5275
    %5916 = vmatprep.subr.bf16.mxu0 0
    %5917 = vmatpush2.bf16.msra.mxu0 %v5274
    %5918 = vmatprep.subr.bf16.mxu0 0
    %5919 = vmatpush2.bf16.msra.mxu0 %v5273
    %5920 = vmatprep.mubr.bf16.mxu0 %v5412
    %5921 = vmatmul.mubr.bf16.gmra.mxu0 %v5411
    %v5922 = vpop.f32.mrf.mxu0
    %v5923 = vadd.f32 %v5882, %v5922
    %v5924 = vpop.f32.mrf.mxu0
    %v5925 = vpop.f32.mrf.mxu0
    %v5926 = vadd.f32 %v5885, %v5925
    %v5927 = vpop.f32.mrf.mxu0
    %5928 = vdwg.mxu0
    %5929 = vmatprep.subr.bf16.mxu0 0
    %5930 = vmatpush1.bf16.msra.mxu0 %v5288
    %5931 = vmatprep.subr.bf16.mxu0 0
    %5932 = vmatpush1.bf16.msra.mxu0 %v5287
    %5933 = vmatprep.subr.bf16.mxu0 0
    %5934 = vmatpush1.bf16.msra.mxu0 %v5286
    %5935 = vmatprep.subr.bf16.mxu0 0
    %5936 = vmatpush1.bf16.msra.mxu0 %v5285
    %5937 = vmatprep.subr.bf16.mxu0 0
    %5938 = vmatpush1.bf16.msra.mxu0 %v5284
    %5939 = vmatprep.subr.bf16.mxu0 0
    %5940 = vmatpush1.bf16.msra.mxu0 %v5283
    %5941 = vmatprep.subr.bf16.mxu0 0
    %5942 = vmatpush1.bf16.msra.mxu0 %v5282
    %5943 = vmatprep.subr.bf16.mxu0 0
    %5944 = vmatpush1.bf16.msra.mxu0 %v5281
    %5945 = vmatprep.subr.bf16.mxu0 0
    %5946 = vmatpush2.bf16.msra.mxu0 %v5296
    %5947 = vmatprep.subr.bf16.mxu0 0
    %5948 = vmatpush2.bf16.msra.mxu0 %v5295
    %5949 = vmatprep.subr.bf16.mxu0 0
    %5950 = vmatpush2.bf16.msra.mxu0 %v5294
    %5951 = vmatprep.subr.bf16.mxu0 0
    %5952 = vmatpush2.bf16.msra.mxu0 %v5293
    %5953 = vmatprep.subr.bf16.mxu0 0
    %5954 = vmatpush2.bf16.msra.mxu0 %v5292
    %5955 = vmatprep.subr.bf16.mxu0 0
    %5956 = vmatpush2.bf16.msra.mxu0 %v5291
    %5957 = vmatprep.subr.bf16.mxu0 0
    %5958 = vmatpush2.bf16.msra.mxu0 %v5290
    %5959 = vmatprep.subr.bf16.mxu0 0
    %5960 = vmatpush2.bf16.msra.mxu0 %v5289
    %5961 = vmatprep.mubr.bf16.mxu0 %v5414
    %5962 = vmatmul.mubr.bf16.gmra.mxu0 %v5413
    %v5963 = vpop.f32.mrf.mxu0
    %v5964 = vadd.f32 %v5923, %v5963
    %v5965 = vpop.f32.mrf.mxu0
    %v5966 = vpop.f32.mrf.mxu0
    %v5967 = vadd.f32 %v5926, %v5966
    %v5968 = vpop.f32.mrf.mxu0
    %5969 = vdwg.mxu0
    %5970 = vmatprep.subr.bf16.mxu0 0
    %5971 = vmatpush1.bf16.msra.mxu0 %v5304
    %5972 = vmatprep.subr.bf16.mxu0 0
    %5973 = vmatpush1.bf16.msra.mxu0 %v5303
    %5974 = vmatprep.subr.bf16.mxu0 0
    %5975 = vmatpush1.bf16.msra.mxu0 %v5302
    %5976 = vmatprep.subr.bf16.mxu0 0
    %5977 = vmatpush1.bf16.msra.mxu0 %v5301
    %5978 = vmatprep.subr.bf16.mxu0 0
    %5979 = vmatpush1.bf16.msra.mxu0 %v5300
    %5980 = vmatprep.subr.bf16.mxu0 0
    %5981 = vmatpush1.bf16.msra.mxu0 %v5299
    %5982 = vmatprep.subr.bf16.mxu0 0
    %5983 = vmatpush1.bf16.msra.mxu0 %v5298
    %5984 = vmatprep.subr.bf16.mxu0 0
    %5985 = vmatpush1.bf16.msra.mxu0 %v5297
    %5986 = vmatprep.subr.bf16.mxu0 0
    %5987 = vmatpush2.bf16.msra.mxu0 %v5312
    %5988 = vmatprep.subr.bf16.mxu0 0
    %5989 = vmatpush2.bf16.msra.mxu0 %v5311
    %5990 = vmatprep.subr.bf16.mxu0 0
    %5991 = vmatpush2.bf16.msra.mxu0 %v5310
    %5992 = vmatprep.subr.bf16.mxu0 0
    %5993 = vmatpush2.bf16.msra.mxu0 %v5309
    %5994 = vmatprep.subr.bf16.mxu0 0
    %5995 = vmatpush2.bf16.msra.mxu0 %v5308
    %5996 = vmatprep.subr.bf16.mxu0 0
    %5997 = vmatpush2.bf16.msra.mxu0 %v5307
    %5998 = vmatprep.subr.bf16.mxu0 0
    %5999 = vmatpush2.bf16.msra.mxu0 %v5306
    %6000 = vmatprep.subr.bf16.mxu0 0
    %6001 = vmatpush2.bf16.msra.mxu0 %v5305
    %6002 = vmatprep.mubr.bf16.mxu0 %v5416
    %6003 = vmatmul.mubr.bf16.gmra.mxu0 %v5415
    %v6004 = vpop.f32.mrf.mxu0
    %v6005 = vadd.f32 %v5964, %v6004
    %v6006 = vpop.f32.mrf.mxu0
    %v6007 = vpop.f32.mrf.mxu0
    %v6008 = vadd.f32 %v5967, %v6007
    %v6009 = vpop.f32.mrf.mxu0
    %6010 = vdwg.mxu0
    %6011 = vmatprep.subr.bf16.mxu0 0
    %6012 = vmatpush1.bf16.msra.mxu0 %v5320
    %6013 = vmatprep.subr.bf16.mxu0 0
    %6014 = vmatpush1.bf16.msra.mxu0 %v5319
    %6015 = vmatprep.subr.bf16.mxu0 0
    %6016 = vmatpush1.bf16.msra.mxu0 %v5318
    %6017 = vmatprep.subr.bf16.mxu0 0
    %6018 = vmatpush1.bf16.msra.mxu0 %v5317
    %6019 = vmatprep.subr.bf16.mxu0 0
    %6020 = vmatpush1.bf16.msra.mxu0 %v5316
    %6021 = vmatprep.subr.bf16.mxu0 0
    %6022 = vmatpush1.bf16.msra.mxu0 %v5315
    %6023 = vmatprep.subr.bf16.mxu0 0
    %6024 = vmatpush1.bf16.msra.mxu0 %v5314
    %6025 = vmatprep.subr.bf16.mxu0 0
    %6026 = vmatpush1.bf16.msra.mxu0 %v5313
    %6027 = vmatprep.subr.bf16.mxu0 0
    %6028 = vmatpush2.bf16.msra.mxu0 %v5328
    %6029 = vmatprep.subr.bf16.mxu0 0
    %6030 = vmatpush2.bf16.msra.mxu0 %v5327
    %6031 = vmatprep.subr.bf16.mxu0 0
    %6032 = vmatpush2.bf16.msra.mxu0 %v5326
    %6033 = vmatprep.subr.bf16.mxu0 0
    %6034 = vmatpush2.bf16.msra.mxu0 %v5325
    %6035 = vmatprep.subr.bf16.mxu0 0
    %6036 = vmatpush2.bf16.msra.mxu0 %v5324
    %6037 = vmatprep.subr.bf16.mxu0 0
    %6038 = vmatpush2.bf16.msra.mxu0 %v5323
    %6039 = vmatprep.subr.bf16.mxu0 0
    %6040 = vmatpush2.bf16.msra.mxu0 %v5322
    %6041 = vmatprep.subr.bf16.mxu0 0
    %6042 = vmatpush2.bf16.msra.mxu0 %v5321
    %6043 = vmatprep.mubr.bf16.mxu0 %v5418
    %6044 = vmatmul.mubr.bf16.gmra.mxu0 %v5417
    %v6045 = vpop.f32.mrf.mxu0
    %v6046 = vadd.f32 %v6005, %v6045
    %v6047 = vpop.f32.mrf.mxu0
    %v6048 = vpop.f32.mrf.mxu0
    %v6049 = vadd.f32 %v6008, %v6048
    %v6050 = vpop.f32.mrf.mxu0
    %6051 = vdwg.mxu0
    %6052 = vmatprep.subr.bf16.mxu0 0
    %6053 = vmatpush1.bf16.msra.mxu0 %v5336
    %6054 = vmatprep.subr.bf16.mxu0 0
    %6055 = vmatpush1.bf16.msra.mxu0 %v5335
    %6056 = vmatprep.subr.bf16.mxu0 0
    %6057 = vmatpush1.bf16.msra.mxu0 %v5334
    %6058 = vmatprep.subr.bf16.mxu0 0
    %6059 = vmatpush1.bf16.msra.mxu0 %v5333
    %6060 = vmatprep.subr.bf16.mxu0 0
    %6061 = vmatpush1.bf16.msra.mxu0 %v5332
    %6062 = vmatprep.subr.bf16.mxu0 0
    %6063 = vmatpush1.bf16.msra.mxu0 %v5331
    %6064 = vmatprep.subr.bf16.mxu0 0
    %6065 = vmatpush1.bf16.msra.mxu0 %v5330
    %6066 = vmatprep.subr.bf16.mxu0 0
    %6067 = vmatpush1.bf16.msra.mxu0 %v5329
    %6068 = vmatprep.subr.bf16.mxu0 0
    %6069 = vmatpush2.bf16.msra.mxu0 %v5344
    %6070 = vmatprep.subr.bf16.mxu0 0
    %6071 = vmatpush2.bf16.msra.mxu0 %v5343
    %6072 = vmatprep.subr.bf16.mxu0 0
    %6073 = vmatpush2.bf16.msra.mxu0 %v5342
    %6074 = vmatprep.subr.bf16.mxu0 0
    %6075 = vmatpush2.bf16.msra.mxu0 %v5341
    %6076 = vmatprep.subr.bf16.mxu0 0
    %6077 = vmatpush2.bf16.msra.mxu0 %v5340
    %6078 = vmatprep.subr.bf16.mxu0 0
    %6079 = vmatpush2.bf16.msra.mxu0 %v5339
    %6080 = vmatprep.subr.bf16.mxu0 0
    %6081 = vmatpush2.bf16.msra.mxu0 %v5338
    %6082 = vmatprep.subr.bf16.mxu0 0
    %6083 = vmatpush2.bf16.msra.mxu0 %v5337
    %6084 = vmatprep.mubr.bf16.mxu0 %v5420
    %6085 = vmatmul.mubr.bf16.gmra.mxu0 %v5419
    %v6086 = vpop.f32.mrf.mxu0
    %v6087 = vadd.f32 %v6046, %v6086
    %v6088 = vpop.f32.mrf.mxu0
    %v6089 = vpop.f32.mrf.mxu0
    %v6090 = vadd.f32 %v6049, %v6089
    %v6091 = vpop.f32.mrf.mxu0
    %6092 = vdwg.mxu0
    %6093 = vmatprep.subr.bf16.mxu0 0
    %6094 = vmatpush1.bf16.msra.mxu0 %v5352
    %6095 = vmatprep.subr.bf16.mxu0 0
    %6096 = vmatpush1.bf16.msra.mxu0 %v5351
    %6097 = vmatprep.subr.bf16.mxu0 0
    %6098 = vmatpush1.bf16.msra.mxu0 %v5350
    %6099 = vmatprep.subr.bf16.mxu0 0
    %6100 = vmatpush1.bf16.msra.mxu0 %v5349
    %6101 = vmatprep.subr.bf16.mxu0 0
    %6102 = vmatpush1.bf16.msra.mxu0 %v5348
    %6103 = vmatprep.subr.bf16.mxu0 0
    %6104 = vmatpush1.bf16.msra.mxu0 %v5347
    %6105 = vmatprep.subr.bf16.mxu0 0
    %6106 = vmatpush1.bf16.msra.mxu0 %v5346
    %6107 = vmatprep.subr.bf16.mxu0 0
    %6108 = vmatpush1.bf16.msra.mxu0 %v5345
    %6109 = vmatprep.subr.bf16.mxu0 0
    %6110 = vmatpush2.bf16.msra.mxu0 %v5360
    %6111 = vmatprep.subr.bf16.mxu0 0
    %6112 = vmatpush2.bf16.msra.mxu0 %v5359
    %6113 = vmatprep.subr.bf16.mxu0 0
    %6114 = vmatpush2.bf16.msra.mxu0 %v5358
    %6115 = vmatprep.subr.bf16.mxu0 0
    %6116 = vmatpush2.bf16.msra.mxu0 %v5357
    %6117 = vmatprep.subr.bf16.mxu0 0
    %6118 = vmatpush2.bf16.msra.mxu0 %v5356
    %6119 = vmatprep.subr.bf16.mxu0 0
    %6120 = vmatpush2.bf16.msra.mxu0 %v5355
    %6121 = vmatprep.subr.bf16.mxu0 0
    %6122 = vmatpush2.bf16.msra.mxu0 %v5354
    %6123 = vmatprep.subr.bf16.mxu0 0
    %6124 = vmatpush2.bf16.msra.mxu0 %v5353
    %6125 = vmatprep.mubr.bf16.mxu0 %v5422
    %6126 = vmatmul.mubr.bf16.gmra.mxu0 %v5421
    %v6127 = vpop.f32.mrf.mxu0
    %v6128 = vadd.f32 %v6087, %v6127
    %v6129 = vpop.f32.mrf.mxu0
    %v6130 = vpop.f32.mrf.mxu0
    %v6131 = vadd.f32 %v6090, %v6130
    %v6132 = vpop.f32.mrf.mxu0
    %6133 = vdwg.mxu0
    %6134 = vmatprep.subr.bf16.mxu0 0
    %6135 = vmatpush1.bf16.msra.mxu0 %v5368
    %6136 = vmatprep.subr.bf16.mxu0 0
    %6137 = vmatpush1.bf16.msra.mxu0 %v5367
    %6138 = vmatprep.subr.bf16.mxu0 0
    %6139 = vmatpush1.bf16.msra.mxu0 %v5366
    %6140 = vmatprep.subr.bf16.mxu0 0
    %6141 = vmatpush1.bf16.msra.mxu0 %v5365
    %6142 = vmatprep.subr.bf16.mxu0 0
    %6143 = vmatpush1.bf16.msra.mxu0 %v5364
    %6144 = vmatprep.subr.bf16.mxu0 0
    %6145 = vmatpush1.bf16.msra.mxu0 %v5363
    %6146 = vmatprep.subr.bf16.mxu0 0
    %6147 = vmatpush1.bf16.msra.mxu0 %v5362
    %6148 = vmatprep.subr.bf16.mxu0 0
    %6149 = vmatpush1.bf16.msra.mxu0 %v5361
    %6150 = vmatprep.subr.bf16.mxu0 0
    %6151 = vmatpush2.bf16.msra.mxu0 %v5376
    %6152 = vmatprep.subr.bf16.mxu0 0
    %6153 = vmatpush2.bf16.msra.mxu0 %v5375
    %6154 = vmatprep.subr.bf16.mxu0 0
    %6155 = vmatpush2.bf16.msra.mxu0 %v5374
    %6156 = vmatprep.subr.bf16.mxu0 0
    %6157 = vmatpush2.bf16.msra.mxu0 %v5373
    %6158 = vmatprep.subr.bf16.mxu0 0
    %6159 = vmatpush2.bf16.msra.mxu0 %v5372
    %6160 = vmatprep.subr.bf16.mxu0 0
    %6161 = vmatpush2.bf16.msra.mxu0 %v5371
    %6162 = vmatprep.subr.bf16.mxu0 0
    %6163 = vmatpush2.bf16.msra.mxu0 %v5370
    %6164 = vmatprep.subr.bf16.mxu0 0
    %6165 = vmatpush2.bf16.msra.mxu0 %v5369
    %6166 = vmatprep.mubr.bf16.mxu0 %v5424
    %6167 = vmatmul.mubr.bf16.gmra.mxu0 %v5423
    %v6168 = vpop.f32.mrf.mxu0
    %v6169 = vadd.f32 %v6128, %v6168
    %v6170 = vpop.f32.mrf.mxu0
    %v6171 = vpop.f32.mrf.mxu0
    %v6172 = vadd.f32 %v6131, %v6171
    %v6173 = vpop.f32.mrf.mxu0
    %6174 = vdwg.mxu0
    %6175 = vmatprep.subr.bf16.mxu0 0
    %6176 = vmatpush1.bf16.msra.mxu0 %v5384
    %6177 = vmatprep.subr.bf16.mxu0 0
    %6178 = vmatpush1.bf16.msra.mxu0 %v5383
    %6179 = vmatprep.subr.bf16.mxu0 0
    %6180 = vmatpush1.bf16.msra.mxu0 %v5382
    %6181 = vmatprep.subr.bf16.mxu0 0
    %6182 = vmatpush1.bf16.msra.mxu0 %v5381
    %6183 = vmatprep.subr.bf16.mxu0 0
    %6184 = vmatpush1.bf16.msra.mxu0 %v5380
    %6185 = vmatprep.subr.bf16.mxu0 0
    %6186 = vmatpush1.bf16.msra.mxu0 %v5379
    %6187 = vmatprep.subr.bf16.mxu0 0
    %6188 = vmatpush1.bf16.msra.mxu0 %v5378
    %6189 = vmatprep.subr.bf16.mxu0 0
    %6190 = vmatpush1.bf16.msra.mxu0 %v5377
    %6191 = vmatprep.subr.bf16.mxu0 0
    %6192 = vmatpush2.bf16.msra.mxu0 0
    %6193 = vmatprep.subr.bf16.mxu0 0
    %6194 = vmatpush2.bf16.msra.mxu0 0
    %6195 = vmatprep.subr.bf16.mxu0 0
    %6196 = vmatpush2.bf16.msra.mxu0 0
    %6197 = vmatprep.subr.bf16.mxu0 0
    %6198 = vmatpush2.bf16.msra.mxu0 0
    %6199 = vmatprep.subr.bf16.mxu0 0
    %6200 = vmatpush2.bf16.msra.mxu0 %v5388
    %6201 = vmatprep.subr.bf16.mxu0 0
    %6202 = vmatpush2.bf16.msra.mxu0 %v5387
    %6203 = vmatprep.subr.bf16.mxu0 0
    %6204 = vmatpush2.bf16.msra.mxu0 %v5386
    %6205 = vmatprep.subr.bf16.mxu0 0
    %6206 = vmatpush2.bf16.msra.mxu0 %v5385
    %6207 = vmatprep.mubr.bf16.mxu0 %v5435
    %6208 = vmatmul.mubr.bf16.gmra.mxu0 %v5425
    %v6209 = vpop.f32.mrf.mxu0
    %v6210 = vadd.f32 %v6169, %v6209
    %v6211 = vpop.f32.mrf.mxu0
    %v6212 = vpop.f32.mrf.mxu0
    %v6213 = vadd.f32 %v6172, %v6212
    %v6214 = vpop.f32.mrf.mxu0
    %6215 = vdwg.mxu0
    %v6216 = vmul.f32 %v6210, 0.5
    %v6217 = vmul.f32 %v6213, 0.5
    %v6218 = vmul.f32 %v6210, 0.70710677
    %v6219 = vmul.f32 %v6213, 0.70710677
    %v6220 = vand.u32 2147483647, %v6218
    %v6221 = vand.u32 2147483647, %v6219
    %v6222 = vmul.f32 %v6220, 0.3275911
    %v6223 = vmul.f32 %v6221, 0.3275911
    %v6224 = vadd.f32 %v6222, 1.0
    %v6225 = vadd.f32 %v6223, 1.0
    %v6226 = vrcp.pop %v6224
    %v6227 = vmul.f32 1.0, %v6226
    %v6228 = vrcp.pop %v6225
    %v6229 = vmul.f32 1.0, %v6228
    %v6230 = vmul.f32 %v6227, 1.0614054
    %v6231 = vmul.f32 %v6229, 1.0614054
    %v6232 = vadd.f32 %v6230, -1.4531521
    %v6233 = vadd.f32 %v6231, -1.4531521
    %v6234 = vmul.f32 %v6232, %v6227
    %v6235 = vmul.f32 %v6233, %v6229
    %v6236 = vadd.f32 %v6234, 1.4214138
    %v6237 = vadd.f32 %v6235, 1.4214138
    %v6238 = vmul.f32 %v6236, %v6227
    %v6239 = vmul.f32 %v6237, %v6229
    %v6240 = vadd.f32 %v6238, -0.28449672
    %v6241 = vadd.f32 %v6239, -0.28449672
    %v6242 = vmul.f32 %v6240, %v6227
    %v6243 = vmul.f32 %v6241, %v6229
    %v6244 = vadd.f32 %v6242, 0.2548296
    %v6245 = vadd.f32 %v6243, 0.2548296
    %v6246 = vmul.f32 %v6244, %v6227
    %v6247 = vmul.f32 %v6245, %v6229
    %v6248 = vsub.f32 0.0, %v6220
    %v6249 = vsub.f32 0.0, %v6221
    %v6250 = vmul.f32 %v6248, %v6220
    %v6251 = vmul.f32 %v6249, %v6221
    %v6252 = vmul.f32 %v6250, 1.442695
    %v6253 = vpow.pop %v6252
    %v6254 = vmul.f32 %v6251, 1.442695
    %v6255 = vpow.pop %v6254
    %v6256 = vmul.f32 %v6246, %v6253
    %v6257 = vmul.f32 %v6247, %v6255
    %v6258 = vsub.f32 1.0, %v6256
    %v6259 = vsub.f32 1.0, %v6257
    %vm6260 = vcmp.ge.f32.partialorder %v6218, 0.0
    %vm6261 = vcmp.ge.f32.partialorder %v6219, 0.0
    %v6262 = vsub.f32 0.0, %v6258
    %v6263 = vsub.f32 0.0, %v6259
    %v6264 = vsel %vm6260, %v6258, %v6262
    %v6265 = vsel %vm6261, %v6259, %v6263
    %v6266 = vadd.f32 %v6264, 1.0
    %v6267 = vadd.f32 %v6265, 1.0
    %v6268 = vmul.f32 %v6216, %v6266
    %v6269 = vmul.f32 %v6217, %v6267
    %6270 = vadd.xlane.f32.xlu0 %v6268
    %v6271 = vpop.xlane.xlu0 %6270
    %6272 = vadd.xlane.f32.xlu0 %v6269
    %v6273 = vpop.xlane.xlu0 %6272
    %v6274 = vmul.f32 %v6268, %v6268
    %v6275 = vmul.f32 %v6269, %v6269
    %6276 = vadd.xlane.f32.xlu0 %v6274
    %v6277 = vpop.xlane.xlu0 %6276
    %6278 = vadd.xlane.f32.xlu0 %v6275
    %v6279 = vpop.xlane.xlu0 %6278
    %v6280 = vmul.f32 %v6271, 0.0078125
    %v6281 = vmul.f32 %v6273, 0.0078125
    %v6282 = vmul.f32 %v6277, 0.0078125
    %v6283 = vmul.f32 %v6279, 0.0078125
    %v6284 = vmul.f32 %v6280, %v6280
    %v6285 = vmul.f32 %v6281, %v6281
    %v6286 = vsub.f32 %v6282, %v6284
    %v6287 = vsub.f32 %v6283, %v6285
    %v6288 = vmax.f32 %v6286, 0.0
    %v6289 = vmax.f32 %v6287, 0.0
    %v6290 = vsub.f32 %v6268, %v6280
    %v6291 = vsub.f32 %v6269, %v6281
    %v6292 = vadd.f32 %v6288, 1e-05
    %v6293 = vadd.f32 %v6289, 1e-05
    %v6294 = vrsqrt.pop %v6292
    %v6295 = vrsqrt.pop %v6293
    %v6296 = vmul.f32 %v6290, %v6294
    %v6297 = vmul.f32 %v6291, %v6295
    %v6298 = vld [vmem:[%s6] sm:$0x1]
    %v6300 = vlaneseq
    %v6301 = vshrl.u32 %v6300, 7
    %v6302 = vsub.s32 0, %v6301
    %v6303 = vrot.slane %v6298, %v6302
    %v6305 = vmul.f32 %v6296, %v6303
    %v6306 = vmul.f32 %v6297, %v6303
    %v6307 = vld [vmem:[%s7] sm:$0x1]
    %v6309 = vlaneseq
    %v6310 = vshrl.u32 %v6309, 7
    %v6311 = vsub.s32 0, %v6310
    %v6312 = vrot.slane %v6307, %v6311
    %v6314 = vadd.f32 %v6305, %v6312
    %v6315 = vadd.f32 %v6306, %v6312
    %v6316 = vld [vmem:[%s8] sm:$0xf]
    %v6317 = vld [vmem:[%s8 + $0x4] sm:$0xf]
    %v6318 = vld [vmem:[%s8 + $0x8] sm:$0xf]
    %v6319 = vld [vmem:[%s8 + $0xc] sm:$0xf]
    %v6320 = vld [vmem:[%s8 + $0x10] sm:$0xf]
    %v6321 = vld [vmem:[%s8 + $0x14] sm:$0xf]
    %v6322 = vld [vmem:[%s8 + $0x18] sm:$0xf]
    %v6323 = vld [vmem:[%s8 + $0x1c] sm:$0xf]
    %v6324 = vld [vmem:[%s8 + $0x20] sm:$0xf]
    %v6325 = vld [vmem:[%s8 + $0x24] sm:$0xf]
    %v6326 = vld [vmem:[%s8 + $0x28] sm:$0xf]
    %v6327 = vld [vmem:[%s8 + $0x2c] sm:$0xf]
    %v6328 = vld [vmem:[%s8 + $0x30] sm:$0xf]
    %v6329 = vld [vmem:[%s8 + $0x34] sm:$0xf]
    %v6330 = vld [vmem:[%s8 + $0x38] sm:$0xf]
    %v6331 = vld [vmem:[%s8 + $0x3c] sm:$0xf]
    %v6332 = vpack.c.bf16 %v6315, %v6314
    %v6333 = vld [vmem:[%s9] sm:$0x1]
    %v6335 = vlaneseq
    %v6336 = vshrl.u32 %v6335, 7
    %v6337 = vsub.s32 0, %v6336
    %v6338 = vrot.slane %v6333, %v6337
    %v6356 = vunpack.c.l.b16 %v6316
    %v6357 = vunpack.c.l.b16 %v6317
    %v6358 = vunpack.c.l.b16 %v6318
    %v6359 = vunpack.c.l.b16 %v6319
    %v6360 = vunpack.c.l.b16 %v6320
    %v6361 = vunpack.c.l.b16 %v6321
    %v6362 = vunpack.c.l.b16 %v6322
    %v6363 = vunpack.c.l.b16 %v6323
    %v6364 = vunpack.c.l.b16 %v6324
    %v6365 = vunpack.c.l.b16 %v6325
    %v6366 = vunpack.c.l.b16 %v6326
    %v6367 = vunpack.c.l.b16 %v6327
    %v6368 = vunpack.c.l.b16 %v6328
    %v6369 = vunpack.c.l.b16 %v6329
    %v6370 = vunpack.c.l.b16 %v6330
    %v6371 = vunpack.c.l.b16 %v6331
    %v6372 = vpack.c.b16 %v6357, %v6356
    %v6373 = vpack.c.b16 %v6359, %v6358
    %v6374 = vpack.c.b16 %v6361, %v6360
    %v6375 = vpack.c.b16 %v6363, %v6362
    %v6376 = vpack.c.b16 %v6365, %v6364
    %v6377 = vpack.c.b16 %v6367, %v6366
    %v6378 = vpack.c.b16 %v6369, %v6368
    %v6379 = vpack.c.b16 %v6371, %v6370
    %6388 = vmatprep.subr.bf16.mxu0 0
    %6389 = vmatpush1.bf16.msra.mxu0 %v6379
    %6390 = vmatprep.subr.bf16.mxu0 0
    %6391 = vmatpush1.bf16.msra.mxu0 %v6378
    %6392 = vmatprep.subr.bf16.mxu0 0
    %6393 = vmatpush1.bf16.msra.mxu0 %v6377
    %6394 = vmatprep.subr.bf16.mxu0 0
    %6395 = vmatpush1.bf16.msra.mxu0 %v6376
    %6396 = vmatprep.subr.bf16.mxu0 0
    %6397 = vmatpush1.bf16.msra.mxu0 %v6375
    %6398 = vmatprep.subr.bf16.mxu0 0
    %6399 = vmatpush1.bf16.msra.mxu0 %v6374
    %6400 = vmatprep.subr.bf16.mxu0 0
    %6401 = vmatpush1.bf16.msra.mxu0 %v6373
    %6402 = vmatprep.subr.bf16.mxu0 0
    %6403 = vmatpush1.bf16.msra.mxu0 %v6372
    %6404 = vmatprep.subr.bf16.mxu0 0
    %6405 = vmatpush2.bf16.msra.mxu0 0
    %6406 = vmatprep.subr.bf16.mxu0 0
    %6407 = vmatpush2.bf16.msra.mxu0 0
    %6408 = vmatprep.subr.bf16.mxu0 0
    %6409 = vmatpush2.bf16.msra.mxu0 0
    %6410 = vmatprep.subr.bf16.mxu0 0
    %6411 = vmatpush2.bf16.msra.mxu0 0
    %6412 = vmatprep.subr.bf16.mxu0 0
    %6413 = vmatpush2.bf16.msra.mxu0 0
    %6414 = vmatprep.subr.bf16.mxu0 0
    %6415 = vmatpush2.bf16.msra.mxu0 0
    %6416 = vmatprep.subr.bf16.mxu0 0
    %6417 = vmatpush2.bf16.msra.mxu0 0
    %6418 = vmatprep.subr.bf16.mxu0 0
    %6419 = vmatpush2.bf16.msra.mxu0 0
    %6420 = vmatprep.mubr.bf16.mxu0 0
    %6421 = vmatmul.mubr.bf16.gmra.mxu0 %v6332
    %v6422 = vpop.f32.mrf.mxu0
    %v6423 = vadd.f32 %v6338, %v6422
    %v6424 = vpop.f32.mrf.mxu0
    %v6425 = vpop.f32.mrf.mxu0
    %v6426 = vadd.f32 %v6338, %v6425
    %v6427 = vpop.f32.mrf.mxu0
    %6428 = vdwg.mxu0
    %v6429 = vmul.f32 %v6423, 0.5
    %v6430 = vmul.f32 %v6426, 0.5
    %v6431 = vmul.f32 %v6423, 0.70710677
    %v6432 = vmul.f32 %v6426, 0.70710677
    %v6433 = vand.u32 2147483647, %v6431
    %v6434 = vand.u32 2147483647, %v6432
    %v6435 = vmul.f32 %v6433, 0.3275911
    %v6436 = vmul.f32 %v6434, 0.3275911
    %v6437 = vadd.f32 %v6435, 1.0
    %v6438 = vadd.f32 %v6436, 1.0
    %v6439 = vrcp.pop %v6437
    %v6440 = vmul.f32 1.0, %v6439
    %v6441 = vrcp.pop %v6438
    %v6442 = vmul.f32 1.0, %v6441
    %v6443 = vmul.f32 %v6440, 1.0614054
    %v6444 = vmul.f32 %v6442, 1.0614054
    %v6445 = vadd.f32 %v6443, -1.4531521
    %v6446 = vadd.f32 %v6444, -1.4531521
    %v6447 = vmul.f32 %v6445, %v6440
    %v6448 = vmul.f32 %v6446, %v6442
    %v6449 = vadd.f32 %v6447, 1.4214138
    %v6450 = vadd.f32 %v6448, 1.4214138
    %v6451 = vmul.f32 %v6449, %v6440
    %v6452 = vmul.f32 %v6450, %v6442
    %v6453 = vadd.f32 %v6451, -0.28449672
    %v6454 = vadd.f32 %v6452, -0.28449672
    %v6455 = vmul.f32 %v6453, %v6440
    %v6456 = vmul.f32 %v6454, %v6442
    %v6457 = vadd.f32 %v6455, 0.2548296
    %v6458 = vadd.f32 %v6456, 0.2548296
    %v6459 = vmul.f32 %v6457, %v6440
    %v6460 = vmul.f32 %v6458, %v6442
    %v6461 = vsub.f32 0.0, %v6433
    %v6462 = vsub.f32 0.0, %v6434
    %v6463 = vmul.f32 %v6461, %v6433
    %v6464 = vmul.f32 %v6462, %v6434
    %v6465 = vmul.f32 %v6463, 1.442695
    %v6466 = vpow.pop %v6465
    %v6467 = vmul.f32 %v6464, 1.442695
    %v6468 = vpow.pop %v6467
    %v6469 = vmul.f32 %v6459, %v6466
    %v6470 = vmul.f32 %v6460, %v6468
    %v6471 = vsub.f32 1.0, %v6469
    %v6472 = vsub.f32 1.0, %v6470
    %vm6473 = vcmp.ge.f32.partialorder %v6431, 0.0
    %vm6474 = vcmp.ge.f32.partialorder %v6432, 0.0
    %v6475 = vsub.f32 0.0, %v6471
    %v6476 = vsub.f32 0.0, %v6472
    %v6477 = vsel %vm6473, %v6471, %v6475
    %v6478 = vsel %vm6474, %v6472, %v6476
    %v6479 = vadd.f32 %v6477, 1.0
    %v6480 = vadd.f32 %v6478, 1.0
    %v6481 = vmul.f32 %v6429, %v6479
    %v6482 = vmul.f32 %v6430, %v6480
    %v6483 = vsel %vm2213, %v6481, 0.0
    %6484 = vadd.xlane.f32.xlu0 %v6483
    %v6485 = vpop.xlane.xlu0 %6484
    %v6486 = vsel %vm2213, %v6482, 0.0
    %6487 = vadd.xlane.f32.xlu0 %v6486
    %v6488 = vpop.xlane.xlu0 %6487
    %v6489 = vmul.f32 %v6481, %v6481
    %v6490 = vmul.f32 %v6482, %v6482
    %v6491 = vsel %vm2213, %v6489, 0.0
    %6492 = vadd.xlane.f32.xlu0 %v6491
    %v6493 = vpop.xlane.xlu0 %6492
    %v6494 = vsel %vm2213, %v6490, 0.0
    %6495 = vadd.xlane.f32.xlu0 %v6494
    %v6496 = vpop.xlane.xlu0 %6495
    %v6497 = vmul.f32 %v6485, 0.015625
    %v6498 = vmul.f32 %v6488, 0.015625
    %v6499 = vmul.f32 %v6493, 0.015625
    %v6500 = vmul.f32 %v6496, 0.015625
    %v6501 = vmul.f32 %v6497, %v6497
    %v6502 = vmul.f32 %v6498, %v6498
    %v6503 = vsub.f32 %v6499, %v6501
    %v6504 = vsub.f32 %v6500, %v6502
    %v6505 = vmax.f32 %v6503, 0.0
    %v6506 = vmax.f32 %v6504, 0.0
    %v6507 = vsub.f32 %v6481, %v6497
    %v6508 = vsub.f32 %v6482, %v6498
    %v6509 = vadd.f32 %v6505, 1e-05
    %v6510 = vadd.f32 %v6506, 1e-05
    %v6511 = vrsqrt.pop %v6509
    %v6512 = vrsqrt.pop %v6510
    %v6513 = vmul.f32 %v6507, %v6511
    %v6514 = vmul.f32 %v6508, %v6512
    %v6515 = vld [vmem:[%s10] sm:$0x1]
    %v6517 = vlaneseq
    %v6518 = vshrl.u32 %v6517, 7
    %v6519 = vsub.s32 0, %v6518
    %v6520 = vrot.slane %v6515, %v6519
    %v6522 = vmul.f32 %v6513, %v6520
    %v6523 = vmul.f32 %v6514, %v6520
    %v6524 = vld [vmem:[%s11] sm:$0x1]
    %v6526 = vlaneseq
    %v6527 = vshrl.u32 %v6526, 7
    %v6528 = vsub.s32 0, %v6527
    %v6529 = vrot.slane %v6524, %v6528
    %v6531 = vadd.f32 %v6522, %v6529
    %v6532 = vadd.f32 %v6523, %v6529
    %v6533 = vld [vmem:[%s12] sm:$0xf]
    %v6534 = vld [vmem:[%s12 + $0x4] sm:$0xf]
    %v6535 = vld [vmem:[%s12 + $0x8] sm:$0xf]
    %v6536 = vld [vmem:[%s12 + $0xc] sm:$0xf]
    %v6537 = vld [vmem:[%s12 + $0x10] sm:$0xf]
    %v6538 = vld [vmem:[%s12 + $0x14] sm:$0xf]
    %v6539 = vld [vmem:[%s12 + $0x18] sm:$0xf]
    %v6540 = vld [vmem:[%s12 + $0x1c] sm:$0xf]
    %v6541 = vpack.c.bf16 %v6532, %v6531
    %v6542 = vld [vmem:[%s13] sm:$0x1]
    %v6544 = vlaneseq
    %v6545 = vshrl.u32 %v6544, 7
    %v6546 = vsub.s32 0, %v6545
    %v6547 = vrot.slane %v6542, %v6546
    %v6557 = vunpack.c.l.b16 %v6533
    %v6558 = vunpack.c.l.b16 %v6534
    %v6559 = vunpack.c.l.b16 %v6535
    %v6560 = vunpack.c.l.b16 %v6536
    %v6561 = vunpack.c.l.b16 %v6537
    %v6562 = vunpack.c.l.b16 %v6538
    %v6563 = vunpack.c.l.b16 %v6539
    %v6564 = vunpack.c.l.b16 %v6540
    %v6565 = vpack.c.b16 %v6558, %v6557
    %v6566 = vpack.c.b16 %v6560, %v6559
    %v6567 = vpack.c.b16 %v6562, %v6561
    %v6568 = vpack.c.b16 %v6564, %v6563
    %v6574 = vsel %vm2213, %v6541, 0
    %6576 = vmatprep.subr.bf16.mxu0 0
    %6577 = vmatpush1.bf16.msra.mxu0 0
    %6578 = vmatprep.subr.bf16.mxu0 0
    %6579 = vmatpush1.bf16.msra.mxu0 0
    %6580 = vmatprep.subr.bf16.mxu0 0
    %6581 = vmatpush1.bf16.msra.mxu0 0
    %6582 = vmatprep.subr.bf16.mxu0 0
    %6583 = vmatpush1.bf16.msra.mxu0 0
    %6584 = vmatprep.subr.bf16.mxu0 0
    %6585 = vmatpush1.bf16.msra.mxu0 %v6568
    %6586 = vmatprep.subr.bf16.mxu0 0
    %6587 = vmatpush1.bf16.msra.mxu0 %v6567
    %6588 = vmatprep.subr.bf16.mxu0 0
    %6589 = vmatpush1.bf16.msra.mxu0 %v6566
    %6590 = vmatprep.subr.bf16.mxu0 0
    %6591 = vmatpush1.bf16.msra.mxu0 %v6565
    %6592 = vmatprep.subr.bf16.mxu0 0
    %6593 = vmatpush2.bf16.msra.mxu0 0
    %6594 = vmatprep.subr.bf16.mxu0 0
    %6595 = vmatpush2.bf16.msra.mxu0 0
    %6596 = vmatprep.subr.bf16.mxu0 0
    %6597 = vmatpush2.bf16.msra.mxu0 0
    %6598 = vmatprep.subr.bf16.mxu0 0
    %6599 = vmatpush2.bf16.msra.mxu0 0
    %6600 = vmatprep.subr.bf16.mxu0 0
    %6601 = vmatpush2.bf16.msra.mxu0 0
    %6602 = vmatprep.subr.bf16.mxu0 0
    %6603 = vmatpush2.bf16.msra.mxu0 0
    %6604 = vmatprep.subr.bf16.mxu0 0
    %6605 = vmatpush2.bf16.msra.mxu0 0
    %6606 = vmatprep.subr.bf16.mxu0 0
    %6607 = vmatpush2.bf16.msra.mxu0 0
    %6608 = vmatprep.mubr.bf16.mxu0 0
    %6609 = vmatmul.mubr.bf16.gmra.mxu0 %v6574
    %v6610 = vpop.f32.mrf.mxu0
    %v6611 = vadd.f32 %v6547, %v6610
    %v6612 = vpop.f32.mrf.mxu0
    %v6613 = vpop.f32.mrf.mxu0
    %v6614 = vadd.f32 %v6547, %v6613
    %v6615 = vpop.f32.mrf.mxu0
    %6616 = vdwg.mxu0
    %vm6617 = vcmask 261120
    %v6618 = vsel %vm6617, %v6611, -inf
    %6619 = vmax.xlane.f32.xlu0 %v6618
    %v6620 = vpop.xlane.xlu0 %6619
    %v6621 = vsel %vm6617, %v6614, -inf
    %6622 = vmax.xlane.f32.xlu0 %v6621
    %v6623 = vpop.xlane.xlu0 %6622
    %v6624 = vsub.f32 %v6611, %v6620
    %v6625 = vsub.f32 %v6614, %v6623
    %v6626 = vmul.f32 %v6624, 1.442695
    %v6627 = vpow.pop %v6626
    %v6628 = vmul.f32 %v6625, 1.442695
    %v6629 = vpow.pop %v6628
    %v6630 = vsel %vm6617, %v6627, 0.0
    %6631 = vadd.xlane.f32.xlu0 %v6630
    %v6632 = vpop.xlane.xlu0 %6631
    %v6633 = vsel %vm6617, %v6629, 0.0
    %6634 = vadd.xlane.f32.xlu0 %v6633
    %v6635 = vpop.xlane.xlu0 %6634
    %v6636 = vrcp.pop %v6632
    %v6637 = vmul.f32 %v6627, %v6636
    %v6638 = vrcp.pop %v6635
    %v6639 = vmul.f32 %v6629, %v6638
    %6640 = vst.msk [vmem:[#allocation2] sm:$0xff] %vm6617, %v6637
    %6641 = vst.msk [vmem:[#allocation2 + $0x8] sm:$0xff] %vm6617, %v6639
    // Predicated region
    $region58: #{space_group_nn_forward.1} parent=1 // pred_check
      _
    $region59: #{space_group_nn_forward.1} parent=1 // pred_check_branch
      %6643 = sbr.rel (0) target = $region61
    $region60: #{space_group_nn_forward.1} parent=1 // pred_region
      %s6645 = ssub.s32 256, 256
      %6646 = vsyncadd [#allocation3], %s6645
      %s6647 = sshll.u32 [#allocation2], 4
      %s6648 = int_to_ptr.vmem [resolvable:$true] %s6647
      %6653 = dma.vmem_to_hbm [thread:$0]  %s6648, 256, %s14, [#allocation3], 128, 128, 8
    $region61: #{space_group_nn_forward.1} parent=1 // pred_fallthru
      _
    // Predicated region
    $region62: #{space_group_nn_forward.1} parent=1 // pred_check
      _
    $region63: #{space_group_nn_forward.1} parent=1 // pred_check_branch
      %6655 = sbr.rel (0) target = $region65
    $region64: #{space_group_nn_forward.1} parent=1 // pred_region
      %6656 = dma.done [#allocation3], 256
    $region65: #{space_group_nn_forward.1} parent=1 // pred_fallthru
      _
    %6657 = vsyncpa [#allocation3], 1

</llo_original>
